<compile_context>
chip_gen: v6e
topology: v6e:2x2x1
jax: 0.10.0
libtpu: 0.0.40
codegen_flags: <defaults>
</compile_context>

<pallas_src>
import functools

import jax
import jax.numpy as jnp
from jax.experimental import pallas as pl
from jax.experimental.pallas import tpu as pltpu

BN_EPS = 1e-5     # torch.nn.BatchNorm default eps
L2_EPS = 1e-12    # torch.nn.functional.normalize default eps

K_PAD = 128       # im2col K (9*C_in = 36) zero-padded to a full 128-lane row
STEM_C = 128      # lane-dense stem width (>=128 lanes -> unmasked stores)
FEAT_C = 2048     # ResNet-50 feature width
HID = 512         # projection hidden dim
OUT_DIM = 128     # projection output dim
TILE_F = 1024     # feature tile: 2 tiles -> one per v7x TensorCore, tiny VMEM
VMEM_LIMIT = 32 * 1024 * 1024


# ----------------------------------------------------------------------------
# Pallas kernels
# ----------------------------------------------------------------------------
def _backbone_kernel(cols_ref, sw_ref, sg_ref, sbt_ref,
                     ew_ref, eg_ref, ebt_ref, o_ref,
                     *, inv_m, n_img, hw, inv_hw):
    """Stem conv + BN + ReLU -> 1x1 expansion + BN + ReLU -> global avg pool.

    Runs once per feature-channel tile.  The (cheap) stem matmul is recomputed
    per tile so every grid step is fully independent -> safe under "parallel"
    dimension semantics (megacore) with no cross-iteration scratch.
    """
    # ---- stem: im2col matmul, bf16 inputs / f32 accumulation ----
    # (pre-BN conv bias omitted: exactly cancelled by BN mean subtraction)
    a = jnp.dot(cols_ref[...], sw_ref[...], preferred_element_type=jnp.float32)
    # single-pass batch statistics over all M = N*H*W rows (torch BN train mode)
    mean = jnp.sum(a, axis=0, keepdims=True) * inv_m
    var = jnp.sum(a * a, axis=0, keepdims=True) * inv_m - mean * mean
    scale = sg_ref[...] * jax.lax.rsqrt(var + BN_EPS)     # fold BN into 1 FMA
    shift = sbt_ref[...] - mean * scale
    a = jnp.maximum(a * scale + shift, 0.0)

    # ---- 1x1 expansion to this feature tile ----
    y = jnp.dot(a.astype(jnp.bfloat16), ew_ref[...],
                preferred_element_type=jnp.float32)
    mean2 = jnp.sum(y, axis=0, keepdims=True) * inv_m
    var2 = jnp.sum(y * y, axis=0, keepdims=True) * inv_m - mean2 * mean2
    scale2 = eg_ref[...] * jax.lax.rsqrt(var2 + BN_EPS)
    shift2 = ebt_ref[...] - mean2 * scale2
    y = jnp.maximum(y * scale2 + shift2, 0.0)

    # ---- fused global average pool: reshape-reduce on VPU/XLU (no MXU) ----
    pooled = jnp.sum(y.reshape(n_img, hw, y.shape[1]), axis=1) * inv_hw
    o_ref[...] = pooled.astype(jnp.bfloat16)               # bf16 feature writeback


def backbone_forward(cols, p, n_img, hw):
    """cols: (M, K_PAD) bf16 -> (N, FEAT_C) bf16 features."""
    M = cols.shape[0]
    assert M == n_img * hw and FEAT_C % TILE_F == 0
    n_tiles = FEAT_C // TILE_F
    kern = functools.partial(_backbone_kernel, inv_m=1.0 / M,
                             n_img=n_img, hw=hw, inv_hw=1.0 / hw)

    const = lambda j: (0, 0)
    tile_col = lambda j: (0, j)

    flops = int(n_tiles * 2 * M * K_PAD * STEM_C      # stem recomputed per tile
                + 2 * M * STEM_C * FEAT_C             # 1x1 expansion
                + M * FEAT_C)                         # fused pooling reduction
    bytes_accessed = int(M * K_PAD * 2 + K_PAD * STEM_C * 2 + 2 * STEM_C * 4
                         + STEM_C * FEAT_C * 2 + 2 * FEAT_C * 4
                         + n_img * FEAT_C * 2)

    return pl.pallas_call(
        kern,
        out_shape=jax.ShapeDtypeStruct((n_img, FEAT_C), jnp.bfloat16),
        grid_spec=pltpu.PrefetchScalarGridSpec(
            num_scalar_prefetch=0,
            grid=(n_tiles,),
            in_specs=[
                pl.BlockSpec((M, K_PAD), const),           # im2col cols (bf16)
                pl.BlockSpec((K_PAD, STEM_C), const),      # stem weights (bf16)
                pl.BlockSpec((1, STEM_C), const),          # stem BN gamma
                pl.BlockSpec((1, STEM_C), const),          # stem BN beta
                pl.BlockSpec((STEM_C, TILE_F), tile_col),  # expansion W tile
                pl.BlockSpec((1, TILE_F), tile_col),       # expansion BN gamma
                pl.BlockSpec((1, TILE_F), tile_col),       # expansion BN beta
            ],
            out_specs=pl.BlockSpec((n_img, TILE_F), tile_col),
        ),
        compiler_params=pltpu.CompilerParams(
            dimension_semantics=("parallel",),
            vmem_limit_bytes=VMEM_LIMIT),
        cost_estimate=pl.CostEstimate(
            flops=flops,
            transcendentals=n_tiles * STEM_C + FEAT_C,
            bytes_accessed=bytes_accessed),
    )(cols,
      p["stem_w"],
      p["stem_g"].reshape(1, STEM_C),
      p["stem_bt"].reshape(1, STEM_C),
      p["exp_w"],
      p["exp_g"].reshape(1, FEAT_C),
      p["exp_bt"].reshape(1, FEAT_C))


def _projector_kernel(h_ref, w1_ref, g_ref, beta_ref, w2_ref, b2_ref,
                      z_ref, *, inv_n):
    # Linear(in_dim, hidden): bf16 features x bf16 weights, f32 accumulation.
    # (Linear1 bias omitted: exactly cancelled by the following train-mode BN.)
    a = jnp.dot(h_ref[...], w1_ref[...], preferred_element_type=jnp.float32)
    # BatchNorm1d(hidden) in training mode: single-pass batch stats over dim 0,
    # folded into one scale + shift per channel.
    mean = jnp.sum(a, axis=0, keepdims=True) * inv_n
    var = jnp.sum(a * a, axis=0, keepdims=True) * inv_n - mean * mean
    scale = g_ref[...] * jax.lax.rsqrt(var + BN_EPS)
    shift = beta_ref[...] - mean * scale
    # BN apply + ReLU
    a = jnp.maximum(a * scale + shift, 0.0)
    # Linear(hidden, out_dim)
    y = jnp.dot(a.astype(jnp.bfloat16), w2_ref[...],
                preferred_element_type=jnp.float32) + b2_ref[...]
    # F.normalize(y, dim=1): y / max(||y||, eps) == y * rsqrt(max(||y||^2, eps^2))
    ssq = jnp.sum(y * y, axis=1, keepdims=True)
    z_ref[...] = y * jax.lax.rsqrt(jnp.maximum(ssq, L2_EPS * L2_EPS))


def projection_head(h, p):
    N = h.shape[0]
    kern = functools.partial(_projector_kernel, inv_n=1.0 / N)
    flops = int(2 * N * FEAT_C * HID + 2 * N * HID * OUT_DIM)
    bytes_accessed = int(N * FEAT_C * 2 + FEAT_C * HID * 2 + HID * OUT_DIM * 2
                         + 2 * HID * 4 + OUT_DIM * 4 + N * OUT_DIM * 4)
    vmem_spec = pl.BlockSpec(memory_space=pltpu.MemorySpace.VMEM)
    return pl.pallas_call(
        kern,
        out_shape=jax.ShapeDtypeStruct((N, OUT_DIM), jnp.float32),
        in_specs=[vmem_spec] * 6,
        out_specs=vmem_spec,
        compiler_params=pltpu.CompilerParams(vmem_limit_bytes=VMEM_LIMIT),
        cost_estimate=pl.CostEstimate(
            flops=flops, transcendentals=HID + N, bytes_accessed=bytes_accessed),
    )(h,
      p["w1"],
      p["g1"].reshape(1, HID),
      p["bt1"].reshape(1, HID),
      p["w2"],
      p["b2"].reshape(1, OUT_DIM))


# ----------------------------------------------------------------------------
# Plain-JAX glue (layout plumbing only, no hot-path compute)
# ----------------------------------------------------------------------------
def im2col_3x3(x_nhwc):
    """Same-padded 3x3 patches: (N,H,W,C) -> (N*H*W, K_PAD), K zero-padded."""
    N, H, W, C = x_nhwc.shape
    xp = jnp.pad(x_nhwc, ((0, 0), (1, 1), (1, 1), (0, 0)))
    cols = [xp[:, dh:dh + H, dw:dw + W, :] for dh in range(3) for dw in range(3)]
    cols = jnp.concatenate(cols, axis=-1).reshape(N * H * W, 9 * C)
    k = cols.shape[1]
    if k < K_PAD:
        cols = jnp.pad(cols, ((0, 0), (0, K_PAD - k)))   # lane-friendly K
    return cols


def init_params(key, c_in=4):
    ks = jax.random.split(key, 4)
    p = {}
    # backbone stem: 3x3 conv stored directly in im2col (K_PAD, STEM_C) layout;
    # rows >= 9*c_in multiply zero-padded im2col columns and are inert.
    # Matmul weights are stored in bf16 once at init (no per-forward casts);
    # conv/linear biases that precede a train-mode BN are omitted (BN cancels
    # them exactly), matching torchvision's bias=False convention.
    p["stem_w"] = (0.05 * jax.random.normal(ks[0], (K_PAD, STEM_C),
                                            jnp.float32)).astype(jnp.bfloat16)
    p["stem_g"] = jnp.ones((STEM_C,), jnp.float32)
    p["stem_bt"] = jnp.zeros((STEM_C,), jnp.float32)
    # backbone expansion: 1x1 conv to the ResNet-50 feature width (2048)
    p["exp_w"] = (0.05 * jax.random.normal(ks[1], (STEM_C, FEAT_C),
                                           jnp.float32)).astype(jnp.bfloat16)
    p["exp_g"] = jnp.ones((FEAT_C,), jnp.float32)
    p["exp_bt"] = jnp.zeros((FEAT_C,), jnp.float32)
    # projection head: Linear(2048,512) -> BN -> ReLU -> Linear(512,128)
    p["w1"] = (0.02 * jax.random.normal(ks[2], (FEAT_C, HID),
                                        jnp.float32)).astype(jnp.bfloat16)
    p["g1"] = jnp.ones((HID,), jnp.float32)
    p["bt1"] = jnp.zeros((HID,), jnp.float32)
    p["w2"] = (0.05 * jax.random.normal(ks[3], (HID, OUT_DIM),
                                        jnp.float32)).astype(jnp.bfloat16)
    p["b2"] = jnp.zeros((OUT_DIM,), jnp.float32)
    return p


@jax.jit
def simclr_forward(params, x_nchw):
    # NCHW (PyTorch) -> NHWC
    x = jnp.transpose(x_nchw, (0, 2, 3, 1)).astype(jnp.float32)
    N, H, W, _ = x.shape
    HW = H * W

    # im2col + bf16 cast at the kernel boundary (f32 accumulation in-kernel)
    cols = im2col_3x3(x).astype(jnp.bfloat16)               # (N*H*W, K_PAD)

    # ---- backbone (scaled-down stand-in for resnet50 w/ fc=Identity) ----
    h = backbone_forward(cols, params, N, HW)                # (N, 2048) bf16

    # ---- ProjectionHead: Linear -> BN -> ReLU -> Linear -> L2 normalize ----
    z = projection_head(h, params)                           # (N, 128) f32
    return z


if __name__ == "__main__":
    key = jax.random.PRNGKey(0)
    k_param, k_x = jax.random.split(key)
    params = init_params(k_param)
    # Small synthetic NCHW image batch: batch=2, channels=4, spatial=16x16
    x = jax.random.normal(k_x, (2, 4, 16, 16), jnp.float32)

    z = simclr_forward(params, x)
    z = jax.block_until_ready(z)

    assert z.shape == (2, 128)
    assert bool(jnp.all(jnp.isfinite(z)))
    # L2-normalized rows
    assert bool(jnp.allclose(jnp.linalg.norm(z, axis=1), 1.0, atol=1e-3))
    print("KERNEL_OK")
</pallas_src>

<mosaic_0001>
module attributes {stable_mosaic.version = 11 : i64} {
  func.func @_backbone_kernel(%arg0: i32, %arg1: memref<512x128xbf16, #tpu.memory_space<vmem>>, %arg2: memref<128x128xbf16, #tpu.memory_space<vmem>>, %arg3: memref<1x128xf32, #tpu.memory_space<vmem>>, %arg4: memref<1x128xf32, #tpu.memory_space<vmem>>, %arg5: memref<128x1024xbf16, #tpu.memory_space<vmem>>, %arg6: memref<1x1024xf32, #tpu.memory_space<vmem>>, %arg7: memref<1x1024xf32, #tpu.memory_space<vmem>>, %arg8: memref<2x1024xbf16, #tpu.memory_space<vmem>>) attributes {dimension_semantics = [#tpu.dimension_semantics<parallel>], iteration_bounds = array<i64: 2>, scalar_prefetch = 0 : i64, scratch_operands = 0 : i64, tpu.core_type = #tpu.core_type<tc>, window_params = [{pipeline_mode = #tpu.pipeline_mode<synchronous>, transform_indices = @transform_0, window_bounds = array<i64: 512, 128>}, {pipeline_mode = #tpu.pipeline_mode<synchronous>, transform_indices = @transform_1, window_bounds = array<i64: 128, 128>}, {pipeline_mode = #tpu.pipeline_mode<synchronous>, transform_indices = @transform_2, window_bounds = array<i64: 1, 128>}, {pipeline_mode = #tpu.pipeline_mode<synchronous>, transform_indices = @transform_3, window_bounds = array<i64: 1, 128>}, {transform_indices = @transform_4, window_bounds = array<i64: 128, 1024>}, {transform_indices = @transform_5, window_bounds = array<i64: 1, 1024>}, {transform_indices = @transform_6, window_bounds = array<i64: 1, 1024>}, {transform_indices = @transform_7, window_bounds = array<i64: 2, 1024>}]} {
    %c0 = arith.constant 0 : index
    %c0_0 = arith.constant 0 : index
    %0 = vector.load %arg1[%c0, %c0_0] : memref<512x128xbf16, #tpu.memory_space<vmem>>, vector<512x128xbf16>
    %c0_1 = arith.constant 0 : index
    %c0_2 = arith.constant 0 : index
    %1 = vector.load %arg2[%c0_1, %c0_2] : memref<128x128xbf16, #tpu.memory_space<vmem>>, vector<128x128xbf16>
    %cst = arith.constant dense<0.000000e+00> : vector<512x128xf32>
    %2 = tpu.matmul %0, %1, %cst {dimension_numbers = #tpu.dot_dimension_numbers<[1], [0], [0], [1], [0, 0, 1, 1], [], []>} : vector<512x128xbf16>, vector<128x128xbf16>, vector<512x128xf32> -> vector<512x128xf32>
    %cst_3 = arith.constant dense<0.000000e+00> : vector<128xf32>
    %3 = vector.multi_reduction <add>, %2, %cst_3 [0] : vector<512x128xf32> to vector<128xf32>
    %4 = vector.shape_cast %3 : vector<128xf32> to vector<1x128xf32>
    %cst_4 = arith.constant 0.001953125 : f32
    %5 = vector.broadcast %cst_4 : f32 to vector<1x128xf32>
    %6 = arith.mulf %4, %5 : vector<1x128xf32>
    %7 = arith.mulf %2, %2 : vector<512x128xf32>
    %cst_5 = arith.constant dense<0.000000e+00> : vector<128xf32>
    %8 = vector.multi_reduction <add>, %7, %cst_5 [0] : vector<512x128xf32> to vector<128xf32>
    %9 = vector.shape_cast %8 : vector<128xf32> to vector<1x128xf32>
    %cst_6 = arith.constant 0.001953125 : f32
    %10 = vector.broadcast %cst_6 : f32 to vector<1x128xf32>
    %11 = arith.mulf %9, %10 : vector<1x128xf32>
    %12 = arith.mulf %6, %6 : vector<1x128xf32>
    %13 = arith.subf %11, %12 : vector<1x128xf32>
    %c0_7 = arith.constant 0 : index
    %c0_8 = arith.constant 0 : index
    %14 = vector.load %arg3[%c0_7, %c0_8] : memref<1x128xf32, #tpu.memory_space<vmem>>, vector<1x128xf32>
    %cst_9 = arith.constant 9.99999974E-6 : f32
    %15 = vector.broadcast %cst_9 : f32 to vector<1x128xf32>
    %16 = arith.addf %13, %15 : vector<1x128xf32>
    %17 = math.rsqrt %16 : vector<1x128xf32>
    %18 = arith.mulf %14, %17 : vector<1x128xf32>
    %c0_10 = arith.constant 0 : index
    %c0_11 = arith.constant 0 : index
    %19 = vector.load %arg4[%c0_10, %c0_11] : memref<1x128xf32, #tpu.memory_space<vmem>>, vector<1x128xf32>
    %20 = arith.mulf %6, %18 : vector<1x128xf32>
    %21 = arith.subf %19, %20 : vector<1x128xf32>
    %22 = vector.broadcast %18 : vector<1x128xf32> to vector<512x128xf32>
    %23 = arith.mulf %2, %22 : vector<512x128xf32>
    %24 = vector.broadcast %21 : vector<1x128xf32> to vector<512x128xf32>
    %25 = arith.addf %23, %24 : vector<512x128xf32>
    %cst_12 = arith.constant 0.000000e+00 : f32
    %26 = vector.broadcast %cst_12 : f32 to vector<512x128xf32>
    %27 = arith.maximumf %25, %26 : vector<512x128xf32>
    %28 = arith.truncf %27 : vector<512x128xf32> to vector<512x128xbf16>
    %c0_13 = arith.constant 0 : index
    %c0_14 = arith.constant 0 : index
    %29 = vector.load %arg5[%c0_13, %c0_14] : memref<128x1024xbf16, #tpu.memory_space<vmem>>, vector<128x1024xbf16>
    %cst_15 = arith.constant dense<0.000000e+00> : vector<512x1024xf32>
    %30 = tpu.matmul %28, %29, %cst_15 {dimension_numbers = #tpu.dot_dimension_numbers<[1], [0], [0], [1], [0, 0, 1, 1], [], []>} : vector<512x128xbf16>, vector<128x1024xbf16>, vector<512x1024xf32> -> vector<512x1024xf32>
    %cst_16 = arith.constant dense<0.000000e+00> : vector<1024xf32>
    %31 = vector.multi_reduction <add>, %30, %cst_16 [0] : vector<512x1024xf32> to vector<1024xf32>
    %32 = vector.shape_cast %31 : vector<1024xf32> to vector<1x1024xf32>
    %cst_17 = arith.constant 0.001953125 : f32
    %33 = vector.broadcast %cst_17 : f32 to vector<1x1024xf32>
    %34 = arith.mulf %32, %33 : vector<1x1024xf32>
    %35 = arith.mulf %30, %30 : vector<512x1024xf32>
    %cst_18 = arith.constant dense<0.000000e+00> : vector<1024xf32>
    %36 = vector.multi_reduction <add>, %35, %cst_18 [0] : vector<512x1024xf32> to vector<1024xf32>
    %37 = vector.shape_cast %36 : vector<1024xf32> to vector<1x1024xf32>
    %cst_19 = arith.constant 0.001953125 : f32
    %38 = vector.broadcast %cst_19 : f32 to vector<1x1024xf32>
    %39 = arith.mulf %37, %38 : vector<1x1024xf32>
    %40 = arith.mulf %34, %34 : vector<1x1024xf32>
    %41 = arith.subf %39, %40 : vector<1x1024xf32>
    %c0_20 = arith.constant 0 : index
    %c0_21 = arith.constant 0 : index
    %42 = vector.load %arg6[%c0_20, %c0_21] : memref<1x1024xf32, #tpu.memory_space<vmem>>, vector<1x1024xf32>
    %cst_22 = arith.constant 9.99999974E-6 : f32
    %43 = vector.broadcast %cst_22 : f32 to vector<1x1024xf32>
    %44 = arith.addf %41, %43 : vector<1x1024xf32>
    %45 = math.rsqrt %44 : vector<1x1024xf32>
    %46 = arith.mulf %42, %45 : vector<1x1024xf32>
    %c0_23 = arith.constant 0 : index
    %c0_24 = arith.constant 0 : index
    %47 = vector.load %arg7[%c0_23, %c0_24] : memref<1x1024xf32, #tpu.memory_space<vmem>>, vector<1x1024xf32>
    %48 = arith.mulf %34, %46 : vector<1x1024xf32>
    %49 = arith.subf %47, %48 : vector<1x1024xf32>
    %50 = vector.broadcast %46 : vector<1x1024xf32> to vector<512x1024xf32>
    %51 = arith.mulf %30, %50 : vector<512x1024xf32>
    %52 = vector.broadcast %49 : vector<1x1024xf32> to vector<512x1024xf32>
    %53 = arith.addf %51, %52 : vector<512x1024xf32>
    %cst_25 = arith.constant 0.000000e+00 : f32
    %54 = vector.broadcast %cst_25 : f32 to vector<512x1024xf32>
    %55 = arith.maximumf %53, %54 : vector<512x1024xf32>
    %56 = vector.shape_cast %55 : vector<512x1024xf32> to vector<2x256x1024xf32>
    %cst_26 = arith.constant dense<0.000000e+00> : vector<2x1024xf32>
    %57 = vector.multi_reduction <add>, %56, %cst_26 [1] : vector<2x256x1024xf32> to vector<2x1024xf32>
    %cst_27 = arith.constant 3.906250e-03 : f32
    %58 = vector.broadcast %cst_27 : f32 to vector<2x1024xf32>
    %59 = arith.mulf %57, %58 : vector<2x1024xf32>
    %60 = arith.truncf %59 : vector<2x1024xf32> to vector<2x1024xbf16>
    %c0_28 = arith.constant 0 : index
    %c0_29 = arith.constant 0 : index
    %61 = vector.load %arg8[%c0_28, %c0_29] : memref<2x1024xbf16, #tpu.memory_space<vmem>>, vector<2x1024xbf16>
    tpu.vector_store %arg8[%c0_28, %c0_29], %60 {strides = array<i32>} : memref<2x1024xbf16, #tpu.memory_space<vmem>>, vector<2x1024xbf16>,
    return
  }
  func.func @transform_0(%arg0: i32) -> (i32, i32) {
    %c0_i32 = arith.constant 0 : i32
    %c0_i32_0 = arith.constant 0 : i32
    %c0_i32_1 = arith.constant 0 : i32
    return %c0_i32, %c0_i32_0 : i32, i32
  }
  func.func @transform_1(%arg0: i32) -> (i32, i32) {
    %c0_i32 = arith.constant 0 : i32
    %c0_i32_0 = arith.constant 0 : i32
    %c0_i32_1 = arith.constant 0 : i32
    return %c0_i32, %c0_i32_0 : i32, i32
  }
  func.func @transform_2(%arg0: i32) -> (i32, i32) {
    %c0_i32 = arith.constant 0 : i32
    %c0_i32_0 = arith.constant 0 : i32
    %c0_i32_1 = arith.constant 0 : i32
    return %c0_i32, %c0_i32_0 : i32, i32
  }
  func.func @transform_3(%arg0: i32) -> (i32, i32) {
    %c0_i32 = arith.constant 0 : i32
    %c0_i32_0 = arith.constant 0 : i32
    %c0_i32_1 = arith.constant 0 : i32
    return %c0_i32, %c0_i32_0 : i32, i32
  }
  func.func @transform_4(%arg0: i32) -> (i32, i32) {
    %c0_i32 = arith.constant 0 : i32
    %c0_i32_0 = arith.constant 0 : i32
    return %c0_i32, %arg0 : i32, i32
  }
  func.func @transform_5(%arg0: i32) -> (i32, i32) {
    %c0_i32 = arith.constant 0 : i32
    %c0_i32_0 = arith.constant 0 : i32
    return %c0_i32, %arg0 : i32, i32
  }
  func.func @transform_6(%arg0: i32) -> (i32, i32) {
    %c0_i32 = arith.constant 0 : i32
    %c0_i32_0 = arith.constant 0 : i32
    return %c0_i32, %arg0 : i32, i32
  }
  func.func @transform_7(%arg0: i32) -> (i32, i32) {
    %c0_i32 = arith.constant 0 : i32
    %c0_i32_0 = arith.constant 0 : i32
    return %c0_i32, %arg0 : i32, i32
  }
}

module attributes {stable_mosaic.version = 11 : i64} {
  func.func @_projector_kernel(%arg0: memref<2x2048xbf16, #tpu.memory_space<vmem>>, %arg1: memref<2048x512xbf16, #tpu.memory_space<vmem>>, %arg2: memref<1x512xf32, #tpu.memory_space<vmem>>, %arg3: memref<1x512xf32, #tpu.memory_space<vmem>>, %arg4: memref<512x128xbf16, #tpu.memory_space<vmem>>, %arg5: memref<1x128xf32, #tpu.memory_space<vmem>>, %arg6: memref<2x128xf32, #tpu.memory_space<vmem>>) attributes {dimension_semantics = [], scalar_prefetch = 0 : i64, scratch_operands = 0 : i64, tpu.core_type = #tpu.core_type<tc>} {
    %c0 = arith.constant 0 : index
    %c0_0 = arith.constant 0 : index
    %0 = vector.load %arg0[%c0, %c0_0] : memref<2x2048xbf16, #tpu.memory_space<vmem>>, vector<2x2048xbf16>
    %c0_1 = arith.constant 0 : index
    %c0_2 = arith.constant 0 : index
    %1 = vector.load %arg1[%c0_1, %c0_2] : memref<2048x512xbf16, #tpu.memory_space<vmem>>, vector<2048x512xbf16>
    %cst = arith.constant dense<0.000000e+00> : vector<2x512xf32>
    %2 = tpu.matmul %0, %1, %cst {dimension_numbers = #tpu.dot_dimension_numbers<[1], [0], [0], [1], [0, 0, 1, 1], [], []>} : vector<2x2048xbf16>, vector<2048x512xbf16>, vector<2x512xf32> -> vector<2x512xf32>
    %cst_3 = arith.constant dense<0.000000e+00> : vector<512xf32>
    %3 = vector.multi_reduction <add>, %2, %cst_3 [0] : vector<2x512xf32> to vector<512xf32>
    %4 = vector.shape_cast %3 : vector<512xf32> to vector<1x512xf32>
    %cst_4 = arith.constant 5.000000e-01 : f32
    %5 = vector.broadcast %cst_4 : f32 to vector<1x512xf32>
    %6 = arith.mulf %4, %5 : vector<1x512xf32>
    %7 = arith.mulf %2, %2 : vector<2x512xf32>
    %cst_5 = arith.constant dense<0.000000e+00> : vector<512xf32>
    %8 = vector.multi_reduction <add>, %7, %cst_5 [0] : vector<2x512xf32> to vector<512xf32>
    %9 = vector.shape_cast %8 : vector<512xf32> to vector<1x512xf32>
    %cst_6 = arith.constant 5.000000e-01 : f32
    %10 = vector.broadcast %cst_6 : f32 to vector<1x512xf32>
    %11 = arith.mulf %9, %10 : vector<1x512xf32>
    %12 = arith.mulf %6, %6 : vector<1x512xf32>
    %13 = arith.subf %11, %12 : vector<1x512xf32>
    %c0_7 = arith.constant 0 : index
    %c0_8 = arith.constant 0 : index
    %14 = vector.load %arg2[%c0_7, %c0_8] : memref<1x512xf32, #tpu.memory_space<vmem>>, vector<1x512xf32>
    %cst_9 = arith.constant 9.99999974E-6 : f32
    %15 = vector.broadcast %cst_9 : f32 to vector<1x512xf32>
    %16 = arith.addf %13, %15 : vector<1x512xf32>
    %17 = math.rsqrt %16 : vector<1x512xf32>
    %18 = arith.mulf %14, %17 : vector<1x512xf32>
    %c0_10 = arith.constant 0 : index
    %c0_11 = arith.constant 0 : index
    %19 = vector.load %arg3[%c0_10, %c0_11] : memref<1x512xf32, #tpu.memory_space<vmem>>, vector<1x512xf32>
    %20 = arith.mulf %6, %18 : vector<1x512xf32>
    %21 = arith.subf %19, %20 : vector<1x512xf32>
    %22 = vector.broadcast %18 : vector<1x512xf32> to vector<2x512xf32>
    %23 = arith.mulf %2, %22 : vector<2x512xf32>
    %24 = vector.broadcast %21 : vector<1x512xf32> to vector<2x512xf32>
    %25 = arith.addf %23, %24 : vector<2x512xf32>
    %cst_12 = arith.constant 0.000000e+00 : f32
    %26 = vector.broadcast %cst_12 : f32 to vector<2x512xf32>
    %27 = arith.maximumf %25, %26 : vector<2x512xf32>
    %28 = arith.truncf %27 : vector<2x512xf32> to vector<2x512xbf16>
    %c0_13 = arith.constant 0 : index
    %c0_14 = arith.constant 0 : index
    %29 = vector.load %arg4[%c0_13, %c0_14] : memref<512x128xbf16, #tpu.memory_space<vmem>>, vector<512x128xbf16>
    %cst_15 = arith.constant dense<0.000000e+00> : vector<2x128xf32>
    %30 = tpu.matmul %28, %29, %cst_15 {dimension_numbers = #tpu.dot_dimension_numbers<[1], [0], [0], [1], [0, 0, 1, 1], [], []>} : vector<2x512xbf16>, vector<512x128xbf16>, vector<2x128xf32> -> vector<2x128xf32>
    %c0_16 = arith.constant 0 : index
    %c0_17 = arith.constant 0 : index
    %31 = vector.load %arg5[%c0_16, %c0_17] : memref<1x128xf32, #tpu.memory_space<vmem>>, vector<1x128xf32>
    %32 = vector.broadcast %31 : vector<1x128xf32> to vector<2x128xf32>
    %33 = arith.addf %30, %32 : vector<2x128xf32>
    %34 = arith.mulf %33, %33 : vector<2x128xf32>
    %cst_18 = arith.constant dense<0.000000e+00> : vector<2xf32>
    %35 = vector.multi_reduction <add>, %34, %cst_18 [1] : vector<2x128xf32> to vector<2xf32>
    %36 = vector.shape_cast %35 : vector<2xf32> to vector<2x1xf32>
    %cst_19 = arith.constant 1.000000e-24 : f32
    %37 = vector.broadcast %cst_19 : f32 to vector<2x1xf32>
    %38 = arith.maximumf %36, %37 : vector<2x1xf32>
    %39 = math.rsqrt %38 : vector<2x1xf32>
    %40 = vector.broadcast %39 : vector<2x1xf32> to vector<2x128xf32>
    %41 = arith.mulf %33, %40 : vector<2x128xf32>
    %c0_20 = arith.constant 0 : index
    %c0_21 = arith.constant 0 : index
    %42 = vector.load %arg6[%c0_20, %c0_21] : memref<2x128xf32, #tpu.memory_space<vmem>>, vector<2x128xf32>
    tpu.vector_store %arg6[%c0_20, %c0_21], %41 {strides = array<i32>} : memref<2x128xf32, #tpu.memory_space<vmem>>, vector<2x128xf32>,
    return
  }
}

</mosaic_0001>

<llo_original>
// kernel: simclr_forward.2
$region0: #{simclr_forward.2}
  #allocation0 [shape = 'u32[]', space=smem, size = 0x4, offset = 0x4, fixed_abs, tag = 'smem constant byte address 0x4 - core index']
  #allocation1 [shape = 'u32[144,128]{1,0:T(1,128)}', space=vmem, size = 0x12000, scoped, tag = 'internal scratch']
  %s0 = inlined_call_operand.vmem [shape: bf16[512,128], index: 0, kind: input, shape index: {}]
  %s1 = inlined_call_operand.vmem [shape: bf16[128,128], index: 1, kind: input, shape index: {}]
  %s2 = inlined_call_operand.vmem [shape: f32[1,128], index: 2, kind: input, shape index: {}]
  %s3 = inlined_call_operand.vmem [shape: f32[1,128], index: 3, kind: input, shape index: {}]
  %s4 = inlined_call_operand.vmem [shape: bf16[128,2048], index: 4, kind: input, shape index: {}]
  %s5 = inlined_call_operand.vmem [shape: f32[1,2048], index: 5, kind: input, shape index: {}]
  %s6 = inlined_call_operand.vmem [shape: f32[1,2048], index: 6, kind: input, shape index: {}]
  %s7 = inlined_call_operand.vmem [shape: bf16[2,2048], index: 7, kind: output, shape index: {}]
  %s8 = sld [smem:[#allocation0]]
  $region84: #{simclr_forward.2} parent=0
    _
  %s10 = ssub.s32 1, %s8
  %s11 = scalar_select 0, %s10, %s8
  $region1: #{simclr_forward.2} parent=0
    #allocation2 [shape = 'u8[524288]{0}', space=vmem, size = 0x80000, scoped, tag = 'input window, operand 4']
    loop: start=0, step=1, limit=4
    $region2: #{simclr_forward.2} parent=1 // loop_pre_header
      _
    $region3: #{simclr_forward.2} parent=1 // loop_header
      %s13 = sphi 0, %s17
      %p14 = scmp.ge.s32.totalorder %s13, 4
      %s21 = sphi 0, %s21
      %s23 = sphi 0, %s21
      %s24 = sphi 0, %s23
      %s38 = sphi 0, %s24
      %s42 = sphi 0, %s42
      %s44 = sphi 0, %s42
      %s45 = sphi 0, %s44
      %s59 = sphi 0, %s45
      %s63 = sphi 0, %s63
      %s65 = sphi 0, %s63
      %s66 = sphi 0, %s65
      %s80 = sphi 0, %s66
      %s84 = sphi 0, %s84
      %s86 = sphi 0, %s84
      %s87 = sphi 0, %s86
      %s101 = sphi 0, %s87
      %s107 = sphi 0, %s109
      %s110 = sphi 0, %s107
      %s111 = sphi 0, %s110
      %s127 = sphi 0, %s111
      %s133 = sphi 0, %s135
      %s136 = sphi 0, %s133
      %s137 = sphi 0, %s136
      %s153 = sphi 0, %s137
      %s159 = sphi 0, %s161
      %s162 = sphi 0, %s159
      %s163 = sphi 0, %s162
      %s179 = sphi 0, %s163
      %s185 = sphi 0, %s187
      %s188 = sphi 0, %s185
      %s189 = sphi 0, %s188
      %s205 = sphi 0, %s189
    $region4: #{simclr_forward.2} parent=1 // loop_header_branch
      %16 = sbr.rel (%p14) target = $region8
    $region5: #{simclr_forward.2} parent=1 // loop_body
      %s18 = ssub.s32 %s13, 1
      %s19 = ssub.s32 %s13, 2
      %s20 = sadd.s32 %s13, 1
      %s22 = sadd.s32 %s21, 1
      %p25 = scmp.eq.s32.totalorder %s13, 1
      %p26 = scmp.ne.s32.totalorder %s21, %s23
      %p27 = scmp.eq.s32.totalorder %s13, 0
      %p28 = por %p26, %p27
      %p29 = scmp.ne.s32.totalorder %s21, %s23
      %p30 = scmp.eq.s32.totalorder %s18, 1
      %p31 = por %p29, %p30
      %p32 = scmp.ne.s32.totalorder %s23, %s24
      %p33 = scmp.eq.s32.totalorder %s18, 0
      %p34 = por %p32, %p33
      %p35 = scmp.ne.s32.totalorder %s23, %s24
      %p36 = scmp.eq.s32.totalorder %s19, 1
      %p37 = por %p35, %p36
      %p39 = scmp.ne.s32.totalorder %s24, %s38
      %p40 = scmp.eq.s32.totalorder %s19, 0
      %p41 = por %p39, %p40
      %s43 = sadd.s32 %s42, 1
      %p46 = scmp.eq.s32.totalorder %s13, 1
      %p47 = scmp.ne.s32.totalorder %s42, %s44
      %p48 = scmp.eq.s32.totalorder %s13, 0
      %p49 = por %p47, %p48
      %p50 = scmp.ne.s32.totalorder %s42, %s44
      %p51 = scmp.eq.s32.totalorder %s18, 1
      %p52 = por %p50, %p51
      %p53 = scmp.ne.s32.totalorder %s44, %s45
      %p54 = scmp.eq.s32.totalorder %s18, 0
      %p55 = por %p53, %p54
      %p56 = scmp.ne.s32.totalorder %s44, %s45
      %p57 = scmp.eq.s32.totalorder %s19, 1
      %p58 = por %p56, %p57
      %p60 = scmp.ne.s32.totalorder %s45, %s59
      %p61 = scmp.eq.s32.totalorder %s19, 0
      %p62 = por %p60, %p61
      %s64 = sadd.s32 %s63, 1
      %p67 = scmp.eq.s32.totalorder %s13, 1
      %p68 = scmp.ne.s32.totalorder %s63, %s65
      %p69 = scmp.eq.s32.totalorder %s13, 0
      %p70 = por %p68, %p69
      %p71 = scmp.ne.s32.totalorder %s63, %s65
      %p72 = scmp.eq.s32.totalorder %s18, 1
      %p73 = por %p71, %p72
      %p74 = scmp.ne.s32.totalorder %s65, %s66
      %p75 = scmp.eq.s32.totalorder %s18, 0
      %p76 = por %p74, %p75
      %p77 = scmp.ne.s32.totalorder %s65, %s66
      %p78 = scmp.eq.s32.totalorder %s19, 1
      %p79 = por %p77, %p78
      %p81 = scmp.ne.s32.totalorder %s66, %s80
      %p82 = scmp.eq.s32.totalorder %s19, 0
      %p83 = por %p81, %p82
      %s85 = sadd.s32 %s84, 1
      %p88 = scmp.eq.s32.totalorder %s13, 1
      %p89 = scmp.ne.s32.totalorder %s84, %s86
      %p90 = scmp.eq.s32.totalorder %s13, 0
      %p91 = por %p89, %p90
      %p92 = scmp.ne.s32.totalorder %s84, %s86
      %p93 = scmp.eq.s32.totalorder %s18, 1
      %p94 = por %p92, %p93
      %p95 = scmp.ne.s32.totalorder %s86, %s87
      %p96 = scmp.eq.s32.totalorder %s18, 0
      %p97 = por %p95, %p96
      %p98 = scmp.ne.s32.totalorder %s86, %s87
      %p99 = scmp.eq.s32.totalorder %s19, 1
      %p100 = por %p98, %p99
      %p102 = scmp.ne.s32.totalorder %s87, %s101
      %p103 = scmp.eq.s32.totalorder %s19, 0
      %p104 = por %p102, %p103
      %s105 = ssub.s32 %s13, %s20
      %p106 = scmp.eq.s32.totalorder %s105, 0
      %s108 = sadd.s32 %s107, 1
      %s109 = scalar_select %p106, %s107, %s108
      %p112 = pneg %p106
      %p113 = scmp.eq.s32.totalorder %s13, 1
      %p114 = por %p112, %p113
      %p115 = scmp.ne.s32.totalorder %s107, %s110
      %p116 = scmp.eq.s32.totalorder %s13, 0
      %p117 = por %p115, %p116
      %p118 = scmp.ne.s32.totalorder %s107, %s110
      %p119 = scmp.eq.s32.totalorder %s18, 1
      %p120 = por %p118, %p119
      %p121 = scmp.ne.s32.totalorder %s110, %s111
      %p122 = scmp.eq.s32.totalorder %s18, 0
      %p123 = por %p121, %p122
      %p124 = scmp.ne.s32.totalorder %s110, %s111
      %p125 = scmp.eq.s32.totalorder %s19, 1
      %p126 = por %p124, %p125
      %p128 = scmp.ne.s32.totalorder %s111, %s127
      %p129 = scmp.eq.s32.totalorder %s19, 0
      %p130 = por %p128, %p129
      %s131 = ssub.s32 %s13, %s20
      %p132 = scmp.eq.s32.totalorder %s131, 0
      %s134 = sadd.s32 %s133, 1
      %s135 = scalar_select %p132, %s133, %s134
      %p138 = pneg %p132
      %p139 = scmp.eq.s32.totalorder %s13, 1
      %p140 = por %p138, %p139
      %p141 = scmp.ne.s32.totalorder %s133, %s136
      %p142 = scmp.eq.s32.totalorder %s13, 0
      %p143 = por %p141, %p142
      %p144 = scmp.ne.s32.totalorder %s133, %s136
      %p145 = scmp.eq.s32.totalorder %s18, 1
      %p146 = por %p144, %p145
      %p147 = scmp.ne.s32.totalorder %s136, %s137
      %p148 = scmp.eq.s32.totalorder %s18, 0
      %p149 = por %p147, %p148
      %p150 = scmp.ne.s32.totalorder %s136, %s137
      %p151 = scmp.eq.s32.totalorder %s19, 1
      %p152 = por %p150, %p151
      %p154 = scmp.ne.s32.totalorder %s137, %s153
      %p155 = scmp.eq.s32.totalorder %s19, 0
      %p156 = por %p154, %p155
      %s157 = ssub.s32 %s13, %s20
      %p158 = scmp.eq.s32.totalorder %s157, 0
      %s160 = sadd.s32 %s159, 1
      %s161 = scalar_select %p158, %s159, %s160
      %p164 = pneg %p158
      %p165 = scmp.eq.s32.totalorder %s13, 1
      %p166 = por %p164, %p165
      %p167 = scmp.ne.s32.totalorder %s159, %s162
      %p168 = scmp.eq.s32.totalorder %s13, 0
      %p169 = por %p167, %p168
      %p170 = scmp.ne.s32.totalorder %s159, %s162
      %p171 = scmp.eq.s32.totalorder %s18, 1
      %p172 = por %p170, %p171
      %p173 = scmp.ne.s32.totalorder %s162, %s163
      %p174 = scmp.eq.s32.totalorder %s18, 0
      %p175 = por %p173, %p174
      %p176 = scmp.ne.s32.totalorder %s162, %s163
      %p177 = scmp.eq.s32.totalorder %s19, 1
      %p178 = por %p176, %p177
      %p180 = scmp.ne.s32.totalorder %s163, %s179
      %p181 = scmp.eq.s32.totalorder %s19, 0
      %p182 = por %p180, %p181
      %s183 = ssub.s32 %s13, %s20
      %p184 = scmp.eq.s32.totalorder %s183, 0
      %s186 = sadd.s32 %s185, 1
      %s187 = scalar_select %p184, %s185, %s186
      %p190 = pneg %p184
      %p191 = scmp.eq.s32.totalorder %s13, 1
      %p192 = por %p190, %p191
      %p193 = scmp.ne.s32.totalorder %s185, %s188
      %p194 = scmp.eq.s32.totalorder %s13, 0
      %p195 = por %p193, %p194
      %p196 = scmp.ne.s32.totalorder %s185, %s188
      %p197 = scmp.eq.s32.totalorder %s18, 1
      %p198 = por %p196, %p197
      %p199 = scmp.ne.s32.totalorder %s188, %s189
      %p200 = scmp.eq.s32.totalorder %s18, 0
      %p201 = por %p199, %p200
      %p202 = scmp.ne.s32.totalorder %s188, %s189
      %p203 = scmp.eq.s32.totalorder %s19, 1
      %p204 = por %p202, %p203
      %p206 = scmp.ne.s32.totalorder %s189, %s205
      %p207 = scmp.eq.s32.totalorder %s19, 0
      %p208 = por %p206, %p207
      %p209 = scmp.le.s32.totalorder 1, %s13
      %p210 = scmp.lt.s32.totalorder %s13, 3
      %p211 = pnand %p209, %p210
      %p212 = pneg %p211
      // Predicated region
      $region9: #{simclr_forward.2} parent=5 // pred_check
        _
      $region10: #{simclr_forward.2} parent=5 // pred_check_branch
        %214 = sbr.rel (%p211) target = $region12
      $region11: #{simclr_forward.2} parent=5 // pred_region
        %s215 = ssub.s32 %s13, 1
        // Predicated region
        $region13: #{simclr_forward.2} parent=11 // pred_check
          %p216 = pneg %p34
        $region14: #{simclr_forward.2} parent=11 // pred_check_branch
          %218 = sbr.rel (%p216) target = $region16
        $region15: #{simclr_forward.2} parent=11 // pred_region
          _
        $region16: #{simclr_forward.2} parent=11 // pred_fallthru
          _
        // Predicated region
        $region17: #{simclr_forward.2} parent=11 // pred_check
          %p219 = pneg %p55
        $region18: #{simclr_forward.2} parent=11 // pred_check_branch
          %221 = sbr.rel (%p219) target = $region20
        $region19: #{simclr_forward.2} parent=11 // pred_region
          _
        $region20: #{simclr_forward.2} parent=11 // pred_fallthru
          _
        // Predicated region
        $region21: #{simclr_forward.2} parent=11 // pred_check
          %p222 = pneg %p76
        $region22: #{simclr_forward.2} parent=11 // pred_check_branch
          %224 = sbr.rel (%p222) target = $region24
        $region23: #{simclr_forward.2} parent=11 // pred_region
          _
        $region24: #{simclr_forward.2} parent=11 // pred_fallthru
          _
        // Predicated region
        $region25: #{simclr_forward.2} parent=11 // pred_check
          %p225 = pneg %p97
        $region26: #{simclr_forward.2} parent=11 // pred_check_branch
          %227 = sbr.rel (%p225) target = $region28
        $region27: #{simclr_forward.2} parent=11 // pred_region
          _
        $region28: #{simclr_forward.2} parent=11 // pred_fallthru
          _
      $region12: #{simclr_forward.2} parent=5 // pred_fallthru
        _
      %p228 = scmp.lt.s32.totalorder %s13, 2
      // Predicated region
      $region29: #{simclr_forward.2} parent=5 // pred_check
        %p229 = pneg %p228
      $region30: #{simclr_forward.2} parent=5 // pred_check_branch
        %231 = sbr.rel (%p229) target = $region32
      $region31: #{simclr_forward.2} parent=5 // pred_region
        // Predicated region
        $region33: #{simclr_forward.2} parent=31 // pred_check
          %p232 = pneg %p117
        $region34: #{simclr_forward.2} parent=31 // pred_check_branch
          %234 = sbr.rel (%p232) target = $region36
        $region35: #{simclr_forward.2} parent=31 // pred_region
          %s235 = sand.u32 %s107, 1
          %s236 = sand.u32 %s107, 1
          %s237 = smul.addr %s236, 512
          %s238 = scalar_lea.vmem [#allocation2], %s237
          %s239 = smul.u32 8, %s13
          %s240 = smul.addr %s239, 4
          %s241 = scalar_lea.vmem %s4, %s240
          // Predicated region
          $region37: #{simclr_forward.2} parent=35 // pred_check
            _
          $region38: #{simclr_forward.2} parent=35 // pred_check_branch
            %243 = sbr.rel (0) target = $region40
          $region39: #{simclr_forward.2} parent=35 // pred_region
            // Predicated region
            $region41: #{simclr_forward.2} parent=39 // pred_check
              _
            $region42: #{simclr_forward.2} parent=39 // pred_check_branch
              %245 = sbr.rel (0) target = $region44
            $region43: #{simclr_forward.2} parent=39 // pred_region
              loop: start=0, step=1, limit=1
              $region45: #{simclr_forward.2} parent=43 // loop_pre_header
                _
              $region46: #{simclr_forward.2} parent=43 // loop_header
                %s247 = sphi 0, %s251
                %p248 = scmp.ge.s32.totalorder %s247, 1
                %s252 = sphi %s241, %s241
                %s253 = sphi %s238, %s238
              $region47: #{simclr_forward.2} parent=43 // loop_header_branch
                %250 = sbr.rel (%p248) target = $region51
              $region48: #{simclr_forward.2} parent=43 // loop_body
                %v254 = vld [vmem:[%s252] sm:$0xff]
                %255 = vst [vmem:[%s253] sm:$0xff] %v254
                %v256 = vld [vmem:[%s252 + $0x8] sm:$0xff]
                %257 = vst [vmem:[%s253 + $0x8] sm:$0xff] %v256
                %v258 = vld [vmem:[%s252 + $0x10] sm:$0xff]
                %259 = vst [vmem:[%s253 + $0x10] sm:$0xff] %v258
                %v260 = vld [vmem:[%s252 + $0x18] sm:$0xff]
                %261 = vst [vmem:[%s253 + $0x18] sm:$0xff] %v260
                %v262 = vld [vmem:[%s252 + $0x40] sm:$0xff]
                %263 = vst [vmem:[%s253 + $0x20] sm:$0xff] %v262
                %v264 = vld [vmem:[%s252 + $0x48] sm:$0xff]
                %265 = vst [vmem:[%s253 + $0x28] sm:$0xff] %v264
                %v266 = vld [vmem:[%s252 + $0x50] sm:$0xff]
                %267 = vst [vmem:[%s253 + $0x30] sm:$0xff] %v266
                %v268 = vld [vmem:[%s252 + $0x58] sm:$0xff]
                %269 = vst [vmem:[%s253 + $0x38] sm:$0xff] %v268
                %v270 = vld [vmem:[%s252 + $0x80] sm:$0xff]
                %271 = vst [vmem:[%s253 + $0x40] sm:$0xff] %v270
                %v272 = vld [vmem:[%s252 + $0x88] sm:$0xff]
                %273 = vst [vmem:[%s253 + $0x48] sm:$0xff] %v272
                %v274 = vld [vmem:[%s252 + $0x90] sm:$0xff]
                %275 = vst [vmem:[%s253 + $0x50] sm:$0xff] %v274
                %v276 = vld [vmem:[%s252 + $0x98] sm:$0xff]
                %277 = vst [vmem:[%s253 + $0x58] sm:$0xff] %v276
                %v278 = vld [vmem:[%s252 + $0xc0] sm:$0xff]
                %279 = vst [vmem:[%s253 + $0x60] sm:$0xff] %v278
                %v280 = vld [vmem:[%s252 + $0xc8] sm:$0xff]
                %281 = vst [vmem:[%s253 + $0x68] sm:$0xff] %v280
                %v282 = vld [vmem:[%s252 + $0xd0] sm:$0xff]
                %283 = vst [vmem:[%s253 + $0x70] sm:$0xff] %v282
                %v284 = vld [vmem:[%s252 + $0xd8] sm:$0xff]
                %285 = vst [vmem:[%s253 + $0x78] sm:$0xff] %v284
                %v286 = vld [vmem:[%s252 + $0x100] sm:$0xff]
                %287 = vst [vmem:[%s253 + $0x80] sm:$0xff] %v286
                %v288 = vld [vmem:[%s252 + $0x108] sm:$0xff]
                %289 = vst [vmem:[%s253 + $0x88] sm:$0xff] %v288
                %v290 = vld [vmem:[%s252 + $0x110] sm:$0xff]
                %291 = vst [vmem:[%s253 + $0x90] sm:$0xff] %v290
                %v292 = vld [vmem:[%s252 + $0x118] sm:$0xff]
                %293 = vst [vmem:[%s253 + $0x98] sm:$0xff] %v292
                %v294 = vld [vmem:[%s252 + $0x140] sm:$0xff]
                %295 = vst [vmem:[%s253 + $0xa0] sm:$0xff] %v294
                %v296 = vld [vmem:[%s252 + $0x148] sm:$0xff]
                %297 = vst [vmem:[%s253 + $0xa8] sm:$0xff] %v296
                %v298 = vld [vmem:[%s252 + $0x150] sm:$0xff]
                %299 = vst [vmem:[%s253 + $0xb0] sm:$0xff] %v298
                %v300 = vld [vmem:[%s252 + $0x158] sm:$0xff]
                %301 = vst [vmem:[%s253 + $0xb8] sm:$0xff] %v300
                %v302 = vld [vmem:[%s252 + $0x180] sm:$0xff]
                %303 = vst [vmem:[%s253 + $0xc0] sm:$0xff] %v302
                %v304 = vld [vmem:[%s252 + $0x188] sm:$0xff]
                %305 = vst [vmem:[%s253 + $0xc8] sm:$0xff] %v304
                %v306 = vld [vmem:[%s252 + $0x190] sm:$0xff]
                %307 = vst [vmem:[%s253 + $0xd0] sm:$0xff] %v306
                %v308 = vld [vmem:[%s252 + $0x198] sm:$0xff]
                %309 = vst [vmem:[%s253 + $0xd8] sm:$0xff] %v308
                %v310 = vld [vmem:[%s252 + $0x1c0] sm:$0xff]
                %311 = vst [vmem:[%s253 + $0xe0] sm:$0xff] %v310
                %v312 = vld [vmem:[%s252 + $0x1c8] sm:$0xff]
                %313 = vst [vmem:[%s253 + $0xe8] sm:$0xff] %v312
                %v314 = vld [vmem:[%s252 + $0x1d0] sm:$0xff]
                %315 = vst [vmem:[%s253 + $0xf0] sm:$0xff] %v314
                %v316 = vld [vmem:[%s252 + $0x1d8] sm:$0xff]
                %317 = vst [vmem:[%s253 + $0xf8] sm:$0xff] %v316
                %v318 = vld [vmem:[%s252 + $0x200] sm:$0xff]
                %319 = vst [vmem:[%s253 + $0x100] sm:$0xff] %v318
                %v320 = vld [vmem:[%s252 + $0x208] sm:$0xff]
                %321 = vst [vmem:[%s253 + $0x108] sm:$0xff] %v320
                %v322 = vld [vmem:[%s252 + $0x210] sm:$0xff]
                %323 = vst [vmem:[%s253 + $0x110] sm:$0xff] %v322
                %v324 = vld [vmem:[%s252 + $0x218] sm:$0xff]
                %325 = vst [vmem:[%s253 + $0x118] sm:$0xff] %v324
                %v326 = vld [vmem:[%s252 + $0x240] sm:$0xff]
                %327 = vst [vmem:[%s253 + $0x120] sm:$0xff] %v326
                %v328 = vld [vmem:[%s252 + $0x248] sm:$0xff]
                %329 = vst [vmem:[%s253 + $0x128] sm:$0xff] %v328
                %v330 = vld [vmem:[%s252 + $0x250] sm:$0xff]
                %331 = vst [vmem:[%s253 + $0x130] sm:$0xff] %v330
                %v332 = vld [vmem:[%s252 + $0x258] sm:$0xff]
                %333 = vst [vmem:[%s253 + $0x138] sm:$0xff] %v332
                %v334 = vld [vmem:[%s252 + $0x280] sm:$0xff]
                %335 = vst [vmem:[%s253 + $0x140] sm:$0xff] %v334
                %v336 = vld [vmem:[%s252 + $0x288] sm:$0xff]
                %337 = vst [vmem:[%s253 + $0x148] sm:$0xff] %v336
                %v338 = vld [vmem:[%s252 + $0x290] sm:$0xff]
                %339 = vst [vmem:[%s253 + $0x150] sm:$0xff] %v338
                %v340 = vld [vmem:[%s252 + $0x298] sm:$0xff]
                %341 = vst [vmem:[%s253 + $0x158] sm:$0xff] %v340
                %v342 = vld [vmem:[%s252 + $0x2c0] sm:$0xff]
                %343 = vst [vmem:[%s253 + $0x160] sm:$0xff] %v342
                %v344 = vld [vmem:[%s252 + $0x2c8] sm:$0xff]
                %345 = vst [vmem:[%s253 + $0x168] sm:$0xff] %v344
                %v346 = vld [vmem:[%s252 + $0x2d0] sm:$0xff]
                %347 = vst [vmem:[%s253 + $0x170] sm:$0xff] %v346
                %v348 = vld [vmem:[%s252 + $0x2d8] sm:$0xff]
                %349 = vst [vmem:[%s253 + $0x178] sm:$0xff] %v348
                %v350 = vld [vmem:[%s252 + $0x300] sm:$0xff]
                %351 = vst [vmem:[%s253 + $0x180] sm:$0xff] %v350
                %v352 = vld [vmem:[%s252 + $0x308] sm:$0xff]
                %353 = vst [vmem:[%s253 + $0x188] sm:$0xff] %v352
                %v354 = vld [vmem:[%s252 + $0x310] sm:$0xff]
                %355 = vst [vmem:[%s253 + $0x190] sm:$0xff] %v354
                %v356 = vld [vmem:[%s252 + $0x318] sm:$0xff]
                %357 = vst [vmem:[%s253 + $0x198] sm:$0xff] %v356
                %v358 = vld [vmem:[%s252 + $0x340] sm:$0xff]
                %359 = vst [vmem:[%s253 + $0x1a0] sm:$0xff] %v358
                %v360 = vld [vmem:[%s252 + $0x348] sm:$0xff]
                %361 = vst [vmem:[%s253 + $0x1a8] sm:$0xff] %v360
                %v362 = vld [vmem:[%s252 + $0x350] sm:$0xff]
                %363 = vst [vmem:[%s253 + $0x1b0] sm:$0xff] %v362
                %v364 = vld [vmem:[%s252 + $0x358] sm:$0xff]
                %365 = vst [vmem:[%s253 + $0x1b8] sm:$0xff] %v364
                %v366 = vld [vmem:[%s252 + $0x380] sm:$0xff]
                %367 = vst [vmem:[%s253 + $0x1c0] sm:$0xff] %v366
                %v368 = vld [vmem:[%s252 + $0x388] sm:$0xff]
                %369 = vst [vmem:[%s253 + $0x1c8] sm:$0xff] %v368
                %v370 = vld [vmem:[%s252 + $0x390] sm:$0xff]
                %371 = vst [vmem:[%s253 + $0x1d0] sm:$0xff] %v370
                %v372 = vld [vmem:[%s252 + $0x398] sm:$0xff]
                %373 = vst [vmem:[%s253 + $0x1d8] sm:$0xff] %v372
                %v374 = vld [vmem:[%s252 + $0x3c0] sm:$0xff]
                %375 = vst [vmem:[%s253 + $0x1e0] sm:$0xff] %v374
                %v376 = vld [vmem:[%s252 + $0x3c8] sm:$0xff]
                %377 = vst [vmem:[%s253 + $0x1e8] sm:$0xff] %v376
                %v378 = vld [vmem:[%s252 + $0x3d0] sm:$0xff]
                %379 = vst [vmem:[%s253 + $0x1f0] sm:$0xff] %v378
                %v380 = vld [vmem:[%s252 + $0x3d8] sm:$0xff]
                %381 = vst [vmem:[%s253 + $0x1f8] sm:$0xff] %v380
              $region49: #{simclr_forward.2} parent=43 // loop_footer
                %s251 = sadd.s32 1, %s247
              $region50: #{simclr_forward.2} parent=43 // loop_footer_branch
                %246 = sbr.rel target = $region46
              $region51: #{simclr_forward.2} parent=43 // loop_exit
                _
            $region44: #{simclr_forward.2} parent=39 // pred_fallthru
              _
            // Predicated region
            $region52: #{simclr_forward.2} parent=39 // pred_check
              _
            $region53: #{simclr_forward.2} parent=39 // pred_check_branch
              %383 = sbr.rel target = $region55
            $region54: #{simclr_forward.2} parent=39 // pred_region
              _
            $region55: #{simclr_forward.2} parent=39 // pred_fallthru
              _
          $region40: #{simclr_forward.2} parent=35 // pred_fallthru
            _
          %384 = vnop
        $region36: #{simclr_forward.2} parent=31 // pred_fallthru
          _
        // Predicated region
        $region56: #{simclr_forward.2} parent=31 // pred_check
          %p385 = pneg %p143
        $region57: #{simclr_forward.2} parent=31 // pred_check_branch
          %387 = sbr.rel (%p385) target = $region59
        $region58: #{simclr_forward.2} parent=31 // pred_region
          %s388 = smul.u32 8, %s13
          %p389 = scmp.lt.s32.totalorder %s388, 15
          %s390 = scalar_select %p389, %s388, 15
          %s391 = scalar_lea.vmem %s5, %s390
          %s392 = smul.u32 8, %s13
        $region59: #{simclr_forward.2} parent=31 // pred_fallthru
          _
        // Predicated region
        $region60: #{simclr_forward.2} parent=31 // pred_check
          %p393 = pneg %p169
        $region61: #{simclr_forward.2} parent=31 // pred_check_branch
          %395 = sbr.rel (%p393) target = $region63
        $region62: #{simclr_forward.2} parent=31 // pred_region
          %s396 = smul.u32 8, %s13
          %p397 = scmp.lt.s32.totalorder %s396, 15
          %s398 = scalar_select %p397, %s396, 15
          %s399 = scalar_lea.vmem %s6, %s398
          %s400 = smul.u32 8, %s13
        $region63: #{simclr_forward.2} parent=31 // pred_fallthru
          _
      $region32: #{simclr_forward.2} parent=5 // pred_fallthru
        _
      %p401 = scmp.le.s32.totalorder 1, %s13
      %p402 = scmp.lt.s32.totalorder %s13, 3
      %p403 = pnand %p401, %p402
      %p404 = pneg %p403
      // Predicated region
      $region64: #{simclr_forward.2} parent=5 // pred_check
        _
      $region65: #{simclr_forward.2} parent=5 // pred_check_branch
        %406 = sbr.rel (%p403) target = $region67
      $region66: #{simclr_forward.2} parent=5 // pred_region
        %s407 = ssub.s32 %s13, 1
        %s408 = sand.u32 %s110, 1
        %s409 = sand.u32 %s110, 1
        %s410 = smul.addr %s409, 512
        %s411 = scalar_lea.vmem [#allocation2], %s410
        // Predicated region
        $region68: #{simclr_forward.2} parent=66 // pred_check
          %p412 = pneg %p123
        $region69: #{simclr_forward.2} parent=66 // pred_check_branch
          %414 = sbr.rel (%p412) target = $region71
        $region70: #{simclr_forward.2} parent=66 // pred_region
          _
        $region71: #{simclr_forward.2} parent=66 // pred_fallthru
          _
        %p415 = pneg %p34
        %p416 = pneg %p31
        %p417 = pneg %p55
        %p418 = pneg %p52
        %p419 = pneg %p76
        %p420 = pneg %p73
        %p421 = pneg %p97
        %p422 = pneg %p94
        %s423 = sand.u32 %s110, 1
        %s424 = sand.u32 %s110, 1
        %s425 = smul.addr %s424, 512
        %s426 = scalar_lea.vmem [#allocation2], %s425
        %p427 = pneg %p123
        %p428 = pneg %p120
        %s429 = smul.u32 8, %s18
        %p430 = scmp.lt.s32.totalorder %s429, 15
        %s431 = scalar_select %p430, %s429, 15
        %s432 = scalar_lea.vmem %s5, %s431
        %p433 = pneg %p149
        %p434 = pneg %p146
        %s435 = smul.u32 8, %s18
        %p436 = scmp.lt.s32.totalorder %s435, 15
        %s437 = scalar_select %p436, %s435, 15
        %s438 = scalar_lea.vmem %s6, %s437
        %p439 = pneg %p175
        %p440 = pneg %p172
        %p441 = pneg %p201
        %p442 = pneg %p198
        %s443 = smul.u32 8, %s18
        %p444 = scmp.lt.s32.totalorder %s443, 15
        %s445 = scalar_select %p444, %s443, 15
        %s446 = scalar_lea.vmem %s7, %s445
        %s447 = smul.u32 8, %s18
        %s448 = smul.u32 8, %s18
        %p449 = scmp.lt.s32.totalorder %s448, 15
        %s450 = scalar_select %p449, %s448, 15
        %s451 = scalar_lea.vmem %s5, %s450
        %s452 = smul.u32 8, %s18
        %s453 = smul.u32 8, %s18
        %p454 = scmp.lt.s32.totalorder %s453, 15
        %s455 = scalar_select %p454, %s453, 15
        %s456 = scalar_lea.vmem %s6, %s455
        %s457 = smul.u32 8, %s18
        %s458 = smul.u32 8, %s18
        %p459 = scmp.lt.s32.totalorder %s458, 15
        %s460 = scalar_select %p459, %s458, 15
        %s461 = scalar_lea.vmem %s7, %s460
        %s462 = smul.u32 8, %s18
        %v464 = vld [vmem:[%s0] sm:$0xf]
        %v465 = vld [vmem:[%s0 + $0x4] sm:$0xf]
        %v466 = vld [vmem:[%s0 + $0x8] sm:$0xf]
        %v467 = vld [vmem:[%s0 + $0xc] sm:$0xf]
        %v468 = vld [vmem:[%s0 + $0x10] sm:$0xf]
        %v469 = vld [vmem:[%s0 + $0x14] sm:$0xf]
        %v470 = vld [vmem:[%s0 + $0x18] sm:$0xf]
        %v471 = vld [vmem:[%s0 + $0x1c] sm:$0xf]
        %v472 = vld [vmem:[%s0 + $0x20] sm:$0xf]
        %v473 = vld [vmem:[%s0 + $0x24] sm:$0xf]
        %v474 = vld [vmem:[%s0 + $0x28] sm:$0xf]
        %v475 = vld [vmem:[%s0 + $0x2c] sm:$0xf]
        %v476 = vld [vmem:[%s0 + $0x30] sm:$0xf]
        %v477 = vld [vmem:[%s0 + $0x34] sm:$0xf]
        %v478 = vld [vmem:[%s0 + $0x38] sm:$0xf]
        %v479 = vld [vmem:[%s0 + $0x3c] sm:$0xf]
        %v480 = vld [vmem:[%s0 + $0x40] sm:$0xf]
        %v481 = vld [vmem:[%s0 + $0x44] sm:$0xf]
        %v482 = vld [vmem:[%s0 + $0x48] sm:$0xf]
        %v483 = vld [vmem:[%s0 + $0x4c] sm:$0xf]
        %v484 = vld [vmem:[%s0 + $0x50] sm:$0xf]
        %v485 = vld [vmem:[%s0 + $0x54] sm:$0xf]
        %v486 = vld [vmem:[%s0 + $0x58] sm:$0xf]
        %v487 = vld [vmem:[%s0 + $0x5c] sm:$0xf]
        %v488 = vld [vmem:[%s0 + $0x60] sm:$0xf]
        %v489 = vld [vmem:[%s0 + $0x64] sm:$0xf]
        %v490 = vld [vmem:[%s0 + $0x68] sm:$0xf]
        %v491 = vld [vmem:[%s0 + $0x6c] sm:$0xf]
        %v492 = vld [vmem:[%s0 + $0x70] sm:$0xf]
        %v493 = vld [vmem:[%s0 + $0x74] sm:$0xf]
        %v494 = vld [vmem:[%s0 + $0x78] sm:$0xf]
        %v495 = vld [vmem:[%s0 + $0x7c] sm:$0xf]
        %v496 = vld [vmem:[%s0 + $0x80] sm:$0xf]
        %v497 = vld [vmem:[%s0 + $0x84] sm:$0xf]
        %v498 = vld [vmem:[%s0 + $0x88] sm:$0xf]
        %v499 = vld [vmem:[%s0 + $0x8c] sm:$0xf]
        %v500 = vld [vmem:[%s0 + $0x90] sm:$0xf]
        %v501 = vld [vmem:[%s0 + $0x94] sm:$0xf]
        %v502 = vld [vmem:[%s0 + $0x98] sm:$0xf]
        %v503 = vld [vmem:[%s0 + $0x9c] sm:$0xf]
        %v504 = vld [vmem:[%s0 + $0xa0] sm:$0xf]
        %v505 = vld [vmem:[%s0 + $0xa4] sm:$0xf]
        %v506 = vld [vmem:[%s0 + $0xa8] sm:$0xf]
        %v507 = vld [vmem:[%s0 + $0xac] sm:$0xf]
        %v508 = vld [vmem:[%s0 + $0xb0] sm:$0xf]
        %v509 = vld [vmem:[%s0 + $0xb4] sm:$0xf]
        %v510 = vld [vmem:[%s0 + $0xb8] sm:$0xf]
        %v511 = vld [vmem:[%s0 + $0xbc] sm:$0xf]
        %v512 = vld [vmem:[%s0 + $0xc0] sm:$0xf]
        %v513 = vld [vmem:[%s0 + $0xc4] sm:$0xf]
        %v514 = vld [vmem:[%s0 + $0xc8] sm:$0xf]
        %v515 = vld [vmem:[%s0 + $0xcc] sm:$0xf]
        %v516 = vld [vmem:[%s0 + $0xd0] sm:$0xf]
        %v517 = vld [vmem:[%s0 + $0xd4] sm:$0xf]
        %v518 = vld [vmem:[%s0 + $0xd8] sm:$0xf]
        %v519 = vld [vmem:[%s0 + $0xdc] sm:$0xf]
        %v520 = vld [vmem:[%s0 + $0xe0] sm:$0xf]
        %v521 = vld [vmem:[%s0 + $0xe4] sm:$0xf]
        %v522 = vld [vmem:[%s0 + $0xe8] sm:$0xf]
        %v523 = vld [vmem:[%s0 + $0xec] sm:$0xf]
        %v524 = vld [vmem:[%s0 + $0xf0] sm:$0xf]
        %v525 = vld [vmem:[%s0 + $0xf4] sm:$0xf]
        %v526 = vld [vmem:[%s0 + $0xf8] sm:$0xf]
        %v527 = vld [vmem:[%s0 + $0xfc] sm:$0xf]
        %v528 = vld [vmem:[%s1] sm:$0xf]
        %v529 = vld [vmem:[%s1 + $0x4] sm:$0xf]
        %v530 = vld [vmem:[%s1 + $0x8] sm:$0xf]
        %v531 = vld [vmem:[%s1 + $0xc] sm:$0xf]
        %v532 = vld [vmem:[%s1 + $0x10] sm:$0xf]
        %v533 = vld [vmem:[%s1 + $0x14] sm:$0xf]
        %v534 = vld [vmem:[%s1 + $0x18] sm:$0xf]
        %v535 = vld [vmem:[%s1 + $0x1c] sm:$0xf]
        %v536 = vld [vmem:[%s1 + $0x20] sm:$0xf]
        %v537 = vld [vmem:[%s1 + $0x24] sm:$0xf]
        %v538 = vld [vmem:[%s1 + $0x28] sm:$0xf]
        %v539 = vld [vmem:[%s1 + $0x2c] sm:$0xf]
        %v540 = vld [vmem:[%s1 + $0x30] sm:$0xf]
        %v541 = vld [vmem:[%s1 + $0x34] sm:$0xf]
        %v542 = vld [vmem:[%s1 + $0x38] sm:$0xf]
        %v543 = vld [vmem:[%s1 + $0x3c] sm:$0xf]
        %v608 = vunpack.c.l.b16 %v464
        %v609 = vunpack.c.l.b16 %v465
        %v610 = vunpack.c.l.b16 %v466
        %v611 = vunpack.c.l.b16 %v467
        %v612 = vunpack.c.l.b16 %v468
        %v613 = vunpack.c.l.b16 %v469
        %v614 = vunpack.c.l.b16 %v470
        %v615 = vunpack.c.l.b16 %v471
        %v616 = vunpack.c.l.b16 %v472
        %v617 = vunpack.c.l.b16 %v473
        %v618 = vunpack.c.l.b16 %v474
        %v619 = vunpack.c.l.b16 %v475
        %v620 = vunpack.c.l.b16 %v476
        %v621 = vunpack.c.l.b16 %v477
        %v622 = vunpack.c.l.b16 %v478
        %v623 = vunpack.c.l.b16 %v479
        %v624 = vunpack.c.l.b16 %v480
        %v625 = vunpack.c.l.b16 %v481
        %v626 = vunpack.c.l.b16 %v482
        %v627 = vunpack.c.l.b16 %v483
        %v628 = vunpack.c.l.b16 %v484
        %v629 = vunpack.c.l.b16 %v485
        %v630 = vunpack.c.l.b16 %v486
        %v631 = vunpack.c.l.b16 %v487
        %v632 = vunpack.c.l.b16 %v488
        %v633 = vunpack.c.l.b16 %v489
        %v634 = vunpack.c.l.b16 %v490
        %v635 = vunpack.c.l.b16 %v491
        %v636 = vunpack.c.l.b16 %v492
        %v637 = vunpack.c.l.b16 %v493
        %v638 = vunpack.c.l.b16 %v494
        %v639 = vunpack.c.l.b16 %v495
        %v640 = vunpack.c.l.b16 %v496
        %v641 = vunpack.c.l.b16 %v497
        %v642 = vunpack.c.l.b16 %v498
        %v643 = vunpack.c.l.b16 %v499
        %v644 = vunpack.c.l.b16 %v500
        %v645 = vunpack.c.l.b16 %v501
        %v646 = vunpack.c.l.b16 %v502
        %v647 = vunpack.c.l.b16 %v503
        %v648 = vunpack.c.l.b16 %v504
        %v649 = vunpack.c.l.b16 %v505
        %v650 = vunpack.c.l.b16 %v506
        %v651 = vunpack.c.l.b16 %v507
        %v652 = vunpack.c.l.b16 %v508
        %v653 = vunpack.c.l.b16 %v509
        %v654 = vunpack.c.l.b16 %v510
        %v655 = vunpack.c.l.b16 %v511
        %v656 = vunpack.c.l.b16 %v512
        %v657 = vunpack.c.l.b16 %v513
        %v658 = vunpack.c.l.b16 %v514
        %v659 = vunpack.c.l.b16 %v515
        %v660 = vunpack.c.l.b16 %v516
        %v661 = vunpack.c.l.b16 %v517
        %v662 = vunpack.c.l.b16 %v518
        %v663 = vunpack.c.l.b16 %v519
        %v664 = vunpack.c.l.b16 %v520
        %v665 = vunpack.c.l.b16 %v521
        %v666 = vunpack.c.l.b16 %v522
        %v667 = vunpack.c.l.b16 %v523
        %v668 = vunpack.c.l.b16 %v524
        %v669 = vunpack.c.l.b16 %v525
        %v670 = vunpack.c.l.b16 %v526
        %v671 = vunpack.c.l.b16 %v527
        %v672 = vpack.c.b16 %v609, %v608
        %v673 = vpack.c.b16 %v611, %v610
        %v674 = vpack.c.b16 %v613, %v612
        %v675 = vpack.c.b16 %v615, %v614
        %v676 = vpack.c.b16 %v617, %v616
        %v677 = vpack.c.b16 %v619, %v618
        %v678 = vpack.c.b16 %v621, %v620
        %v679 = vpack.c.b16 %v623, %v622
        %v680 = vpack.c.b16 %v625, %v624
        %v681 = vpack.c.b16 %v627, %v626
        %v682 = vpack.c.b16 %v629, %v628
        %v683 = vpack.c.b16 %v631, %v630
        %v684 = vpack.c.b16 %v633, %v632
        %v685 = vpack.c.b16 %v635, %v634
        %v686 = vpack.c.b16 %v637, %v636
        %v687 = vpack.c.b16 %v639, %v638
        %v688 = vpack.c.b16 %v641, %v640
        %v689 = vpack.c.b16 %v643, %v642
        %v690 = vpack.c.b16 %v645, %v644
        %v691 = vpack.c.b16 %v647, %v646
        %v692 = vpack.c.b16 %v649, %v648
        %v693 = vpack.c.b16 %v651, %v650
        %v694 = vpack.c.b16 %v653, %v652
        %v695 = vpack.c.b16 %v655, %v654
        %v696 = vpack.c.b16 %v657, %v656
        %v697 = vpack.c.b16 %v659, %v658
        %v698 = vpack.c.b16 %v661, %v660
        %v699 = vpack.c.b16 %v663, %v662
        %v700 = vpack.c.b16 %v665, %v664
        %v701 = vpack.c.b16 %v667, %v666
        %v702 = vpack.c.b16 %v669, %v668
        %v703 = vpack.c.b16 %v671, %v670
        %v752 = vunpack.c.l.b16 %v528
        %v753 = vunpack.c.l.b16 %v529
        %v754 = vunpack.c.l.b16 %v530
        %v755 = vunpack.c.l.b16 %v531
        %v756 = vunpack.c.l.b16 %v532
        %v757 = vunpack.c.l.b16 %v533
        %v758 = vunpack.c.l.b16 %v534
        %v759 = vunpack.c.l.b16 %v535
        %v760 = vunpack.c.l.b16 %v536
        %v761 = vunpack.c.l.b16 %v537
        %v762 = vunpack.c.l.b16 %v538
        %v763 = vunpack.c.l.b16 %v539
        %v764 = vunpack.c.l.b16 %v540
        %v765 = vunpack.c.l.b16 %v541
        %v766 = vunpack.c.l.b16 %v542
        %v767 = vunpack.c.l.b16 %v543
        %v768 = vpack.c.b16 %v753, %v752
        %v769 = vpack.c.b16 %v755, %v754
        %v770 = vpack.c.b16 %v757, %v756
        %v771 = vpack.c.b16 %v759, %v758
        %v772 = vpack.c.b16 %v761, %v760
        %v773 = vpack.c.b16 %v763, %v762
        %v774 = vpack.c.b16 %v765, %v764
        %v775 = vpack.c.b16 %v767, %v766
        %784 = vmatprep.subr.bf16.mxu0 0
        %785 = vmatpush1.bf16.msra.mxu0 %v775
        %786 = vmatprep.subr.bf16.mxu0 0
        %787 = vmatpush1.bf16.msra.mxu0 %v774
        %788 = vmatprep.subr.bf16.mxu0 0
        %789 = vmatpush1.bf16.msra.mxu0 %v773
        %790 = vmatprep.subr.bf16.mxu0 0
        %791 = vmatpush1.bf16.msra.mxu0 %v772
        %792 = vmatprep.subr.bf16.mxu0 0
        %793 = vmatpush1.bf16.msra.mxu0 %v771
        %794 = vmatprep.subr.bf16.mxu0 0
        %795 = vmatpush1.bf16.msra.mxu0 %v770
        %796 = vmatprep.subr.bf16.mxu0 0
        %797 = vmatpush1.bf16.msra.mxu0 %v769
        %798 = vmatprep.subr.bf16.mxu0 0
        %799 = vmatpush1.bf16.msra.mxu0 %v768
        %800 = vmatprep.subr.bf16.mxu0 0
        %801 = vmatpush2.bf16.msra.mxu0 0
        %802 = vmatprep.subr.bf16.mxu0 0
        %803 = vmatpush2.bf16.msra.mxu0 0
        %804 = vmatprep.subr.bf16.mxu0 0
        %805 = vmatpush2.bf16.msra.mxu0 0
        %806 = vmatprep.subr.bf16.mxu0 0
        %807 = vmatpush2.bf16.msra.mxu0 0
        %808 = vmatprep.subr.bf16.mxu0 0
        %809 = vmatpush2.bf16.msra.mxu0 0
        %810 = vmatprep.subr.bf16.mxu0 0
        %811 = vmatpush2.bf16.msra.mxu0 0
        %812 = vmatprep.subr.bf16.mxu0 0
        %813 = vmatpush2.bf16.msra.mxu0 0
        %814 = vmatprep.subr.bf16.mxu0 0
        %815 = vmatpush2.bf16.msra.mxu0 0
        %816 = vmatprep.mubr.bf16.mxu0 0
        %817 = vmatmul.mubr.bf16.gmra.mxu0 %v672
        %v818 = vpop.f32.mrf.mxu0
        %v819 = vadd.f32 0.0, %v818
        %v820 = vpop.f32.mrf.mxu0
        %v821 = vpop.f32.mrf.mxu0
        %v822 = vadd.f32 0.0, %v821
        %v823 = vpop.f32.mrf.mxu0
        %824 = vmatprep.mubr.bf16.mxu0 0
        %825 = vmatmul.mubr.bf16.gmra.mxu0 %v673
        %v826 = vpop.f32.mrf.mxu0
        %v827 = vadd.f32 0.0, %v826
        %v828 = vpop.f32.mrf.mxu0
        %v829 = vpop.f32.mrf.mxu0
        %v830 = vadd.f32 0.0, %v829
        %v831 = vpop.f32.mrf.mxu0
        %832 = vmatprep.mubr.bf16.mxu0 0
        %833 = vmatmul.mubr.bf16.gmra.mxu0 %v674
        %v834 = vpop.f32.mrf.mxu0
        %v835 = vadd.f32 0.0, %v834
        %v836 = vpop.f32.mrf.mxu0
        %v837 = vpop.f32.mrf.mxu0
        %v838 = vadd.f32 0.0, %v837
        %v839 = vpop.f32.mrf.mxu0
        %840 = vmatprep.mubr.bf16.mxu0 0
        %841 = vmatmul.mubr.bf16.gmra.mxu0 %v675
        %v842 = vpop.f32.mrf.mxu0
        %v843 = vadd.f32 0.0, %v842
        %v844 = vpop.f32.mrf.mxu0
        %v845 = vpop.f32.mrf.mxu0
        %v846 = vadd.f32 0.0, %v845
        %v847 = vpop.f32.mrf.mxu0
        %848 = vmatprep.mubr.bf16.mxu0 0
        %849 = vmatmul.mubr.bf16.gmra.mxu0 %v676
        %v850 = vpop.f32.mrf.mxu0
        %v851 = vadd.f32 0.0, %v850
        %v852 = vpop.f32.mrf.mxu0
        %v853 = vpop.f32.mrf.mxu0
        %v854 = vadd.f32 0.0, %v853
        %v855 = vpop.f32.mrf.mxu0
        %856 = vmatprep.mubr.bf16.mxu0 0
        %857 = vmatmul.mubr.bf16.gmra.mxu0 %v677
        %v858 = vpop.f32.mrf.mxu0
        %v859 = vadd.f32 0.0, %v858
        %v860 = vpop.f32.mrf.mxu0
        %v861 = vpop.f32.mrf.mxu0
        %v862 = vadd.f32 0.0, %v861
        %v863 = vpop.f32.mrf.mxu0
        %864 = vmatprep.mubr.bf16.mxu0 0
        %865 = vmatmul.mubr.bf16.gmra.mxu0 %v678
        %v866 = vpop.f32.mrf.mxu0
        %v867 = vadd.f32 0.0, %v866
        %v868 = vpop.f32.mrf.mxu0
        %v869 = vpop.f32.mrf.mxu0
        %v870 = vadd.f32 0.0, %v869
        %v871 = vpop.f32.mrf.mxu0
        %872 = vmatprep.mubr.bf16.mxu0 0
        %873 = vmatmul.mubr.bf16.gmra.mxu0 %v679
        %v874 = vpop.f32.mrf.mxu0
        %v875 = vadd.f32 0.0, %v874
        %v876 = vpop.f32.mrf.mxu0
        %v877 = vpop.f32.mrf.mxu0
        %v878 = vadd.f32 0.0, %v877
        %v879 = vpop.f32.mrf.mxu0
        %880 = vmatprep.mubr.bf16.mxu0 0
        %881 = vmatmul.mubr.bf16.gmra.mxu0 %v680
        %v882 = vpop.f32.mrf.mxu0
        %v883 = vadd.f32 0.0, %v882
        %v884 = vpop.f32.mrf.mxu0
        %v885 = vpop.f32.mrf.mxu0
        %v886 = vadd.f32 0.0, %v885
        %v887 = vpop.f32.mrf.mxu0
        %888 = vmatprep.mubr.bf16.mxu0 0
        %889 = vmatmul.mubr.bf16.gmra.mxu0 %v681
        %v890 = vpop.f32.mrf.mxu0
        %v891 = vadd.f32 0.0, %v890
        %v892 = vpop.f32.mrf.mxu0
        %v893 = vpop.f32.mrf.mxu0
        %v894 = vadd.f32 0.0, %v893
        %v895 = vpop.f32.mrf.mxu0
        %896 = vmatprep.mubr.bf16.mxu0 0
        %897 = vmatmul.mubr.bf16.gmra.mxu0 %v682
        %v898 = vpop.f32.mrf.mxu0
        %v899 = vadd.f32 0.0, %v898
        %v900 = vpop.f32.mrf.mxu0
        %v901 = vpop.f32.mrf.mxu0
        %v902 = vadd.f32 0.0, %v901
        %v903 = vpop.f32.mrf.mxu0
        %904 = vmatprep.mubr.bf16.mxu0 0
        %905 = vmatmul.mubr.bf16.gmra.mxu0 %v683
        %v906 = vpop.f32.mrf.mxu0
        %v907 = vadd.f32 0.0, %v906
        %v908 = vpop.f32.mrf.mxu0
        %v909 = vpop.f32.mrf.mxu0
        %v910 = vadd.f32 0.0, %v909
        %v911 = vpop.f32.mrf.mxu0
        %912 = vmatprep.mubr.bf16.mxu0 0
        %913 = vmatmul.mubr.bf16.gmra.mxu0 %v684
        %v914 = vpop.f32.mrf.mxu0
        %v915 = vadd.f32 0.0, %v914
        %v916 = vpop.f32.mrf.mxu0
        %v917 = vpop.f32.mrf.mxu0
        %v918 = vadd.f32 0.0, %v917
        %v919 = vpop.f32.mrf.mxu0
        %920 = vmatprep.mubr.bf16.mxu0 0
        %921 = vmatmul.mubr.bf16.gmra.mxu0 %v685
        %v922 = vpop.f32.mrf.mxu0
        %v923 = vadd.f32 0.0, %v922
        %v924 = vpop.f32.mrf.mxu0
        %v925 = vpop.f32.mrf.mxu0
        %v926 = vadd.f32 0.0, %v925
        %v927 = vpop.f32.mrf.mxu0
        %928 = vmatprep.mubr.bf16.mxu0 0
        %929 = vmatmul.mubr.bf16.gmra.mxu0 %v686
        %v930 = vpop.f32.mrf.mxu0
        %v931 = vadd.f32 0.0, %v930
        %v932 = vpop.f32.mrf.mxu0
        %v933 = vpop.f32.mrf.mxu0
        %v934 = vadd.f32 0.0, %v933
        %v935 = vpop.f32.mrf.mxu0
        %936 = vmatprep.mubr.bf16.mxu0 0
        %937 = vmatmul.mubr.bf16.gmra.mxu0 %v687
        %v938 = vpop.f32.mrf.mxu0
        %v939 = vadd.f32 0.0, %v938
        %v940 = vpop.f32.mrf.mxu0
        %v941 = vpop.f32.mrf.mxu0
        %v942 = vadd.f32 0.0, %v941
        %v943 = vpop.f32.mrf.mxu0
        %944 = vmatprep.mubr.bf16.mxu0 0
        %945 = vmatmul.mubr.bf16.gmra.mxu0 %v688
        %v946 = vpop.f32.mrf.mxu0
        %v947 = vadd.f32 0.0, %v946
        %v948 = vpop.f32.mrf.mxu0
        %v949 = vpop.f32.mrf.mxu0
        %v950 = vadd.f32 0.0, %v949
        %v951 = vpop.f32.mrf.mxu0
        %952 = vmatprep.mubr.bf16.mxu0 0
        %953 = vmatmul.mubr.bf16.gmra.mxu0 %v689
        %v954 = vpop.f32.mrf.mxu0
        %v955 = vadd.f32 0.0, %v954
        %v956 = vpop.f32.mrf.mxu0
        %v957 = vpop.f32.mrf.mxu0
        %v958 = vadd.f32 0.0, %v957
        %v959 = vpop.f32.mrf.mxu0
        %960 = vmatprep.mubr.bf16.mxu0 0
        %961 = vmatmul.mubr.bf16.gmra.mxu0 %v690
        %v962 = vpop.f32.mrf.mxu0
        %v963 = vadd.f32 0.0, %v962
        %v964 = vpop.f32.mrf.mxu0
        %v965 = vpop.f32.mrf.mxu0
        %v966 = vadd.f32 0.0, %v965
        %v967 = vpop.f32.mrf.mxu0
        %968 = vmatprep.mubr.bf16.mxu0 0
        %969 = vmatmul.mubr.bf16.gmra.mxu0 %v691
        %v970 = vpop.f32.mrf.mxu0
        %v971 = vadd.f32 0.0, %v970
        %v972 = vpop.f32.mrf.mxu0
        %v973 = vpop.f32.mrf.mxu0
        %v974 = vadd.f32 0.0, %v973
        %v975 = vpop.f32.mrf.mxu0
        %976 = vmatprep.mubr.bf16.mxu0 0
        %977 = vmatmul.mubr.bf16.gmra.mxu0 %v692
        %v978 = vpop.f32.mrf.mxu0
        %v979 = vadd.f32 0.0, %v978
        %v980 = vpop.f32.mrf.mxu0
        %v981 = vpop.f32.mrf.mxu0
        %v982 = vadd.f32 0.0, %v981
        %v983 = vpop.f32.mrf.mxu0
        %984 = vmatprep.mubr.bf16.mxu0 0
        %985 = vmatmul.mubr.bf16.gmra.mxu0 %v693
        %v986 = vpop.f32.mrf.mxu0
        %v987 = vadd.f32 0.0, %v986
        %v988 = vpop.f32.mrf.mxu0
        %v989 = vpop.f32.mrf.mxu0
        %v990 = vadd.f32 0.0, %v989
        %v991 = vpop.f32.mrf.mxu0
        %992 = vmatprep.mubr.bf16.mxu0 0
        %993 = vmatmul.mubr.bf16.gmra.mxu0 %v694
        %v994 = vpop.f32.mrf.mxu0
        %v995 = vadd.f32 0.0, %v994
        %v996 = vpop.f32.mrf.mxu0
        %v997 = vpop.f32.mrf.mxu0
        %v998 = vadd.f32 0.0, %v997
        %v999 = vpop.f32.mrf.mxu0
        %1000 = vmatprep.mubr.bf16.mxu0 0
        %1001 = vmatmul.mubr.bf16.gmra.mxu0 %v695
        %v1002 = vpop.f32.mrf.mxu0
        %v1003 = vadd.f32 0.0, %v1002
        %v1004 = vpop.f32.mrf.mxu0
        %v1005 = vpop.f32.mrf.mxu0
        %v1006 = vadd.f32 0.0, %v1005
        %v1007 = vpop.f32.mrf.mxu0
        %1008 = vmatprep.mubr.bf16.mxu0 0
        %1009 = vmatmul.mubr.bf16.gmra.mxu0 %v696
        %v1010 = vpop.f32.mrf.mxu0
        %v1011 = vadd.f32 0.0, %v1010
        %v1012 = vpop.f32.mrf.mxu0
        %v1013 = vpop.f32.mrf.mxu0
        %v1014 = vadd.f32 0.0, %v1013
        %v1015 = vpop.f32.mrf.mxu0
        %1016 = vmatprep.mubr.bf16.mxu0 0
        %1017 = vmatmul.mubr.bf16.gmra.mxu0 %v697
        %v1018 = vpop.f32.mrf.mxu0
        %v1019 = vadd.f32 0.0, %v1018
        %v1020 = vpop.f32.mrf.mxu0
        %v1021 = vpop.f32.mrf.mxu0
        %v1022 = vadd.f32 0.0, %v1021
        %v1023 = vpop.f32.mrf.mxu0
        %1024 = vmatprep.mubr.bf16.mxu0 0
        %1025 = vmatmul.mubr.bf16.gmra.mxu0 %v698
        %v1026 = vpop.f32.mrf.mxu0
        %v1027 = vadd.f32 0.0, %v1026
        %v1028 = vpop.f32.mrf.mxu0
        %v1029 = vpop.f32.mrf.mxu0
        %v1030 = vadd.f32 0.0, %v1029
        %v1031 = vpop.f32.mrf.mxu0
        %1032 = vmatprep.mubr.bf16.mxu0 0
        %1033 = vmatmul.mubr.bf16.gmra.mxu0 %v699
        %v1034 = vpop.f32.mrf.mxu0
        %v1035 = vadd.f32 0.0, %v1034
        %v1036 = vpop.f32.mrf.mxu0
        %v1037 = vpop.f32.mrf.mxu0
        %v1038 = vadd.f32 0.0, %v1037
        %v1039 = vpop.f32.mrf.mxu0
        %1040 = vmatprep.mubr.bf16.mxu0 0
        %1041 = vmatmul.mubr.bf16.gmra.mxu0 %v700
        %v1042 = vpop.f32.mrf.mxu0
        %v1043 = vadd.f32 0.0, %v1042
        %v1044 = vpop.f32.mrf.mxu0
        %v1045 = vpop.f32.mrf.mxu0
        %v1046 = vadd.f32 0.0, %v1045
        %v1047 = vpop.f32.mrf.mxu0
        %1048 = vmatprep.mubr.bf16.mxu0 0
        %1049 = vmatmul.mubr.bf16.gmra.mxu0 %v701
        %v1050 = vpop.f32.mrf.mxu0
        %v1051 = vadd.f32 0.0, %v1050
        %v1052 = vpop.f32.mrf.mxu0
        %v1053 = vpop.f32.mrf.mxu0
        %v1054 = vadd.f32 0.0, %v1053
        %v1055 = vpop.f32.mrf.mxu0
        %1056 = vmatprep.mubr.bf16.mxu0 0
        %1057 = vmatmul.mubr.bf16.gmra.mxu0 %v702
        %v1058 = vpop.f32.mrf.mxu0
        %v1059 = vadd.f32 0.0, %v1058
        %v1060 = vpop.f32.mrf.mxu0
        %v1061 = vpop.f32.mrf.mxu0
        %v1062 = vadd.f32 0.0, %v1061
        %v1063 = vpop.f32.mrf.mxu0
        %1064 = vmatprep.mubr.bf16.mxu0 0
        %1065 = vmatmul.mubr.bf16.gmra.mxu0 %v703
        %v1066 = vpop.f32.mrf.mxu0
        %v1067 = vadd.f32 0.0, %v1066
        %v1068 = vpop.f32.mrf.mxu0
        %v1069 = vpop.f32.mrf.mxu0
        %v1070 = vadd.f32 0.0, %v1069
        %v1071 = vpop.f32.mrf.mxu0
        %1072 = vdwg.mxu0
        %v1073 = vadd.f32 %v819, %v822
        %v1074 = vadd.f32 %v1073, %v827
        %v1075 = vadd.f32 %v1074, %v830
        %v1076 = vadd.f32 %v1075, %v835
        %v1077 = vadd.f32 %v1076, %v838
        %v1078 = vadd.f32 %v1077, %v843
        %v1079 = vadd.f32 %v1078, %v846
        %v1080 = vadd.f32 %v1079, %v851
        %v1081 = vadd.f32 %v1080, %v854
        %v1082 = vadd.f32 %v1081, %v859
        %v1083 = vadd.f32 %v1082, %v862
        %v1084 = vadd.f32 %v1083, %v867
        %v1085 = vadd.f32 %v1084, %v870
        %v1086 = vadd.f32 %v1085, %v875
        %v1087 = vadd.f32 %v1086, %v878
        %v1088 = vadd.f32 %v1087, %v883
        %v1089 = vadd.f32 %v1088, %v886
        %v1090 = vadd.f32 %v1089, %v891
        %v1091 = vadd.f32 %v1090, %v894
        %v1092 = vadd.f32 %v1091, %v899
        %v1093 = vadd.f32 %v1092, %v902
        %v1094 = vadd.f32 %v1093, %v907
        %v1095 = vadd.f32 %v1094, %v910
        %v1096 = vadd.f32 %v1095, %v915
        %v1097 = vadd.f32 %v1096, %v918
        %v1098 = vadd.f32 %v1097, %v923
        %v1099 = vadd.f32 %v1098, %v926
        %v1100 = vadd.f32 %v1099, %v931
        %v1101 = vadd.f32 %v1100, %v934
        %v1102 = vadd.f32 %v1101, %v939
        %v1103 = vadd.f32 %v1102, %v942
        %v1104 = vadd.f32 %v1103, %v947
        %v1105 = vadd.f32 %v1104, %v950
        %v1106 = vadd.f32 %v1105, %v955
        %v1107 = vadd.f32 %v1106, %v958
        %v1108 = vadd.f32 %v1107, %v963
        %v1109 = vadd.f32 %v1108, %v966
        %v1110 = vadd.f32 %v1109, %v971
        %v1111 = vadd.f32 %v1110, %v974
        %v1112 = vadd.f32 %v1111, %v979
        %v1113 = vadd.f32 %v1112, %v982
        %v1114 = vadd.f32 %v1113, %v987
        %v1115 = vadd.f32 %v1114, %v990
        %v1116 = vadd.f32 %v1115, %v995
        %v1117 = vadd.f32 %v1116, %v998
        %v1118 = vadd.f32 %v1117, %v1003
        %v1119 = vadd.f32 %v1118, %v1006
        %v1120 = vadd.f32 %v1119, %v1011
        %v1121 = vadd.f32 %v1120, %v1014
        %v1122 = vadd.f32 %v1121, %v1019
        %v1123 = vadd.f32 %v1122, %v1022
        %v1124 = vadd.f32 %v1123, %v1027
        %v1125 = vadd.f32 %v1124, %v1030
        %v1126 = vadd.f32 %v1125, %v1035
        %v1127 = vadd.f32 %v1126, %v1038
        %v1128 = vadd.f32 %v1127, %v1043
        %v1129 = vadd.f32 %v1128, %v1046
        %v1130 = vadd.f32 %v1129, %v1051
        %v1131 = vadd.f32 %v1130, %v1054
        %v1132 = vadd.f32 %v1131, %v1059
        %v1133 = vadd.f32 %v1132, %v1062
        %v1134 = vadd.f32 %v1133, %v1067
        %v1135 = vadd.f32 %v1134, %v1070
        %v1136 = vrot.slane %v1135, 4
        %v1137 = vadd.f32 %v1135, %v1136
        %v1138 = vrot.slane %v1137, 2
        %v1139 = vadd.f32 %v1137, %v1138
        %v1140 = vrot.slane %v1139, 1
        %v1141 = vadd.f32 %v1139, %v1140
        %v1142 = vmul.f32 %v1141, 0.001953125
        %v1143 = vmul.f32 %v819, %v819
        %v1144 = vmul.f32 %v822, %v822
        %v1145 = vmul.f32 %v827, %v827
        %v1146 = vmul.f32 %v830, %v830
        %v1147 = vmul.f32 %v835, %v835
        %v1148 = vmul.f32 %v838, %v838
        %v1149 = vmul.f32 %v843, %v843
        %v1150 = vmul.f32 %v846, %v846
        %v1151 = vmul.f32 %v851, %v851
        %v1152 = vmul.f32 %v854, %v854
        %v1153 = vmul.f32 %v859, %v859
        %v1154 = vmul.f32 %v862, %v862
        %v1155 = vmul.f32 %v867, %v867
        %v1156 = vmul.f32 %v870, %v870
        %v1157 = vmul.f32 %v875, %v875
        %v1158 = vmul.f32 %v878, %v878
        %v1159 = vmul.f32 %v883, %v883
        %v1160 = vmul.f32 %v886, %v886
        %v1161 = vmul.f32 %v891, %v891
        %v1162 = vmul.f32 %v894, %v894
        %v1163 = vmul.f32 %v899, %v899
        %v1164 = vmul.f32 %v902, %v902
        %v1165 = vmul.f32 %v907, %v907
        %v1166 = vmul.f32 %v910, %v910
        %v1167 = vmul.f32 %v915, %v915
        %v1168 = vmul.f32 %v918, %v918
        %v1169 = vmul.f32 %v923, %v923
        %v1170 = vmul.f32 %v926, %v926
        %v1171 = vmul.f32 %v931, %v931
        %v1172 = vmul.f32 %v934, %v934
        %v1173 = vmul.f32 %v939, %v939
        %v1174 = vmul.f32 %v942, %v942
        %v1175 = vmul.f32 %v947, %v947
        %v1176 = vmul.f32 %v950, %v950
        %v1177 = vmul.f32 %v955, %v955
        %v1178 = vmul.f32 %v958, %v958
        %v1179 = vmul.f32 %v963, %v963
        %v1180 = vmul.f32 %v966, %v966
        %v1181 = vmul.f32 %v971, %v971
        %v1182 = vmul.f32 %v974, %v974
        %v1183 = vmul.f32 %v979, %v979
        %v1184 = vmul.f32 %v982, %v982
        %v1185 = vmul.f32 %v987, %v987
        %v1186 = vmul.f32 %v990, %v990
        %v1187 = vmul.f32 %v995, %v995
        %v1188 = vmul.f32 %v998, %v998
        %v1189 = vmul.f32 %v1003, %v1003
        %v1190 = vmul.f32 %v1006, %v1006
        %v1191 = vmul.f32 %v1011, %v1011
        %v1192 = vmul.f32 %v1014, %v1014
        %v1193 = vmul.f32 %v1019, %v1019
        %v1194 = vmul.f32 %v1022, %v1022
        %v1195 = vmul.f32 %v1027, %v1027
        %v1196 = vmul.f32 %v1030, %v1030
        %v1197 = vmul.f32 %v1035, %v1035
        %v1198 = vmul.f32 %v1038, %v1038
        %v1199 = vmul.f32 %v1043, %v1043
        %v1200 = vmul.f32 %v1046, %v1046
        %v1201 = vmul.f32 %v1051, %v1051
        %v1202 = vmul.f32 %v1054, %v1054
        %v1203 = vmul.f32 %v1059, %v1059
        %v1204 = vmul.f32 %v1062, %v1062
        %v1205 = vmul.f32 %v1067, %v1067
        %v1206 = vmul.f32 %v1070, %v1070
        %v1207 = vadd.f32 %v1143, %v1144
        %v1208 = vadd.f32 %v1207, %v1145
        %v1209 = vadd.f32 %v1208, %v1146
        %v1210 = vadd.f32 %v1209, %v1147
        %v1211 = vadd.f32 %v1210, %v1148
        %v1212 = vadd.f32 %v1211, %v1149
        %v1213 = vadd.f32 %v1212, %v1150
        %v1214 = vadd.f32 %v1213, %v1151
        %v1215 = vadd.f32 %v1214, %v1152
        %v1216 = vadd.f32 %v1215, %v1153
        %v1217 = vadd.f32 %v1216, %v1154
        %v1218 = vadd.f32 %v1217, %v1155
        %v1219 = vadd.f32 %v1218, %v1156
        %v1220 = vadd.f32 %v1219, %v1157
        %v1221 = vadd.f32 %v1220, %v1158
        %v1222 = vadd.f32 %v1221, %v1159
        %v1223 = vadd.f32 %v1222, %v1160
        %v1224 = vadd.f32 %v1223, %v1161
        %v1225 = vadd.f32 %v1224, %v1162
        %v1226 = vadd.f32 %v1225, %v1163
        %v1227 = vadd.f32 %v1226, %v1164
        %v1228 = vadd.f32 %v1227, %v1165
        %v1229 = vadd.f32 %v1228, %v1166
        %v1230 = vadd.f32 %v1229, %v1167
        %v1231 = vadd.f32 %v1230, %v1168
        %v1232 = vadd.f32 %v1231, %v1169
        %v1233 = vadd.f32 %v1232, %v1170
        %v1234 = vadd.f32 %v1233, %v1171
        %v1235 = vadd.f32 %v1234, %v1172
        %v1236 = vadd.f32 %v1235, %v1173
        %v1237 = vadd.f32 %v1236, %v1174
        %v1238 = vadd.f32 %v1237, %v1175
        %v1239 = vadd.f32 %v1238, %v1176
        %v1240 = vadd.f32 %v1239, %v1177
        %v1241 = vadd.f32 %v1240, %v1178
        %v1242 = vadd.f32 %v1241, %v1179
        %v1243 = vadd.f32 %v1242, %v1180
        %v1244 = vadd.f32 %v1243, %v1181
        %v1245 = vadd.f32 %v1244, %v1182
        %v1246 = vadd.f32 %v1245, %v1183
        %v1247 = vadd.f32 %v1246, %v1184
        %v1248 = vadd.f32 %v1247, %v1185
        %v1249 = vadd.f32 %v1248, %v1186
        %v1250 = vadd.f32 %v1249, %v1187
        %v1251 = vadd.f32 %v1250, %v1188
        %v1252 = vadd.f32 %v1251, %v1189
        %v1253 = vadd.f32 %v1252, %v1190
        %v1254 = vadd.f32 %v1253, %v1191
        %v1255 = vadd.f32 %v1254, %v1192
        %v1256 = vadd.f32 %v1255, %v1193
        %v1257 = vadd.f32 %v1256, %v1194
        %v1258 = vadd.f32 %v1257, %v1195
        %v1259 = vadd.f32 %v1258, %v1196
        %v1260 = vadd.f32 %v1259, %v1197
        %v1261 = vadd.f32 %v1260, %v1198
        %v1262 = vadd.f32 %v1261, %v1199
        %v1263 = vadd.f32 %v1262, %v1200
        %v1264 = vadd.f32 %v1263, %v1201
        %v1265 = vadd.f32 %v1264, %v1202
        %v1266 = vadd.f32 %v1265, %v1203
        %v1267 = vadd.f32 %v1266, %v1204
        %v1268 = vadd.f32 %v1267, %v1205
        %v1269 = vadd.f32 %v1268, %v1206
        %v1270 = vrot.slane %v1269, 4
        %v1271 = vadd.f32 %v1269, %v1270
        %v1272 = vrot.slane %v1271, 2
        %v1273 = vadd.f32 %v1271, %v1272
        %v1274 = vrot.slane %v1273, 1
        %v1275 = vadd.f32 %v1273, %v1274
        %v1276 = vmul.f32 %v1275, 0.001953125
        %v1277 = vmul.f32 %v1142, %v1142
        %v1278 = vsub.f32 %v1276, %v1277
        %v1279 = vld [vmem:[%s2] sm:$0x1]
        %v1280 = vadd.f32 %v1278, 1e-05
        %v1281 = vrsqrt.pop %v1280
        %v1282 = vmul.f32 %v1279, %v1281
        %v1283 = vld [vmem:[%s3] sm:$0x1]
        %v1284 = vmul.f32 %v1142, %v1282
        %v1285 = vsub.f32 %v1283, %v1284
        %v1287 = vlaneseq
        %v1288 = vshrl.u32 %v1287, 7
        %v1289 = vsub.s32 0, %v1288
        %v1290 = vrot.slane %v1282, %v1289
        %v1292 = vmul.f32 %v819, %v1290
        %v1293 = vmul.f32 %v822, %v1290
        %v1294 = vmul.f32 %v827, %v1290
        %v1295 = vmul.f32 %v830, %v1290
        %v1296 = vmul.f32 %v835, %v1290
        %v1297 = vmul.f32 %v838, %v1290
        %v1298 = vmul.f32 %v843, %v1290
        %v1299 = vmul.f32 %v846, %v1290
        %v1300 = vmul.f32 %v851, %v1290
        %v1301 = vmul.f32 %v854, %v1290
        %v1302 = vmul.f32 %v859, %v1290
        %v1303 = vmul.f32 %v862, %v1290
        %v1304 = vmul.f32 %v867, %v1290
        %v1305 = vmul.f32 %v870, %v1290
        %v1306 = vmul.f32 %v875, %v1290
        %v1307 = vmul.f32 %v878, %v1290
        %v1308 = vmul.f32 %v883, %v1290
        %v1309 = vmul.f32 %v886, %v1290
        %v1310 = vmul.f32 %v891, %v1290
        %v1311 = vmul.f32 %v894, %v1290
        %v1312 = vmul.f32 %v899, %v1290
        %v1313 = vmul.f32 %v902, %v1290
        %v1314 = vmul.f32 %v907, %v1290
        %v1315 = vmul.f32 %v910, %v1290
        %v1316 = vmul.f32 %v915, %v1290
        %v1317 = vmul.f32 %v918, %v1290
        %v1318 = vmul.f32 %v923, %v1290
        %v1319 = vmul.f32 %v926, %v1290
        %v1320 = vmul.f32 %v931, %v1290
        %v1321 = vmul.f32 %v934, %v1290
        %v1322 = vmul.f32 %v939, %v1290
        %v1323 = vmul.f32 %v942, %v1290
        %v1324 = vmul.f32 %v947, %v1290
        %v1325 = vmul.f32 %v950, %v1290
        %v1326 = vmul.f32 %v955, %v1290
        %v1327 = vmul.f32 %v958, %v1290
        %v1328 = vmul.f32 %v963, %v1290
        %v1329 = vmul.f32 %v966, %v1290
        %v1330 = vmul.f32 %v971, %v1290
        %v1331 = vmul.f32 %v974, %v1290
        %v1332 = vmul.f32 %v979, %v1290
        %v1333 = vmul.f32 %v982, %v1290
        %v1334 = vmul.f32 %v987, %v1290
        %v1335 = vmul.f32 %v990, %v1290
        %v1336 = vmul.f32 %v995, %v1290
        %v1337 = vmul.f32 %v998, %v1290
        %v1338 = vmul.f32 %v1003, %v1290
        %v1339 = vmul.f32 %v1006, %v1290
        %v1340 = vmul.f32 %v1011, %v1290
        %v1341 = vmul.f32 %v1014, %v1290
        %v1342 = vmul.f32 %v1019, %v1290
        %v1343 = vmul.f32 %v1022, %v1290
        %v1344 = vmul.f32 %v1027, %v1290
        %v1345 = vmul.f32 %v1030, %v1290
        %v1346 = vmul.f32 %v1035, %v1290
        %v1347 = vmul.f32 %v1038, %v1290
        %v1348 = vmul.f32 %v1043, %v1290
        %v1349 = vmul.f32 %v1046, %v1290
        %v1350 = vmul.f32 %v1051, %v1290
        %v1351 = vmul.f32 %v1054, %v1290
        %v1352 = vmul.f32 %v1059, %v1290
        %v1353 = vmul.f32 %v1062, %v1290
        %v1354 = vmul.f32 %v1067, %v1290
        %v1355 = vmul.f32 %v1070, %v1290
        %v1357 = vlaneseq
        %v1358 = vshrl.u32 %v1357, 7
        %v1359 = vsub.s32 0, %v1358
        %v1360 = vrot.slane %v1285, %v1359
        %v1362 = vadd.f32 %v1292, %v1360
        %v1363 = vadd.f32 %v1293, %v1360
        %v1364 = vadd.f32 %v1294, %v1360
        %v1365 = vadd.f32 %v1295, %v1360
        %v1366 = vadd.f32 %v1296, %v1360
        %v1367 = vadd.f32 %v1297, %v1360
        %v1368 = vadd.f32 %v1298, %v1360
        %v1369 = vadd.f32 %v1299, %v1360
        %v1370 = vadd.f32 %v1300, %v1360
        %v1371 = vadd.f32 %v1301, %v1360
        %v1372 = vadd.f32 %v1302, %v1360
        %v1373 = vadd.f32 %v1303, %v1360
        %v1374 = vadd.f32 %v1304, %v1360
        %v1375 = vadd.f32 %v1305, %v1360
        %v1376 = vadd.f32 %v1306, %v1360
        %v1377 = vadd.f32 %v1307, %v1360
        %v1378 = vadd.f32 %v1308, %v1360
        %v1379 = vadd.f32 %v1309, %v1360
        %v1380 = vadd.f32 %v1310, %v1360
        %v1381 = vadd.f32 %v1311, %v1360
        %v1382 = vadd.f32 %v1312, %v1360
        %v1383 = vadd.f32 %v1313, %v1360
        %v1384 = vadd.f32 %v1314, %v1360
        %v1385 = vadd.f32 %v1315, %v1360
        %v1386 = vadd.f32 %v1316, %v1360
        %v1387 = vadd.f32 %v1317, %v1360
        %v1388 = vadd.f32 %v1318, %v1360
        %v1389 = vadd.f32 %v1319, %v1360
        %v1390 = vadd.f32 %v1320, %v1360
        %v1391 = vadd.f32 %v1321, %v1360
        %v1392 = vadd.f32 %v1322, %v1360
        %v1393 = vadd.f32 %v1323, %v1360
        %v1394 = vadd.f32 %v1324, %v1360
        %v1395 = vadd.f32 %v1325, %v1360
        %v1396 = vadd.f32 %v1326, %v1360
        %v1397 = vadd.f32 %v1327, %v1360
        %v1398 = vadd.f32 %v1328, %v1360
        %v1399 = vadd.f32 %v1329, %v1360
        %v1400 = vadd.f32 %v1330, %v1360
        %v1401 = vadd.f32 %v1331, %v1360
        %v1402 = vadd.f32 %v1332, %v1360
        %v1403 = vadd.f32 %v1333, %v1360
        %v1404 = vadd.f32 %v1334, %v1360
        %v1405 = vadd.f32 %v1335, %v1360
        %v1406 = vadd.f32 %v1336, %v1360
        %v1407 = vadd.f32 %v1337, %v1360
        %v1408 = vadd.f32 %v1338, %v1360
        %v1409 = vadd.f32 %v1339, %v1360
        %v1410 = vadd.f32 %v1340, %v1360
        %v1411 = vadd.f32 %v1341, %v1360
        %v1412 = vadd.f32 %v1342, %v1360
        %v1413 = vadd.f32 %v1343, %v1360
        %v1414 = vadd.f32 %v1344, %v1360
        %v1415 = vadd.f32 %v1345, %v1360
        %v1416 = vadd.f32 %v1346, %v1360
        %v1417 = vadd.f32 %v1347, %v1360
        %v1418 = vadd.f32 %v1348, %v1360
        %v1419 = vadd.f32 %v1349, %v1360
        %v1420 = vadd.f32 %v1350, %v1360
        %v1421 = vadd.f32 %v1351, %v1360
        %v1422 = vadd.f32 %v1352, %v1360
        %v1423 = vadd.f32 %v1353, %v1360
        %v1424 = vadd.f32 %v1354, %v1360
        %v1425 = vadd.f32 %v1355, %v1360
        %v1426 = vmax.f32 %v1362, 0.0
        %v1427 = vmax.f32 %v1363, 0.0
        %v1428 = vmax.f32 %v1364, 0.0
        %v1429 = vmax.f32 %v1365, 0.0
        %v1430 = vmax.f32 %v1366, 0.0
        %v1431 = vmax.f32 %v1367, 0.0
        %v1432 = vmax.f32 %v1368, 0.0
        %v1433 = vmax.f32 %v1369, 0.0
        %v1434 = vmax.f32 %v1370, 0.0
        %v1435 = vmax.f32 %v1371, 0.0
        %v1436 = vmax.f32 %v1372, 0.0
        %v1437 = vmax.f32 %v1373, 0.0
        %v1438 = vmax.f32 %v1374, 0.0
        %v1439 = vmax.f32 %v1375, 0.0
        %v1440 = vmax.f32 %v1376, 0.0
        %v1441 = vmax.f32 %v1377, 0.0
        %v1442 = vmax.f32 %v1378, 0.0
        %v1443 = vmax.f32 %v1379, 0.0
        %v1444 = vmax.f32 %v1380, 0.0
        %v1445 = vmax.f32 %v1381, 0.0
        %v1446 = vmax.f32 %v1382, 0.0
        %v1447 = vmax.f32 %v1383, 0.0
        %v1448 = vmax.f32 %v1384, 0.0
        %v1449 = vmax.f32 %v1385, 0.0
        %v1450 = vmax.f32 %v1386, 0.0
        %v1451 = vmax.f32 %v1387, 0.0
        %v1452 = vmax.f32 %v1388, 0.0
        %v1453 = vmax.f32 %v1389, 0.0
        %v1454 = vmax.f32 %v1390, 0.0
        %v1455 = vmax.f32 %v1391, 0.0
        %v1456 = vmax.f32 %v1392, 0.0
        %v1457 = vmax.f32 %v1393, 0.0
        %v1458 = vmax.f32 %v1394, 0.0
        %v1459 = vmax.f32 %v1395, 0.0
        %v1460 = vmax.f32 %v1396, 0.0
        %v1461 = vmax.f32 %v1397, 0.0
        %v1462 = vmax.f32 %v1398, 0.0
        %v1463 = vmax.f32 %v1399, 0.0
        %v1464 = vmax.f32 %v1400, 0.0
        %v1465 = vmax.f32 %v1401, 0.0
        %v1466 = vmax.f32 %v1402, 0.0
        %v1467 = vmax.f32 %v1403, 0.0
        %v1468 = vmax.f32 %v1404, 0.0
        %v1469 = vmax.f32 %v1405, 0.0
        %v1470 = vmax.f32 %v1406, 0.0
        %v1471 = vmax.f32 %v1407, 0.0
        %v1472 = vmax.f32 %v1408, 0.0
        %v1473 = vmax.f32 %v1409, 0.0
        %v1474 = vmax.f32 %v1410, 0.0
        %v1475 = vmax.f32 %v1411, 0.0
        %v1476 = vmax.f32 %v1412, 0.0
        %v1477 = vmax.f32 %v1413, 0.0
        %v1478 = vmax.f32 %v1414, 0.0
        %v1479 = vmax.f32 %v1415, 0.0
        %v1480 = vmax.f32 %v1416, 0.0
        %v1481 = vmax.f32 %v1417, 0.0
        %v1482 = vmax.f32 %v1418, 0.0
        %v1483 = vmax.f32 %v1419, 0.0
        %v1484 = vmax.f32 %v1420, 0.0
        %v1485 = vmax.f32 %v1421, 0.0
        %v1486 = vmax.f32 %v1422, 0.0
        %v1487 = vmax.f32 %v1423, 0.0
        %v1488 = vmax.f32 %v1424, 0.0
        %v1489 = vmax.f32 %v1425, 0.0
        %v1490 = vpack.c.bf16 %v1427, %v1426
        %v1491 = vpack.c.bf16 %v1429, %v1428
        %v1492 = vpack.c.bf16 %v1431, %v1430
        %v1493 = vpack.c.bf16 %v1433, %v1432
        %v1494 = vpack.c.bf16 %v1435, %v1434
        %v1495 = vpack.c.bf16 %v1437, %v1436
        %v1496 = vpack.c.bf16 %v1439, %v1438
        %v1497 = vpack.c.bf16 %v1441, %v1440
        %v1498 = vpack.c.bf16 %v1443, %v1442
        %v1499 = vpack.c.bf16 %v1445, %v1444
        %v1500 = vpack.c.bf16 %v1447, %v1446
        %v1501 = vpack.c.bf16 %v1449, %v1448
        %v1502 = vpack.c.bf16 %v1451, %v1450
        %v1503 = vpack.c.bf16 %v1453, %v1452
        %v1504 = vpack.c.bf16 %v1455, %v1454
        %v1505 = vpack.c.bf16 %v1457, %v1456
        %v1506 = vpack.c.bf16 %v1459, %v1458
        %v1507 = vpack.c.bf16 %v1461, %v1460
        %v1508 = vpack.c.bf16 %v1463, %v1462
        %v1509 = vpack.c.bf16 %v1465, %v1464
        %v1510 = vpack.c.bf16 %v1467, %v1466
        %v1511 = vpack.c.bf16 %v1469, %v1468
        %v1512 = vpack.c.bf16 %v1471, %v1470
        %v1513 = vpack.c.bf16 %v1473, %v1472
        %v1514 = vpack.c.bf16 %v1475, %v1474
        %v1515 = vpack.c.bf16 %v1477, %v1476
        %v1516 = vpack.c.bf16 %v1479, %v1478
        %v1517 = vpack.c.bf16 %v1481, %v1480
        %v1518 = vpack.c.bf16 %v1483, %v1482
        %v1519 = vpack.c.bf16 %v1485, %v1484
        %v1520 = vpack.c.bf16 %v1487, %v1486
        %v1521 = vpack.c.bf16 %v1489, %v1488
        %v1522 = vld [vmem:[%s411] sm:$0xff]
        %v1523 = vld [vmem:[%s411 + $0x8] sm:$0xff]
        %v1524 = vld [vmem:[%s411 + $0x10] sm:$0xff]
        %v1525 = vld [vmem:[%s411 + $0x18] sm:$0xff]
        %v1526 = vld [vmem:[%s411 + $0x20] sm:$0xff]
        %v1527 = vld [vmem:[%s411 + $0x28] sm:$0xff]
        %v1528 = vld [vmem:[%s411 + $0x30] sm:$0xff]
        %v1529 = vld [vmem:[%s411 + $0x38] sm:$0xff]
        %v1530 = vld [vmem:[%s411 + $0x40] sm:$0xff]
        %v1531 = vld [vmem:[%s411 + $0x48] sm:$0xff]
        %v1532 = vld [vmem:[%s411 + $0x50] sm:$0xff]
        %v1533 = vld [vmem:[%s411 + $0x58] sm:$0xff]
        %v1534 = vld [vmem:[%s411 + $0x60] sm:$0xff]
        %v1535 = vld [vmem:[%s411 + $0x68] sm:$0xff]
        %v1536 = vld [vmem:[%s411 + $0x70] sm:$0xff]
        %v1537 = vld [vmem:[%s411 + $0x78] sm:$0xff]
        %v1538 = vld [vmem:[%s411 + $0x80] sm:$0xff]
        %v1539 = vld [vmem:[%s411 + $0x88] sm:$0xff]
        %v1540 = vld [vmem:[%s411 + $0x90] sm:$0xff]
        %v1541 = vld [vmem:[%s411 + $0x98] sm:$0xff]
        %v1542 = vld [vmem:[%s411 + $0xa0] sm:$0xff]
        %v1543 = vld [vmem:[%s411 + $0xa8] sm:$0xff]
        %v1544 = vld [vmem:[%s411 + $0xb0] sm:$0xff]
        %v1545 = vld [vmem:[%s411 + $0xb8] sm:$0xff]
        %v1546 = vld [vmem:[%s411 + $0xc0] sm:$0xff]
        %v1547 = vld [vmem:[%s411 + $0xc8] sm:$0xff]
        %v1548 = vld [vmem:[%s411 + $0xd0] sm:$0xff]
        %v1549 = vld [vmem:[%s411 + $0xd8] sm:$0xff]
        %v1550 = vld [vmem:[%s411 + $0xe0] sm:$0xff]
        %v1551 = vld [vmem:[%s411 + $0xe8] sm:$0xff]
        %v1552 = vld [vmem:[%s411 + $0xf0] sm:$0xff]
        %v1553 = vld [vmem:[%s411 + $0xf8] sm:$0xff]
        %v1554 = vld [vmem:[%s411 + $0x100] sm:$0xff]
        %v1555 = vld [vmem:[%s411 + $0x108] sm:$0xff]
        %v1556 = vld [vmem:[%s411 + $0x110] sm:$0xff]
        %v1557 = vld [vmem:[%s411 + $0x118] sm:$0xff]
        %v1558 = vld [vmem:[%s411 + $0x120] sm:$0xff]
        %v1559 = vld [vmem:[%s411 + $0x128] sm:$0xff]
        %v1560 = vld [vmem:[%s411 + $0x130] sm:$0xff]
        %v1561 = vld [vmem:[%s411 + $0x138] sm:$0xff]
        %v1562 = vld [vmem:[%s411 + $0x140] sm:$0xff]
        %v1563 = vld [vmem:[%s411 + $0x148] sm:$0xff]
        %v1564 = vld [vmem:[%s411 + $0x150] sm:$0xff]
        %v1565 = vld [vmem:[%s411 + $0x158] sm:$0xff]
        %v1566 = vld [vmem:[%s411 + $0x160] sm:$0xff]
        %v1567 = vld [vmem:[%s411 + $0x168] sm:$0xff]
        %v1568 = vld [vmem:[%s411 + $0x170] sm:$0xff]
        %v1569 = vld [vmem:[%s411 + $0x178] sm:$0xff]
        %v1570 = vld [vmem:[%s411 + $0x180] sm:$0xff]
        %v1571 = vld [vmem:[%s411 + $0x188] sm:$0xff]
        %v1572 = vld [vmem:[%s411 + $0x190] sm:$0xff]
        %v1573 = vld [vmem:[%s411 + $0x198] sm:$0xff]
        %v1574 = vld [vmem:[%s411 + $0x1a0] sm:$0xff]
        %v1575 = vld [vmem:[%s411 + $0x1a8] sm:$0xff]
        %v1576 = vld [vmem:[%s411 + $0x1b0] sm:$0xff]
        %v1577 = vld [vmem:[%s411 + $0x1b8] sm:$0xff]
        %v1578 = vld [vmem:[%s411 + $0x1c0] sm:$0xff]
        %v1579 = vld [vmem:[%s411 + $0x1c8] sm:$0xff]
        %v1580 = vld [vmem:[%s411 + $0x1d0] sm:$0xff]
        %v1581 = vld [vmem:[%s411 + $0x1d8] sm:$0xff]
        %v1582 = vld [vmem:[%s411 + $0x1e0] sm:$0xff]
        %v1583 = vld [vmem:[%s411 + $0x1e8] sm:$0xff]
        %v1584 = vld [vmem:[%s411 + $0x1f0] sm:$0xff]
        %v1585 = vld [vmem:[%s411 + $0x1f8] sm:$0xff]
        %v1650 = vunpack.c.l.b16 %v1522
        %v1651 = vunpack.c.h.b16 %v1522
        %v1652 = vunpack.c.l.b16 %v1523
        %v1653 = vunpack.c.h.b16 %v1523
        %v1654 = vunpack.c.l.b16 %v1524
        %v1655 = vunpack.c.h.b16 %v1524
        %v1656 = vunpack.c.l.b16 %v1525
        %v1657 = vunpack.c.h.b16 %v1525
        %v1658 = vunpack.c.l.b16 %v1526
        %v1659 = vunpack.c.h.b16 %v1526
        %v1660 = vunpack.c.l.b16 %v1527
        %v1661 = vunpack.c.h.b16 %v1527
        %v1662 = vunpack.c.l.b16 %v1528
        %v1663 = vunpack.c.h.b16 %v1528
        %v1664 = vunpack.c.l.b16 %v1529
        %v1665 = vunpack.c.h.b16 %v1529
        %v1666 = vunpack.c.l.b16 %v1530
        %v1667 = vunpack.c.h.b16 %v1530
        %v1668 = vunpack.c.l.b16 %v1531
        %v1669 = vunpack.c.h.b16 %v1531
        %v1670 = vunpack.c.l.b16 %v1532
        %v1671 = vunpack.c.h.b16 %v1532
        %v1672 = vunpack.c.l.b16 %v1533
        %v1673 = vunpack.c.h.b16 %v1533
        %v1674 = vunpack.c.l.b16 %v1534
        %v1675 = vunpack.c.h.b16 %v1534
        %v1676 = vunpack.c.l.b16 %v1535
        %v1677 = vunpack.c.h.b16 %v1535
        %v1678 = vunpack.c.l.b16 %v1536
        %v1679 = vunpack.c.h.b16 %v1536
        %v1680 = vunpack.c.l.b16 %v1537
        %v1681 = vunpack.c.h.b16 %v1537
        %v1682 = vunpack.c.l.b16 %v1538
        %v1683 = vunpack.c.h.b16 %v1538
        %v1684 = vunpack.c.l.b16 %v1539
        %v1685 = vunpack.c.h.b16 %v1539
        %v1686 = vunpack.c.l.b16 %v1540
        %v1687 = vunpack.c.h.b16 %v1540
        %v1688 = vunpack.c.l.b16 %v1541
        %v1689 = vunpack.c.h.b16 %v1541
        %v1690 = vunpack.c.l.b16 %v1542
        %v1691 = vunpack.c.h.b16 %v1542
        %v1692 = vunpack.c.l.b16 %v1543
        %v1693 = vunpack.c.h.b16 %v1543
        %v1694 = vunpack.c.l.b16 %v1544
        %v1695 = vunpack.c.h.b16 %v1544
        %v1696 = vunpack.c.l.b16 %v1545
        %v1697 = vunpack.c.h.b16 %v1545
        %v1698 = vunpack.c.l.b16 %v1546
        %v1699 = vunpack.c.h.b16 %v1546
        %v1700 = vunpack.c.l.b16 %v1547
        %v1701 = vunpack.c.h.b16 %v1547
        %v1702 = vunpack.c.l.b16 %v1548
        %v1703 = vunpack.c.h.b16 %v1548
        %v1704 = vunpack.c.l.b16 %v1549
        %v1705 = vunpack.c.h.b16 %v1549
        %v1706 = vunpack.c.l.b16 %v1550
        %v1707 = vunpack.c.h.b16 %v1550
        %v1708 = vunpack.c.l.b16 %v1551
        %v1709 = vunpack.c.h.b16 %v1551
        %v1710 = vunpack.c.l.b16 %v1552
        %v1711 = vunpack.c.h.b16 %v1552
        %v1712 = vunpack.c.l.b16 %v1553
        %v1713 = vunpack.c.h.b16 %v1553
        %v1714 = vunpack.c.l.b16 %v1554
        %v1715 = vunpack.c.h.b16 %v1554
        %v1716 = vunpack.c.l.b16 %v1555
        %v1717 = vunpack.c.h.b16 %v1555
        %v1718 = vunpack.c.l.b16 %v1556
        %v1719 = vunpack.c.h.b16 %v1556
        %v1720 = vunpack.c.l.b16 %v1557
        %v1721 = vunpack.c.h.b16 %v1557
        %v1722 = vunpack.c.l.b16 %v1558
        %v1723 = vunpack.c.h.b16 %v1558
        %v1724 = vunpack.c.l.b16 %v1559
        %v1725 = vunpack.c.h.b16 %v1559
        %v1726 = vunpack.c.l.b16 %v1560
        %v1727 = vunpack.c.h.b16 %v1560
        %v1728 = vunpack.c.l.b16 %v1561
        %v1729 = vunpack.c.h.b16 %v1561
        %v1730 = vunpack.c.l.b16 %v1562
        %v1731 = vunpack.c.h.b16 %v1562
        %v1732 = vunpack.c.l.b16 %v1563
        %v1733 = vunpack.c.h.b16 %v1563
        %v1734 = vunpack.c.l.b16 %v1564
        %v1735 = vunpack.c.h.b16 %v1564
        %v1736 = vunpack.c.l.b16 %v1565
        %v1737 = vunpack.c.h.b16 %v1565
        %v1738 = vunpack.c.l.b16 %v1566
        %v1739 = vunpack.c.h.b16 %v1566
        %v1740 = vunpack.c.l.b16 %v1567
        %v1741 = vunpack.c.h.b16 %v1567
        %v1742 = vunpack.c.l.b16 %v1568
        %v1743 = vunpack.c.h.b16 %v1568
        %v1744 = vunpack.c.l.b16 %v1569
        %v1745 = vunpack.c.h.b16 %v1569
        %v1746 = vunpack.c.l.b16 %v1570
        %v1747 = vunpack.c.h.b16 %v1570
        %v1748 = vunpack.c.l.b16 %v1571
        %v1749 = vunpack.c.h.b16 %v1571
        %v1750 = vunpack.c.l.b16 %v1572
        %v1751 = vunpack.c.h.b16 %v1572
        %v1752 = vunpack.c.l.b16 %v1573
        %v1753 = vunpack.c.h.b16 %v1573
        %v1754 = vunpack.c.l.b16 %v1574
        %v1755 = vunpack.c.h.b16 %v1574
        %v1756 = vunpack.c.l.b16 %v1575
        %v1757 = vunpack.c.h.b16 %v1575
        %v1758 = vunpack.c.l.b16 %v1576
        %v1759 = vunpack.c.h.b16 %v1576
        %v1760 = vunpack.c.l.b16 %v1577
        %v1761 = vunpack.c.h.b16 %v1577
        %v1762 = vunpack.c.l.b16 %v1578
        %v1763 = vunpack.c.h.b16 %v1578
        %v1764 = vunpack.c.l.b16 %v1579
        %v1765 = vunpack.c.h.b16 %v1579
        %v1766 = vunpack.c.l.b16 %v1580
        %v1767 = vunpack.c.h.b16 %v1580
        %v1768 = vunpack.c.l.b16 %v1581
        %v1769 = vunpack.c.h.b16 %v1581
        %v1770 = vunpack.c.l.b16 %v1582
        %v1771 = vunpack.c.h.b16 %v1582
        %v1772 = vunpack.c.l.b16 %v1583
        %v1773 = vunpack.c.h.b16 %v1583
        %v1774 = vunpack.c.l.b16 %v1584
        %v1775 = vunpack.c.h.b16 %v1584
        %v1776 = vunpack.c.l.b16 %v1585
        %v1777 = vunpack.c.h.b16 %v1585
        %v1778 = vpack.c.b16 %v1658, %v1650
        %v1779 = vpack.c.b16 %v1659, %v1651
        %v1780 = vpack.c.b16 %v1660, %v1652
        %v1781 = vpack.c.b16 %v1661, %v1653
        %v1782 = vpack.c.b16 %v1662, %v1654
        %v1783 = vpack.c.b16 %v1663, %v1655
        %v1784 = vpack.c.b16 %v1664, %v1656
        %v1785 = vpack.c.b16 %v1665, %v1657
        %v1786 = vpack.c.b16 %v1674, %v1666
        %v1787 = vpack.c.b16 %v1675, %v1667
        %v1788 = vpack.c.b16 %v1676, %v1668
        %v1789 = vpack.c.b16 %v1677, %v1669
        %v1790 = vpack.c.b16 %v1678, %v1670
        %v1791 = vpack.c.b16 %v1679, %v1671
        %v1792 = vpack.c.b16 %v1680, %v1672
        %v1793 = vpack.c.b16 %v1681, %v1673
        %v1794 = vpack.c.b16 %v1690, %v1682
        %v1795 = vpack.c.b16 %v1691, %v1683
        %v1796 = vpack.c.b16 %v1692, %v1684
        %v1797 = vpack.c.b16 %v1693, %v1685
        %v1798 = vpack.c.b16 %v1694, %v1686
        %v1799 = vpack.c.b16 %v1695, %v1687
        %v1800 = vpack.c.b16 %v1696, %v1688
        %v1801 = vpack.c.b16 %v1697, %v1689
        %v1802 = vpack.c.b16 %v1706, %v1698
        %v1803 = vpack.c.b16 %v1707, %v1699
        %v1804 = vpack.c.b16 %v1708, %v1700
        %v1805 = vpack.c.b16 %v1709, %v1701
        %v1806 = vpack.c.b16 %v1710, %v1702
        %v1807 = vpack.c.b16 %v1711, %v1703
        %v1808 = vpack.c.b16 %v1712, %v1704
        %v1809 = vpack.c.b16 %v1713, %v1705
        %v1810 = vpack.c.b16 %v1722, %v1714
        %v1811 = vpack.c.b16 %v1723, %v1715
        %v1812 = vpack.c.b16 %v1724, %v1716
        %v1813 = vpack.c.b16 %v1725, %v1717
        %v1814 = vpack.c.b16 %v1726, %v1718
        %v1815 = vpack.c.b16 %v1727, %v1719
        %v1816 = vpack.c.b16 %v1728, %v1720
        %v1817 = vpack.c.b16 %v1729, %v1721
        %v1818 = vpack.c.b16 %v1738, %v1730
        %v1819 = vpack.c.b16 %v1739, %v1731
        %v1820 = vpack.c.b16 %v1740, %v1732
        %v1821 = vpack.c.b16 %v1741, %v1733
        %v1822 = vpack.c.b16 %v1742, %v1734
        %v1823 = vpack.c.b16 %v1743, %v1735
        %v1824 = vpack.c.b16 %v1744, %v1736
        %v1825 = vpack.c.b16 %v1745, %v1737
        %v1826 = vpack.c.b16 %v1754, %v1746
        %v1827 = vpack.c.b16 %v1755, %v1747
        %v1828 = vpack.c.b16 %v1756, %v1748
        %v1829 = vpack.c.b16 %v1757, %v1749
        %v1830 = vpack.c.b16 %v1758, %v1750
        %v1831 = vpack.c.b16 %v1759, %v1751
        %v1832 = vpack.c.b16 %v1760, %v1752
        %v1833 = vpack.c.b16 %v1761, %v1753
        %v1834 = vpack.c.b16 %v1770, %v1762
        %v1835 = vpack.c.b16 %v1771, %v1763
        %v1836 = vpack.c.b16 %v1772, %v1764
        %v1837 = vpack.c.b16 %v1773, %v1765
        %v1838 = vpack.c.b16 %v1774, %v1766
        %v1839 = vpack.c.b16 %v1775, %v1767
        %v1840 = vpack.c.b16 %v1776, %v1768
        %v1841 = vpack.c.b16 %v1777, %v1769
        %1906 = vmatprep.subr.bf16.mxu0 %v1835
        %1907 = vmatpush1.bf16.msra.mxu0 %v1834
        %1908 = vmatprep.subr.bf16.mxu0 %v1827
        %1909 = vmatpush1.bf16.msra.mxu0 %v1826
        %1910 = vmatprep.subr.bf16.mxu0 %v1819
        %1911 = vmatpush1.bf16.msra.mxu0 %v1818
        %1912 = vmatprep.subr.bf16.mxu0 %v1811
        %1913 = vmatpush1.bf16.msra.mxu0 %v1810
        %1914 = vmatprep.subr.bf16.mxu0 %v1803
        %1915 = vmatpush1.bf16.msra.mxu0 %v1802
        %1916 = vmatprep.subr.bf16.mxu0 %v1795
        %1917 = vmatpush1.bf16.msra.mxu0 %v1794
        %1918 = vmatprep.subr.bf16.mxu0 %v1787
        %1919 = vmatpush1.bf16.msra.mxu0 %v1786
        %1920 = vmatprep.subr.bf16.mxu0 %v1779
        %1921 = vmatpush1.bf16.msra.mxu0 %v1778
        %1922 = vmatprep.subr.bf16.mxu0 0
        %1923 = vmatpush2.bf16.msra.mxu0 0
        %1924 = vmatprep.subr.bf16.mxu0 0
        %1925 = vmatpush2.bf16.msra.mxu0 0
        %1926 = vmatprep.subr.bf16.mxu0 0
        %1927 = vmatpush2.bf16.msra.mxu0 0
        %1928 = vmatprep.subr.bf16.mxu0 0
        %1929 = vmatpush2.bf16.msra.mxu0 0
        %1930 = vmatprep.subr.bf16.mxu0 0
        %1931 = vmatpush2.bf16.msra.mxu0 0
        %1932 = vmatprep.subr.bf16.mxu0 0
        %1933 = vmatpush2.bf16.msra.mxu0 0
        %1934 = vmatprep.subr.bf16.mxu0 0
        %1935 = vmatpush2.bf16.msra.mxu0 0
        %1936 = vmatprep.subr.bf16.mxu0 0
        %1937 = vmatpush2.bf16.msra.mxu0 0
        %1938 = vmatprep.mubr.bf16.mxu0 0
        %1939 = vmatmul.mubr.bf16.gmra.mxu0 %v1490
        %v1940 = vpop.f32.mrf.mxu0
        %v1941 = vadd.f32 0.0, %v1940
        %v1942 = vpop.f32.mrf.mxu0
        %v1943 = vadd.f32 0.0, %v1942
        %v1944 = vpop.f32.mrf.mxu0
        %v1945 = vadd.f32 0.0, %v1944
        %v1946 = vpop.f32.mrf.mxu0
        %v1947 = vadd.f32 0.0, %v1946
        %1948 = vmatprep.mubr.bf16.mxu0 0
        %1949 = vmatmul.mubr.bf16.gmra.mxu0 %v1491
        %v1950 = vpop.f32.mrf.mxu0
        %v1951 = vadd.f32 0.0, %v1950
        %v1952 = vpop.f32.mrf.mxu0
        %v1953 = vadd.f32 0.0, %v1952
        %v1954 = vpop.f32.mrf.mxu0
        %v1955 = vadd.f32 0.0, %v1954
        %v1956 = vpop.f32.mrf.mxu0
        %v1957 = vadd.f32 0.0, %v1956
        %1958 = vmatprep.mubr.bf16.mxu0 0
        %1959 = vmatmul.mubr.bf16.gmra.mxu0 %v1492
        %v1960 = vpop.f32.mrf.mxu0
        %v1961 = vadd.f32 0.0, %v1960
        %v1962 = vpop.f32.mrf.mxu0
        %v1963 = vadd.f32 0.0, %v1962
        %v1964 = vpop.f32.mrf.mxu0
        %v1965 = vadd.f32 0.0, %v1964
        %v1966 = vpop.f32.mrf.mxu0
        %v1967 = vadd.f32 0.0, %v1966
        %1968 = vmatprep.mubr.bf16.mxu0 0
        %1969 = vmatmul.mubr.bf16.gmra.mxu0 %v1493
        %v1970 = vpop.f32.mrf.mxu0
        %v1971 = vadd.f32 0.0, %v1970
        %v1972 = vpop.f32.mrf.mxu0
        %v1973 = vadd.f32 0.0, %v1972
        %v1974 = vpop.f32.mrf.mxu0
        %v1975 = vadd.f32 0.0, %v1974
        %v1976 = vpop.f32.mrf.mxu0
        %v1977 = vadd.f32 0.0, %v1976
        %1978 = vmatprep.mubr.bf16.mxu0 0
        %1979 = vmatmul.mubr.bf16.gmra.mxu0 %v1494
        %v1980 = vpop.f32.mrf.mxu0
        %v1981 = vadd.f32 0.0, %v1980
        %v1982 = vpop.f32.mrf.mxu0
        %v1983 = vadd.f32 0.0, %v1982
        %v1984 = vpop.f32.mrf.mxu0
        %v1985 = vadd.f32 0.0, %v1984
        %v1986 = vpop.f32.mrf.mxu0
        %v1987 = vadd.f32 0.0, %v1986
        %1988 = vmatprep.mubr.bf16.mxu0 0
        %1989 = vmatmul.mubr.bf16.gmra.mxu0 %v1495
        %v1990 = vpop.f32.mrf.mxu0
        %v1991 = vadd.f32 0.0, %v1990
        %v1992 = vpop.f32.mrf.mxu0
        %v1993 = vadd.f32 0.0, %v1992
        %v1994 = vpop.f32.mrf.mxu0
        %v1995 = vadd.f32 0.0, %v1994
        %v1996 = vpop.f32.mrf.mxu0
        %v1997 = vadd.f32 0.0, %v1996
        %1998 = vmatprep.mubr.bf16.mxu0 0
        %1999 = vmatmul.mubr.bf16.gmra.mxu0 %v1496
        %v2000 = vpop.f32.mrf.mxu0
        %v2001 = vadd.f32 0.0, %v2000
        %v2002 = vpop.f32.mrf.mxu0
        %v2003 = vadd.f32 0.0, %v2002
        %v2004 = vpop.f32.mrf.mxu0
        %v2005 = vadd.f32 0.0, %v2004
        %v2006 = vpop.f32.mrf.mxu0
        %v2007 = vadd.f32 0.0, %v2006
        %2008 = vmatprep.mubr.bf16.mxu0 0
        %2009 = vmatmul.mubr.bf16.gmra.mxu0 %v1497
        %v2010 = vpop.f32.mrf.mxu0
        %v2011 = vadd.f32 0.0, %v2010
        %v2012 = vpop.f32.mrf.mxu0
        %v2013 = vadd.f32 0.0, %v2012
        %v2014 = vpop.f32.mrf.mxu0
        %v2015 = vadd.f32 0.0, %v2014
        %v2016 = vpop.f32.mrf.mxu0
        %v2017 = vadd.f32 0.0, %v2016
        %2018 = vmatprep.mubr.bf16.mxu0 0
        %2019 = vmatmul.mubr.bf16.gmra.mxu0 %v1498
        %v2020 = vpop.f32.mrf.mxu0
        %v2021 = vadd.f32 0.0, %v2020
        %v2022 = vpop.f32.mrf.mxu0
        %v2023 = vadd.f32 0.0, %v2022
        %v2024 = vpop.f32.mrf.mxu0
        %v2025 = vadd.f32 0.0, %v2024
        %v2026 = vpop.f32.mrf.mxu0
        %v2027 = vadd.f32 0.0, %v2026
        %2028 = vmatprep.mubr.bf16.mxu0 0
        %2029 = vmatmul.mubr.bf16.gmra.mxu0 %v1499
        %v2030 = vpop.f32.mrf.mxu0
        %v2031 = vadd.f32 0.0, %v2030
        %v2032 = vpop.f32.mrf.mxu0
        %v2033 = vadd.f32 0.0, %v2032
        %v2034 = vpop.f32.mrf.mxu0
        %v2035 = vadd.f32 0.0, %v2034
        %v2036 = vpop.f32.mrf.mxu0
        %v2037 = vadd.f32 0.0, %v2036
        %2038 = vmatprep.mubr.bf16.mxu0 0
        %2039 = vmatmul.mubr.bf16.gmra.mxu0 %v1500
        %v2040 = vpop.f32.mrf.mxu0
        %v2041 = vadd.f32 0.0, %v2040
        %v2042 = vpop.f32.mrf.mxu0
        %v2043 = vadd.f32 0.0, %v2042
        %v2044 = vpop.f32.mrf.mxu0
        %v2045 = vadd.f32 0.0, %v2044
        %v2046 = vpop.f32.mrf.mxu0
        %v2047 = vadd.f32 0.0, %v2046
        %2048 = vmatprep.mubr.bf16.mxu0 0
        %2049 = vmatmul.mubr.bf16.gmra.mxu0 %v1501
        %v2050 = vpop.f32.mrf.mxu0
        %v2051 = vadd.f32 0.0, %v2050
        %v2052 = vpop.f32.mrf.mxu0
        %v2053 = vadd.f32 0.0, %v2052
        %v2054 = vpop.f32.mrf.mxu0
        %v2055 = vadd.f32 0.0, %v2054
        %v2056 = vpop.f32.mrf.mxu0
        %v2057 = vadd.f32 0.0, %v2056
        %2058 = vmatprep.mubr.bf16.mxu0 0
        %2059 = vmatmul.mubr.bf16.gmra.mxu0 %v1502
        %v2060 = vpop.f32.mrf.mxu0
        %v2061 = vadd.f32 0.0, %v2060
        %v2062 = vpop.f32.mrf.mxu0
        %v2063 = vadd.f32 0.0, %v2062
        %v2064 = vpop.f32.mrf.mxu0
        %v2065 = vadd.f32 0.0, %v2064
        %v2066 = vpop.f32.mrf.mxu0
        %v2067 = vadd.f32 0.0, %v2066
        %2068 = vmatprep.mubr.bf16.mxu0 0
        %2069 = vmatmul.mubr.bf16.gmra.mxu0 %v1503
        %v2070 = vpop.f32.mrf.mxu0
        %v2071 = vadd.f32 0.0, %v2070
        %v2072 = vpop.f32.mrf.mxu0
        %v2073 = vadd.f32 0.0, %v2072
        %v2074 = vpop.f32.mrf.mxu0
        %v2075 = vadd.f32 0.0, %v2074
        %v2076 = vpop.f32.mrf.mxu0
        %v2077 = vadd.f32 0.0, %v2076
        %2078 = vmatprep.mubr.bf16.mxu0 0
        %2079 = vmatmul.mubr.bf16.gmra.mxu0 %v1504
        %v2080 = vpop.f32.mrf.mxu0
        %v2081 = vadd.f32 0.0, %v2080
        %v2082 = vpop.f32.mrf.mxu0
        %v2083 = vadd.f32 0.0, %v2082
        %v2084 = vpop.f32.mrf.mxu0
        %v2085 = vadd.f32 0.0, %v2084
        %v2086 = vpop.f32.mrf.mxu0
        %v2087 = vadd.f32 0.0, %v2086
        %2088 = vmatprep.mubr.bf16.mxu0 0
        %2089 = vmatmul.mubr.bf16.gmra.mxu0 %v1505
        %v2090 = vpop.f32.mrf.mxu0
        %v2091 = vadd.f32 0.0, %v2090
        %v2092 = vpop.f32.mrf.mxu0
        %v2093 = vadd.f32 0.0, %v2092
        %v2094 = vpop.f32.mrf.mxu0
        %v2095 = vadd.f32 0.0, %v2094
        %v2096 = vpop.f32.mrf.mxu0
        %v2097 = vadd.f32 0.0, %v2096
        %2098 = vmatprep.mubr.bf16.mxu0 0
        %2099 = vmatmul.mubr.bf16.gmra.mxu0 %v1506
        %v2100 = vpop.f32.mrf.mxu0
        %v2101 = vadd.f32 0.0, %v2100
        %v2102 = vpop.f32.mrf.mxu0
        %v2103 = vadd.f32 0.0, %v2102
        %v2104 = vpop.f32.mrf.mxu0
        %v2105 = vadd.f32 0.0, %v2104
        %v2106 = vpop.f32.mrf.mxu0
        %v2107 = vadd.f32 0.0, %v2106
        %2108 = vmatprep.mubr.bf16.mxu0 0
        %2109 = vmatmul.mubr.bf16.gmra.mxu0 %v1507
        %v2110 = vpop.f32.mrf.mxu0
        %v2111 = vadd.f32 0.0, %v2110
        %v2112 = vpop.f32.mrf.mxu0
        %v2113 = vadd.f32 0.0, %v2112
        %v2114 = vpop.f32.mrf.mxu0
        %v2115 = vadd.f32 0.0, %v2114
        %v2116 = vpop.f32.mrf.mxu0
        %v2117 = vadd.f32 0.0, %v2116
        %2118 = vmatprep.mubr.bf16.mxu0 0
        %2119 = vmatmul.mubr.bf16.gmra.mxu0 %v1508
        %v2120 = vpop.f32.mrf.mxu0
        %v2121 = vadd.f32 0.0, %v2120
        %v2122 = vpop.f32.mrf.mxu0
        %v2123 = vadd.f32 0.0, %v2122
        %v2124 = vpop.f32.mrf.mxu0
        %v2125 = vadd.f32 0.0, %v2124
        %v2126 = vpop.f32.mrf.mxu0
        %v2127 = vadd.f32 0.0, %v2126
        %2128 = vmatprep.mubr.bf16.mxu0 0
        %2129 = vmatmul.mubr.bf16.gmra.mxu0 %v1509
        %v2130 = vpop.f32.mrf.mxu0
        %v2131 = vadd.f32 0.0, %v2130
        %v2132 = vpop.f32.mrf.mxu0
        %v2133 = vadd.f32 0.0, %v2132
        %v2134 = vpop.f32.mrf.mxu0
        %v2135 = vadd.f32 0.0, %v2134
        %v2136 = vpop.f32.mrf.mxu0
        %v2137 = vadd.f32 0.0, %v2136
        %2138 = vmatprep.mubr.bf16.mxu0 0
        %2139 = vmatmul.mubr.bf16.gmra.mxu0 %v1510
        %v2140 = vpop.f32.mrf.mxu0
        %v2141 = vadd.f32 0.0, %v2140
        %v2142 = vpop.f32.mrf.mxu0
        %v2143 = vadd.f32 0.0, %v2142
        %v2144 = vpop.f32.mrf.mxu0
        %v2145 = vadd.f32 0.0, %v2144
        %v2146 = vpop.f32.mrf.mxu0
        %v2147 = vadd.f32 0.0, %v2146
        %2148 = vmatprep.mubr.bf16.mxu0 0
        %2149 = vmatmul.mubr.bf16.gmra.mxu0 %v1511
        %v2150 = vpop.f32.mrf.mxu0
        %v2151 = vadd.f32 0.0, %v2150
        %v2152 = vpop.f32.mrf.mxu0
        %v2153 = vadd.f32 0.0, %v2152
        %v2154 = vpop.f32.mrf.mxu0
        %v2155 = vadd.f32 0.0, %v2154
        %v2156 = vpop.f32.mrf.mxu0
        %v2157 = vadd.f32 0.0, %v2156
        %2158 = vmatprep.mubr.bf16.mxu0 0
        %2159 = vmatmul.mubr.bf16.gmra.mxu0 %v1512
        %v2160 = vpop.f32.mrf.mxu0
        %v2161 = vadd.f32 0.0, %v2160
        %v2162 = vpop.f32.mrf.mxu0
        %v2163 = vadd.f32 0.0, %v2162
        %v2164 = vpop.f32.mrf.mxu0
        %v2165 = vadd.f32 0.0, %v2164
        %v2166 = vpop.f32.mrf.mxu0
        %v2167 = vadd.f32 0.0, %v2166
        %2168 = vmatprep.mubr.bf16.mxu0 0
        %2169 = vmatmul.mubr.bf16.gmra.mxu0 %v1513
        %v2170 = vpop.f32.mrf.mxu0
        %v2171 = vadd.f32 0.0, %v2170
        %v2172 = vpop.f32.mrf.mxu0
        %v2173 = vadd.f32 0.0, %v2172
        %v2174 = vpop.f32.mrf.mxu0
        %v2175 = vadd.f32 0.0, %v2174
        %v2176 = vpop.f32.mrf.mxu0
        %v2177 = vadd.f32 0.0, %v2176
        %2178 = vmatprep.mubr.bf16.mxu0 0
        %2179 = vmatmul.mubr.bf16.gmra.mxu0 %v1514
        %v2180 = vpop.f32.mrf.mxu0
        %v2181 = vadd.f32 0.0, %v2180
        %v2182 = vpop.f32.mrf.mxu0
        %v2183 = vadd.f32 0.0, %v2182
        %v2184 = vpop.f32.mrf.mxu0
        %v2185 = vadd.f32 0.0, %v2184
        %v2186 = vpop.f32.mrf.mxu0
        %v2187 = vadd.f32 0.0, %v2186
        %2188 = vmatprep.mubr.bf16.mxu0 0
        %2189 = vmatmul.mubr.bf16.gmra.mxu0 %v1515
        %v2190 = vpop.f32.mrf.mxu0
        %v2191 = vadd.f32 0.0, %v2190
        %v2192 = vpop.f32.mrf.mxu0
        %v2193 = vadd.f32 0.0, %v2192
        %v2194 = vpop.f32.mrf.mxu0
        %v2195 = vadd.f32 0.0, %v2194
        %v2196 = vpop.f32.mrf.mxu0
        %v2197 = vadd.f32 0.0, %v2196
        %2198 = vmatprep.mubr.bf16.mxu0 0
        %2199 = vmatmul.mubr.bf16.gmra.mxu0 %v1516
        %v2200 = vpop.f32.mrf.mxu0
        %v2201 = vadd.f32 0.0, %v2200
        %v2202 = vpop.f32.mrf.mxu0
        %v2203 = vadd.f32 0.0, %v2202
        %v2204 = vpop.f32.mrf.mxu0
        %v2205 = vadd.f32 0.0, %v2204
        %v2206 = vpop.f32.mrf.mxu0
        %v2207 = vadd.f32 0.0, %v2206
        %2208 = vmatprep.mubr.bf16.mxu0 0
        %2209 = vmatmul.mubr.bf16.gmra.mxu0 %v1517
        %v2210 = vpop.f32.mrf.mxu0
        %v2211 = vadd.f32 0.0, %v2210
        %v2212 = vpop.f32.mrf.mxu0
        %v2213 = vadd.f32 0.0, %v2212
        %v2214 = vpop.f32.mrf.mxu0
        %v2215 = vadd.f32 0.0, %v2214
        %v2216 = vpop.f32.mrf.mxu0
        %v2217 = vadd.f32 0.0, %v2216
        %2218 = vmatprep.mubr.bf16.mxu0 0
        %2219 = vmatmul.mubr.bf16.gmra.mxu0 %v1518
        %v2220 = vpop.f32.mrf.mxu0
        %v2221 = vadd.f32 0.0, %v2220
        %v2222 = vpop.f32.mrf.mxu0
        %v2223 = vadd.f32 0.0, %v2222
        %v2224 = vpop.f32.mrf.mxu0
        %v2225 = vadd.f32 0.0, %v2224
        %v2226 = vpop.f32.mrf.mxu0
        %v2227 = vadd.f32 0.0, %v2226
        %2228 = vmatprep.mubr.bf16.mxu0 0
        %2229 = vmatmul.mubr.bf16.gmra.mxu0 %v1519
        %v2230 = vpop.f32.mrf.mxu0
        %v2231 = vadd.f32 0.0, %v2230
        %v2232 = vpop.f32.mrf.mxu0
        %v2233 = vadd.f32 0.0, %v2232
        %v2234 = vpop.f32.mrf.mxu0
        %v2235 = vadd.f32 0.0, %v2234
        %v2236 = vpop.f32.mrf.mxu0
        %v2237 = vadd.f32 0.0, %v2236
        %2238 = vmatprep.mubr.bf16.mxu0 0
        %2239 = vmatmul.mubr.bf16.gmra.mxu0 %v1520
        %v2240 = vpop.f32.mrf.mxu0
        %v2241 = vadd.f32 0.0, %v2240
        %v2242 = vpop.f32.mrf.mxu0
        %v2243 = vadd.f32 0.0, %v2242
        %v2244 = vpop.f32.mrf.mxu0
        %v2245 = vadd.f32 0.0, %v2244
        %v2246 = vpop.f32.mrf.mxu0
        %v2247 = vadd.f32 0.0, %v2246
        %2248 = vmatprep.mubr.bf16.mxu0 0
        %2249 = vmatmul.mubr.bf16.gmra.mxu0 %v1521
        %v2250 = vpop.f32.mrf.mxu0
        %v2251 = vadd.f32 0.0, %v2250
        %v2252 = vpop.f32.mrf.mxu0
        %v2253 = vadd.f32 0.0, %v2252
        %v2254 = vpop.f32.mrf.mxu0
        %v2255 = vadd.f32 0.0, %v2254
        %v2256 = vpop.f32.mrf.mxu0
        %v2257 = vadd.f32 0.0, %v2256
        %2258 = vdwg.mxu0
        %2259 = vmatprep.subr.bf16.mxu0 %v1837
        %2260 = vmatpush1.bf16.msra.mxu0 %v1836
        %2261 = vmatprep.subr.bf16.mxu0 %v1829
        %2262 = vmatpush1.bf16.msra.mxu0 %v1828
        %2263 = vmatprep.subr.bf16.mxu0 %v1821
        %2264 = vmatpush1.bf16.msra.mxu0 %v1820
        %2265 = vmatprep.subr.bf16.mxu0 %v1813
        %2266 = vmatpush1.bf16.msra.mxu0 %v1812
        %2267 = vmatprep.subr.bf16.mxu0 %v1805
        %2268 = vmatpush1.bf16.msra.mxu0 %v1804
        %2269 = vmatprep.subr.bf16.mxu0 %v1797
        %2270 = vmatpush1.bf16.msra.mxu0 %v1796
        %2271 = vmatprep.subr.bf16.mxu0 %v1789
        %2272 = vmatpush1.bf16.msra.mxu0 %v1788
        %2273 = vmatprep.subr.bf16.mxu0 %v1781
        %2274 = vmatpush1.bf16.msra.mxu0 %v1780
        %2275 = vmatprep.subr.bf16.mxu0 0
        %2276 = vmatpush2.bf16.msra.mxu0 0
        %2277 = vmatprep.subr.bf16.mxu0 0
        %2278 = vmatpush2.bf16.msra.mxu0 0
        %2279 = vmatprep.subr.bf16.mxu0 0
        %2280 = vmatpush2.bf16.msra.mxu0 0
        %2281 = vmatprep.subr.bf16.mxu0 0
        %2282 = vmatpush2.bf16.msra.mxu0 0
        %2283 = vmatprep.subr.bf16.mxu0 0
        %2284 = vmatpush2.bf16.msra.mxu0 0
        %2285 = vmatprep.subr.bf16.mxu0 0
        %2286 = vmatpush2.bf16.msra.mxu0 0
        %2287 = vmatprep.subr.bf16.mxu0 0
        %2288 = vmatpush2.bf16.msra.mxu0 0
        %2289 = vmatprep.subr.bf16.mxu0 0
        %2290 = vmatpush2.bf16.msra.mxu0 0
        %2291 = vmatprep.mubr.bf16.mxu0 0
        %2292 = vmatmul.mubr.bf16.gmra.mxu0 %v1490
        %v2293 = vpop.f32.mrf.mxu0
        %v2294 = vadd.f32 0.0, %v2293
        %v2295 = vpop.f32.mrf.mxu0
        %v2296 = vadd.f32 0.0, %v2295
        %v2297 = vpop.f32.mrf.mxu0
        %v2298 = vadd.f32 0.0, %v2297
        %v2299 = vpop.f32.mrf.mxu0
        %v2300 = vadd.f32 0.0, %v2299
        %2301 = vmatprep.mubr.bf16.mxu0 0
        %2302 = vmatmul.mubr.bf16.gmra.mxu0 %v1491
        %v2303 = vpop.f32.mrf.mxu0
        %v2304 = vadd.f32 0.0, %v2303
        %v2305 = vpop.f32.mrf.mxu0
        %v2306 = vadd.f32 0.0, %v2305
        %v2307 = vpop.f32.mrf.mxu0
        %v2308 = vadd.f32 0.0, %v2307
        %v2309 = vpop.f32.mrf.mxu0
        %v2310 = vadd.f32 0.0, %v2309
        %2311 = vmatprep.mubr.bf16.mxu0 0
        %2312 = vmatmul.mubr.bf16.gmra.mxu0 %v1492
        %v2313 = vpop.f32.mrf.mxu0
        %v2314 = vadd.f32 0.0, %v2313
        %v2315 = vpop.f32.mrf.mxu0
        %v2316 = vadd.f32 0.0, %v2315
        %v2317 = vpop.f32.mrf.mxu0
        %v2318 = vadd.f32 0.0, %v2317
        %v2319 = vpop.f32.mrf.mxu0
        %v2320 = vadd.f32 0.0, %v2319
        %2321 = vmatprep.mubr.bf16.mxu0 0
        %2322 = vmatmul.mubr.bf16.gmra.mxu0 %v1493
        %v2323 = vpop.f32.mrf.mxu0
        %v2324 = vadd.f32 0.0, %v2323
        %v2325 = vpop.f32.mrf.mxu0
        %v2326 = vadd.f32 0.0, %v2325
        %v2327 = vpop.f32.mrf.mxu0
        %v2328 = vadd.f32 0.0, %v2327
        %v2329 = vpop.f32.mrf.mxu0
        %v2330 = vadd.f32 0.0, %v2329
        %2331 = vmatprep.mubr.bf16.mxu0 0
        %2332 = vmatmul.mubr.bf16.gmra.mxu0 %v1494
        %v2333 = vpop.f32.mrf.mxu0
        %v2334 = vadd.f32 0.0, %v2333
        %v2335 = vpop.f32.mrf.mxu0
        %v2336 = vadd.f32 0.0, %v2335
        %v2337 = vpop.f32.mrf.mxu0
        %v2338 = vadd.f32 0.0, %v2337
        %v2339 = vpop.f32.mrf.mxu0
        %v2340 = vadd.f32 0.0, %v2339
        %2341 = vmatprep.mubr.bf16.mxu0 0
        %2342 = vmatmul.mubr.bf16.gmra.mxu0 %v1495
        %v2343 = vpop.f32.mrf.mxu0
        %v2344 = vadd.f32 0.0, %v2343
        %v2345 = vpop.f32.mrf.mxu0
        %v2346 = vadd.f32 0.0, %v2345
        %v2347 = vpop.f32.mrf.mxu0
        %v2348 = vadd.f32 0.0, %v2347
        %v2349 = vpop.f32.mrf.mxu0
        %v2350 = vadd.f32 0.0, %v2349
        %2351 = vmatprep.mubr.bf16.mxu0 0
        %2352 = vmatmul.mubr.bf16.gmra.mxu0 %v1496
        %v2353 = vpop.f32.mrf.mxu0
        %v2354 = vadd.f32 0.0, %v2353
        %v2355 = vpop.f32.mrf.mxu0
        %v2356 = vadd.f32 0.0, %v2355
        %v2357 = vpop.f32.mrf.mxu0
        %v2358 = vadd.f32 0.0, %v2357
        %v2359 = vpop.f32.mrf.mxu0
        %v2360 = vadd.f32 0.0, %v2359
        %2361 = vmatprep.mubr.bf16.mxu0 0
        %2362 = vmatmul.mubr.bf16.gmra.mxu0 %v1497
        %v2363 = vpop.f32.mrf.mxu0
        %v2364 = vadd.f32 0.0, %v2363
        %v2365 = vpop.f32.mrf.mxu0
        %v2366 = vadd.f32 0.0, %v2365
        %v2367 = vpop.f32.mrf.mxu0
        %v2368 = vadd.f32 0.0, %v2367
        %v2369 = vpop.f32.mrf.mxu0
        %v2370 = vadd.f32 0.0, %v2369
        %2371 = vmatprep.mubr.bf16.mxu0 0
        %2372 = vmatmul.mubr.bf16.gmra.mxu0 %v1498
        %v2373 = vpop.f32.mrf.mxu0
        %v2374 = vadd.f32 0.0, %v2373
        %v2375 = vpop.f32.mrf.mxu0
        %v2376 = vadd.f32 0.0, %v2375
        %v2377 = vpop.f32.mrf.mxu0
        %v2378 = vadd.f32 0.0, %v2377
        %v2379 = vpop.f32.mrf.mxu0
        %v2380 = vadd.f32 0.0, %v2379
        %2381 = vmatprep.mubr.bf16.mxu0 0
        %2382 = vmatmul.mubr.bf16.gmra.mxu0 %v1499
        %v2383 = vpop.f32.mrf.mxu0
        %v2384 = vadd.f32 0.0, %v2383
        %v2385 = vpop.f32.mrf.mxu0
        %v2386 = vadd.f32 0.0, %v2385
        %v2387 = vpop.f32.mrf.mxu0
        %v2388 = vadd.f32 0.0, %v2387
        %v2389 = vpop.f32.mrf.mxu0
        %v2390 = vadd.f32 0.0, %v2389
        %2391 = vmatprep.mubr.bf16.mxu0 0
        %2392 = vmatmul.mubr.bf16.gmra.mxu0 %v1500
        %v2393 = vpop.f32.mrf.mxu0
        %v2394 = vadd.f32 0.0, %v2393
        %v2395 = vpop.f32.mrf.mxu0
        %v2396 = vadd.f32 0.0, %v2395
        %v2397 = vpop.f32.mrf.mxu0
        %v2398 = vadd.f32 0.0, %v2397
        %v2399 = vpop.f32.mrf.mxu0
        %v2400 = vadd.f32 0.0, %v2399
        %2401 = vmatprep.mubr.bf16.mxu0 0
        %2402 = vmatmul.mubr.bf16.gmra.mxu0 %v1501
        %v2403 = vpop.f32.mrf.mxu0
        %v2404 = vadd.f32 0.0, %v2403
        %v2405 = vpop.f32.mrf.mxu0
        %v2406 = vadd.f32 0.0, %v2405
        %v2407 = vpop.f32.mrf.mxu0
        %v2408 = vadd.f32 0.0, %v2407
        %v2409 = vpop.f32.mrf.mxu0
        %v2410 = vadd.f32 0.0, %v2409
        %2411 = vmatprep.mubr.bf16.mxu0 0
        %2412 = vmatmul.mubr.bf16.gmra.mxu0 %v1502
        %v2413 = vpop.f32.mrf.mxu0
        %v2414 = vadd.f32 0.0, %v2413
        %v2415 = vpop.f32.mrf.mxu0
        %v2416 = vadd.f32 0.0, %v2415
        %v2417 = vpop.f32.mrf.mxu0
        %v2418 = vadd.f32 0.0, %v2417
        %v2419 = vpop.f32.mrf.mxu0
        %v2420 = vadd.f32 0.0, %v2419
        %2421 = vmatprep.mubr.bf16.mxu0 0
        %2422 = vmatmul.mubr.bf16.gmra.mxu0 %v1503
        %v2423 = vpop.f32.mrf.mxu0
        %v2424 = vadd.f32 0.0, %v2423
        %v2425 = vpop.f32.mrf.mxu0
        %v2426 = vadd.f32 0.0, %v2425
        %v2427 = vpop.f32.mrf.mxu0
        %v2428 = vadd.f32 0.0, %v2427
        %v2429 = vpop.f32.mrf.mxu0
        %v2430 = vadd.f32 0.0, %v2429
        %2431 = vmatprep.mubr.bf16.mxu0 0
        %2432 = vmatmul.mubr.bf16.gmra.mxu0 %v1504
        %v2433 = vpop.f32.mrf.mxu0
        %v2434 = vadd.f32 0.0, %v2433
        %v2435 = vpop.f32.mrf.mxu0
        %v2436 = vadd.f32 0.0, %v2435
        %v2437 = vpop.f32.mrf.mxu0
        %v2438 = vadd.f32 0.0, %v2437
        %v2439 = vpop.f32.mrf.mxu0
        %v2440 = vadd.f32 0.0, %v2439
        %2441 = vmatprep.mubr.bf16.mxu0 0
        %2442 = vmatmul.mubr.bf16.gmra.mxu0 %v1505
        %v2443 = vpop.f32.mrf.mxu0
        %v2444 = vadd.f32 0.0, %v2443
        %v2445 = vpop.f32.mrf.mxu0
        %v2446 = vadd.f32 0.0, %v2445
        %v2447 = vpop.f32.mrf.mxu0
        %v2448 = vadd.f32 0.0, %v2447
        %v2449 = vpop.f32.mrf.mxu0
        %v2450 = vadd.f32 0.0, %v2449
        %2451 = vmatprep.mubr.bf16.mxu0 0
        %2452 = vmatmul.mubr.bf16.gmra.mxu0 %v1506
        %v2453 = vpop.f32.mrf.mxu0
        %v2454 = vadd.f32 0.0, %v2453
        %v2455 = vpop.f32.mrf.mxu0
        %v2456 = vadd.f32 0.0, %v2455
        %v2457 = vpop.f32.mrf.mxu0
        %v2458 = vadd.f32 0.0, %v2457
        %v2459 = vpop.f32.mrf.mxu0
        %v2460 = vadd.f32 0.0, %v2459
        %2461 = vmatprep.mubr.bf16.mxu0 0
        %2462 = vmatmul.mubr.bf16.gmra.mxu0 %v1507
        %v2463 = vpop.f32.mrf.mxu0
        %v2464 = vadd.f32 0.0, %v2463
        %v2465 = vpop.f32.mrf.mxu0
        %v2466 = vadd.f32 0.0, %v2465
        %v2467 = vpop.f32.mrf.mxu0
        %v2468 = vadd.f32 0.0, %v2467
        %v2469 = vpop.f32.mrf.mxu0
        %v2470 = vadd.f32 0.0, %v2469
        %2471 = vmatprep.mubr.bf16.mxu0 0
        %2472 = vmatmul.mubr.bf16.gmra.mxu0 %v1508
        %v2473 = vpop.f32.mrf.mxu0
        %v2474 = vadd.f32 0.0, %v2473
        %v2475 = vpop.f32.mrf.mxu0
        %v2476 = vadd.f32 0.0, %v2475
        %v2477 = vpop.f32.mrf.mxu0
        %v2478 = vadd.f32 0.0, %v2477
        %v2479 = vpop.f32.mrf.mxu0
        %v2480 = vadd.f32 0.0, %v2479
        %2481 = vmatprep.mubr.bf16.mxu0 0
        %2482 = vmatmul.mubr.bf16.gmra.mxu0 %v1509
        %v2483 = vpop.f32.mrf.mxu0
        %v2484 = vadd.f32 0.0, %v2483
        %v2485 = vpop.f32.mrf.mxu0
        %v2486 = vadd.f32 0.0, %v2485
        %v2487 = vpop.f32.mrf.mxu0
        %v2488 = vadd.f32 0.0, %v2487
        %v2489 = vpop.f32.mrf.mxu0
        %v2490 = vadd.f32 0.0, %v2489
        %2491 = vmatprep.mubr.bf16.mxu0 0
        %2492 = vmatmul.mubr.bf16.gmra.mxu0 %v1510
        %v2493 = vpop.f32.mrf.mxu0
        %v2494 = vadd.f32 0.0, %v2493
        %v2495 = vpop.f32.mrf.mxu0
        %v2496 = vadd.f32 0.0, %v2495
        %v2497 = vpop.f32.mrf.mxu0
        %v2498 = vadd.f32 0.0, %v2497
        %v2499 = vpop.f32.mrf.mxu0
        %v2500 = vadd.f32 0.0, %v2499
        %2501 = vmatprep.mubr.bf16.mxu0 0
        %2502 = vmatmul.mubr.bf16.gmra.mxu0 %v1511
        %v2503 = vpop.f32.mrf.mxu0
        %v2504 = vadd.f32 0.0, %v2503
        %v2505 = vpop.f32.mrf.mxu0
        %v2506 = vadd.f32 0.0, %v2505
        %v2507 = vpop.f32.mrf.mxu0
        %v2508 = vadd.f32 0.0, %v2507
        %v2509 = vpop.f32.mrf.mxu0
        %v2510 = vadd.f32 0.0, %v2509
        %2511 = vmatprep.mubr.bf16.mxu0 0
        %2512 = vmatmul.mubr.bf16.gmra.mxu0 %v1512
        %v2513 = vpop.f32.mrf.mxu0
        %v2514 = vadd.f32 0.0, %v2513
        %v2515 = vpop.f32.mrf.mxu0
        %v2516 = vadd.f32 0.0, %v2515
        %v2517 = vpop.f32.mrf.mxu0
        %v2518 = vadd.f32 0.0, %v2517
        %v2519 = vpop.f32.mrf.mxu0
        %v2520 = vadd.f32 0.0, %v2519
        %2521 = vmatprep.mubr.bf16.mxu0 0
        %2522 = vmatmul.mubr.bf16.gmra.mxu0 %v1513
        %v2523 = vpop.f32.mrf.mxu0
        %v2524 = vadd.f32 0.0, %v2523
        %v2525 = vpop.f32.mrf.mxu0
        %v2526 = vadd.f32 0.0, %v2525
        %v2527 = vpop.f32.mrf.mxu0
        %v2528 = vadd.f32 0.0, %v2527
        %v2529 = vpop.f32.mrf.mxu0
        %v2530 = vadd.f32 0.0, %v2529
        %2531 = vmatprep.mubr.bf16.mxu0 0
        %2532 = vmatmul.mubr.bf16.gmra.mxu0 %v1514
        %v2533 = vpop.f32.mrf.mxu0
        %v2534 = vadd.f32 0.0, %v2533
        %v2535 = vpop.f32.mrf.mxu0
        %v2536 = vadd.f32 0.0, %v2535
        %v2537 = vpop.f32.mrf.mxu0
        %v2538 = vadd.f32 0.0, %v2537
        %v2539 = vpop.f32.mrf.mxu0
        %v2540 = vadd.f32 0.0, %v2539
        %2541 = vmatprep.mubr.bf16.mxu0 0
        %2542 = vmatmul.mubr.bf16.gmra.mxu0 %v1515
        %v2543 = vpop.f32.mrf.mxu0
        %v2544 = vadd.f32 0.0, %v2543
        %v2545 = vpop.f32.mrf.mxu0
        %v2546 = vadd.f32 0.0, %v2545
        %v2547 = vpop.f32.mrf.mxu0
        %v2548 = vadd.f32 0.0, %v2547
        %v2549 = vpop.f32.mrf.mxu0
        %v2550 = vadd.f32 0.0, %v2549
        %2551 = vmatprep.mubr.bf16.mxu0 0
        %2552 = vmatmul.mubr.bf16.gmra.mxu0 %v1516
        %v2553 = vpop.f32.mrf.mxu0
        %v2554 = vadd.f32 0.0, %v2553
        %v2555 = vpop.f32.mrf.mxu0
        %v2556 = vadd.f32 0.0, %v2555
        %v2557 = vpop.f32.mrf.mxu0
        %v2558 = vadd.f32 0.0, %v2557
        %v2559 = vpop.f32.mrf.mxu0
        %v2560 = vadd.f32 0.0, %v2559
        %2561 = vmatprep.mubr.bf16.mxu0 0
        %2562 = vmatmul.mubr.bf16.gmra.mxu0 %v1517
        %v2563 = vpop.f32.mrf.mxu0
        %v2564 = vadd.f32 0.0, %v2563
        %v2565 = vpop.f32.mrf.mxu0
        %v2566 = vadd.f32 0.0, %v2565
        %v2567 = vpop.f32.mrf.mxu0
        %v2568 = vadd.f32 0.0, %v2567
        %v2569 = vpop.f32.mrf.mxu0
        %v2570 = vadd.f32 0.0, %v2569
        %2571 = vmatprep.mubr.bf16.mxu0 0
        %2572 = vmatmul.mubr.bf16.gmra.mxu0 %v1518
        %v2573 = vpop.f32.mrf.mxu0
        %v2574 = vadd.f32 0.0, %v2573
        %v2575 = vpop.f32.mrf.mxu0
        %v2576 = vadd.f32 0.0, %v2575
        %v2577 = vpop.f32.mrf.mxu0
        %v2578 = vadd.f32 0.0, %v2577
        %v2579 = vpop.f32.mrf.mxu0
        %v2580 = vadd.f32 0.0, %v2579
        %2581 = vmatprep.mubr.bf16.mxu0 0
        %2582 = vmatmul.mubr.bf16.gmra.mxu0 %v1519
        %v2583 = vpop.f32.mrf.mxu0
        %v2584 = vadd.f32 0.0, %v2583
        %v2585 = vpop.f32.mrf.mxu0
        %v2586 = vadd.f32 0.0, %v2585
        %v2587 = vpop.f32.mrf.mxu0
        %v2588 = vadd.f32 0.0, %v2587
        %v2589 = vpop.f32.mrf.mxu0
        %v2590 = vadd.f32 0.0, %v2589
        %2591 = vmatprep.mubr.bf16.mxu0 0
        %2592 = vmatmul.mubr.bf16.gmra.mxu0 %v1520
        %v2593 = vpop.f32.mrf.mxu0
        %v2594 = vadd.f32 0.0, %v2593
        %v2595 = vpop.f32.mrf.mxu0
        %v2596 = vadd.f32 0.0, %v2595
        %v2597 = vpop.f32.mrf.mxu0
        %v2598 = vadd.f32 0.0, %v2597
        %v2599 = vpop.f32.mrf.mxu0
        %v2600 = vadd.f32 0.0, %v2599
        %2601 = vmatprep.mubr.bf16.mxu0 0
        %2602 = vmatmul.mubr.bf16.gmra.mxu0 %v1521
        %v2603 = vpop.f32.mrf.mxu0
        %v2604 = vadd.f32 0.0, %v2603
        %v2605 = vpop.f32.mrf.mxu0
        %v2606 = vadd.f32 0.0, %v2605
        %v2607 = vpop.f32.mrf.mxu0
        %v2608 = vadd.f32 0.0, %v2607
        %v2609 = vpop.f32.mrf.mxu0
        %v2610 = vadd.f32 0.0, %v2609
        %2611 = vdwg.mxu0
        %2612 = vmatprep.subr.bf16.mxu0 %v1839
        %2613 = vmatpush1.bf16.msra.mxu0 %v1838
        %2614 = vmatprep.subr.bf16.mxu0 %v1831
        %2615 = vmatpush1.bf16.msra.mxu0 %v1830
        %2616 = vmatprep.subr.bf16.mxu0 %v1823
        %2617 = vmatpush1.bf16.msra.mxu0 %v1822
        %2618 = vmatprep.subr.bf16.mxu0 %v1815
        %2619 = vmatpush1.bf16.msra.mxu0 %v1814
        %2620 = vmatprep.subr.bf16.mxu0 %v1807
        %2621 = vmatpush1.bf16.msra.mxu0 %v1806
        %2622 = vmatprep.subr.bf16.mxu0 %v1799
        %2623 = vmatpush1.bf16.msra.mxu0 %v1798
        %2624 = vmatprep.subr.bf16.mxu0 %v1791
        %2625 = vmatpush1.bf16.msra.mxu0 %v1790
        %2626 = vmatprep.subr.bf16.mxu0 %v1783
        %2627 = vmatpush1.bf16.msra.mxu0 %v1782
        %2628 = vmatprep.subr.bf16.mxu0 0
        %2629 = vmatpush2.bf16.msra.mxu0 0
        %2630 = vmatprep.subr.bf16.mxu0 0
        %2631 = vmatpush2.bf16.msra.mxu0 0
        %2632 = vmatprep.subr.bf16.mxu0 0
        %2633 = vmatpush2.bf16.msra.mxu0 0
        %2634 = vmatprep.subr.bf16.mxu0 0
        %2635 = vmatpush2.bf16.msra.mxu0 0
        %2636 = vmatprep.subr.bf16.mxu0 0
        %2637 = vmatpush2.bf16.msra.mxu0 0
        %2638 = vmatprep.subr.bf16.mxu0 0
        %2639 = vmatpush2.bf16.msra.mxu0 0
        %2640 = vmatprep.subr.bf16.mxu0 0
        %2641 = vmatpush2.bf16.msra.mxu0 0
        %2642 = vmatprep.subr.bf16.mxu0 0
        %2643 = vmatpush2.bf16.msra.mxu0 0
        %2644 = vmatprep.mubr.bf16.mxu0 0
        %2645 = vmatmul.mubr.bf16.gmra.mxu0 %v1490
        %v2646 = vpop.f32.mrf.mxu0
        %v2647 = vadd.f32 0.0, %v2646
        %v2648 = vpop.f32.mrf.mxu0
        %v2649 = vadd.f32 0.0, %v2648
        %v2650 = vpop.f32.mrf.mxu0
        %v2651 = vadd.f32 0.0, %v2650
        %v2652 = vpop.f32.mrf.mxu0
        %v2653 = vadd.f32 0.0, %v2652
        %2654 = vmatprep.mubr.bf16.mxu0 0
        %2655 = vmatmul.mubr.bf16.gmra.mxu0 %v1491
        %v2656 = vpop.f32.mrf.mxu0
        %v2657 = vadd.f32 0.0, %v2656
        %v2658 = vpop.f32.mrf.mxu0
        %v2659 = vadd.f32 0.0, %v2658
        %v2660 = vpop.f32.mrf.mxu0
        %v2661 = vadd.f32 0.0, %v2660
        %v2662 = vpop.f32.mrf.mxu0
        %v2663 = vadd.f32 0.0, %v2662
        %2664 = vmatprep.mubr.bf16.mxu0 0
        %2665 = vmatmul.mubr.bf16.gmra.mxu0 %v1492
        %v2666 = vpop.f32.mrf.mxu0
        %v2667 = vadd.f32 0.0, %v2666
        %v2668 = vpop.f32.mrf.mxu0
        %v2669 = vadd.f32 0.0, %v2668
        %v2670 = vpop.f32.mrf.mxu0
        %v2671 = vadd.f32 0.0, %v2670
        %v2672 = vpop.f32.mrf.mxu0
        %v2673 = vadd.f32 0.0, %v2672
        %2674 = vmatprep.mubr.bf16.mxu0 0
        %2675 = vmatmul.mubr.bf16.gmra.mxu0 %v1493
        %v2676 = vpop.f32.mrf.mxu0
        %v2677 = vadd.f32 0.0, %v2676
        %v2678 = vpop.f32.mrf.mxu0
        %v2679 = vadd.f32 0.0, %v2678
        %v2680 = vpop.f32.mrf.mxu0
        %v2681 = vadd.f32 0.0, %v2680
        %v2682 = vpop.f32.mrf.mxu0
        %v2683 = vadd.f32 0.0, %v2682
        %2684 = vmatprep.mubr.bf16.mxu0 0
        %2685 = vmatmul.mubr.bf16.gmra.mxu0 %v1494
        %v2686 = vpop.f32.mrf.mxu0
        %v2687 = vadd.f32 0.0, %v2686
        %v2688 = vpop.f32.mrf.mxu0
        %v2689 = vadd.f32 0.0, %v2688
        %v2690 = vpop.f32.mrf.mxu0
        %v2691 = vadd.f32 0.0, %v2690
        %v2692 = vpop.f32.mrf.mxu0
        %v2693 = vadd.f32 0.0, %v2692
        %2694 = vmatprep.mubr.bf16.mxu0 0
        %2695 = vmatmul.mubr.bf16.gmra.mxu0 %v1495
        %v2696 = vpop.f32.mrf.mxu0
        %v2697 = vadd.f32 0.0, %v2696
        %v2698 = vpop.f32.mrf.mxu0
        %v2699 = vadd.f32 0.0, %v2698
        %v2700 = vpop.f32.mrf.mxu0
        %v2701 = vadd.f32 0.0, %v2700
        %v2702 = vpop.f32.mrf.mxu0
        %v2703 = vadd.f32 0.0, %v2702
        %2704 = vmatprep.mubr.bf16.mxu0 0
        %2705 = vmatmul.mubr.bf16.gmra.mxu0 %v1496
        %v2706 = vpop.f32.mrf.mxu0
        %v2707 = vadd.f32 0.0, %v2706
        %v2708 = vpop.f32.mrf.mxu0
        %v2709 = vadd.f32 0.0, %v2708
        %v2710 = vpop.f32.mrf.mxu0
        %v2711 = vadd.f32 0.0, %v2710
        %v2712 = vpop.f32.mrf.mxu0
        %v2713 = vadd.f32 0.0, %v2712
        %2714 = vmatprep.mubr.bf16.mxu0 0
        %2715 = vmatmul.mubr.bf16.gmra.mxu0 %v1497
        %v2716 = vpop.f32.mrf.mxu0
        %v2717 = vadd.f32 0.0, %v2716
        %v2718 = vpop.f32.mrf.mxu0
        %v2719 = vadd.f32 0.0, %v2718
        %v2720 = vpop.f32.mrf.mxu0
        %v2721 = vadd.f32 0.0, %v2720
        %v2722 = vpop.f32.mrf.mxu0
        %v2723 = vadd.f32 0.0, %v2722
        %2724 = vmatprep.mubr.bf16.mxu0 0
        %2725 = vmatmul.mubr.bf16.gmra.mxu0 %v1498
        %v2726 = vpop.f32.mrf.mxu0
        %v2727 = vadd.f32 0.0, %v2726
        %v2728 = vpop.f32.mrf.mxu0
        %v2729 = vadd.f32 0.0, %v2728
        %v2730 = vpop.f32.mrf.mxu0
        %v2731 = vadd.f32 0.0, %v2730
        %v2732 = vpop.f32.mrf.mxu0
        %v2733 = vadd.f32 0.0, %v2732
        %2734 = vmatprep.mubr.bf16.mxu0 0
        %2735 = vmatmul.mubr.bf16.gmra.mxu0 %v1499
        %v2736 = vpop.f32.mrf.mxu0
        %v2737 = vadd.f32 0.0, %v2736
        %v2738 = vpop.f32.mrf.mxu0
        %v2739 = vadd.f32 0.0, %v2738
        %v2740 = vpop.f32.mrf.mxu0
        %v2741 = vadd.f32 0.0, %v2740
        %v2742 = vpop.f32.mrf.mxu0
        %v2743 = vadd.f32 0.0, %v2742
        %2744 = vmatprep.mubr.bf16.mxu0 0
        %2745 = vmatmul.mubr.bf16.gmra.mxu0 %v1500
        %v2746 = vpop.f32.mrf.mxu0
        %v2747 = vadd.f32 0.0, %v2746
        %v2748 = vpop.f32.mrf.mxu0
        %v2749 = vadd.f32 0.0, %v2748
        %v2750 = vpop.f32.mrf.mxu0
        %v2751 = vadd.f32 0.0, %v2750
        %v2752 = vpop.f32.mrf.mxu0
        %v2753 = vadd.f32 0.0, %v2752
        %2754 = vmatprep.mubr.bf16.mxu0 0
        %2755 = vmatmul.mubr.bf16.gmra.mxu0 %v1501
        %v2756 = vpop.f32.mrf.mxu0
        %v2757 = vadd.f32 0.0, %v2756
        %v2758 = vpop.f32.mrf.mxu0
        %v2759 = vadd.f32 0.0, %v2758
        %v2760 = vpop.f32.mrf.mxu0
        %v2761 = vadd.f32 0.0, %v2760
        %v2762 = vpop.f32.mrf.mxu0
        %v2763 = vadd.f32 0.0, %v2762
        %2764 = vmatprep.mubr.bf16.mxu0 0
        %2765 = vmatmul.mubr.bf16.gmra.mxu0 %v1502
        %v2766 = vpop.f32.mrf.mxu0
        %v2767 = vadd.f32 0.0, %v2766
        %v2768 = vpop.f32.mrf.mxu0
        %v2769 = vadd.f32 0.0, %v2768
        %v2770 = vpop.f32.mrf.mxu0
        %v2771 = vadd.f32 0.0, %v2770
        %v2772 = vpop.f32.mrf.mxu0
        %v2773 = vadd.f32 0.0, %v2772
        %2774 = vmatprep.mubr.bf16.mxu0 0
        %2775 = vmatmul.mubr.bf16.gmra.mxu0 %v1503
        %v2776 = vpop.f32.mrf.mxu0
        %v2777 = vadd.f32 0.0, %v2776
        %v2778 = vpop.f32.mrf.mxu0
        %v2779 = vadd.f32 0.0, %v2778
        %v2780 = vpop.f32.mrf.mxu0
        %v2781 = vadd.f32 0.0, %v2780
        %v2782 = vpop.f32.mrf.mxu0
        %v2783 = vadd.f32 0.0, %v2782
        %2784 = vmatprep.mubr.bf16.mxu0 0
        %2785 = vmatmul.mubr.bf16.gmra.mxu0 %v1504
        %v2786 = vpop.f32.mrf.mxu0
        %v2787 = vadd.f32 0.0, %v2786
        %v2788 = vpop.f32.mrf.mxu0
        %v2789 = vadd.f32 0.0, %v2788
        %v2790 = vpop.f32.mrf.mxu0
        %v2791 = vadd.f32 0.0, %v2790
        %v2792 = vpop.f32.mrf.mxu0
        %v2793 = vadd.f32 0.0, %v2792
        %2794 = vmatprep.mubr.bf16.mxu0 0
        %2795 = vmatmul.mubr.bf16.gmra.mxu0 %v1505
        %v2796 = vpop.f32.mrf.mxu0
        %v2797 = vadd.f32 0.0, %v2796
        %v2798 = vpop.f32.mrf.mxu0
        %v2799 = vadd.f32 0.0, %v2798
        %v2800 = vpop.f32.mrf.mxu0
        %v2801 = vadd.f32 0.0, %v2800
        %v2802 = vpop.f32.mrf.mxu0
        %v2803 = vadd.f32 0.0, %v2802
        %2804 = vmatprep.mubr.bf16.mxu0 0
        %2805 = vmatmul.mubr.bf16.gmra.mxu0 %v1506
        %v2806 = vpop.f32.mrf.mxu0
        %v2807 = vadd.f32 0.0, %v2806
        %v2808 = vpop.f32.mrf.mxu0
        %v2809 = vadd.f32 0.0, %v2808
        %v2810 = vpop.f32.mrf.mxu0
        %v2811 = vadd.f32 0.0, %v2810
        %v2812 = vpop.f32.mrf.mxu0
        %v2813 = vadd.f32 0.0, %v2812
        %2814 = vmatprep.mubr.bf16.mxu0 0
        %2815 = vmatmul.mubr.bf16.gmra.mxu0 %v1507
        %v2816 = vpop.f32.mrf.mxu0
        %v2817 = vadd.f32 0.0, %v2816
        %v2818 = vpop.f32.mrf.mxu0
        %v2819 = vadd.f32 0.0, %v2818
        %v2820 = vpop.f32.mrf.mxu0
        %v2821 = vadd.f32 0.0, %v2820
        %v2822 = vpop.f32.mrf.mxu0
        %v2823 = vadd.f32 0.0, %v2822
        %2824 = vmatprep.mubr.bf16.mxu0 0
        %2825 = vmatmul.mubr.bf16.gmra.mxu0 %v1508
        %v2826 = vpop.f32.mrf.mxu0
        %v2827 = vadd.f32 0.0, %v2826
        %v2828 = vpop.f32.mrf.mxu0
        %v2829 = vadd.f32 0.0, %v2828
        %v2830 = vpop.f32.mrf.mxu0
        %v2831 = vadd.f32 0.0, %v2830
        %v2832 = vpop.f32.mrf.mxu0
        %v2833 = vadd.f32 0.0, %v2832
        %2834 = vmatprep.mubr.bf16.mxu0 0
        %2835 = vmatmul.mubr.bf16.gmra.mxu0 %v1509
        %v2836 = vpop.f32.mrf.mxu0
        %v2837 = vadd.f32 0.0, %v2836
        %v2838 = vpop.f32.mrf.mxu0
        %v2839 = vadd.f32 0.0, %v2838
        %v2840 = vpop.f32.mrf.mxu0
        %v2841 = vadd.f32 0.0, %v2840
        %v2842 = vpop.f32.mrf.mxu0
        %v2843 = vadd.f32 0.0, %v2842
        %2844 = vmatprep.mubr.bf16.mxu0 0
        %2845 = vmatmul.mubr.bf16.gmra.mxu0 %v1510
        %v2846 = vpop.f32.mrf.mxu0
        %v2847 = vadd.f32 0.0, %v2846
        %v2848 = vpop.f32.mrf.mxu0
        %v2849 = vadd.f32 0.0, %v2848
        %v2850 = vpop.f32.mrf.mxu0
        %v2851 = vadd.f32 0.0, %v2850
        %v2852 = vpop.f32.mrf.mxu0
        %v2853 = vadd.f32 0.0, %v2852
        %2854 = vmatprep.mubr.bf16.mxu0 0
        %2855 = vmatmul.mubr.bf16.gmra.mxu0 %v1511
        %v2856 = vpop.f32.mrf.mxu0
        %v2857 = vadd.f32 0.0, %v2856
        %v2858 = vpop.f32.mrf.mxu0
        %v2859 = vadd.f32 0.0, %v2858
        %v2860 = vpop.f32.mrf.mxu0
        %v2861 = vadd.f32 0.0, %v2860
        %v2862 = vpop.f32.mrf.mxu0
        %v2863 = vadd.f32 0.0, %v2862
        %2864 = vmatprep.mubr.bf16.mxu0 0
        %2865 = vmatmul.mubr.bf16.gmra.mxu0 %v1512
        %v2866 = vpop.f32.mrf.mxu0
        %v2867 = vadd.f32 0.0, %v2866
        %v2868 = vpop.f32.mrf.mxu0
        %v2869 = vadd.f32 0.0, %v2868
        %v2870 = vpop.f32.mrf.mxu0
        %v2871 = vadd.f32 0.0, %v2870
        %v2872 = vpop.f32.mrf.mxu0
        %v2873 = vadd.f32 0.0, %v2872
        %2874 = vmatprep.mubr.bf16.mxu0 0
        %2875 = vmatmul.mubr.bf16.gmra.mxu0 %v1513
        %v2876 = vpop.f32.mrf.mxu0
        %v2877 = vadd.f32 0.0, %v2876
        %v2878 = vpop.f32.mrf.mxu0
        %v2879 = vadd.f32 0.0, %v2878
        %v2880 = vpop.f32.mrf.mxu0
        %v2881 = vadd.f32 0.0, %v2880
        %v2882 = vpop.f32.mrf.mxu0
        %v2883 = vadd.f32 0.0, %v2882
        %2884 = vmatprep.mubr.bf16.mxu0 0
        %2885 = vmatmul.mubr.bf16.gmra.mxu0 %v1514
        %v2886 = vpop.f32.mrf.mxu0
        %v2887 = vadd.f32 0.0, %v2886
        %v2888 = vpop.f32.mrf.mxu0
        %v2889 = vadd.f32 0.0, %v2888
        %v2890 = vpop.f32.mrf.mxu0
        %v2891 = vadd.f32 0.0, %v2890
        %v2892 = vpop.f32.mrf.mxu0
        %v2893 = vadd.f32 0.0, %v2892
        %2894 = vmatprep.mubr.bf16.mxu0 0
        %2895 = vmatmul.mubr.bf16.gmra.mxu0 %v1515
        %v2896 = vpop.f32.mrf.mxu0
        %v2897 = vadd.f32 0.0, %v2896
        %v2898 = vpop.f32.mrf.mxu0
        %v2899 = vadd.f32 0.0, %v2898
        %v2900 = vpop.f32.mrf.mxu0
        %v2901 = vadd.f32 0.0, %v2900
        %v2902 = vpop.f32.mrf.mxu0
        %v2903 = vadd.f32 0.0, %v2902
        %2904 = vmatprep.mubr.bf16.mxu0 0
        %2905 = vmatmul.mubr.bf16.gmra.mxu0 %v1516
        %v2906 = vpop.f32.mrf.mxu0
        %v2907 = vadd.f32 0.0, %v2906
        %v2908 = vpop.f32.mrf.mxu0
        %v2909 = vadd.f32 0.0, %v2908
        %v2910 = vpop.f32.mrf.mxu0
        %v2911 = vadd.f32 0.0, %v2910
        %v2912 = vpop.f32.mrf.mxu0
        %v2913 = vadd.f32 0.0, %v2912
        %2914 = vmatprep.mubr.bf16.mxu0 0
        %2915 = vmatmul.mubr.bf16.gmra.mxu0 %v1517
        %v2916 = vpop.f32.mrf.mxu0
        %v2917 = vadd.f32 0.0, %v2916
        %v2918 = vpop.f32.mrf.mxu0
        %v2919 = vadd.f32 0.0, %v2918
        %v2920 = vpop.f32.mrf.mxu0
        %v2921 = vadd.f32 0.0, %v2920
        %v2922 = vpop.f32.mrf.mxu0
        %v2923 = vadd.f32 0.0, %v2922
        %2924 = vmatprep.mubr.bf16.mxu0 0
        %2925 = vmatmul.mubr.bf16.gmra.mxu0 %v1518
        %v2926 = vpop.f32.mrf.mxu0
        %v2927 = vadd.f32 0.0, %v2926
        %v2928 = vpop.f32.mrf.mxu0
        %v2929 = vadd.f32 0.0, %v2928
        %v2930 = vpop.f32.mrf.mxu0
        %v2931 = vadd.f32 0.0, %v2930
        %v2932 = vpop.f32.mrf.mxu0
        %v2933 = vadd.f32 0.0, %v2932
        %2934 = vmatprep.mubr.bf16.mxu0 0
        %2935 = vmatmul.mubr.bf16.gmra.mxu0 %v1519
        %v2936 = vpop.f32.mrf.mxu0
        %v2937 = vadd.f32 0.0, %v2936
        %v2938 = vpop.f32.mrf.mxu0
        %v2939 = vadd.f32 0.0, %v2938
        %v2940 = vpop.f32.mrf.mxu0
        %v2941 = vadd.f32 0.0, %v2940
        %v2942 = vpop.f32.mrf.mxu0
        %v2943 = vadd.f32 0.0, %v2942
        %2944 = vmatprep.mubr.bf16.mxu0 0
        %2945 = vmatmul.mubr.bf16.gmra.mxu0 %v1520
        %v2946 = vpop.f32.mrf.mxu0
        %v2947 = vadd.f32 0.0, %v2946
        %v2948 = vpop.f32.mrf.mxu0
        %v2949 = vadd.f32 0.0, %v2948
        %v2950 = vpop.f32.mrf.mxu0
        %v2951 = vadd.f32 0.0, %v2950
        %v2952 = vpop.f32.mrf.mxu0
        %v2953 = vadd.f32 0.0, %v2952
        %2954 = vmatprep.mubr.bf16.mxu0 0
        %2955 = vmatmul.mubr.bf16.gmra.mxu0 %v1521
        %v2956 = vpop.f32.mrf.mxu0
        %v2957 = vadd.f32 0.0, %v2956
        %v2958 = vpop.f32.mrf.mxu0
        %v2959 = vadd.f32 0.0, %v2958
        %v2960 = vpop.f32.mrf.mxu0
        %v2961 = vadd.f32 0.0, %v2960
        %v2962 = vpop.f32.mrf.mxu0
        %v2963 = vadd.f32 0.0, %v2962
        %2964 = vdwg.mxu0
        %2965 = vmatprep.subr.bf16.mxu0 %v1841
        %2966 = vmatpush1.bf16.msra.mxu0 %v1840
        %2967 = vmatprep.subr.bf16.mxu0 %v1833
        %2968 = vmatpush1.bf16.msra.mxu0 %v1832
        %2969 = vmatprep.subr.bf16.mxu0 %v1825
        %2970 = vmatpush1.bf16.msra.mxu0 %v1824
        %2971 = vmatprep.subr.bf16.mxu0 %v1817
        %2972 = vmatpush1.bf16.msra.mxu0 %v1816
        %2973 = vmatprep.subr.bf16.mxu0 %v1809
        %2974 = vmatpush1.bf16.msra.mxu0 %v1808
        %2975 = vmatprep.subr.bf16.mxu0 %v1801
        %2976 = vmatpush1.bf16.msra.mxu0 %v1800
        %2977 = vmatprep.subr.bf16.mxu0 %v1793
        %2978 = vmatpush1.bf16.msra.mxu0 %v1792
        %2979 = vmatprep.subr.bf16.mxu0 %v1785
        %2980 = vmatpush1.bf16.msra.mxu0 %v1784
        %2981 = vmatprep.subr.bf16.mxu0 0
        %2982 = vmatpush2.bf16.msra.mxu0 0
        %2983 = vmatprep.subr.bf16.mxu0 0
        %2984 = vmatpush2.bf16.msra.mxu0 0
        %2985 = vmatprep.subr.bf16.mxu0 0
        %2986 = vmatpush2.bf16.msra.mxu0 0
        %2987 = vmatprep.subr.bf16.mxu0 0
        %2988 = vmatpush2.bf16.msra.mxu0 0
        %2989 = vmatprep.subr.bf16.mxu0 0
        %2990 = vmatpush2.bf16.msra.mxu0 0
        %2991 = vmatprep.subr.bf16.mxu0 0
        %2992 = vmatpush2.bf16.msra.mxu0 0
        %2993 = vmatprep.subr.bf16.mxu0 0
        %2994 = vmatpush2.bf16.msra.mxu0 0
        %2995 = vmatprep.subr.bf16.mxu0 0
        %2996 = vmatpush2.bf16.msra.mxu0 0
        %2997 = vmatprep.mubr.bf16.mxu0 0
        %2998 = vmatmul.mubr.bf16.gmra.mxu0 %v1490
        %v2999 = vpop.f32.mrf.mxu0
        %v3000 = vadd.f32 0.0, %v2999
        %v3001 = vpop.f32.mrf.mxu0
        %v3002 = vadd.f32 0.0, %v3001
        %v3003 = vpop.f32.mrf.mxu0
        %v3004 = vadd.f32 0.0, %v3003
        %v3005 = vpop.f32.mrf.mxu0
        %v3006 = vadd.f32 0.0, %v3005
        %3007 = vmatprep.mubr.bf16.mxu0 0
        %3008 = vmatmul.mubr.bf16.gmra.mxu0 %v1491
        %v3009 = vpop.f32.mrf.mxu0
        %v3010 = vadd.f32 0.0, %v3009
        %v3011 = vpop.f32.mrf.mxu0
        %v3012 = vadd.f32 0.0, %v3011
        %v3013 = vpop.f32.mrf.mxu0
        %v3014 = vadd.f32 0.0, %v3013
        %v3015 = vpop.f32.mrf.mxu0
        %v3016 = vadd.f32 0.0, %v3015
        %3017 = vmatprep.mubr.bf16.mxu0 0
        %3018 = vmatmul.mubr.bf16.gmra.mxu0 %v1492
        %v3019 = vpop.f32.mrf.mxu0
        %v3020 = vadd.f32 0.0, %v3019
        %v3021 = vpop.f32.mrf.mxu0
        %v3022 = vadd.f32 0.0, %v3021
        %v3023 = vpop.f32.mrf.mxu0
        %v3024 = vadd.f32 0.0, %v3023
        %v3025 = vpop.f32.mrf.mxu0
        %v3026 = vadd.f32 0.0, %v3025
        %3027 = vmatprep.mubr.bf16.mxu0 0
        %3028 = vmatmul.mubr.bf16.gmra.mxu0 %v1493
        %v3029 = vpop.f32.mrf.mxu0
        %v3030 = vadd.f32 0.0, %v3029
        %v3031 = vpop.f32.mrf.mxu0
        %v3032 = vadd.f32 0.0, %v3031
        %v3033 = vpop.f32.mrf.mxu0
        %v3034 = vadd.f32 0.0, %v3033
        %v3035 = vpop.f32.mrf.mxu0
        %v3036 = vadd.f32 0.0, %v3035
        %3037 = vmatprep.mubr.bf16.mxu0 0
        %3038 = vmatmul.mubr.bf16.gmra.mxu0 %v1494
        %v3039 = vpop.f32.mrf.mxu0
        %v3040 = vadd.f32 0.0, %v3039
        %v3041 = vpop.f32.mrf.mxu0
        %v3042 = vadd.f32 0.0, %v3041
        %v3043 = vpop.f32.mrf.mxu0
        %v3044 = vadd.f32 0.0, %v3043
        %v3045 = vpop.f32.mrf.mxu0
        %v3046 = vadd.f32 0.0, %v3045
        %3047 = vmatprep.mubr.bf16.mxu0 0
        %3048 = vmatmul.mubr.bf16.gmra.mxu0 %v1495
        %v3049 = vpop.f32.mrf.mxu0
        %v3050 = vadd.f32 0.0, %v3049
        %v3051 = vpop.f32.mrf.mxu0
        %v3052 = vadd.f32 0.0, %v3051
        %v3053 = vpop.f32.mrf.mxu0
        %v3054 = vadd.f32 0.0, %v3053
        %v3055 = vpop.f32.mrf.mxu0
        %v3056 = vadd.f32 0.0, %v3055
        %3057 = vmatprep.mubr.bf16.mxu0 0
        %3058 = vmatmul.mubr.bf16.gmra.mxu0 %v1496
        %v3059 = vpop.f32.mrf.mxu0
        %v3060 = vadd.f32 0.0, %v3059
        %v3061 = vpop.f32.mrf.mxu0
        %v3062 = vadd.f32 0.0, %v3061
        %v3063 = vpop.f32.mrf.mxu0
        %v3064 = vadd.f32 0.0, %v3063
        %v3065 = vpop.f32.mrf.mxu0
        %v3066 = vadd.f32 0.0, %v3065
        %3067 = vmatprep.mubr.bf16.mxu0 0
        %3068 = vmatmul.mubr.bf16.gmra.mxu0 %v1497
        %v3069 = vpop.f32.mrf.mxu0
        %v3070 = vadd.f32 0.0, %v3069
        %v3071 = vpop.f32.mrf.mxu0
        %v3072 = vadd.f32 0.0, %v3071
        %v3073 = vpop.f32.mrf.mxu0
        %v3074 = vadd.f32 0.0, %v3073
        %v3075 = vpop.f32.mrf.mxu0
        %v3076 = vadd.f32 0.0, %v3075
        %3077 = vmatprep.mubr.bf16.mxu0 0
        %3078 = vmatmul.mubr.bf16.gmra.mxu0 %v1498
        %v3079 = vpop.f32.mrf.mxu0
        %v3080 = vadd.f32 0.0, %v3079
        %v3081 = vpop.f32.mrf.mxu0
        %v3082 = vadd.f32 0.0, %v3081
        %v3083 = vpop.f32.mrf.mxu0
        %v3084 = vadd.f32 0.0, %v3083
        %v3085 = vpop.f32.mrf.mxu0
        %v3086 = vadd.f32 0.0, %v3085
        %3087 = vmatprep.mubr.bf16.mxu0 0
        %3088 = vmatmul.mubr.bf16.gmra.mxu0 %v1499
        %v3089 = vpop.f32.mrf.mxu0
        %v3090 = vadd.f32 0.0, %v3089
        %v3091 = vpop.f32.mrf.mxu0
        %v3092 = vadd.f32 0.0, %v3091
        %v3093 = vpop.f32.mrf.mxu0
        %v3094 = vadd.f32 0.0, %v3093
        %v3095 = vpop.f32.mrf.mxu0
        %v3096 = vadd.f32 0.0, %v3095
        %3097 = vmatprep.mubr.bf16.mxu0 0
        %3098 = vmatmul.mubr.bf16.gmra.mxu0 %v1500
        %v3099 = vpop.f32.mrf.mxu0
        %v3100 = vadd.f32 0.0, %v3099
        %v3101 = vpop.f32.mrf.mxu0
        %v3102 = vadd.f32 0.0, %v3101
        %v3103 = vpop.f32.mrf.mxu0
        %v3104 = vadd.f32 0.0, %v3103
        %v3105 = vpop.f32.mrf.mxu0
        %v3106 = vadd.f32 0.0, %v3105
        %3107 = vmatprep.mubr.bf16.mxu0 0
        %3108 = vmatmul.mubr.bf16.gmra.mxu0 %v1501
        %v3109 = vpop.f32.mrf.mxu0
        %v3110 = vadd.f32 0.0, %v3109
        %v3111 = vpop.f32.mrf.mxu0
        %v3112 = vadd.f32 0.0, %v3111
        %v3113 = vpop.f32.mrf.mxu0
        %v3114 = vadd.f32 0.0, %v3113
        %v3115 = vpop.f32.mrf.mxu0
        %v3116 = vadd.f32 0.0, %v3115
        %3117 = vmatprep.mubr.bf16.mxu0 0
        %3118 = vmatmul.mubr.bf16.gmra.mxu0 %v1502
        %v3119 = vpop.f32.mrf.mxu0
        %v3120 = vadd.f32 0.0, %v3119
        %v3121 = vpop.f32.mrf.mxu0
        %v3122 = vadd.f32 0.0, %v3121
        %v3123 = vpop.f32.mrf.mxu0
        %v3124 = vadd.f32 0.0, %v3123
        %v3125 = vpop.f32.mrf.mxu0
        %v3126 = vadd.f32 0.0, %v3125
        %3127 = vmatprep.mubr.bf16.mxu0 0
        %3128 = vmatmul.mubr.bf16.gmra.mxu0 %v1503
        %v3129 = vpop.f32.mrf.mxu0
        %v3130 = vadd.f32 0.0, %v3129
        %v3131 = vpop.f32.mrf.mxu0
        %v3132 = vadd.f32 0.0, %v3131
        %v3133 = vpop.f32.mrf.mxu0
        %v3134 = vadd.f32 0.0, %v3133
        %v3135 = vpop.f32.mrf.mxu0
        %v3136 = vadd.f32 0.0, %v3135
        %3137 = vmatprep.mubr.bf16.mxu0 0
        %3138 = vmatmul.mubr.bf16.gmra.mxu0 %v1504
        %v3139 = vpop.f32.mrf.mxu0
        %v3140 = vadd.f32 0.0, %v3139
        %v3141 = vpop.f32.mrf.mxu0
        %v3142 = vadd.f32 0.0, %v3141
        %v3143 = vpop.f32.mrf.mxu0
        %v3144 = vadd.f32 0.0, %v3143
        %v3145 = vpop.f32.mrf.mxu0
        %v3146 = vadd.f32 0.0, %v3145
        %3147 = vmatprep.mubr.bf16.mxu0 0
        %3148 = vmatmul.mubr.bf16.gmra.mxu0 %v1505
        %v3149 = vpop.f32.mrf.mxu0
        %v3150 = vadd.f32 0.0, %v3149
        %v3151 = vpop.f32.mrf.mxu0
        %v3152 = vadd.f32 0.0, %v3151
        %v3153 = vpop.f32.mrf.mxu0
        %v3154 = vadd.f32 0.0, %v3153
        %v3155 = vpop.f32.mrf.mxu0
        %v3156 = vadd.f32 0.0, %v3155
        %3157 = vmatprep.mubr.bf16.mxu0 0
        %3158 = vmatmul.mubr.bf16.gmra.mxu0 %v1506
        %v3159 = vpop.f32.mrf.mxu0
        %v3160 = vadd.f32 0.0, %v3159
        %v3161 = vpop.f32.mrf.mxu0
        %v3162 = vadd.f32 0.0, %v3161
        %v3163 = vpop.f32.mrf.mxu0
        %v3164 = vadd.f32 0.0, %v3163
        %v3165 = vpop.f32.mrf.mxu0
        %v3166 = vadd.f32 0.0, %v3165
        %3167 = vmatprep.mubr.bf16.mxu0 0
        %3168 = vmatmul.mubr.bf16.gmra.mxu0 %v1507
        %v3169 = vpop.f32.mrf.mxu0
        %v3170 = vadd.f32 0.0, %v3169
        %v3171 = vpop.f32.mrf.mxu0
        %v3172 = vadd.f32 0.0, %v3171
        %v3173 = vpop.f32.mrf.mxu0
        %v3174 = vadd.f32 0.0, %v3173
        %v3175 = vpop.f32.mrf.mxu0
        %v3176 = vadd.f32 0.0, %v3175
        %3177 = vmatprep.mubr.bf16.mxu0 0
        %3178 = vmatmul.mubr.bf16.gmra.mxu0 %v1508
        %v3179 = vpop.f32.mrf.mxu0
        %v3180 = vadd.f32 0.0, %v3179
        %v3181 = vpop.f32.mrf.mxu0
        %v3182 = vadd.f32 0.0, %v3181
        %v3183 = vpop.f32.mrf.mxu0
        %v3184 = vadd.f32 0.0, %v3183
        %v3185 = vpop.f32.mrf.mxu0
        %v3186 = vadd.f32 0.0, %v3185
        %3187 = vmatprep.mubr.bf16.mxu0 0
        %3188 = vmatmul.mubr.bf16.gmra.mxu0 %v1509
        %v3189 = vpop.f32.mrf.mxu0
        %v3190 = vadd.f32 0.0, %v3189
        %v3191 = vpop.f32.mrf.mxu0
        %v3192 = vadd.f32 0.0, %v3191
        %v3193 = vpop.f32.mrf.mxu0
        %v3194 = vadd.f32 0.0, %v3193
        %v3195 = vpop.f32.mrf.mxu0
        %v3196 = vadd.f32 0.0, %v3195
        %3197 = vmatprep.mubr.bf16.mxu0 0
        %3198 = vmatmul.mubr.bf16.gmra.mxu0 %v1510
        %v3199 = vpop.f32.mrf.mxu0
        %v3200 = vadd.f32 0.0, %v3199
        %v3201 = vpop.f32.mrf.mxu0
        %v3202 = vadd.f32 0.0, %v3201
        %v3203 = vpop.f32.mrf.mxu0
        %v3204 = vadd.f32 0.0, %v3203
        %v3205 = vpop.f32.mrf.mxu0
        %v3206 = vadd.f32 0.0, %v3205
        %3207 = vmatprep.mubr.bf16.mxu0 0
        %3208 = vmatmul.mubr.bf16.gmra.mxu0 %v1511
        %v3209 = vpop.f32.mrf.mxu0
        %v3210 = vadd.f32 0.0, %v3209
        %v3211 = vpop.f32.mrf.mxu0
        %v3212 = vadd.f32 0.0, %v3211
        %v3213 = vpop.f32.mrf.mxu0
        %v3214 = vadd.f32 0.0, %v3213
        %v3215 = vpop.f32.mrf.mxu0
        %v3216 = vadd.f32 0.0, %v3215
        %3217 = vmatprep.mubr.bf16.mxu0 0
        %3218 = vmatmul.mubr.bf16.gmra.mxu0 %v1512
        %v3219 = vpop.f32.mrf.mxu0
        %v3220 = vadd.f32 0.0, %v3219
        %v3221 = vpop.f32.mrf.mxu0
        %v3222 = vadd.f32 0.0, %v3221
        %v3223 = vpop.f32.mrf.mxu0
        %v3224 = vadd.f32 0.0, %v3223
        %v3225 = vpop.f32.mrf.mxu0
        %v3226 = vadd.f32 0.0, %v3225
        %3227 = vmatprep.mubr.bf16.mxu0 0
        %3228 = vmatmul.mubr.bf16.gmra.mxu0 %v1513
        %v3229 = vpop.f32.mrf.mxu0
        %v3230 = vadd.f32 0.0, %v3229
        %v3231 = vpop.f32.mrf.mxu0
        %v3232 = vadd.f32 0.0, %v3231
        %v3233 = vpop.f32.mrf.mxu0
        %v3234 = vadd.f32 0.0, %v3233
        %v3235 = vpop.f32.mrf.mxu0
        %v3236 = vadd.f32 0.0, %v3235
        %3237 = vmatprep.mubr.bf16.mxu0 0
        %3238 = vmatmul.mubr.bf16.gmra.mxu0 %v1514
        %v3239 = vpop.f32.mrf.mxu0
        %v3240 = vadd.f32 0.0, %v3239
        %v3241 = vpop.f32.mrf.mxu0
        %v3242 = vadd.f32 0.0, %v3241
        %v3243 = vpop.f32.mrf.mxu0
        %v3244 = vadd.f32 0.0, %v3243
        %v3245 = vpop.f32.mrf.mxu0
        %v3246 = vadd.f32 0.0, %v3245
        %3247 = vmatprep.mubr.bf16.mxu0 0
        %3248 = vmatmul.mubr.bf16.gmra.mxu0 %v1515
        %v3249 = vpop.f32.mrf.mxu0
        %v3250 = vadd.f32 0.0, %v3249
        %v3251 = vpop.f32.mrf.mxu0
        %v3252 = vadd.f32 0.0, %v3251
        %v3253 = vpop.f32.mrf.mxu0
        %v3254 = vadd.f32 0.0, %v3253
        %v3255 = vpop.f32.mrf.mxu0
        %v3256 = vadd.f32 0.0, %v3255
        %3257 = vmatprep.mubr.bf16.mxu0 0
        %3258 = vmatmul.mubr.bf16.gmra.mxu0 %v1516
        %v3259 = vpop.f32.mrf.mxu0
        %v3260 = vadd.f32 0.0, %v3259
        %v3261 = vpop.f32.mrf.mxu0
        %v3262 = vadd.f32 0.0, %v3261
        %v3263 = vpop.f32.mrf.mxu0
        %v3264 = vadd.f32 0.0, %v3263
        %v3265 = vpop.f32.mrf.mxu0
        %v3266 = vadd.f32 0.0, %v3265
        %3267 = vmatprep.mubr.bf16.mxu0 0
        %3268 = vmatmul.mubr.bf16.gmra.mxu0 %v1517
        %v3269 = vpop.f32.mrf.mxu0
        %v3270 = vadd.f32 0.0, %v3269
        %v3271 = vpop.f32.mrf.mxu0
        %v3272 = vadd.f32 0.0, %v3271
        %v3273 = vpop.f32.mrf.mxu0
        %v3274 = vadd.f32 0.0, %v3273
        %v3275 = vpop.f32.mrf.mxu0
        %v3276 = vadd.f32 0.0, %v3275
        %3277 = vmatprep.mubr.bf16.mxu0 0
        %3278 = vmatmul.mubr.bf16.gmra.mxu0 %v1518
        %v3279 = vpop.f32.mrf.mxu0
        %v3280 = vadd.f32 0.0, %v3279
        %v3281 = vpop.f32.mrf.mxu0
        %v3282 = vadd.f32 0.0, %v3281
        %v3283 = vpop.f32.mrf.mxu0
        %v3284 = vadd.f32 0.0, %v3283
        %v3285 = vpop.f32.mrf.mxu0
        %v3286 = vadd.f32 0.0, %v3285
        %3287 = vmatprep.mubr.bf16.mxu0 0
        %3288 = vmatmul.mubr.bf16.gmra.mxu0 %v1519
        %v3289 = vpop.f32.mrf.mxu0
        %v3290 = vadd.f32 0.0, %v3289
        %v3291 = vpop.f32.mrf.mxu0
        %v3292 = vadd.f32 0.0, %v3291
        %v3293 = vpop.f32.mrf.mxu0
        %v3294 = vadd.f32 0.0, %v3293
        %v3295 = vpop.f32.mrf.mxu0
        %v3296 = vadd.f32 0.0, %v3295
        %3297 = vmatprep.mubr.bf16.mxu0 0
        %3298 = vmatmul.mubr.bf16.gmra.mxu0 %v1520
        %v3299 = vpop.f32.mrf.mxu0
        %v3300 = vadd.f32 0.0, %v3299
        %v3301 = vpop.f32.mrf.mxu0
        %v3302 = vadd.f32 0.0, %v3301
        %v3303 = vpop.f32.mrf.mxu0
        %v3304 = vadd.f32 0.0, %v3303
        %v3305 = vpop.f32.mrf.mxu0
        %v3306 = vadd.f32 0.0, %v3305
        %3307 = vmatprep.mubr.bf16.mxu0 0
        %3308 = vmatmul.mubr.bf16.gmra.mxu0 %v1521
        %v3309 = vpop.f32.mrf.mxu0
        %v3310 = vadd.f32 0.0, %v3309
        %v3311 = vpop.f32.mrf.mxu0
        %v3312 = vadd.f32 0.0, %v3311
        %v3313 = vpop.f32.mrf.mxu0
        %v3314 = vadd.f32 0.0, %v3313
        %v3315 = vpop.f32.mrf.mxu0
        %v3316 = vadd.f32 0.0, %v3315
        %3317 = vdwg.mxu0
        %v3318 = vadd.f32 %v1941, %v1945
        %v3319 = vadd.f32 %v3318, %v1951
        %v3320 = vadd.f32 %v3319, %v1955
        %v3321 = vadd.f32 %v3320, %v1961
        %v3322 = vadd.f32 %v3321, %v1965
        %v3323 = vadd.f32 %v3322, %v1971
        %v3324 = vadd.f32 %v3323, %v1975
        %v3325 = vadd.f32 %v3324, %v1981
        %v3326 = vadd.f32 %v3325, %v1985
        %v3327 = vadd.f32 %v3326, %v1991
        %v3328 = vadd.f32 %v3327, %v1995
        %v3329 = vadd.f32 %v3328, %v2001
        %v3330 = vadd.f32 %v3329, %v2005
        %v3331 = vadd.f32 %v3330, %v2011
        %v3332 = vadd.f32 %v3331, %v2015
        %v3333 = vadd.f32 %v3332, %v2021
        %v3334 = vadd.f32 %v3333, %v2025
        %v3335 = vadd.f32 %v3334, %v2031
        %v3336 = vadd.f32 %v3335, %v2035
        %v3337 = vadd.f32 %v3336, %v2041
        %v3338 = vadd.f32 %v3337, %v2045
        %v3339 = vadd.f32 %v3338, %v2051
        %v3340 = vadd.f32 %v3339, %v2055
        %v3341 = vadd.f32 %v3340, %v2061
        %v3342 = vadd.f32 %v3341, %v2065
        %v3343 = vadd.f32 %v3342, %v2071
        %v3344 = vadd.f32 %v3343, %v2075
        %v3345 = vadd.f32 %v3344, %v2081
        %v3346 = vadd.f32 %v3345, %v2085
        %v3347 = vadd.f32 %v3346, %v2091
        %v3348 = vadd.f32 %v3347, %v2095
        %v3349 = vadd.f32 %v3348, %v2101
        %v3350 = vadd.f32 %v3349, %v2105
        %v3351 = vadd.f32 %v3350, %v2111
        %v3352 = vadd.f32 %v3351, %v2115
        %v3353 = vadd.f32 %v3352, %v2121
        %v3354 = vadd.f32 %v3353, %v2125
        %v3355 = vadd.f32 %v3354, %v2131
        %v3356 = vadd.f32 %v3355, %v2135
        %v3357 = vadd.f32 %v3356, %v2141
        %v3358 = vadd.f32 %v3357, %v2145
        %v3359 = vadd.f32 %v3358, %v2151
        %v3360 = vadd.f32 %v3359, %v2155
        %v3361 = vadd.f32 %v3360, %v2161
        %v3362 = vadd.f32 %v3361, %v2165
        %v3363 = vadd.f32 %v3362, %v2171
        %v3364 = vadd.f32 %v3363, %v2175
        %v3365 = vadd.f32 %v3364, %v2181
        %v3366 = vadd.f32 %v3365, %v2185
        %v3367 = vadd.f32 %v3366, %v2191
        %v3368 = vadd.f32 %v3367, %v2195
        %v3369 = vadd.f32 %v3368, %v2201
        %v3370 = vadd.f32 %v3369, %v2205
        %v3371 = vadd.f32 %v3370, %v2211
        %v3372 = vadd.f32 %v3371, %v2215
        %v3373 = vadd.f32 %v3372, %v2221
        %v3374 = vadd.f32 %v3373, %v2225
        %v3375 = vadd.f32 %v3374, %v2231
        %v3376 = vadd.f32 %v3375, %v2235
        %v3377 = vadd.f32 %v3376, %v2241
        %v3378 = vadd.f32 %v3377, %v2245
        %v3379 = vadd.f32 %v3378, %v2251
        %v3380 = vadd.f32 %v3379, %v2255
        %v3381 = vrot.slane %v3380, 4
        %v3382 = vadd.f32 %v3380, %v3381
        %v3383 = vrot.slane %v3382, 2
        %v3384 = vadd.f32 %v3382, %v3383
        %v3385 = vrot.slane %v3384, 1
        %v3386 = vadd.f32 %v3384, %v3385
        %v3387 = vadd.f32 %v1943, %v1947
        %v3388 = vadd.f32 %v3387, %v1953
        %v3389 = vadd.f32 %v3388, %v1957
        %v3390 = vadd.f32 %v3389, %v1963
        %v3391 = vadd.f32 %v3390, %v1967
        %v3392 = vadd.f32 %v3391, %v1973
        %v3393 = vadd.f32 %v3392, %v1977
        %v3394 = vadd.f32 %v3393, %v1983
        %v3395 = vadd.f32 %v3394, %v1987
        %v3396 = vadd.f32 %v3395, %v1993
        %v3397 = vadd.f32 %v3396, %v1997
        %v3398 = vadd.f32 %v3397, %v2003
        %v3399 = vadd.f32 %v3398, %v2007
        %v3400 = vadd.f32 %v3399, %v2013
        %v3401 = vadd.f32 %v3400, %v2017
        %v3402 = vadd.f32 %v3401, %v2023
        %v3403 = vadd.f32 %v3402, %v2027
        %v3404 = vadd.f32 %v3403, %v2033
        %v3405 = vadd.f32 %v3404, %v2037
        %v3406 = vadd.f32 %v3405, %v2043
        %v3407 = vadd.f32 %v3406, %v2047
        %v3408 = vadd.f32 %v3407, %v2053
        %v3409 = vadd.f32 %v3408, %v2057
        %v3410 = vadd.f32 %v3409, %v2063
        %v3411 = vadd.f32 %v3410, %v2067
        %v3412 = vadd.f32 %v3411, %v2073
        %v3413 = vadd.f32 %v3412, %v2077
        %v3414 = vadd.f32 %v3413, %v2083
        %v3415 = vadd.f32 %v3414, %v2087
        %v3416 = vadd.f32 %v3415, %v2093
        %v3417 = vadd.f32 %v3416, %v2097
        %v3418 = vadd.f32 %v3417, %v2103
        %v3419 = vadd.f32 %v3418, %v2107
        %v3420 = vadd.f32 %v3419, %v2113
        %v3421 = vadd.f32 %v3420, %v2117
        %v3422 = vadd.f32 %v3421, %v2123
        %v3423 = vadd.f32 %v3422, %v2127
        %v3424 = vadd.f32 %v3423, %v2133
        %v3425 = vadd.f32 %v3424, %v2137
        %v3426 = vadd.f32 %v3425, %v2143
        %v3427 = vadd.f32 %v3426, %v2147
        %v3428 = vadd.f32 %v3427, %v2153
        %v3429 = vadd.f32 %v3428, %v2157
        %v3430 = vadd.f32 %v3429, %v2163
        %v3431 = vadd.f32 %v3430, %v2167
        %v3432 = vadd.f32 %v3431, %v2173
        %v3433 = vadd.f32 %v3432, %v2177
        %v3434 = vadd.f32 %v3433, %v2183
        %v3435 = vadd.f32 %v3434, %v2187
        %v3436 = vadd.f32 %v3435, %v2193
        %v3437 = vadd.f32 %v3436, %v2197
        %v3438 = vadd.f32 %v3437, %v2203
        %v3439 = vadd.f32 %v3438, %v2207
        %v3440 = vadd.f32 %v3439, %v2213
        %v3441 = vadd.f32 %v3440, %v2217
        %v3442 = vadd.f32 %v3441, %v2223
        %v3443 = vadd.f32 %v3442, %v2227
        %v3444 = vadd.f32 %v3443, %v2233
        %v3445 = vadd.f32 %v3444, %v2237
        %v3446 = vadd.f32 %v3445, %v2243
        %v3447 = vadd.f32 %v3446, %v2247
        %v3448 = vadd.f32 %v3447, %v2253
        %v3449 = vadd.f32 %v3448, %v2257
        %v3450 = vrot.slane %v3449, 4
        %v3451 = vadd.f32 %v3449, %v3450
        %v3452 = vrot.slane %v3451, 2
        %v3453 = vadd.f32 %v3451, %v3452
        %v3454 = vrot.slane %v3453, 1
        %v3455 = vadd.f32 %v3453, %v3454
        %v3456 = vadd.f32 %v2294, %v2298
        %v3457 = vadd.f32 %v3456, %v2304
        %v3458 = vadd.f32 %v3457, %v2308
        %v3459 = vadd.f32 %v3458, %v2314
        %v3460 = vadd.f32 %v3459, %v2318
        %v3461 = vadd.f32 %v3460, %v2324
        %v3462 = vadd.f32 %v3461, %v2328
        %v3463 = vadd.f32 %v3462, %v2334
        %v3464 = vadd.f32 %v3463, %v2338
        %v3465 = vadd.f32 %v3464, %v2344
        %v3466 = vadd.f32 %v3465, %v2348
        %v3467 = vadd.f32 %v3466, %v2354
        %v3468 = vadd.f32 %v3467, %v2358
        %v3469 = vadd.f32 %v3468, %v2364
        %v3470 = vadd.f32 %v3469, %v2368
        %v3471 = vadd.f32 %v3470, %v2374
        %v3472 = vadd.f32 %v3471, %v2378
        %v3473 = vadd.f32 %v3472, %v2384
        %v3474 = vadd.f32 %v3473, %v2388
        %v3475 = vadd.f32 %v3474, %v2394
        %v3476 = vadd.f32 %v3475, %v2398
        %v3477 = vadd.f32 %v3476, %v2404
        %v3478 = vadd.f32 %v3477, %v2408
        %v3479 = vadd.f32 %v3478, %v2414
        %v3480 = vadd.f32 %v3479, %v2418
        %v3481 = vadd.f32 %v3480, %v2424
        %v3482 = vadd.f32 %v3481, %v2428
        %v3483 = vadd.f32 %v3482, %v2434
        %v3484 = vadd.f32 %v3483, %v2438
        %v3485 = vadd.f32 %v3484, %v2444
        %v3486 = vadd.f32 %v3485, %v2448
        %v3487 = vadd.f32 %v3486, %v2454
        %v3488 = vadd.f32 %v3487, %v2458
        %v3489 = vadd.f32 %v3488, %v2464
        %v3490 = vadd.f32 %v3489, %v2468
        %v3491 = vadd.f32 %v3490, %v2474
        %v3492 = vadd.f32 %v3491, %v2478
        %v3493 = vadd.f32 %v3492, %v2484
        %v3494 = vadd.f32 %v3493, %v2488
        %v3495 = vadd.f32 %v3494, %v2494
        %v3496 = vadd.f32 %v3495, %v2498
        %v3497 = vadd.f32 %v3496, %v2504
        %v3498 = vadd.f32 %v3497, %v2508
        %v3499 = vadd.f32 %v3498, %v2514
        %v3500 = vadd.f32 %v3499, %v2518
        %v3501 = vadd.f32 %v3500, %v2524
        %v3502 = vadd.f32 %v3501, %v2528
        %v3503 = vadd.f32 %v3502, %v2534
        %v3504 = vadd.f32 %v3503, %v2538
        %v3505 = vadd.f32 %v3504, %v2544
        %v3506 = vadd.f32 %v3505, %v2548
        %v3507 = vadd.f32 %v3506, %v2554
        %v3508 = vadd.f32 %v3507, %v2558
        %v3509 = vadd.f32 %v3508, %v2564
        %v3510 = vadd.f32 %v3509, %v2568
        %v3511 = vadd.f32 %v3510, %v2574
        %v3512 = vadd.f32 %v3511, %v2578
        %v3513 = vadd.f32 %v3512, %v2584
        %v3514 = vadd.f32 %v3513, %v2588
        %v3515 = vadd.f32 %v3514, %v2594
        %v3516 = vadd.f32 %v3515, %v2598
        %v3517 = vadd.f32 %v3516, %v2604
        %v3518 = vadd.f32 %v3517, %v2608
        %v3519 = vrot.slane %v3518, 4
        %v3520 = vadd.f32 %v3518, %v3519
        %v3521 = vrot.slane %v3520, 2
        %v3522 = vadd.f32 %v3520, %v3521
        %v3523 = vrot.slane %v3522, 1
        %v3524 = vadd.f32 %v3522, %v3523
        %v3525 = vadd.f32 %v2296, %v2300
        %v3526 = vadd.f32 %v3525, %v2306
        %v3527 = vadd.f32 %v3526, %v2310
        %v3528 = vadd.f32 %v3527, %v2316
        %v3529 = vadd.f32 %v3528, %v2320
        %v3530 = vadd.f32 %v3529, %v2326
        %v3531 = vadd.f32 %v3530, %v2330
        %v3532 = vadd.f32 %v3531, %v2336
        %v3533 = vadd.f32 %v3532, %v2340
        %v3534 = vadd.f32 %v3533, %v2346
        %v3535 = vadd.f32 %v3534, %v2350
        %v3536 = vadd.f32 %v3535, %v2356
        %v3537 = vadd.f32 %v3536, %v2360
        %v3538 = vadd.f32 %v3537, %v2366
        %v3539 = vadd.f32 %v3538, %v2370
        %v3540 = vadd.f32 %v3539, %v2376
        %v3541 = vadd.f32 %v3540, %v2380
        %v3542 = vadd.f32 %v3541, %v2386
        %v3543 = vadd.f32 %v3542, %v2390
        %v3544 = vadd.f32 %v3543, %v2396
        %v3545 = vadd.f32 %v3544, %v2400
        %v3546 = vadd.f32 %v3545, %v2406
        %v3547 = vadd.f32 %v3546, %v2410
        %v3548 = vadd.f32 %v3547, %v2416
        %v3549 = vadd.f32 %v3548, %v2420
        %v3550 = vadd.f32 %v3549, %v2426
        %v3551 = vadd.f32 %v3550, %v2430
        %v3552 = vadd.f32 %v3551, %v2436
        %v3553 = vadd.f32 %v3552, %v2440
        %v3554 = vadd.f32 %v3553, %v2446
        %v3555 = vadd.f32 %v3554, %v2450
        %v3556 = vadd.f32 %v3555, %v2456
        %v3557 = vadd.f32 %v3556, %v2460
        %v3558 = vadd.f32 %v3557, %v2466
        %v3559 = vadd.f32 %v3558, %v2470
        %v3560 = vadd.f32 %v3559, %v2476
        %v3561 = vadd.f32 %v3560, %v2480
        %v3562 = vadd.f32 %v3561, %v2486
        %v3563 = vadd.f32 %v3562, %v2490
        %v3564 = vadd.f32 %v3563, %v2496
        %v3565 = vadd.f32 %v3564, %v2500
        %v3566 = vadd.f32 %v3565, %v2506
        %v3567 = vadd.f32 %v3566, %v2510
        %v3568 = vadd.f32 %v3567, %v2516
        %v3569 = vadd.f32 %v3568, %v2520
        %v3570 = vadd.f32 %v3569, %v2526
        %v3571 = vadd.f32 %v3570, %v2530
        %v3572 = vadd.f32 %v3571, %v2536
        %v3573 = vadd.f32 %v3572, %v2540
        %v3574 = vadd.f32 %v3573, %v2546
        %v3575 = vadd.f32 %v3574, %v2550
        %v3576 = vadd.f32 %v3575, %v2556
        %v3577 = vadd.f32 %v3576, %v2560
        %v3578 = vadd.f32 %v3577, %v2566
        %v3579 = vadd.f32 %v3578, %v2570
        %v3580 = vadd.f32 %v3579, %v2576
        %v3581 = vadd.f32 %v3580, %v2580
        %v3582 = vadd.f32 %v3581, %v2586
        %v3583 = vadd.f32 %v3582, %v2590
        %v3584 = vadd.f32 %v3583, %v2596
        %v3585 = vadd.f32 %v3584, %v2600
        %v3586 = vadd.f32 %v3585, %v2606
        %v3587 = vadd.f32 %v3586, %v2610
        %v3588 = vrot.slane %v3587, 4
        %v3589 = vadd.f32 %v3587, %v3588
        %v3590 = vrot.slane %v3589, 2
        %v3591 = vadd.f32 %v3589, %v3590
        %v3592 = vrot.slane %v3591, 1
        %v3593 = vadd.f32 %v3591, %v3592
        %v3594 = vadd.f32 %v2647, %v2651
        %v3595 = vadd.f32 %v3594, %v2657
        %v3596 = vadd.f32 %v3595, %v2661
        %v3597 = vadd.f32 %v3596, %v2667
        %v3598 = vadd.f32 %v3597, %v2671
        %v3599 = vadd.f32 %v3598, %v2677
        %v3600 = vadd.f32 %v3599, %v2681
        %v3601 = vadd.f32 %v3600, %v2687
        %v3602 = vadd.f32 %v3601, %v2691
        %v3603 = vadd.f32 %v3602, %v2697
        %v3604 = vadd.f32 %v3603, %v2701
        %v3605 = vadd.f32 %v3604, %v2707
        %v3606 = vadd.f32 %v3605, %v2711
        %v3607 = vadd.f32 %v3606, %v2717
        %v3608 = vadd.f32 %v3607, %v2721
        %v3609 = vadd.f32 %v3608, %v2727
        %v3610 = vadd.f32 %v3609, %v2731
        %v3611 = vadd.f32 %v3610, %v2737
        %v3612 = vadd.f32 %v3611, %v2741
        %v3613 = vadd.f32 %v3612, %v2747
        %v3614 = vadd.f32 %v3613, %v2751
        %v3615 = vadd.f32 %v3614, %v2757
        %v3616 = vadd.f32 %v3615, %v2761
        %v3617 = vadd.f32 %v3616, %v2767
        %v3618 = vadd.f32 %v3617, %v2771
        %v3619 = vadd.f32 %v3618, %v2777
        %v3620 = vadd.f32 %v3619, %v2781
        %v3621 = vadd.f32 %v3620, %v2787
        %v3622 = vadd.f32 %v3621, %v2791
        %v3623 = vadd.f32 %v3622, %v2797
        %v3624 = vadd.f32 %v3623, %v2801
        %v3625 = vadd.f32 %v3624, %v2807
        %v3626 = vadd.f32 %v3625, %v2811
        %v3627 = vadd.f32 %v3626, %v2817
        %v3628 = vadd.f32 %v3627, %v2821
        %v3629 = vadd.f32 %v3628, %v2827
        %v3630 = vadd.f32 %v3629, %v2831
        %v3631 = vadd.f32 %v3630, %v2837
        %v3632 = vadd.f32 %v3631, %v2841
        %v3633 = vadd.f32 %v3632, %v2847
        %v3634 = vadd.f32 %v3633, %v2851
        %v3635 = vadd.f32 %v3634, %v2857
        %v3636 = vadd.f32 %v3635, %v2861
        %v3637 = vadd.f32 %v3636, %v2867
        %v3638 = vadd.f32 %v3637, %v2871
        %v3639 = vadd.f32 %v3638, %v2877
        %v3640 = vadd.f32 %v3639, %v2881
        %v3641 = vadd.f32 %v3640, %v2887
        %v3642 = vadd.f32 %v3641, %v2891
        %v3643 = vadd.f32 %v3642, %v2897
        %v3644 = vadd.f32 %v3643, %v2901
        %v3645 = vadd.f32 %v3644, %v2907
        %v3646 = vadd.f32 %v3645, %v2911
        %v3647 = vadd.f32 %v3646, %v2917
        %v3648 = vadd.f32 %v3647, %v2921
        %v3649 = vadd.f32 %v3648, %v2927
        %v3650 = vadd.f32 %v3649, %v2931
        %v3651 = vadd.f32 %v3650, %v2937
        %v3652 = vadd.f32 %v3651, %v2941
        %v3653 = vadd.f32 %v3652, %v2947
        %v3654 = vadd.f32 %v3653, %v2951
        %v3655 = vadd.f32 %v3654, %v2957
        %v3656 = vadd.f32 %v3655, %v2961
        %v3657 = vrot.slane %v3656, 4
        %v3658 = vadd.f32 %v3656, %v3657
        %v3659 = vrot.slane %v3658, 2
        %v3660 = vadd.f32 %v3658, %v3659
        %v3661 = vrot.slane %v3660, 1
        %v3662 = vadd.f32 %v3660, %v3661
        %v3663 = vadd.f32 %v2649, %v2653
        %v3664 = vadd.f32 %v3663, %v2659
        %v3665 = vadd.f32 %v3664, %v2663
        %v3666 = vadd.f32 %v3665, %v2669
        %v3667 = vadd.f32 %v3666, %v2673
        %v3668 = vadd.f32 %v3667, %v2679
        %v3669 = vadd.f32 %v3668, %v2683
        %v3670 = vadd.f32 %v3669, %v2689
        %v3671 = vadd.f32 %v3670, %v2693
        %v3672 = vadd.f32 %v3671, %v2699
        %v3673 = vadd.f32 %v3672, %v2703
        %v3674 = vadd.f32 %v3673, %v2709
        %v3675 = vadd.f32 %v3674, %v2713
        %v3676 = vadd.f32 %v3675, %v2719
        %v3677 = vadd.f32 %v3676, %v2723
        %v3678 = vadd.f32 %v3677, %v2729
        %v3679 = vadd.f32 %v3678, %v2733
        %v3680 = vadd.f32 %v3679, %v2739
        %v3681 = vadd.f32 %v3680, %v2743
        %v3682 = vadd.f32 %v3681, %v2749
        %v3683 = vadd.f32 %v3682, %v2753
        %v3684 = vadd.f32 %v3683, %v2759
        %v3685 = vadd.f32 %v3684, %v2763
        %v3686 = vadd.f32 %v3685, %v2769
        %v3687 = vadd.f32 %v3686, %v2773
        %v3688 = vadd.f32 %v3687, %v2779
        %v3689 = vadd.f32 %v3688, %v2783
        %v3690 = vadd.f32 %v3689, %v2789
        %v3691 = vadd.f32 %v3690, %v2793
        %v3692 = vadd.f32 %v3691, %v2799
        %v3693 = vadd.f32 %v3692, %v2803
        %v3694 = vadd.f32 %v3693, %v2809
        %v3695 = vadd.f32 %v3694, %v2813
        %v3696 = vadd.f32 %v3695, %v2819
        %v3697 = vadd.f32 %v3696, %v2823
        %v3698 = vadd.f32 %v3697, %v2829
        %v3699 = vadd.f32 %v3698, %v2833
        %v3700 = vadd.f32 %v3699, %v2839
        %v3701 = vadd.f32 %v3700, %v2843
        %v3702 = vadd.f32 %v3701, %v2849
        %v3703 = vadd.f32 %v3702, %v2853
        %v3704 = vadd.f32 %v3703, %v2859
        %v3705 = vadd.f32 %v3704, %v2863
        %v3706 = vadd.f32 %v3705, %v2869
        %v3707 = vadd.f32 %v3706, %v2873
        %v3708 = vadd.f32 %v3707, %v2879
        %v3709 = vadd.f32 %v3708, %v2883
        %v3710 = vadd.f32 %v3709, %v2889
        %v3711 = vadd.f32 %v3710, %v2893
        %v3712 = vadd.f32 %v3711, %v2899
        %v3713 = vadd.f32 %v3712, %v2903
        %v3714 = vadd.f32 %v3713, %v2909
        %v3715 = vadd.f32 %v3714, %v2913
        %v3716 = vadd.f32 %v3715, %v2919
        %v3717 = vadd.f32 %v3716, %v2923
        %v3718 = vadd.f32 %v3717, %v2929
        %v3719 = vadd.f32 %v3718, %v2933
        %v3720 = vadd.f32 %v3719, %v2939
        %v3721 = vadd.f32 %v3720, %v2943
        %v3722 = vadd.f32 %v3721, %v2949
        %v3723 = vadd.f32 %v3722, %v2953
        %v3724 = vadd.f32 %v3723, %v2959
        %v3725 = vadd.f32 %v3724, %v2963
        %v3726 = vrot.slane %v3725, 4
        %v3727 = vadd.f32 %v3725, %v3726
        %v3728 = vrot.slane %v3727, 2
        %v3729 = vadd.f32 %v3727, %v3728
        %v3730 = vrot.slane %v3729, 1
        %v3731 = vadd.f32 %v3729, %v3730
        %v3732 = vadd.f32 %v3000, %v3004
        %v3733 = vadd.f32 %v3732, %v3010
        %v3734 = vadd.f32 %v3733, %v3014
        %v3735 = vadd.f32 %v3734, %v3020
        %v3736 = vadd.f32 %v3735, %v3024
        %v3737 = vadd.f32 %v3736, %v3030
        %v3738 = vadd.f32 %v3737, %v3034
        %v3739 = vadd.f32 %v3738, %v3040
        %v3740 = vadd.f32 %v3739, %v3044
        %v3741 = vadd.f32 %v3740, %v3050
        %v3742 = vadd.f32 %v3741, %v3054
        %v3743 = vadd.f32 %v3742, %v3060
        %v3744 = vadd.f32 %v3743, %v3064
        %v3745 = vadd.f32 %v3744, %v3070
        %v3746 = vadd.f32 %v3745, %v3074
        %v3747 = vadd.f32 %v3746, %v3080
        %v3748 = vadd.f32 %v3747, %v3084
        %v3749 = vadd.f32 %v3748, %v3090
        %v3750 = vadd.f32 %v3749, %v3094
        %v3751 = vadd.f32 %v3750, %v3100
        %v3752 = vadd.f32 %v3751, %v3104
        %v3753 = vadd.f32 %v3752, %v3110
        %v3754 = vadd.f32 %v3753, %v3114
        %v3755 = vadd.f32 %v3754, %v3120
        %v3756 = vadd.f32 %v3755, %v3124
        %v3757 = vadd.f32 %v3756, %v3130
        %v3758 = vadd.f32 %v3757, %v3134
        %v3759 = vadd.f32 %v3758, %v3140
        %v3760 = vadd.f32 %v3759, %v3144
        %v3761 = vadd.f32 %v3760, %v3150
        %v3762 = vadd.f32 %v3761, %v3154
        %v3763 = vadd.f32 %v3762, %v3160
        %v3764 = vadd.f32 %v3763, %v3164
        %v3765 = vadd.f32 %v3764, %v3170
        %v3766 = vadd.f32 %v3765, %v3174
        %v3767 = vadd.f32 %v3766, %v3180
        %v3768 = vadd.f32 %v3767, %v3184
        %v3769 = vadd.f32 %v3768, %v3190
        %v3770 = vadd.f32 %v3769, %v3194
        %v3771 = vadd.f32 %v3770, %v3200
        %v3772 = vadd.f32 %v3771, %v3204
        %v3773 = vadd.f32 %v3772, %v3210
        %v3774 = vadd.f32 %v3773, %v3214
        %v3775 = vadd.f32 %v3774, %v3220
        %v3776 = vadd.f32 %v3775, %v3224
        %v3777 = vadd.f32 %v3776, %v3230
        %v3778 = vadd.f32 %v3777, %v3234
        %v3779 = vadd.f32 %v3778, %v3240
        %v3780 = vadd.f32 %v3779, %v3244
        %v3781 = vadd.f32 %v3780, %v3250
        %v3782 = vadd.f32 %v3781, %v3254
        %v3783 = vadd.f32 %v3782, %v3260
        %v3784 = vadd.f32 %v3783, %v3264
        %v3785 = vadd.f32 %v3784, %v3270
        %v3786 = vadd.f32 %v3785, %v3274
        %v3787 = vadd.f32 %v3786, %v3280
        %v3788 = vadd.f32 %v3787, %v3284
        %v3789 = vadd.f32 %v3788, %v3290
        %v3790 = vadd.f32 %v3789, %v3294
        %v3791 = vadd.f32 %v3790, %v3300
        %v3792 = vadd.f32 %v3791, %v3304
        %v3793 = vadd.f32 %v3792, %v3310
        %v3794 = vadd.f32 %v3793, %v3314
        %v3795 = vrot.slane %v3794, 4
        %v3796 = vadd.f32 %v3794, %v3795
        %v3797 = vrot.slane %v3796, 2
        %v3798 = vadd.f32 %v3796, %v3797
        %v3799 = vrot.slane %v3798, 1
        %v3800 = vadd.f32 %v3798, %v3799
        %v3801 = vadd.f32 %v3002, %v3006
        %v3802 = vadd.f32 %v3801, %v3012
        %v3803 = vadd.f32 %v3802, %v3016
        %v3804 = vadd.f32 %v3803, %v3022
        %v3805 = vadd.f32 %v3804, %v3026
        %v3806 = vadd.f32 %v3805, %v3032
        %v3807 = vadd.f32 %v3806, %v3036
        %v3808 = vadd.f32 %v3807, %v3042
        %v3809 = vadd.f32 %v3808, %v3046
        %v3810 = vadd.f32 %v3809, %v3052
        %v3811 = vadd.f32 %v3810, %v3056
        %v3812 = vadd.f32 %v3811, %v3062
        %v3813 = vadd.f32 %v3812, %v3066
        %v3814 = vadd.f32 %v3813, %v3072
        %v3815 = vadd.f32 %v3814, %v3076
        %v3816 = vadd.f32 %v3815, %v3082
        %v3817 = vadd.f32 %v3816, %v3086
        %v3818 = vadd.f32 %v3817, %v3092
        %v3819 = vadd.f32 %v3818, %v3096
        %v3820 = vadd.f32 %v3819, %v3102
        %v3821 = vadd.f32 %v3820, %v3106
        %v3822 = vadd.f32 %v3821, %v3112
        %v3823 = vadd.f32 %v3822, %v3116
        %v3824 = vadd.f32 %v3823, %v3122
        %v3825 = vadd.f32 %v3824, %v3126
        %v3826 = vadd.f32 %v3825, %v3132
        %v3827 = vadd.f32 %v3826, %v3136
        %v3828 = vadd.f32 %v3827, %v3142
        %v3829 = vadd.f32 %v3828, %v3146
        %v3830 = vadd.f32 %v3829, %v3152
        %v3831 = vadd.f32 %v3830, %v3156
        %v3832 = vadd.f32 %v3831, %v3162
        %v3833 = vadd.f32 %v3832, %v3166
        %v3834 = vadd.f32 %v3833, %v3172
        %v3835 = vadd.f32 %v3834, %v3176
        %v3836 = vadd.f32 %v3835, %v3182
        %v3837 = vadd.f32 %v3836, %v3186
        %v3838 = vadd.f32 %v3837, %v3192
        %v3839 = vadd.f32 %v3838, %v3196
        %v3840 = vadd.f32 %v3839, %v3202
        %v3841 = vadd.f32 %v3840, %v3206
        %v3842 = vadd.f32 %v3841, %v3212
        %v3843 = vadd.f32 %v3842, %v3216
        %v3844 = vadd.f32 %v3843, %v3222
        %v3845 = vadd.f32 %v3844, %v3226
        %v3846 = vadd.f32 %v3845, %v3232
        %v3847 = vadd.f32 %v3846, %v3236
        %v3848 = vadd.f32 %v3847, %v3242
        %v3849 = vadd.f32 %v3848, %v3246
        %v3850 = vadd.f32 %v3849, %v3252
        %v3851 = vadd.f32 %v3850, %v3256
        %v3852 = vadd.f32 %v3851, %v3262
        %v3853 = vadd.f32 %v3852, %v3266
        %v3854 = vadd.f32 %v3853, %v3272
        %v3855 = vadd.f32 %v3854, %v3276
        %v3856 = vadd.f32 %v3855, %v3282
        %v3857 = vadd.f32 %v3856, %v3286
        %v3858 = vadd.f32 %v3857, %v3292
        %v3859 = vadd.f32 %v3858, %v3296
        %v3860 = vadd.f32 %v3859, %v3302
        %v3861 = vadd.f32 %v3860, %v3306
        %v3862 = vadd.f32 %v3861, %v3312
        %v3863 = vadd.f32 %v3862, %v3316
        %v3864 = vrot.slane %v3863, 4
        %v3865 = vadd.f32 %v3863, %v3864
        %v3866 = vrot.slane %v3865, 2
        %v3867 = vadd.f32 %v3865, %v3866
        %v3868 = vrot.slane %v3867, 1
        %v3869 = vadd.f32 %v3867, %v3868
        %v3870 = vmul.f32 %v3386, 0.001953125
        %v3871 = vmul.f32 %v3455, 0.001953125
        %v3872 = vmul.f32 %v3524, 0.001953125
        %v3873 = vmul.f32 %v3593, 0.001953125
        %v3874 = vmul.f32 %v3662, 0.001953125
        %v3875 = vmul.f32 %v3731, 0.001953125
        %v3876 = vmul.f32 %v3800, 0.001953125
        %v3877 = vmul.f32 %v3869, 0.001953125
        %v3878 = vmul.f32 %v1941, %v1941
        %v3879 = vmul.f32 %v1943, %v1943
        %v3880 = vmul.f32 %v2294, %v2294
        %v3881 = vmul.f32 %v2296, %v2296
        %v3882 = vmul.f32 %v2647, %v2647
        %v3883 = vmul.f32 %v2649, %v2649
        %v3884 = vmul.f32 %v3000, %v3000
        %v3885 = vmul.f32 %v3002, %v3002
        %v3886 = vmul.f32 %v1945, %v1945
        %v3887 = vmul.f32 %v1947, %v1947
        %v3888 = vmul.f32 %v2298, %v2298
        %v3889 = vmul.f32 %v2300, %v2300
        %v3890 = vmul.f32 %v2651, %v2651
        %v3891 = vmul.f32 %v2653, %v2653
        %v3892 = vmul.f32 %v3004, %v3004
        %v3893 = vmul.f32 %v3006, %v3006
        %v3894 = vmul.f32 %v1951, %v1951
        %v3895 = vmul.f32 %v1953, %v1953
        %v3896 = vmul.f32 %v2304, %v2304
        %v3897 = vmul.f32 %v2306, %v2306
        %v3898 = vmul.f32 %v2657, %v2657
        %v3899 = vmul.f32 %v2659, %v2659
        %v3900 = vmul.f32 %v3010, %v3010
        %v3901 = vmul.f32 %v3012, %v3012
        %v3902 = vmul.f32 %v1955, %v1955
        %v3903 = vmul.f32 %v1957, %v1957
        %v3904 = vmul.f32 %v2308, %v2308
        %v3905 = vmul.f32 %v2310, %v2310
        %v3906 = vmul.f32 %v2661, %v2661
        %v3907 = vmul.f32 %v2663, %v2663
        %v3908 = vmul.f32 %v3014, %v3014
        %v3909 = vmul.f32 %v3016, %v3016
        %v3910 = vmul.f32 %v1961, %v1961
        %v3911 = vmul.f32 %v1963, %v1963
        %v3912 = vmul.f32 %v2314, %v2314
        %v3913 = vmul.f32 %v2316, %v2316
        %v3914 = vmul.f32 %v2667, %v2667
        %v3915 = vmul.f32 %v2669, %v2669
        %v3916 = vmul.f32 %v3020, %v3020
        %v3917 = vmul.f32 %v3022, %v3022
        %v3918 = vmul.f32 %v1965, %v1965
        %v3919 = vmul.f32 %v1967, %v1967
        %v3920 = vmul.f32 %v2318, %v2318
        %v3921 = vmul.f32 %v2320, %v2320
        %v3922 = vmul.f32 %v2671, %v2671
        %v3923 = vmul.f32 %v2673, %v2673
        %v3924 = vmul.f32 %v3024, %v3024
        %v3925 = vmul.f32 %v3026, %v3026
        %v3926 = vmul.f32 %v1971, %v1971
        %v3927 = vmul.f32 %v1973, %v1973
        %v3928 = vmul.f32 %v2324, %v2324
        %v3929 = vmul.f32 %v2326, %v2326
        %v3930 = vmul.f32 %v2677, %v2677
        %v3931 = vmul.f32 %v2679, %v2679
        %v3932 = vmul.f32 %v3030, %v3030
        %v3933 = vmul.f32 %v3032, %v3032
        %v3934 = vmul.f32 %v1975, %v1975
        %v3935 = vmul.f32 %v1977, %v1977
        %v3936 = vmul.f32 %v2328, %v2328
        %v3937 = vmul.f32 %v2330, %v2330
        %v3938 = vmul.f32 %v2681, %v2681
        %v3939 = vmul.f32 %v2683, %v2683
        %v3940 = vmul.f32 %v3034, %v3034
        %v3941 = vmul.f32 %v3036, %v3036
        %v3942 = vmul.f32 %v1981, %v1981
        %v3943 = vmul.f32 %v1983, %v1983
        %v3944 = vmul.f32 %v2334, %v2334
        %v3945 = vmul.f32 %v2336, %v2336
        %v3946 = vmul.f32 %v2687, %v2687
        %v3947 = vmul.f32 %v2689, %v2689
        %v3948 = vmul.f32 %v3040, %v3040
        %v3949 = vmul.f32 %v3042, %v3042
        %v3950 = vmul.f32 %v1985, %v1985
        %v3951 = vmul.f32 %v1987, %v1987
        %v3952 = vmul.f32 %v2338, %v2338
        %v3953 = vmul.f32 %v2340, %v2340
        %v3954 = vmul.f32 %v2691, %v2691
        %v3955 = vmul.f32 %v2693, %v2693
        %v3956 = vmul.f32 %v3044, %v3044
        %v3957 = vmul.f32 %v3046, %v3046
        %v3958 = vmul.f32 %v1991, %v1991
        %v3959 = vmul.f32 %v1993, %v1993
        %v3960 = vmul.f32 %v2344, %v2344
        %v3961 = vmul.f32 %v2346, %v2346
        %v3962 = vmul.f32 %v2697, %v2697
        %v3963 = vmul.f32 %v2699, %v2699
        %v3964 = vmul.f32 %v3050, %v3050
        %v3965 = vmul.f32 %v3052, %v3052
        %v3966 = vmul.f32 %v1995, %v1995
        %v3967 = vmul.f32 %v1997, %v1997
        %v3968 = vmul.f32 %v2348, %v2348
        %v3969 = vmul.f32 %v2350, %v2350
        %v3970 = vmul.f32 %v2701, %v2701
        %v3971 = vmul.f32 %v2703, %v2703
        %v3972 = vmul.f32 %v3054, %v3054
        %v3973 = vmul.f32 %v3056, %v3056
        %v3974 = vmul.f32 %v2001, %v2001
        %v3975 = vmul.f32 %v2003, %v2003
        %v3976 = vmul.f32 %v2354, %v2354
        %v3977 = vmul.f32 %v2356, %v2356
        %v3978 = vmul.f32 %v2707, %v2707
        %v3979 = vmul.f32 %v2709, %v2709
        %v3980 = vmul.f32 %v3060, %v3060
        %v3981 = vmul.f32 %v3062, %v3062
        %v3982 = vmul.f32 %v2005, %v2005
        %v3983 = vmul.f32 %v2007, %v2007
        %v3984 = vmul.f32 %v2358, %v2358
        %v3985 = vmul.f32 %v2360, %v2360
        %v3986 = vmul.f32 %v2711, %v2711
        %v3987 = vmul.f32 %v2713, %v2713
        %v3988 = vmul.f32 %v3064, %v3064
        %v3989 = vmul.f32 %v3066, %v3066
        %v3990 = vmul.f32 %v2011, %v2011
        %v3991 = vmul.f32 %v2013, %v2013
        %v3992 = vmul.f32 %v2364, %v2364
        %v3993 = vmul.f32 %v2366, %v2366
        %v3994 = vmul.f32 %v2717, %v2717
        %v3995 = vmul.f32 %v2719, %v2719
        %v3996 = vmul.f32 %v3070, %v3070
        %v3997 = vmul.f32 %v3072, %v3072
        %v3998 = vmul.f32 %v2015, %v2015
        %v3999 = vmul.f32 %v2017, %v2017
        %v4000 = vmul.f32 %v2368, %v2368
        %v4001 = vmul.f32 %v2370, %v2370
        %v4002 = vmul.f32 %v2721, %v2721
        %v4003 = vmul.f32 %v2723, %v2723
        %v4004 = vmul.f32 %v3074, %v3074
        %v4005 = vmul.f32 %v3076, %v3076
        %v4006 = vmul.f32 %v2021, %v2021
        %v4007 = vmul.f32 %v2023, %v2023
        %v4008 = vmul.f32 %v2374, %v2374
        %v4009 = vmul.f32 %v2376, %v2376
        %v4010 = vmul.f32 %v2727, %v2727
        %v4011 = vmul.f32 %v2729, %v2729
        %v4012 = vmul.f32 %v3080, %v3080
        %v4013 = vmul.f32 %v3082, %v3082
        %v4014 = vmul.f32 %v2025, %v2025
        %v4015 = vmul.f32 %v2027, %v2027
        %v4016 = vmul.f32 %v2378, %v2378
        %v4017 = vmul.f32 %v2380, %v2380
        %v4018 = vmul.f32 %v2731, %v2731
        %v4019 = vmul.f32 %v2733, %v2733
        %v4020 = vmul.f32 %v3084, %v3084
        %v4021 = vmul.f32 %v3086, %v3086
        %v4022 = vmul.f32 %v2031, %v2031
        %v4023 = vmul.f32 %v2033, %v2033
        %v4024 = vmul.f32 %v2384, %v2384
        %v4025 = vmul.f32 %v2386, %v2386
        %v4026 = vmul.f32 %v2737, %v2737
        %v4027 = vmul.f32 %v2739, %v2739
        %v4028 = vmul.f32 %v3090, %v3090
        %v4029 = vmul.f32 %v3092, %v3092
        %v4030 = vmul.f32 %v2035, %v2035
        %v4031 = vmul.f32 %v2037, %v2037
        %v4032 = vmul.f32 %v2388, %v2388
        %v4033 = vmul.f32 %v2390, %v2390
        %v4034 = vmul.f32 %v2741, %v2741
        %v4035 = vmul.f32 %v2743, %v2743
        %v4036 = vmul.f32 %v3094, %v3094
        %v4037 = vmul.f32 %v3096, %v3096
        %v4038 = vmul.f32 %v2041, %v2041
        %v4039 = vmul.f32 %v2043, %v2043
        %v4040 = vmul.f32 %v2394, %v2394
        %v4041 = vmul.f32 %v2396, %v2396
        %v4042 = vmul.f32 %v2747, %v2747
        %v4043 = vmul.f32 %v2749, %v2749
        %v4044 = vmul.f32 %v3100, %v3100
        %v4045 = vmul.f32 %v3102, %v3102
        %v4046 = vmul.f32 %v2045, %v2045
        %v4047 = vmul.f32 %v2047, %v2047
        %v4048 = vmul.f32 %v2398, %v2398
        %v4049 = vmul.f32 %v2400, %v2400
        %v4050 = vmul.f32 %v2751, %v2751
        %v4051 = vmul.f32 %v2753, %v2753
        %v4052 = vmul.f32 %v3104, %v3104
        %v4053 = vmul.f32 %v3106, %v3106
        %v4054 = vmul.f32 %v2051, %v2051
        %v4055 = vmul.f32 %v2053, %v2053
        %v4056 = vmul.f32 %v2404, %v2404
        %v4057 = vmul.f32 %v2406, %v2406
        %v4058 = vmul.f32 %v2757, %v2757
        %v4059 = vmul.f32 %v2759, %v2759
        %v4060 = vmul.f32 %v3110, %v3110
        %v4061 = vmul.f32 %v3112, %v3112
        %v4062 = vmul.f32 %v2055, %v2055
        %v4063 = vmul.f32 %v2057, %v2057
        %v4064 = vmul.f32 %v2408, %v2408
        %v4065 = vmul.f32 %v2410, %v2410
        %v4066 = vmul.f32 %v2761, %v2761
        %v4067 = vmul.f32 %v2763, %v2763
        %v4068 = vmul.f32 %v3114, %v3114
        %v4069 = vmul.f32 %v3116, %v3116
        %v4070 = vmul.f32 %v2061, %v2061
        %v4071 = vmul.f32 %v2063, %v2063
        %v4072 = vmul.f32 %v2414, %v2414
        %v4073 = vmul.f32 %v2416, %v2416
        %v4074 = vmul.f32 %v2767, %v2767
        %v4075 = vmul.f32 %v2769, %v2769
        %v4076 = vmul.f32 %v3120, %v3120
        %v4077 = vmul.f32 %v3122, %v3122
        %v4078 = vmul.f32 %v2065, %v2065
        %v4079 = vmul.f32 %v2067, %v2067
        %v4080 = vmul.f32 %v2418, %v2418
        %v4081 = vmul.f32 %v2420, %v2420
        %v4082 = vmul.f32 %v2771, %v2771
        %v4083 = vmul.f32 %v2773, %v2773
        %v4084 = vmul.f32 %v3124, %v3124
        %v4085 = vmul.f32 %v3126, %v3126
        %v4086 = vmul.f32 %v2071, %v2071
        %v4087 = vmul.f32 %v2073, %v2073
        %v4088 = vmul.f32 %v2424, %v2424
        %v4089 = vmul.f32 %v2426, %v2426
        %v4090 = vmul.f32 %v2777, %v2777
        %v4091 = vmul.f32 %v2779, %v2779
        %v4092 = vmul.f32 %v3130, %v3130
        %v4093 = vmul.f32 %v3132, %v3132
        %v4094 = vmul.f32 %v2075, %v2075
        %v4095 = vmul.f32 %v2077, %v2077
        %v4096 = vmul.f32 %v2428, %v2428
        %v4097 = vmul.f32 %v2430, %v2430
        %v4098 = vmul.f32 %v2781, %v2781
        %v4099 = vmul.f32 %v2783, %v2783
        %v4100 = vmul.f32 %v3134, %v3134
        %v4101 = vmul.f32 %v3136, %v3136
        %v4102 = vmul.f32 %v2081, %v2081
        %v4103 = vmul.f32 %v2083, %v2083
        %v4104 = vmul.f32 %v2434, %v2434
        %v4105 = vmul.f32 %v2436, %v2436
        %v4106 = vmul.f32 %v2787, %v2787
        %v4107 = vmul.f32 %v2789, %v2789
        %v4108 = vmul.f32 %v3140, %v3140
        %v4109 = vmul.f32 %v3142, %v3142
        %v4110 = vmul.f32 %v2085, %v2085
        %v4111 = vmul.f32 %v2087, %v2087
        %v4112 = vmul.f32 %v2438, %v2438
        %v4113 = vmul.f32 %v2440, %v2440
        %v4114 = vmul.f32 %v2791, %v2791
        %v4115 = vmul.f32 %v2793, %v2793
        %v4116 = vmul.f32 %v3144, %v3144
        %v4117 = vmul.f32 %v3146, %v3146
        %v4118 = vmul.f32 %v2091, %v2091
        %v4119 = vmul.f32 %v2093, %v2093
        %v4120 = vmul.f32 %v2444, %v2444
        %v4121 = vmul.f32 %v2446, %v2446
        %v4122 = vmul.f32 %v2797, %v2797
        %v4123 = vmul.f32 %v2799, %v2799
        %v4124 = vmul.f32 %v3150, %v3150
        %v4125 = vmul.f32 %v3152, %v3152
        %v4126 = vmul.f32 %v2095, %v2095
        %v4127 = vmul.f32 %v2097, %v2097
        %v4128 = vmul.f32 %v2448, %v2448
        %v4129 = vmul.f32 %v2450, %v2450
        %v4130 = vmul.f32 %v2801, %v2801
        %v4131 = vmul.f32 %v2803, %v2803
        %v4132 = vmul.f32 %v3154, %v3154
        %v4133 = vmul.f32 %v3156, %v3156
        %v4134 = vmul.f32 %v2101, %v2101
        %v4135 = vmul.f32 %v2103, %v2103
        %v4136 = vmul.f32 %v2454, %v2454
        %v4137 = vmul.f32 %v2456, %v2456
        %v4138 = vmul.f32 %v2807, %v2807
        %v4139 = vmul.f32 %v2809, %v2809
        %v4140 = vmul.f32 %v3160, %v3160
        %v4141 = vmul.f32 %v3162, %v3162
        %v4142 = vmul.f32 %v2105, %v2105
        %v4143 = vmul.f32 %v2107, %v2107
        %v4144 = vmul.f32 %v2458, %v2458
        %v4145 = vmul.f32 %v2460, %v2460
        %v4146 = vmul.f32 %v2811, %v2811
        %v4147 = vmul.f32 %v2813, %v2813
        %v4148 = vmul.f32 %v3164, %v3164
        %v4149 = vmul.f32 %v3166, %v3166
        %v4150 = vmul.f32 %v2111, %v2111
        %v4151 = vmul.f32 %v2113, %v2113
        %v4152 = vmul.f32 %v2464, %v2464
        %v4153 = vmul.f32 %v2466, %v2466
        %v4154 = vmul.f32 %v2817, %v2817
        %v4155 = vmul.f32 %v2819, %v2819
        %v4156 = vmul.f32 %v3170, %v3170
        %v4157 = vmul.f32 %v3172, %v3172
        %v4158 = vmul.f32 %v2115, %v2115
        %v4159 = vmul.f32 %v2117, %v2117
        %v4160 = vmul.f32 %v2468, %v2468
        %v4161 = vmul.f32 %v2470, %v2470
        %v4162 = vmul.f32 %v2821, %v2821
        %v4163 = vmul.f32 %v2823, %v2823
        %v4164 = vmul.f32 %v3174, %v3174
        %v4165 = vmul.f32 %v3176, %v3176
        %v4166 = vmul.f32 %v2121, %v2121
        %v4167 = vmul.f32 %v2123, %v2123
        %v4168 = vmul.f32 %v2474, %v2474
        %v4169 = vmul.f32 %v2476, %v2476
        %v4170 = vmul.f32 %v2827, %v2827
        %v4171 = vmul.f32 %v2829, %v2829
        %v4172 = vmul.f32 %v3180, %v3180
        %v4173 = vmul.f32 %v3182, %v3182
        %v4174 = vmul.f32 %v2125, %v2125
        %v4175 = vmul.f32 %v2127, %v2127
        %v4176 = vmul.f32 %v2478, %v2478
        %v4177 = vmul.f32 %v2480, %v2480
        %v4178 = vmul.f32 %v2831, %v2831
        %v4179 = vmul.f32 %v2833, %v2833
        %v4180 = vmul.f32 %v3184, %v3184
        %v4181 = vmul.f32 %v3186, %v3186
        %v4182 = vmul.f32 %v2131, %v2131
        %v4183 = vmul.f32 %v2133, %v2133
        %v4184 = vmul.f32 %v2484, %v2484
        %v4185 = vmul.f32 %v2486, %v2486
        %v4186 = vmul.f32 %v2837, %v2837
        %v4187 = vmul.f32 %v2839, %v2839
        %v4188 = vmul.f32 %v3190, %v3190
        %v4189 = vmul.f32 %v3192, %v3192
        %v4190 = vmul.f32 %v2135, %v2135
        %v4191 = vmul.f32 %v2137, %v2137
        %v4192 = vmul.f32 %v2488, %v2488
        %v4193 = vmul.f32 %v2490, %v2490
        %v4194 = vmul.f32 %v2841, %v2841
        %v4195 = vmul.f32 %v2843, %v2843
        %v4196 = vmul.f32 %v3194, %v3194
        %v4197 = vmul.f32 %v3196, %v3196
        %v4198 = vmul.f32 %v2141, %v2141
        %v4199 = vmul.f32 %v2143, %v2143
        %v4200 = vmul.f32 %v2494, %v2494
        %v4201 = vmul.f32 %v2496, %v2496
        %v4202 = vmul.f32 %v2847, %v2847
        %v4203 = vmul.f32 %v2849, %v2849
        %v4204 = vmul.f32 %v3200, %v3200
        %v4205 = vmul.f32 %v3202, %v3202
        %v4206 = vmul.f32 %v2145, %v2145
        %v4207 = vmul.f32 %v2147, %v2147
        %v4208 = vmul.f32 %v2498, %v2498
        %v4209 = vmul.f32 %v2500, %v2500
        %v4210 = vmul.f32 %v2851, %v2851
        %v4211 = vmul.f32 %v2853, %v2853
        %v4212 = vmul.f32 %v3204, %v3204
        %v4213 = vmul.f32 %v3206, %v3206
        %v4214 = vmul.f32 %v2151, %v2151
        %v4215 = vmul.f32 %v2153, %v2153
        %v4216 = vmul.f32 %v2504, %v2504
        %v4217 = vmul.f32 %v2506, %v2506
        %v4218 = vmul.f32 %v2857, %v2857
        %v4219 = vmul.f32 %v2859, %v2859
        %v4220 = vmul.f32 %v3210, %v3210
        %v4221 = vmul.f32 %v3212, %v3212
        %v4222 = vmul.f32 %v2155, %v2155
        %v4223 = vmul.f32 %v2157, %v2157
        %v4224 = vmul.f32 %v2508, %v2508
        %v4225 = vmul.f32 %v2510, %v2510
        %v4226 = vmul.f32 %v2861, %v2861
        %v4227 = vmul.f32 %v2863, %v2863
        %v4228 = vmul.f32 %v3214, %v3214
        %v4229 = vmul.f32 %v3216, %v3216
        %v4230 = vmul.f32 %v2161, %v2161
        %v4231 = vmul.f32 %v2163, %v2163
        %v4232 = vmul.f32 %v2514, %v2514
        %v4233 = vmul.f32 %v2516, %v2516
        %v4234 = vmul.f32 %v2867, %v2867
        %v4235 = vmul.f32 %v2869, %v2869
        %v4236 = vmul.f32 %v3220, %v3220
        %v4237 = vmul.f32 %v3222, %v3222
        %v4238 = vmul.f32 %v2165, %v2165
        %v4239 = vmul.f32 %v2167, %v2167
        %v4240 = vmul.f32 %v2518, %v2518
        %v4241 = vmul.f32 %v2520, %v2520
        %v4242 = vmul.f32 %v2871, %v2871
        %v4243 = vmul.f32 %v2873, %v2873
        %v4244 = vmul.f32 %v3224, %v3224
        %v4245 = vmul.f32 %v3226, %v3226
        %v4246 = vmul.f32 %v2171, %v2171
        %v4247 = vmul.f32 %v2173, %v2173
        %v4248 = vmul.f32 %v2524, %v2524
        %v4249 = vmul.f32 %v2526, %v2526
        %v4250 = vmul.f32 %v2877, %v2877
        %v4251 = vmul.f32 %v2879, %v2879
        %v4252 = vmul.f32 %v3230, %v3230
        %v4253 = vmul.f32 %v3232, %v3232
        %v4254 = vmul.f32 %v2175, %v2175
        %v4255 = vmul.f32 %v2177, %v2177
        %v4256 = vmul.f32 %v2528, %v2528
        %v4257 = vmul.f32 %v2530, %v2530
        %v4258 = vmul.f32 %v2881, %v2881
        %v4259 = vmul.f32 %v2883, %v2883
        %v4260 = vmul.f32 %v3234, %v3234
        %v4261 = vmul.f32 %v3236, %v3236
        %v4262 = vmul.f32 %v2181, %v2181
        %v4263 = vmul.f32 %v2183, %v2183
        %v4264 = vmul.f32 %v2534, %v2534
        %v4265 = vmul.f32 %v2536, %v2536
        %v4266 = vmul.f32 %v2887, %v2887
        %v4267 = vmul.f32 %v2889, %v2889
        %v4268 = vmul.f32 %v3240, %v3240
        %v4269 = vmul.f32 %v3242, %v3242
        %v4270 = vmul.f32 %v2185, %v2185
        %v4271 = vmul.f32 %v2187, %v2187
        %v4272 = vmul.f32 %v2538, %v2538
        %v4273 = vmul.f32 %v2540, %v2540
        %v4274 = vmul.f32 %v2891, %v2891
        %v4275 = vmul.f32 %v2893, %v2893
        %v4276 = vmul.f32 %v3244, %v3244
        %v4277 = vmul.f32 %v3246, %v3246
        %v4278 = vmul.f32 %v2191, %v2191
        %v4279 = vmul.f32 %v2193, %v2193
        %v4280 = vmul.f32 %v2544, %v2544
        %v4281 = vmul.f32 %v2546, %v2546
        %v4282 = vmul.f32 %v2897, %v2897
        %v4283 = vmul.f32 %v2899, %v2899
        %v4284 = vmul.f32 %v3250, %v3250
        %v4285 = vmul.f32 %v3252, %v3252
        %v4286 = vmul.f32 %v2195, %v2195
        %v4287 = vmul.f32 %v2197, %v2197
        %v4288 = vmul.f32 %v2548, %v2548
        %v4289 = vmul.f32 %v2550, %v2550
        %v4290 = vmul.f32 %v2901, %v2901
        %v4291 = vmul.f32 %v2903, %v2903
        %v4292 = vmul.f32 %v3254, %v3254
        %v4293 = vmul.f32 %v3256, %v3256
        %v4294 = vmul.f32 %v2201, %v2201
        %v4295 = vmul.f32 %v2203, %v2203
        %v4296 = vmul.f32 %v2554, %v2554
        %v4297 = vmul.f32 %v2556, %v2556
        %v4298 = vmul.f32 %v2907, %v2907
        %v4299 = vmul.f32 %v2909, %v2909
        %v4300 = vmul.f32 %v3260, %v3260
        %v4301 = vmul.f32 %v3262, %v3262
        %v4302 = vmul.f32 %v2205, %v2205
        %v4303 = vmul.f32 %v2207, %v2207
        %v4304 = vmul.f32 %v2558, %v2558
        %v4305 = vmul.f32 %v2560, %v2560
        %v4306 = vmul.f32 %v2911, %v2911
        %v4307 = vmul.f32 %v2913, %v2913
        %v4308 = vmul.f32 %v3264, %v3264
        %v4309 = vmul.f32 %v3266, %v3266
        %v4310 = vmul.f32 %v2211, %v2211
        %v4311 = vmul.f32 %v2213, %v2213
        %v4312 = vmul.f32 %v2564, %v2564
        %v4313 = vmul.f32 %v2566, %v2566
        %v4314 = vmul.f32 %v2917, %v2917
        %v4315 = vmul.f32 %v2919, %v2919
        %v4316 = vmul.f32 %v3270, %v3270
        %v4317 = vmul.f32 %v3272, %v3272
        %v4318 = vmul.f32 %v2215, %v2215
        %v4319 = vmul.f32 %v2217, %v2217
        %v4320 = vmul.f32 %v2568, %v2568
        %v4321 = vmul.f32 %v2570, %v2570
        %v4322 = vmul.f32 %v2921, %v2921
        %v4323 = vmul.f32 %v2923, %v2923
        %v4324 = vmul.f32 %v3274, %v3274
        %v4325 = vmul.f32 %v3276, %v3276
        %v4326 = vmul.f32 %v2221, %v2221
        %v4327 = vmul.f32 %v2223, %v2223
        %v4328 = vmul.f32 %v2574, %v2574
        %v4329 = vmul.f32 %v2576, %v2576
        %v4330 = vmul.f32 %v2927, %v2927
        %v4331 = vmul.f32 %v2929, %v2929
        %v4332 = vmul.f32 %v3280, %v3280
        %v4333 = vmul.f32 %v3282, %v3282
        %v4334 = vmul.f32 %v2225, %v2225
        %v4335 = vmul.f32 %v2227, %v2227
        %v4336 = vmul.f32 %v2578, %v2578
        %v4337 = vmul.f32 %v2580, %v2580
        %v4338 = vmul.f32 %v2931, %v2931
        %v4339 = vmul.f32 %v2933, %v2933
        %v4340 = vmul.f32 %v3284, %v3284
        %v4341 = vmul.f32 %v3286, %v3286
        %v4342 = vmul.f32 %v2231, %v2231
        %v4343 = vmul.f32 %v2233, %v2233
        %v4344 = vmul.f32 %v2584, %v2584
        %v4345 = vmul.f32 %v2586, %v2586
        %v4346 = vmul.f32 %v2937, %v2937
        %v4347 = vmul.f32 %v2939, %v2939
        %v4348 = vmul.f32 %v3290, %v3290
        %v4349 = vmul.f32 %v3292, %v3292
        %v4350 = vmul.f32 %v2235, %v2235
        %v4351 = vmul.f32 %v2237, %v2237
        %v4352 = vmul.f32 %v2588, %v2588
        %v4353 = vmul.f32 %v2590, %v2590
        %v4354 = vmul.f32 %v2941, %v2941
        %v4355 = vmul.f32 %v2943, %v2943
        %v4356 = vmul.f32 %v3294, %v3294
        %v4357 = vmul.f32 %v3296, %v3296
        %v4358 = vmul.f32 %v2241, %v2241
        %v4359 = vmul.f32 %v2243, %v2243
        %v4360 = vmul.f32 %v2594, %v2594
        %v4361 = vmul.f32 %v2596, %v2596
        %v4362 = vmul.f32 %v2947, %v2947
        %v4363 = vmul.f32 %v2949, %v2949
        %v4364 = vmul.f32 %v3300, %v3300
        %v4365 = vmul.f32 %v3302, %v3302
        %v4366 = vmul.f32 %v2245, %v2245
        %v4367 = vmul.f32 %v2247, %v2247
        %v4368 = vmul.f32 %v2598, %v2598
        %v4369 = vmul.f32 %v2600, %v2600
        %v4370 = vmul.f32 %v2951, %v2951
        %v4371 = vmul.f32 %v2953, %v2953
        %v4372 = vmul.f32 %v3304, %v3304
        %v4373 = vmul.f32 %v3306, %v3306
        %v4374 = vmul.f32 %v2251, %v2251
        %v4375 = vmul.f32 %v2253, %v2253
        %v4376 = vmul.f32 %v2604, %v2604
        %v4377 = vmul.f32 %v2606, %v2606
        %v4378 = vmul.f32 %v2957, %v2957
        %v4379 = vmul.f32 %v2959, %v2959
        %v4380 = vmul.f32 %v3310, %v3310
        %v4381 = vmul.f32 %v3312, %v3312
        %v4382 = vmul.f32 %v2255, %v2255
        %v4383 = vmul.f32 %v2257, %v2257
        %v4384 = vmul.f32 %v2608, %v2608
        %v4385 = vmul.f32 %v2610, %v2610
        %v4386 = vmul.f32 %v2961, %v2961
        %v4387 = vmul.f32 %v2963, %v2963
        %v4388 = vmul.f32 %v3314, %v3314
        %v4389 = vmul.f32 %v3316, %v3316
        %v4390 = vadd.f32 %v3878, %v3886
        %v4391 = vadd.f32 %v4390, %v3894
        %v4392 = vadd.f32 %v4391, %v3902
        %v4393 = vadd.f32 %v4392, %v3910
        %v4394 = vadd.f32 %v4393, %v3918
        %v4395 = vadd.f32 %v4394, %v3926
        %v4396 = vadd.f32 %v4395, %v3934
        %v4397 = vadd.f32 %v4396, %v3942
        %v4398 = vadd.f32 %v4397, %v3950
        %v4399 = vadd.f32 %v4398, %v3958
        %v4400 = vadd.f32 %v4399, %v3966
        %v4401 = vadd.f32 %v4400, %v3974
        %v4402 = vadd.f32 %v4401, %v3982
        %v4403 = vadd.f32 %v4402, %v3990
        %v4404 = vadd.f32 %v4403, %v3998
        %v4405 = vadd.f32 %v4404, %v4006
        %v4406 = vadd.f32 %v4405, %v4014
        %v4407 = vadd.f32 %v4406, %v4022
        %v4408 = vadd.f32 %v4407, %v4030
        %v4409 = vadd.f32 %v4408, %v4038
        %v4410 = vadd.f32 %v4409, %v4046
        %v4411 = vadd.f32 %v4410, %v4054
        %v4412 = vadd.f32 %v4411, %v4062
        %v4413 = vadd.f32 %v4412, %v4070
        %v4414 = vadd.f32 %v4413, %v4078
        %v4415 = vadd.f32 %v4414, %v4086
        %v4416 = vadd.f32 %v4415, %v4094
        %v4417 = vadd.f32 %v4416, %v4102
        %v4418 = vadd.f32 %v4417, %v4110
        %v4419 = vadd.f32 %v4418, %v4118
        %v4420 = vadd.f32 %v4419, %v4126
        %v4421 = vadd.f32 %v4420, %v4134
        %v4422 = vadd.f32 %v4421, %v4142
        %v4423 = vadd.f32 %v4422, %v4150
        %v4424 = vadd.f32 %v4423, %v4158
        %v4425 = vadd.f32 %v4424, %v4166
        %v4426 = vadd.f32 %v4425, %v4174
        %v4427 = vadd.f32 %v4426, %v4182
        %v4428 = vadd.f32 %v4427, %v4190
        %v4429 = vadd.f32 %v4428, %v4198
        %v4430 = vadd.f32 %v4429, %v4206
        %v4431 = vadd.f32 %v4430, %v4214
        %v4432 = vadd.f32 %v4431, %v4222
        %v4433 = vadd.f32 %v4432, %v4230
        %v4434 = vadd.f32 %v4433, %v4238
        %v4435 = vadd.f32 %v4434, %v4246
        %v4436 = vadd.f32 %v4435, %v4254
        %v4437 = vadd.f32 %v4436, %v4262
        %v4438 = vadd.f32 %v4437, %v4270
        %v4439 = vadd.f32 %v4438, %v4278
        %v4440 = vadd.f32 %v4439, %v4286
        %v4441 = vadd.f32 %v4440, %v4294
        %v4442 = vadd.f32 %v4441, %v4302
        %v4443 = vadd.f32 %v4442, %v4310
        %v4444 = vadd.f32 %v4443, %v4318
        %v4445 = vadd.f32 %v4444, %v4326
        %v4446 = vadd.f32 %v4445, %v4334
        %v4447 = vadd.f32 %v4446, %v4342
        %v4448 = vadd.f32 %v4447, %v4350
        %v4449 = vadd.f32 %v4448, %v4358
        %v4450 = vadd.f32 %v4449, %v4366
        %v4451 = vadd.f32 %v4450, %v4374
        %v4452 = vadd.f32 %v4451, %v4382
        %v4453 = vrot.slane %v4452, 4
        %v4454 = vadd.f32 %v4452, %v4453
        %v4455 = vrot.slane %v4454, 2
        %v4456 = vadd.f32 %v4454, %v4455
        %v4457 = vrot.slane %v4456, 1
        %v4458 = vadd.f32 %v4456, %v4457
        %v4459 = vadd.f32 %v3879, %v3887
        %v4460 = vadd.f32 %v4459, %v3895
        %v4461 = vadd.f32 %v4460, %v3903
        %v4462 = vadd.f32 %v4461, %v3911
        %v4463 = vadd.f32 %v4462, %v3919
        %v4464 = vadd.f32 %v4463, %v3927
        %v4465 = vadd.f32 %v4464, %v3935
        %v4466 = vadd.f32 %v4465, %v3943
        %v4467 = vadd.f32 %v4466, %v3951
        %v4468 = vadd.f32 %v4467, %v3959
        %v4469 = vadd.f32 %v4468, %v3967
        %v4470 = vadd.f32 %v4469, %v3975
        %v4471 = vadd.f32 %v4470, %v3983
        %v4472 = vadd.f32 %v4471, %v3991
        %v4473 = vadd.f32 %v4472, %v3999
        %v4474 = vadd.f32 %v4473, %v4007
        %v4475 = vadd.f32 %v4474, %v4015
        %v4476 = vadd.f32 %v4475, %v4023
        %v4477 = vadd.f32 %v4476, %v4031
        %v4478 = vadd.f32 %v4477, %v4039
        %v4479 = vadd.f32 %v4478, %v4047
        %v4480 = vadd.f32 %v4479, %v4055
        %v4481 = vadd.f32 %v4480, %v4063
        %v4482 = vadd.f32 %v4481, %v4071
        %v4483 = vadd.f32 %v4482, %v4079
        %v4484 = vadd.f32 %v4483, %v4087
        %v4485 = vadd.f32 %v4484, %v4095
        %v4486 = vadd.f32 %v4485, %v4103
        %v4487 = vadd.f32 %v4486, %v4111
        %v4488 = vadd.f32 %v4487, %v4119
        %v4489 = vadd.f32 %v4488, %v4127
        %v4490 = vadd.f32 %v4489, %v4135
        %v4491 = vadd.f32 %v4490, %v4143
        %v4492 = vadd.f32 %v4491, %v4151
        %v4493 = vadd.f32 %v4492, %v4159
        %v4494 = vadd.f32 %v4493, %v4167
        %v4495 = vadd.f32 %v4494, %v4175
        %v4496 = vadd.f32 %v4495, %v4183
        %v4497 = vadd.f32 %v4496, %v4191
        %v4498 = vadd.f32 %v4497, %v4199
        %v4499 = vadd.f32 %v4498, %v4207
        %v4500 = vadd.f32 %v4499, %v4215
        %v4501 = vadd.f32 %v4500, %v4223
        %v4502 = vadd.f32 %v4501, %v4231
        %v4503 = vadd.f32 %v4502, %v4239
        %v4504 = vadd.f32 %v4503, %v4247
        %v4505 = vadd.f32 %v4504, %v4255
        %v4506 = vadd.f32 %v4505, %v4263
        %v4507 = vadd.f32 %v4506, %v4271
        %v4508 = vadd.f32 %v4507, %v4279
        %v4509 = vadd.f32 %v4508, %v4287
        %v4510 = vadd.f32 %v4509, %v4295
        %v4511 = vadd.f32 %v4510, %v4303
        %v4512 = vadd.f32 %v4511, %v4311
        %v4513 = vadd.f32 %v4512, %v4319
        %v4514 = vadd.f32 %v4513, %v4327
        %v4515 = vadd.f32 %v4514, %v4335
        %v4516 = vadd.f32 %v4515, %v4343
        %v4517 = vadd.f32 %v4516, %v4351
        %v4518 = vadd.f32 %v4517, %v4359
        %v4519 = vadd.f32 %v4518, %v4367
        %v4520 = vadd.f32 %v4519, %v4375
        %v4521 = vadd.f32 %v4520, %v4383
        %v4522 = vrot.slane %v4521, 4
        %v4523 = vadd.f32 %v4521, %v4522
        %v4524 = vrot.slane %v4523, 2
        %v4525 = vadd.f32 %v4523, %v4524
        %v4526 = vrot.slane %v4525, 1
        %v4527 = vadd.f32 %v4525, %v4526
        %v4528 = vadd.f32 %v3880, %v3888
        %v4529 = vadd.f32 %v4528, %v3896
        %v4530 = vadd.f32 %v4529, %v3904
        %v4531 = vadd.f32 %v4530, %v3912
        %v4532 = vadd.f32 %v4531, %v3920
        %v4533 = vadd.f32 %v4532, %v3928
        %v4534 = vadd.f32 %v4533, %v3936
        %v4535 = vadd.f32 %v4534, %v3944
        %v4536 = vadd.f32 %v4535, %v3952
        %v4537 = vadd.f32 %v4536, %v3960
        %v4538 = vadd.f32 %v4537, %v3968
        %v4539 = vadd.f32 %v4538, %v3976
        %v4540 = vadd.f32 %v4539, %v3984
        %v4541 = vadd.f32 %v4540, %v3992
        %v4542 = vadd.f32 %v4541, %v4000
        %v4543 = vadd.f32 %v4542, %v4008
        %v4544 = vadd.f32 %v4543, %v4016
        %v4545 = vadd.f32 %v4544, %v4024
        %v4546 = vadd.f32 %v4545, %v4032
        %v4547 = vadd.f32 %v4546, %v4040
        %v4548 = vadd.f32 %v4547, %v4048
        %v4549 = vadd.f32 %v4548, %v4056
        %v4550 = vadd.f32 %v4549, %v4064
        %v4551 = vadd.f32 %v4550, %v4072
        %v4552 = vadd.f32 %v4551, %v4080
        %v4553 = vadd.f32 %v4552, %v4088
        %v4554 = vadd.f32 %v4553, %v4096
        %v4555 = vadd.f32 %v4554, %v4104
        %v4556 = vadd.f32 %v4555, %v4112
        %v4557 = vadd.f32 %v4556, %v4120
        %v4558 = vadd.f32 %v4557, %v4128
        %v4559 = vadd.f32 %v4558, %v4136
        %v4560 = vadd.f32 %v4559, %v4144
        %v4561 = vadd.f32 %v4560, %v4152
        %v4562 = vadd.f32 %v4561, %v4160
        %v4563 = vadd.f32 %v4562, %v4168
        %v4564 = vadd.f32 %v4563, %v4176
        %v4565 = vadd.f32 %v4564, %v4184
        %v4566 = vadd.f32 %v4565, %v4192
        %v4567 = vadd.f32 %v4566, %v4200
        %v4568 = vadd.f32 %v4567, %v4208
        %v4569 = vadd.f32 %v4568, %v4216
        %v4570 = vadd.f32 %v4569, %v4224
        %v4571 = vadd.f32 %v4570, %v4232
        %v4572 = vadd.f32 %v4571, %v4240
        %v4573 = vadd.f32 %v4572, %v4248
        %v4574 = vadd.f32 %v4573, %v4256
        %v4575 = vadd.f32 %v4574, %v4264
        %v4576 = vadd.f32 %v4575, %v4272
        %v4577 = vadd.f32 %v4576, %v4280
        %v4578 = vadd.f32 %v4577, %v4288
        %v4579 = vadd.f32 %v4578, %v4296
        %v4580 = vadd.f32 %v4579, %v4304
        %v4581 = vadd.f32 %v4580, %v4312
        %v4582 = vadd.f32 %v4581, %v4320
        %v4583 = vadd.f32 %v4582, %v4328
        %v4584 = vadd.f32 %v4583, %v4336
        %v4585 = vadd.f32 %v4584, %v4344
        %v4586 = vadd.f32 %v4585, %v4352
        %v4587 = vadd.f32 %v4586, %v4360
        %v4588 = vadd.f32 %v4587, %v4368
        %v4589 = vadd.f32 %v4588, %v4376
        %v4590 = vadd.f32 %v4589, %v4384
        %v4591 = vrot.slane %v4590, 4
        %v4592 = vadd.f32 %v4590, %v4591
        %v4593 = vrot.slane %v4592, 2
        %v4594 = vadd.f32 %v4592, %v4593
        %v4595 = vrot.slane %v4594, 1
        %v4596 = vadd.f32 %v4594, %v4595
        %v4597 = vadd.f32 %v3881, %v3889
        %v4598 = vadd.f32 %v4597, %v3897
        %v4599 = vadd.f32 %v4598, %v3905
        %v4600 = vadd.f32 %v4599, %v3913
        %v4601 = vadd.f32 %v4600, %v3921
        %v4602 = vadd.f32 %v4601, %v3929
        %v4603 = vadd.f32 %v4602, %v3937
        %v4604 = vadd.f32 %v4603, %v3945
        %v4605 = vadd.f32 %v4604, %v3953
        %v4606 = vadd.f32 %v4605, %v3961
        %v4607 = vadd.f32 %v4606, %v3969
        %v4608 = vadd.f32 %v4607, %v3977
        %v4609 = vadd.f32 %v4608, %v3985
        %v4610 = vadd.f32 %v4609, %v3993
        %v4611 = vadd.f32 %v4610, %v4001
        %v4612 = vadd.f32 %v4611, %v4009
        %v4613 = vadd.f32 %v4612, %v4017
        %v4614 = vadd.f32 %v4613, %v4025
        %v4615 = vadd.f32 %v4614, %v4033
        %v4616 = vadd.f32 %v4615, %v4041
        %v4617 = vadd.f32 %v4616, %v4049
        %v4618 = vadd.f32 %v4617, %v4057
        %v4619 = vadd.f32 %v4618, %v4065
        %v4620 = vadd.f32 %v4619, %v4073
        %v4621 = vadd.f32 %v4620, %v4081
        %v4622 = vadd.f32 %v4621, %v4089
        %v4623 = vadd.f32 %v4622, %v4097
        %v4624 = vadd.f32 %v4623, %v4105
        %v4625 = vadd.f32 %v4624, %v4113
        %v4626 = vadd.f32 %v4625, %v4121
        %v4627 = vadd.f32 %v4626, %v4129
        %v4628 = vadd.f32 %v4627, %v4137
        %v4629 = vadd.f32 %v4628, %v4145
        %v4630 = vadd.f32 %v4629, %v4153
        %v4631 = vadd.f32 %v4630, %v4161
        %v4632 = vadd.f32 %v4631, %v4169
        %v4633 = vadd.f32 %v4632, %v4177
        %v4634 = vadd.f32 %v4633, %v4185
        %v4635 = vadd.f32 %v4634, %v4193
        %v4636 = vadd.f32 %v4635, %v4201
        %v4637 = vadd.f32 %v4636, %v4209
        %v4638 = vadd.f32 %v4637, %v4217
        %v4639 = vadd.f32 %v4638, %v4225
        %v4640 = vadd.f32 %v4639, %v4233
        %v4641 = vadd.f32 %v4640, %v4241
        %v4642 = vadd.f32 %v4641, %v4249
        %v4643 = vadd.f32 %v4642, %v4257
        %v4644 = vadd.f32 %v4643, %v4265
        %v4645 = vadd.f32 %v4644, %v4273
        %v4646 = vadd.f32 %v4645, %v4281
        %v4647 = vadd.f32 %v4646, %v4289
        %v4648 = vadd.f32 %v4647, %v4297
        %v4649 = vadd.f32 %v4648, %v4305
        %v4650 = vadd.f32 %v4649, %v4313
        %v4651 = vadd.f32 %v4650, %v4321
        %v4652 = vadd.f32 %v4651, %v4329
        %v4653 = vadd.f32 %v4652, %v4337
        %v4654 = vadd.f32 %v4653, %v4345
        %v4655 = vadd.f32 %v4654, %v4353
        %v4656 = vadd.f32 %v4655, %v4361
        %v4657 = vadd.f32 %v4656, %v4369
        %v4658 = vadd.f32 %v4657, %v4377
        %v4659 = vadd.f32 %v4658, %v4385
        %v4660 = vrot.slane %v4659, 4
        %v4661 = vadd.f32 %v4659, %v4660
        %v4662 = vrot.slane %v4661, 2
        %v4663 = vadd.f32 %v4661, %v4662
        %v4664 = vrot.slane %v4663, 1
        %v4665 = vadd.f32 %v4663, %v4664
        %v4666 = vadd.f32 %v3882, %v3890
        %v4667 = vadd.f32 %v4666, %v3898
        %v4668 = vadd.f32 %v4667, %v3906
        %v4669 = vadd.f32 %v4668, %v3914
        %v4670 = vadd.f32 %v4669, %v3922
        %v4671 = vadd.f32 %v4670, %v3930
        %v4672 = vadd.f32 %v4671, %v3938
        %v4673 = vadd.f32 %v4672, %v3946
        %v4674 = vadd.f32 %v4673, %v3954
        %v4675 = vadd.f32 %v4674, %v3962
        %v4676 = vadd.f32 %v4675, %v3970
        %v4677 = vadd.f32 %v4676, %v3978
        %v4678 = vadd.f32 %v4677, %v3986
        %v4679 = vadd.f32 %v4678, %v3994
        %v4680 = vadd.f32 %v4679, %v4002
        %v4681 = vadd.f32 %v4680, %v4010
        %v4682 = vadd.f32 %v4681, %v4018
        %v4683 = vadd.f32 %v4682, %v4026
        %v4684 = vadd.f32 %v4683, %v4034
        %v4685 = vadd.f32 %v4684, %v4042
        %v4686 = vadd.f32 %v4685, %v4050
        %v4687 = vadd.f32 %v4686, %v4058
        %v4688 = vadd.f32 %v4687, %v4066
        %v4689 = vadd.f32 %v4688, %v4074
        %v4690 = vadd.f32 %v4689, %v4082
        %v4691 = vadd.f32 %v4690, %v4090
        %v4692 = vadd.f32 %v4691, %v4098
        %v4693 = vadd.f32 %v4692, %v4106
        %v4694 = vadd.f32 %v4693, %v4114
        %v4695 = vadd.f32 %v4694, %v4122
        %v4696 = vadd.f32 %v4695, %v4130
        %v4697 = vadd.f32 %v4696, %v4138
        %v4698 = vadd.f32 %v4697, %v4146
        %v4699 = vadd.f32 %v4698, %v4154
        %v4700 = vadd.f32 %v4699, %v4162
        %v4701 = vadd.f32 %v4700, %v4170
        %v4702 = vadd.f32 %v4701, %v4178
        %v4703 = vadd.f32 %v4702, %v4186
        %v4704 = vadd.f32 %v4703, %v4194
        %v4705 = vadd.f32 %v4704, %v4202
        %v4706 = vadd.f32 %v4705, %v4210
        %v4707 = vadd.f32 %v4706, %v4218
        %v4708 = vadd.f32 %v4707, %v4226
        %v4709 = vadd.f32 %v4708, %v4234
        %v4710 = vadd.f32 %v4709, %v4242
        %v4711 = vadd.f32 %v4710, %v4250
        %v4712 = vadd.f32 %v4711, %v4258
        %v4713 = vadd.f32 %v4712, %v4266
        %v4714 = vadd.f32 %v4713, %v4274
        %v4715 = vadd.f32 %v4714, %v4282
        %v4716 = vadd.f32 %v4715, %v4290
        %v4717 = vadd.f32 %v4716, %v4298
        %v4718 = vadd.f32 %v4717, %v4306
        %v4719 = vadd.f32 %v4718, %v4314
        %v4720 = vadd.f32 %v4719, %v4322
        %v4721 = vadd.f32 %v4720, %v4330
        %v4722 = vadd.f32 %v4721, %v4338
        %v4723 = vadd.f32 %v4722, %v4346
        %v4724 = vadd.f32 %v4723, %v4354
        %v4725 = vadd.f32 %v4724, %v4362
        %v4726 = vadd.f32 %v4725, %v4370
        %v4727 = vadd.f32 %v4726, %v4378
        %v4728 = vadd.f32 %v4727, %v4386
        %v4729 = vrot.slane %v4728, 4
        %v4730 = vadd.f32 %v4728, %v4729
        %v4731 = vrot.slane %v4730, 2
        %v4732 = vadd.f32 %v4730, %v4731
        %v4733 = vrot.slane %v4732, 1
        %v4734 = vadd.f32 %v4732, %v4733
        %v4735 = vadd.f32 %v3883, %v3891
        %v4736 = vadd.f32 %v4735, %v3899
        %v4737 = vadd.f32 %v4736, %v3907
        %v4738 = vadd.f32 %v4737, %v3915
        %v4739 = vadd.f32 %v4738, %v3923
        %v4740 = vadd.f32 %v4739, %v3931
        %v4741 = vadd.f32 %v4740, %v3939
        %v4742 = vadd.f32 %v4741, %v3947
        %v4743 = vadd.f32 %v4742, %v3955
        %v4744 = vadd.f32 %v4743, %v3963
        %v4745 = vadd.f32 %v4744, %v3971
        %v4746 = vadd.f32 %v4745, %v3979
        %v4747 = vadd.f32 %v4746, %v3987
        %v4748 = vadd.f32 %v4747, %v3995
        %v4749 = vadd.f32 %v4748, %v4003
        %v4750 = vadd.f32 %v4749, %v4011
        %v4751 = vadd.f32 %v4750, %v4019
        %v4752 = vadd.f32 %v4751, %v4027
        %v4753 = vadd.f32 %v4752, %v4035
        %v4754 = vadd.f32 %v4753, %v4043
        %v4755 = vadd.f32 %v4754, %v4051
        %v4756 = vadd.f32 %v4755, %v4059
        %v4757 = vadd.f32 %v4756, %v4067
        %v4758 = vadd.f32 %v4757, %v4075
        %v4759 = vadd.f32 %v4758, %v4083
        %v4760 = vadd.f32 %v4759, %v4091
        %v4761 = vadd.f32 %v4760, %v4099
        %v4762 = vadd.f32 %v4761, %v4107
        %v4763 = vadd.f32 %v4762, %v4115
        %v4764 = vadd.f32 %v4763, %v4123
        %v4765 = vadd.f32 %v4764, %v4131
        %v4766 = vadd.f32 %v4765, %v4139
        %v4767 = vadd.f32 %v4766, %v4147
        %v4768 = vadd.f32 %v4767, %v4155
        %v4769 = vadd.f32 %v4768, %v4163
        %v4770 = vadd.f32 %v4769, %v4171
        %v4771 = vadd.f32 %v4770, %v4179
        %v4772 = vadd.f32 %v4771, %v4187
        %v4773 = vadd.f32 %v4772, %v4195
        %v4774 = vadd.f32 %v4773, %v4203
        %v4775 = vadd.f32 %v4774, %v4211
        %v4776 = vadd.f32 %v4775, %v4219
        %v4777 = vadd.f32 %v4776, %v4227
        %v4778 = vadd.f32 %v4777, %v4235
        %v4779 = vadd.f32 %v4778, %v4243
        %v4780 = vadd.f32 %v4779, %v4251
        %v4781 = vadd.f32 %v4780, %v4259
        %v4782 = vadd.f32 %v4781, %v4267
        %v4783 = vadd.f32 %v4782, %v4275
        %v4784 = vadd.f32 %v4783, %v4283
        %v4785 = vadd.f32 %v4784, %v4291
        %v4786 = vadd.f32 %v4785, %v4299
        %v4787 = vadd.f32 %v4786, %v4307
        %v4788 = vadd.f32 %v4787, %v4315
        %v4789 = vadd.f32 %v4788, %v4323
        %v4790 = vadd.f32 %v4789, %v4331
        %v4791 = vadd.f32 %v4790, %v4339
        %v4792 = vadd.f32 %v4791, %v4347
        %v4793 = vadd.f32 %v4792, %v4355
        %v4794 = vadd.f32 %v4793, %v4363
        %v4795 = vadd.f32 %v4794, %v4371
        %v4796 = vadd.f32 %v4795, %v4379
        %v4797 = vadd.f32 %v4796, %v4387
        %v4798 = vrot.slane %v4797, 4
        %v4799 = vadd.f32 %v4797, %v4798
        %v4800 = vrot.slane %v4799, 2
        %v4801 = vadd.f32 %v4799, %v4800
        %v4802 = vrot.slane %v4801, 1
        %v4803 = vadd.f32 %v4801, %v4802
        %v4804 = vadd.f32 %v3884, %v3892
        %v4805 = vadd.f32 %v4804, %v3900
        %v4806 = vadd.f32 %v4805, %v3908
        %v4807 = vadd.f32 %v4806, %v3916
        %v4808 = vadd.f32 %v4807, %v3924
        %v4809 = vadd.f32 %v4808, %v3932
        %v4810 = vadd.f32 %v4809, %v3940
        %v4811 = vadd.f32 %v4810, %v3948
        %v4812 = vadd.f32 %v4811, %v3956
        %v4813 = vadd.f32 %v4812, %v3964
        %v4814 = vadd.f32 %v4813, %v3972
        %v4815 = vadd.f32 %v4814, %v3980
        %v4816 = vadd.f32 %v4815, %v3988
        %v4817 = vadd.f32 %v4816, %v3996
        %v4818 = vadd.f32 %v4817, %v4004
        %v4819 = vadd.f32 %v4818, %v4012
        %v4820 = vadd.f32 %v4819, %v4020
        %v4821 = vadd.f32 %v4820, %v4028
        %v4822 = vadd.f32 %v4821, %v4036
        %v4823 = vadd.f32 %v4822, %v4044
        %v4824 = vadd.f32 %v4823, %v4052
        %v4825 = vadd.f32 %v4824, %v4060
        %v4826 = vadd.f32 %v4825, %v4068
        %v4827 = vadd.f32 %v4826, %v4076
        %v4828 = vadd.f32 %v4827, %v4084
        %v4829 = vadd.f32 %v4828, %v4092
        %v4830 = vadd.f32 %v4829, %v4100
        %v4831 = vadd.f32 %v4830, %v4108
        %v4832 = vadd.f32 %v4831, %v4116
        %v4833 = vadd.f32 %v4832, %v4124
        %v4834 = vadd.f32 %v4833, %v4132
        %v4835 = vadd.f32 %v4834, %v4140
        %v4836 = vadd.f32 %v4835, %v4148
        %v4837 = vadd.f32 %v4836, %v4156
        %v4838 = vadd.f32 %v4837, %v4164
        %v4839 = vadd.f32 %v4838, %v4172
        %v4840 = vadd.f32 %v4839, %v4180
        %v4841 = vadd.f32 %v4840, %v4188
        %v4842 = vadd.f32 %v4841, %v4196
        %v4843 = vadd.f32 %v4842, %v4204
        %v4844 = vadd.f32 %v4843, %v4212
        %v4845 = vadd.f32 %v4844, %v4220
        %v4846 = vadd.f32 %v4845, %v4228
        %v4847 = vadd.f32 %v4846, %v4236
        %v4848 = vadd.f32 %v4847, %v4244
        %v4849 = vadd.f32 %v4848, %v4252
        %v4850 = vadd.f32 %v4849, %v4260
        %v4851 = vadd.f32 %v4850, %v4268
        %v4852 = vadd.f32 %v4851, %v4276
        %v4853 = vadd.f32 %v4852, %v4284
        %v4854 = vadd.f32 %v4853, %v4292
        %v4855 = vadd.f32 %v4854, %v4300
        %v4856 = vadd.f32 %v4855, %v4308
        %v4857 = vadd.f32 %v4856, %v4316
        %v4858 = vadd.f32 %v4857, %v4324
        %v4859 = vadd.f32 %v4858, %v4332
        %v4860 = vadd.f32 %v4859, %v4340
        %v4861 = vadd.f32 %v4860, %v4348
        %v4862 = vadd.f32 %v4861, %v4356
        %v4863 = vadd.f32 %v4862, %v4364
        %v4864 = vadd.f32 %v4863, %v4372
        %v4865 = vadd.f32 %v4864, %v4380
        %v4866 = vadd.f32 %v4865, %v4388
        %v4867 = vrot.slane %v4866, 4
        %v4868 = vadd.f32 %v4866, %v4867
        %v4869 = vrot.slane %v4868, 2
        %v4870 = vadd.f32 %v4868, %v4869
        %v4871 = vrot.slane %v4870, 1
        %v4872 = vadd.f32 %v4870, %v4871
        %v4873 = vadd.f32 %v3885, %v3893
        %v4874 = vadd.f32 %v4873, %v3901
        %v4875 = vadd.f32 %v4874, %v3909
        %v4876 = vadd.f32 %v4875, %v3917
        %v4877 = vadd.f32 %v4876, %v3925
        %v4878 = vadd.f32 %v4877, %v3933
        %v4879 = vadd.f32 %v4878, %v3941
        %v4880 = vadd.f32 %v4879, %v3949
        %v4881 = vadd.f32 %v4880, %v3957
        %v4882 = vadd.f32 %v4881, %v3965
        %v4883 = vadd.f32 %v4882, %v3973
        %v4884 = vadd.f32 %v4883, %v3981
        %v4885 = vadd.f32 %v4884, %v3989
        %v4886 = vadd.f32 %v4885, %v3997
        %v4887 = vadd.f32 %v4886, %v4005
        %v4888 = vadd.f32 %v4887, %v4013
        %v4889 = vadd.f32 %v4888, %v4021
        %v4890 = vadd.f32 %v4889, %v4029
        %v4891 = vadd.f32 %v4890, %v4037
        %v4892 = vadd.f32 %v4891, %v4045
        %v4893 = vadd.f32 %v4892, %v4053
        %v4894 = vadd.f32 %v4893, %v4061
        %v4895 = vadd.f32 %v4894, %v4069
        %v4896 = vadd.f32 %v4895, %v4077
        %v4897 = vadd.f32 %v4896, %v4085
        %v4898 = vadd.f32 %v4897, %v4093
        %v4899 = vadd.f32 %v4898, %v4101
        %v4900 = vadd.f32 %v4899, %v4109
        %v4901 = vadd.f32 %v4900, %v4117
        %v4902 = vadd.f32 %v4901, %v4125
        %v4903 = vadd.f32 %v4902, %v4133
        %v4904 = vadd.f32 %v4903, %v4141
        %v4905 = vadd.f32 %v4904, %v4149
        %v4906 = vadd.f32 %v4905, %v4157
        %v4907 = vadd.f32 %v4906, %v4165
        %v4908 = vadd.f32 %v4907, %v4173
        %v4909 = vadd.f32 %v4908, %v4181
        %v4910 = vadd.f32 %v4909, %v4189
        %v4911 = vadd.f32 %v4910, %v4197
        %v4912 = vadd.f32 %v4911, %v4205
        %v4913 = vadd.f32 %v4912, %v4213
        %v4914 = vadd.f32 %v4913, %v4221
        %v4915 = vadd.f32 %v4914, %v4229
        %v4916 = vadd.f32 %v4915, %v4237
        %v4917 = vadd.f32 %v4916, %v4245
        %v4918 = vadd.f32 %v4917, %v4253
        %v4919 = vadd.f32 %v4918, %v4261
        %v4920 = vadd.f32 %v4919, %v4269
        %v4921 = vadd.f32 %v4920, %v4277
        %v4922 = vadd.f32 %v4921, %v4285
        %v4923 = vadd.f32 %v4922, %v4293
        %v4924 = vadd.f32 %v4923, %v4301
        %v4925 = vadd.f32 %v4924, %v4309
        %v4926 = vadd.f32 %v4925, %v4317
        %v4927 = vadd.f32 %v4926, %v4325
        %v4928 = vadd.f32 %v4927, %v4333
        %v4929 = vadd.f32 %v4928, %v4341
        %v4930 = vadd.f32 %v4929, %v4349
        %v4931 = vadd.f32 %v4930, %v4357
        %v4932 = vadd.f32 %v4931, %v4365
        %v4933 = vadd.f32 %v4932, %v4373
        %v4934 = vadd.f32 %v4933, %v4381
        %v4935 = vadd.f32 %v4934, %v4389
        %v4936 = vrot.slane %v4935, 4
        %v4937 = vadd.f32 %v4935, %v4936
        %v4938 = vrot.slane %v4937, 2
        %v4939 = vadd.f32 %v4937, %v4938
        %v4940 = vrot.slane %v4939, 1
        %v4941 = vadd.f32 %v4939, %v4940
        %v4942 = vmul.f32 %v4458, 0.001953125
        %v4943 = vmul.f32 %v4527, 0.001953125
        %v4944 = vmul.f32 %v4596, 0.001953125
        %v4945 = vmul.f32 %v4665, 0.001953125
        %v4946 = vmul.f32 %v4734, 0.001953125
        %v4947 = vmul.f32 %v4803, 0.001953125
        %v4948 = vmul.f32 %v4872, 0.001953125
        %v4949 = vmul.f32 %v4941, 0.001953125
        %v4950 = vmul.f32 %v3870, %v3870
        %v4951 = vmul.f32 %v3871, %v3871
        %v4952 = vmul.f32 %v3872, %v3872
        %v4953 = vmul.f32 %v3873, %v3873
        %v4954 = vmul.f32 %v3874, %v3874
        %v4955 = vmul.f32 %v3875, %v3875
        %v4956 = vmul.f32 %v3876, %v3876
        %v4957 = vmul.f32 %v3877, %v3877
        %v4958 = vsub.f32 %v4942, %v4950
        %v4959 = vsub.f32 %v4943, %v4951
        %v4960 = vsub.f32 %v4944, %v4952
        %v4961 = vsub.f32 %v4945, %v4953
        %v4962 = vsub.f32 %v4946, %v4954
        %v4963 = vsub.f32 %v4947, %v4955
        %v4964 = vsub.f32 %v4948, %v4956
        %v4965 = vsub.f32 %v4949, %v4957
        %v4966 = vld [vmem:[%s451] sm:$0xff]
        %v4967 = vadd.f32 %v4958, 1e-05
        %v4968 = vadd.f32 %v4959, 1e-05
        %v4969 = vadd.f32 %v4960, 1e-05
        %v4970 = vadd.f32 %v4961, 1e-05
        %v4971 = vadd.f32 %v4962, 1e-05
        %v4972 = vadd.f32 %v4963, 1e-05
        %v4973 = vadd.f32 %v4964, 1e-05
        %v4974 = vadd.f32 %v4965, 1e-05
        %v4975 = vrsqrt.pop %v4967
        %v4976 = vrsqrt.pop %v4968
        %v4977 = vrsqrt.pop %v4969
        %v4978 = vrsqrt.pop %v4970
        %v4979 = vrsqrt.pop %v4971
        %v4980 = vrsqrt.pop %v4972
        %v4981 = vrsqrt.pop %v4973
        %v4982 = vrsqrt.pop %v4974
        %v4991 = vcombine.low %v4975, %v4976
        %v4992 = vcombine.low %v4977, %v4978
        %v4993 = vcombine.low %v4979, %v4980
        %v4994 = vcombine.low %v4981, %v4982
        %v4996 = vunpack.c.l.s4 1966171168
        %v4997 = vunpack.c.0.s8 %v4996
        %v4998 = vlaneseq
        %v4999 = vshrl.u32 %v4998, 7
        %v5000 = vsub.s32 %v4997, %v4999
        %v5001 = vrot.slane %v4991, %v5000
        %v5003 = vunpack.c.l.s4 1966171168
        %v5004 = vunpack.c.0.s8 %v5003
        %v5005 = vlaneseq
        %v5006 = vshrl.u32 %v5005, 7
        %v5007 = vsub.s32 %v5004, %v5006
        %v5008 = vrot.slane %v4992, %v5007
        %v5010 = vunpack.c.l.s4 1966171168
        %v5011 = vunpack.c.0.s8 %v5010
        %v5012 = vlaneseq
        %v5013 = vshrl.u32 %v5012, 7
        %v5014 = vsub.s32 %v5011, %v5013
        %v5015 = vrot.slane %v4993, %v5014
        %v5017 = vunpack.c.l.s4 1966171168
        %v5018 = vunpack.c.0.s8 %v5017
        %v5019 = vlaneseq
        %v5020 = vshrl.u32 %v5019, 7
        %v5021 = vsub.s32 %v5018, %v5020
        %v5022 = vrot.slane %v4994, %v5021
        %v5023 = vcombine.low %v5001, %v5008
        %v5024 = vcombine.low %v5015, %v5022
        %v5026 = vunpack.c.l.s4 1966171168
        %v5027 = vunpack.c.0.s8 %v5026
        %v5028 = vlaneseq
        %v5029 = vshrl.u32 %v5028, 7
        %v5030 = vsub.s32 %v5027, %v5029
        %v5031 = vrot.slane %v5023, %v5030
        %v5033 = vunpack.c.l.s4 1966171168
        %v5034 = vunpack.c.0.s8 %v5033
        %v5035 = vlaneseq
        %v5036 = vshrl.u32 %v5035, 7
        %v5037 = vsub.s32 %v5034, %v5036
        %v5038 = vrot.slane %v5024, %v5037
        %v5039 = vcombine.low %v5031, %v5038
        %v5041 = vmul.f32 %v4966, %v5039
        %v5042 = vld [vmem:[%s456] sm:$0xff]
        %v5044 = vlaneseq
        %v5045 = vshrl.u32 %v5044, 7
        %v5046 = vsub.s32 0, %v5045
        %v5047 = vrot.slane %v5041, %v5046
        %v5048 = vlaneseq
        %v5049 = vshrl.u32 %v5048, 7
        %v5050 = vsub.s32 1, %v5049
        %v5051 = vrot.slane %v5041, %v5050
        %v5052 = vlaneseq
        %v5053 = vshrl.u32 %v5052, 7
        %v5054 = vsub.s32 2, %v5053
        %v5055 = vrot.slane %v5041, %v5054
        %v5056 = vlaneseq
        %v5057 = vshrl.u32 %v5056, 7
        %v5058 = vsub.s32 3, %v5057
        %v5059 = vrot.slane %v5041, %v5058
        %v5060 = vlaneseq
        %v5061 = vshrl.u32 %v5060, 7
        %v5062 = vsub.s32 4, %v5061
        %v5063 = vrot.slane %v5041, %v5062
        %v5064 = vlaneseq
        %v5065 = vshrl.u32 %v5064, 7
        %v5066 = vsub.s32 5, %v5065
        %v5067 = vrot.slane %v5041, %v5066
        %v5068 = vlaneseq
        %v5069 = vshrl.u32 %v5068, 7
        %v5070 = vsub.s32 6, %v5069
        %v5071 = vrot.slane %v5041, %v5070
        %v5072 = vlaneseq
        %v5073 = vshrl.u32 %v5072, 7
        %v5074 = vsub.s32 7, %v5073
        %v5075 = vrot.slane %v5041, %v5074
        %v5084 = vmul.f32 %v3870, %v5047
        %v5085 = vmul.f32 %v3871, %v5051
        %v5086 = vmul.f32 %v3872, %v5055
        %v5087 = vmul.f32 %v3873, %v5059
        %v5088 = vmul.f32 %v3874, %v5063
        %v5089 = vmul.f32 %v3875, %v5067
        %v5090 = vmul.f32 %v3876, %v5071
        %v5091 = vmul.f32 %v3877, %v5075
        %v5100 = vcombine.low %v5084, %v5085
        %v5101 = vcombine.low %v5086, %v5087
        %v5102 = vcombine.low %v5088, %v5089
        %v5103 = vcombine.low %v5090, %v5091
        %v5105 = vunpack.c.l.s4 1966171168
        %v5106 = vunpack.c.0.s8 %v5105
        %v5107 = vlaneseq
        %v5108 = vshrl.u32 %v5107, 7
        %v5109 = vsub.s32 %v5106, %v5108
        %v5110 = vrot.slane %v5100, %v5109
        %v5112 = vunpack.c.l.s4 1966171168
        %v5113 = vunpack.c.0.s8 %v5112
        %v5114 = vlaneseq
        %v5115 = vshrl.u32 %v5114, 7
        %v5116 = vsub.s32 %v5113, %v5115
        %v5117 = vrot.slane %v5101, %v5116
        %v5119 = vunpack.c.l.s4 1966171168
        %v5120 = vunpack.c.0.s8 %v5119
        %v5121 = vlaneseq
        %v5122 = vshrl.u32 %v5121, 7
        %v5123 = vsub.s32 %v5120, %v5122
        %v5124 = vrot.slane %v5102, %v5123
        %v5126 = vunpack.c.l.s4 1966171168
        %v5127 = vunpack.c.0.s8 %v5126
        %v5128 = vlaneseq
        %v5129 = vshrl.u32 %v5128, 7
        %v5130 = vsub.s32 %v5127, %v5129
        %v5131 = vrot.slane %v5103, %v5130
        %v5132 = vcombine.low %v5110, %v5117
        %v5133 = vcombine.low %v5124, %v5131
        %v5135 = vunpack.c.l.s4 1966171168
        %v5136 = vunpack.c.0.s8 %v5135
        %v5137 = vlaneseq
        %v5138 = vshrl.u32 %v5137, 7
        %v5139 = vsub.s32 %v5136, %v5138
        %v5140 = vrot.slane %v5132, %v5139
        %v5142 = vunpack.c.l.s4 1966171168
        %v5143 = vunpack.c.0.s8 %v5142
        %v5144 = vlaneseq
        %v5145 = vshrl.u32 %v5144, 7
        %v5146 = vsub.s32 %v5143, %v5145
        %v5147 = vrot.slane %v5133, %v5146
        %v5148 = vcombine.low %v5140, %v5147
        %v5150 = vsub.f32 %v5042, %v5148
        %v5151 = vmul.f32 %v1941, %v5047
        %v5152 = vmul.f32 %v1943, %v5051
        %v5153 = vmul.f32 %v2294, %v5055
        %v5154 = vmul.f32 %v2296, %v5059
        %v5155 = vmul.f32 %v2647, %v5063
        %v5156 = vmul.f32 %v2649, %v5067
        %v5157 = vmul.f32 %v3000, %v5071
        %v5158 = vmul.f32 %v3002, %v5075
        %v5159 = vmul.f32 %v1945, %v5047
        %v5160 = vmul.f32 %v1947, %v5051
        %v5161 = vmul.f32 %v2298, %v5055
        %v5162 = vmul.f32 %v2300, %v5059
        %v5163 = vmul.f32 %v2651, %v5063
        %v5164 = vmul.f32 %v2653, %v5067
        %v5165 = vmul.f32 %v3004, %v5071
        %v5166 = vmul.f32 %v3006, %v5075
        %v5167 = vmul.f32 %v1951, %v5047
        %v5168 = vmul.f32 %v1953, %v5051
        %v5169 = vmul.f32 %v2304, %v5055
        %v5170 = vmul.f32 %v2306, %v5059
        %v5171 = vmul.f32 %v2657, %v5063
        %v5172 = vmul.f32 %v2659, %v5067
        %v5173 = vmul.f32 %v3010, %v5071
        %v5174 = vmul.f32 %v3012, %v5075
        %v5175 = vmul.f32 %v1955, %v5047
        %v5176 = vmul.f32 %v1957, %v5051
        %v5177 = vmul.f32 %v2308, %v5055
        %v5178 = vmul.f32 %v2310, %v5059
        %v5179 = vmul.f32 %v2661, %v5063
        %v5180 = vmul.f32 %v2663, %v5067
        %v5181 = vmul.f32 %v3014, %v5071
        %v5182 = vmul.f32 %v3016, %v5075
        %v5183 = vmul.f32 %v1961, %v5047
        %v5184 = vmul.f32 %v1963, %v5051
        %v5185 = vmul.f32 %v2314, %v5055
        %v5186 = vmul.f32 %v2316, %v5059
        %v5187 = vmul.f32 %v2667, %v5063
        %v5188 = vmul.f32 %v2669, %v5067
        %v5189 = vmul.f32 %v3020, %v5071
        %v5190 = vmul.f32 %v3022, %v5075
        %v5191 = vmul.f32 %v1965, %v5047
        %v5192 = vmul.f32 %v1967, %v5051
        %v5193 = vmul.f32 %v2318, %v5055
        %v5194 = vmul.f32 %v2320, %v5059
        %v5195 = vmul.f32 %v2671, %v5063
        %v5196 = vmul.f32 %v2673, %v5067
        %v5197 = vmul.f32 %v3024, %v5071
        %v5198 = vmul.f32 %v3026, %v5075
        %v5199 = vmul.f32 %v1971, %v5047
        %v5200 = vmul.f32 %v1973, %v5051
        %v5201 = vmul.f32 %v2324, %v5055
        %v5202 = vmul.f32 %v2326, %v5059
        %v5203 = vmul.f32 %v2677, %v5063
        %v5204 = vmul.f32 %v2679, %v5067
        %v5205 = vmul.f32 %v3030, %v5071
        %v5206 = vmul.f32 %v3032, %v5075
        %v5207 = vmul.f32 %v1975, %v5047
        %v5208 = vmul.f32 %v1977, %v5051
        %v5209 = vmul.f32 %v2328, %v5055
        %v5210 = vmul.f32 %v2330, %v5059
        %v5211 = vmul.f32 %v2681, %v5063
        %v5212 = vmul.f32 %v2683, %v5067
        %v5213 = vmul.f32 %v3034, %v5071
        %v5214 = vmul.f32 %v3036, %v5075
        %v5215 = vmul.f32 %v1981, %v5047
        %v5216 = vmul.f32 %v1983, %v5051
        %v5217 = vmul.f32 %v2334, %v5055
        %v5218 = vmul.f32 %v2336, %v5059
        %v5219 = vmul.f32 %v2687, %v5063
        %v5220 = vmul.f32 %v2689, %v5067
        %v5221 = vmul.f32 %v3040, %v5071
        %v5222 = vmul.f32 %v3042, %v5075
        %v5223 = vmul.f32 %v1985, %v5047
        %v5224 = vmul.f32 %v1987, %v5051
        %v5225 = vmul.f32 %v2338, %v5055
        %v5226 = vmul.f32 %v2340, %v5059
        %v5227 = vmul.f32 %v2691, %v5063
        %v5228 = vmul.f32 %v2693, %v5067
        %v5229 = vmul.f32 %v3044, %v5071
        %v5230 = vmul.f32 %v3046, %v5075
        %v5231 = vmul.f32 %v1991, %v5047
        %v5232 = vmul.f32 %v1993, %v5051
        %v5233 = vmul.f32 %v2344, %v5055
        %v5234 = vmul.f32 %v2346, %v5059
        %v5235 = vmul.f32 %v2697, %v5063
        %v5236 = vmul.f32 %v2699, %v5067
        %v5237 = vmul.f32 %v3050, %v5071
        %v5238 = vmul.f32 %v3052, %v5075
        %v5239 = vmul.f32 %v1995, %v5047
        %v5240 = vmul.f32 %v1997, %v5051
        %v5241 = vmul.f32 %v2348, %v5055
        %v5242 = vmul.f32 %v2350, %v5059
        %v5243 = vmul.f32 %v2701, %v5063
        %v5244 = vmul.f32 %v2703, %v5067
        %v5245 = vmul.f32 %v3054, %v5071
        %v5246 = vmul.f32 %v3056, %v5075
        %v5247 = vmul.f32 %v2001, %v5047
        %v5248 = vmul.f32 %v2003, %v5051
        %v5249 = vmul.f32 %v2354, %v5055
        %v5250 = vmul.f32 %v2356, %v5059
        %v5251 = vmul.f32 %v2707, %v5063
        %v5252 = vmul.f32 %v2709, %v5067
        %v5253 = vmul.f32 %v3060, %v5071
        %v5254 = vmul.f32 %v3062, %v5075
        %v5255 = vmul.f32 %v2005, %v5047
        %v5256 = vmul.f32 %v2007, %v5051
        %v5257 = vmul.f32 %v2358, %v5055
        %v5258 = vmul.f32 %v2360, %v5059
        %v5259 = vmul.f32 %v2711, %v5063
        %v5260 = vmul.f32 %v2713, %v5067
        %v5261 = vmul.f32 %v3064, %v5071
        %v5262 = vmul.f32 %v3066, %v5075
        %v5263 = vmul.f32 %v2011, %v5047
        %v5264 = vmul.f32 %v2013, %v5051
        %v5265 = vmul.f32 %v2364, %v5055
        %v5266 = vmul.f32 %v2366, %v5059
        %v5267 = vmul.f32 %v2717, %v5063
        %v5268 = vmul.f32 %v2719, %v5067
        %v5269 = vmul.f32 %v3070, %v5071
        %v5270 = vmul.f32 %v3072, %v5075
        %v5271 = vmul.f32 %v2015, %v5047
        %v5272 = vmul.f32 %v2017, %v5051
        %v5273 = vmul.f32 %v2368, %v5055
        %v5274 = vmul.f32 %v2370, %v5059
        %v5275 = vmul.f32 %v2721, %v5063
        %v5276 = vmul.f32 %v2723, %v5067
        %v5277 = vmul.f32 %v3074, %v5071
        %v5278 = vmul.f32 %v3076, %v5075
        %v5279 = vmul.f32 %v2021, %v5047
        %v5280 = vmul.f32 %v2023, %v5051
        %v5281 = vmul.f32 %v2374, %v5055
        %v5282 = vmul.f32 %v2376, %v5059
        %v5283 = vmul.f32 %v2727, %v5063
        %v5284 = vmul.f32 %v2729, %v5067
        %v5285 = vmul.f32 %v3080, %v5071
        %v5286 = vmul.f32 %v3082, %v5075
        %v5287 = vmul.f32 %v2025, %v5047
        %v5288 = vmul.f32 %v2027, %v5051
        %v5289 = vmul.f32 %v2378, %v5055
        %v5290 = vmul.f32 %v2380, %v5059
        %v5291 = vmul.f32 %v2731, %v5063
        %v5292 = vmul.f32 %v2733, %v5067
        %v5293 = vmul.f32 %v3084, %v5071
        %v5294 = vmul.f32 %v3086, %v5075
        %v5295 = vmul.f32 %v2031, %v5047
        %v5296 = vmul.f32 %v2033, %v5051
        %v5297 = vmul.f32 %v2384, %v5055
        %v5298 = vmul.f32 %v2386, %v5059
        %v5299 = vmul.f32 %v2737, %v5063
        %v5300 = vmul.f32 %v2739, %v5067
        %v5301 = vmul.f32 %v3090, %v5071
        %v5302 = vmul.f32 %v3092, %v5075
        %v5303 = vmul.f32 %v2035, %v5047
        %v5304 = vmul.f32 %v2037, %v5051
        %v5305 = vmul.f32 %v2388, %v5055
        %v5306 = vmul.f32 %v2390, %v5059
        %v5307 = vmul.f32 %v2741, %v5063
        %v5308 = vmul.f32 %v2743, %v5067
        %v5309 = vmul.f32 %v3094, %v5071
        %v5310 = vmul.f32 %v3096, %v5075
        %v5311 = vmul.f32 %v2041, %v5047
        %v5312 = vmul.f32 %v2043, %v5051
        %v5313 = vmul.f32 %v2394, %v5055
        %v5314 = vmul.f32 %v2396, %v5059
        %v5315 = vmul.f32 %v2747, %v5063
        %v5316 = vmul.f32 %v2749, %v5067
        %v5317 = vmul.f32 %v3100, %v5071
        %v5318 = vmul.f32 %v3102, %v5075
        %v5319 = vmul.f32 %v2045, %v5047
        %v5320 = vmul.f32 %v2047, %v5051
        %v5321 = vmul.f32 %v2398, %v5055
        %v5322 = vmul.f32 %v2400, %v5059
        %v5323 = vmul.f32 %v2751, %v5063
        %v5324 = vmul.f32 %v2753, %v5067
        %v5325 = vmul.f32 %v3104, %v5071
        %v5326 = vmul.f32 %v3106, %v5075
        %v5327 = vmul.f32 %v2051, %v5047
        %v5328 = vmul.f32 %v2053, %v5051
        %v5329 = vmul.f32 %v2404, %v5055
        %v5330 = vmul.f32 %v2406, %v5059
        %v5331 = vmul.f32 %v2757, %v5063
        %v5332 = vmul.f32 %v2759, %v5067
        %v5333 = vmul.f32 %v3110, %v5071
        %v5334 = vmul.f32 %v3112, %v5075
        %v5335 = vmul.f32 %v2055, %v5047
        %v5336 = vmul.f32 %v2057, %v5051
        %v5337 = vmul.f32 %v2408, %v5055
        %v5338 = vmul.f32 %v2410, %v5059
        %v5339 = vmul.f32 %v2761, %v5063
        %v5340 = vmul.f32 %v2763, %v5067
        %v5341 = vmul.f32 %v3114, %v5071
        %v5342 = vmul.f32 %v3116, %v5075
        %v5343 = vmul.f32 %v2061, %v5047
        %v5344 = vmul.f32 %v2063, %v5051
        %v5345 = vmul.f32 %v2414, %v5055
        %v5346 = vmul.f32 %v2416, %v5059
        %v5347 = vmul.f32 %v2767, %v5063
        %v5348 = vmul.f32 %v2769, %v5067
        %v5349 = vmul.f32 %v3120, %v5071
        %v5350 = vmul.f32 %v3122, %v5075
        %v5351 = vmul.f32 %v2065, %v5047
        %v5352 = vmul.f32 %v2067, %v5051
        %v5353 = vmul.f32 %v2418, %v5055
        %v5354 = vmul.f32 %v2420, %v5059
        %v5355 = vmul.f32 %v2771, %v5063
        %v5356 = vmul.f32 %v2773, %v5067
        %v5357 = vmul.f32 %v3124, %v5071
        %v5358 = vmul.f32 %v3126, %v5075
        %v5359 = vmul.f32 %v2071, %v5047
        %v5360 = vmul.f32 %v2073, %v5051
        %v5361 = vmul.f32 %v2424, %v5055
        %v5362 = vmul.f32 %v2426, %v5059
        %v5363 = vmul.f32 %v2777, %v5063
        %v5364 = vmul.f32 %v2779, %v5067
        %v5365 = vmul.f32 %v3130, %v5071
        %v5366 = vmul.f32 %v3132, %v5075
        %v5367 = vmul.f32 %v2075, %v5047
        %v5368 = vmul.f32 %v2077, %v5051
        %v5369 = vmul.f32 %v2428, %v5055
        %v5370 = vmul.f32 %v2430, %v5059
        %v5371 = vmul.f32 %v2781, %v5063
        %v5372 = vmul.f32 %v2783, %v5067
        %v5373 = vmul.f32 %v3134, %v5071
        %v5374 = vmul.f32 %v3136, %v5075
        %v5375 = vmul.f32 %v2081, %v5047
        %v5376 = vmul.f32 %v2083, %v5051
        %v5377 = vmul.f32 %v2434, %v5055
        %v5378 = vmul.f32 %v2436, %v5059
        %v5379 = vmul.f32 %v2787, %v5063
        %v5380 = vmul.f32 %v2789, %v5067
        %v5381 = vmul.f32 %v3140, %v5071
        %v5382 = vmul.f32 %v3142, %v5075
        %v5383 = vmul.f32 %v2085, %v5047
        %v5384 = vmul.f32 %v2087, %v5051
        %v5385 = vmul.f32 %v2438, %v5055
        %v5386 = vmul.f32 %v2440, %v5059
        %v5387 = vmul.f32 %v2791, %v5063
        %v5388 = vmul.f32 %v2793, %v5067
        %v5389 = vmul.f32 %v3144, %v5071
        %v5390 = vmul.f32 %v3146, %v5075
        %v5391 = vmul.f32 %v2091, %v5047
        %v5392 = vmul.f32 %v2093, %v5051
        %v5393 = vmul.f32 %v2444, %v5055
        %v5394 = vmul.f32 %v2446, %v5059
        %v5395 = vmul.f32 %v2797, %v5063
        %v5396 = vmul.f32 %v2799, %v5067
        %v5397 = vmul.f32 %v3150, %v5071
        %v5398 = vmul.f32 %v3152, %v5075
        %v5399 = vmul.f32 %v2095, %v5047
        %v5400 = vmul.f32 %v2097, %v5051
        %v5401 = vmul.f32 %v2448, %v5055
        %v5402 = vmul.f32 %v2450, %v5059
        %v5403 = vmul.f32 %v2801, %v5063
        %v5404 = vmul.f32 %v2803, %v5067
        %v5405 = vmul.f32 %v3154, %v5071
        %v5406 = vmul.f32 %v3156, %v5075
        %v5407 = vmul.f32 %v2101, %v5047
        %v5408 = vmul.f32 %v2103, %v5051
        %v5409 = vmul.f32 %v2454, %v5055
        %v5410 = vmul.f32 %v2456, %v5059
        %v5411 = vmul.f32 %v2807, %v5063
        %v5412 = vmul.f32 %v2809, %v5067
        %v5413 = vmul.f32 %v3160, %v5071
        %v5414 = vmul.f32 %v3162, %v5075
        %v5415 = vmul.f32 %v2105, %v5047
        %v5416 = vmul.f32 %v2107, %v5051
        %v5417 = vmul.f32 %v2458, %v5055
        %v5418 = vmul.f32 %v2460, %v5059
        %v5419 = vmul.f32 %v2811, %v5063
        %v5420 = vmul.f32 %v2813, %v5067
        %v5421 = vmul.f32 %v3164, %v5071
        %v5422 = vmul.f32 %v3166, %v5075
        %v5423 = vmul.f32 %v2111, %v5047
        %v5424 = vmul.f32 %v2113, %v5051
        %v5425 = vmul.f32 %v2464, %v5055
        %v5426 = vmul.f32 %v2466, %v5059
        %v5427 = vmul.f32 %v2817, %v5063
        %v5428 = vmul.f32 %v2819, %v5067
        %v5429 = vmul.f32 %v3170, %v5071
        %v5430 = vmul.f32 %v3172, %v5075
        %v5431 = vmul.f32 %v2115, %v5047
        %v5432 = vmul.f32 %v2117, %v5051
        %v5433 = vmul.f32 %v2468, %v5055
        %v5434 = vmul.f32 %v2470, %v5059
        %v5435 = vmul.f32 %v2821, %v5063
        %v5436 = vmul.f32 %v2823, %v5067
        %v5437 = vmul.f32 %v3174, %v5071
        %v5438 = vmul.f32 %v3176, %v5075
        %v5439 = vmul.f32 %v2121, %v5047
        %v5440 = vmul.f32 %v2123, %v5051
        %v5441 = vmul.f32 %v2474, %v5055
        %v5442 = vmul.f32 %v2476, %v5059
        %v5443 = vmul.f32 %v2827, %v5063
        %v5444 = vmul.f32 %v2829, %v5067
        %v5445 = vmul.f32 %v3180, %v5071
        %v5446 = vmul.f32 %v3182, %v5075
        %v5447 = vmul.f32 %v2125, %v5047
        %v5448 = vmul.f32 %v2127, %v5051
        %v5449 = vmul.f32 %v2478, %v5055
        %v5450 = vmul.f32 %v2480, %v5059
        %v5451 = vmul.f32 %v2831, %v5063
        %v5452 = vmul.f32 %v2833, %v5067
        %v5453 = vmul.f32 %v3184, %v5071
        %v5454 = vmul.f32 %v3186, %v5075
        %v5455 = vmul.f32 %v2131, %v5047
        %v5456 = vmul.f32 %v2133, %v5051
        %v5457 = vmul.f32 %v2484, %v5055
        %v5458 = vmul.f32 %v2486, %v5059
        %v5459 = vmul.f32 %v2837, %v5063
        %v5460 = vmul.f32 %v2839, %v5067
        %v5461 = vmul.f32 %v3190, %v5071
        %v5462 = vmul.f32 %v3192, %v5075
        %v5463 = vmul.f32 %v2135, %v5047
        %v5464 = vmul.f32 %v2137, %v5051
        %v5465 = vmul.f32 %v2488, %v5055
        %v5466 = vmul.f32 %v2490, %v5059
        %v5467 = vmul.f32 %v2841, %v5063
        %v5468 = vmul.f32 %v2843, %v5067
        %v5469 = vmul.f32 %v3194, %v5071
        %v5470 = vmul.f32 %v3196, %v5075
        %v5471 = vmul.f32 %v2141, %v5047
        %v5472 = vmul.f32 %v2143, %v5051
        %v5473 = vmul.f32 %v2494, %v5055
        %v5474 = vmul.f32 %v2496, %v5059
        %v5475 = vmul.f32 %v2847, %v5063
        %v5476 = vmul.f32 %v2849, %v5067
        %v5477 = vmul.f32 %v3200, %v5071
        %v5478 = vmul.f32 %v3202, %v5075
        %v5479 = vmul.f32 %v2145, %v5047
        %v5480 = vmul.f32 %v2147, %v5051
        %v5481 = vmul.f32 %v2498, %v5055
        %v5482 = vmul.f32 %v2500, %v5059
        %v5483 = vmul.f32 %v2851, %v5063
        %v5484 = vmul.f32 %v2853, %v5067
        %v5485 = vmul.f32 %v3204, %v5071
        %v5486 = vmul.f32 %v3206, %v5075
        %v5487 = vmul.f32 %v2151, %v5047
        %v5488 = vmul.f32 %v2153, %v5051
        %v5489 = vmul.f32 %v2504, %v5055
        %v5490 = vmul.f32 %v2506, %v5059
        %v5491 = vmul.f32 %v2857, %v5063
        %v5492 = vmul.f32 %v2859, %v5067
        %v5493 = vmul.f32 %v3210, %v5071
        %v5494 = vmul.f32 %v3212, %v5075
        %v5495 = vmul.f32 %v2155, %v5047
        %v5496 = vmul.f32 %v2157, %v5051
        %v5497 = vmul.f32 %v2508, %v5055
        %v5498 = vmul.f32 %v2510, %v5059
        %v5499 = vmul.f32 %v2861, %v5063
        %v5500 = vmul.f32 %v2863, %v5067
        %v5501 = vmul.f32 %v3214, %v5071
        %v5502 = vmul.f32 %v3216, %v5075
        %v5503 = vmul.f32 %v2161, %v5047
        %v5504 = vmul.f32 %v2163, %v5051
        %v5505 = vmul.f32 %v2514, %v5055
        %v5506 = vmul.f32 %v2516, %v5059
        %v5507 = vmul.f32 %v2867, %v5063
        %v5508 = vmul.f32 %v2869, %v5067
        %v5509 = vmul.f32 %v3220, %v5071
        %v5510 = vmul.f32 %v3222, %v5075
        %v5511 = vmul.f32 %v2165, %v5047
        %v5512 = vmul.f32 %v2167, %v5051
        %v5513 = vmul.f32 %v2518, %v5055
        %v5514 = vmul.f32 %v2520, %v5059
        %v5515 = vmul.f32 %v2871, %v5063
        %v5516 = vmul.f32 %v2873, %v5067
        %v5517 = vmul.f32 %v3224, %v5071
        %v5518 = vmul.f32 %v3226, %v5075
        %v5519 = vmul.f32 %v2171, %v5047
        %v5520 = vmul.f32 %v2173, %v5051
        %v5521 = vmul.f32 %v2524, %v5055
        %v5522 = vmul.f32 %v2526, %v5059
        %v5523 = vmul.f32 %v2877, %v5063
        %v5524 = vmul.f32 %v2879, %v5067
        %v5525 = vmul.f32 %v3230, %v5071
        %v5526 = vmul.f32 %v3232, %v5075
        %v5527 = vmul.f32 %v2175, %v5047
        %v5528 = vmul.f32 %v2177, %v5051
        %v5529 = vmul.f32 %v2528, %v5055
        %v5530 = vmul.f32 %v2530, %v5059
        %v5531 = vmul.f32 %v2881, %v5063
        %v5532 = vmul.f32 %v2883, %v5067
        %v5533 = vmul.f32 %v3234, %v5071
        %v5534 = vmul.f32 %v3236, %v5075
        %v5535 = vmul.f32 %v2181, %v5047
        %v5536 = vmul.f32 %v2183, %v5051
        %v5537 = vmul.f32 %v2534, %v5055
        %v5538 = vmul.f32 %v2536, %v5059
        %v5539 = vmul.f32 %v2887, %v5063
        %v5540 = vmul.f32 %v2889, %v5067
        %v5541 = vmul.f32 %v3240, %v5071
        %v5542 = vmul.f32 %v3242, %v5075
        %v5543 = vmul.f32 %v2185, %v5047
        %v5544 = vmul.f32 %v2187, %v5051
        %v5545 = vmul.f32 %v2538, %v5055
        %v5546 = vmul.f32 %v2540, %v5059
        %v5547 = vmul.f32 %v2891, %v5063
        %v5548 = vmul.f32 %v2893, %v5067
        %v5549 = vmul.f32 %v3244, %v5071
        %v5550 = vmul.f32 %v3246, %v5075
        %v5551 = vmul.f32 %v2191, %v5047
        %v5552 = vmul.f32 %v2193, %v5051
        %v5553 = vmul.f32 %v2544, %v5055
        %v5554 = vmul.f32 %v2546, %v5059
        %v5555 = vmul.f32 %v2897, %v5063
        %v5556 = vmul.f32 %v2899, %v5067
        %v5557 = vmul.f32 %v3250, %v5071
        %v5558 = vmul.f32 %v3252, %v5075
        %v5559 = vmul.f32 %v2195, %v5047
        %v5560 = vmul.f32 %v2197, %v5051
        %v5561 = vmul.f32 %v2548, %v5055
        %v5562 = vmul.f32 %v2550, %v5059
        %v5563 = vmul.f32 %v2901, %v5063
        %v5564 = vmul.f32 %v2903, %v5067
        %v5565 = vmul.f32 %v3254, %v5071
        %v5566 = vmul.f32 %v3256, %v5075
        %v5567 = vmul.f32 %v2201, %v5047
        %v5568 = vmul.f32 %v2203, %v5051
        %v5569 = vmul.f32 %v2554, %v5055
        %v5570 = vmul.f32 %v2556, %v5059
        %v5571 = vmul.f32 %v2907, %v5063
        %v5572 = vmul.f32 %v2909, %v5067
        %v5573 = vmul.f32 %v3260, %v5071
        %v5574 = vmul.f32 %v3262, %v5075
        %v5575 = vmul.f32 %v2205, %v5047
        %v5576 = vmul.f32 %v2207, %v5051
        %v5577 = vmul.f32 %v2558, %v5055
        %v5578 = vmul.f32 %v2560, %v5059
        %v5579 = vmul.f32 %v2911, %v5063
        %v5580 = vmul.f32 %v2913, %v5067
        %v5581 = vmul.f32 %v3264, %v5071
        %v5582 = vmul.f32 %v3266, %v5075
        %v5583 = vmul.f32 %v2211, %v5047
        %v5584 = vmul.f32 %v2213, %v5051
        %v5585 = vmul.f32 %v2564, %v5055
        %v5586 = vmul.f32 %v2566, %v5059
        %v5587 = vmul.f32 %v2917, %v5063
        %v5588 = vmul.f32 %v2919, %v5067
        %v5589 = vmul.f32 %v3270, %v5071
        %v5590 = vmul.f32 %v3272, %v5075
        %v5591 = vmul.f32 %v2215, %v5047
        %v5592 = vmul.f32 %v2217, %v5051
        %v5593 = vmul.f32 %v2568, %v5055
        %v5594 = vmul.f32 %v2570, %v5059
        %v5595 = vmul.f32 %v2921, %v5063
        %v5596 = vmul.f32 %v2923, %v5067
        %v5597 = vmul.f32 %v3274, %v5071
        %v5598 = vmul.f32 %v3276, %v5075
        %v5599 = vmul.f32 %v2221, %v5047
        %v5600 = vmul.f32 %v2223, %v5051
        %v5601 = vmul.f32 %v2574, %v5055
        %v5602 = vmul.f32 %v2576, %v5059
        %v5603 = vmul.f32 %v2927, %v5063
        %v5604 = vmul.f32 %v2929, %v5067
        %v5605 = vmul.f32 %v3280, %v5071
        %v5606 = vmul.f32 %v3282, %v5075
        %v5607 = vmul.f32 %v2225, %v5047
        %v5608 = vmul.f32 %v2227, %v5051
        %v5609 = vmul.f32 %v2578, %v5055
        %v5610 = vmul.f32 %v2580, %v5059
        %v5611 = vmul.f32 %v2931, %v5063
        %v5612 = vmul.f32 %v2933, %v5067
        %v5613 = vmul.f32 %v3284, %v5071
        %v5614 = vmul.f32 %v3286, %v5075
        %v5615 = vmul.f32 %v2231, %v5047
        %v5616 = vmul.f32 %v2233, %v5051
        %v5617 = vmul.f32 %v2584, %v5055
        %v5618 = vmul.f32 %v2586, %v5059
        %v5619 = vmul.f32 %v2937, %v5063
        %v5620 = vmul.f32 %v2939, %v5067
        %v5621 = vmul.f32 %v3290, %v5071
        %v5622 = vmul.f32 %v3292, %v5075
        %v5623 = vmul.f32 %v2235, %v5047
        %v5624 = vmul.f32 %v2237, %v5051
        %v5625 = vmul.f32 %v2588, %v5055
        %v5626 = vmul.f32 %v2590, %v5059
        %v5627 = vmul.f32 %v2941, %v5063
        %v5628 = vmul.f32 %v2943, %v5067
        %v5629 = vmul.f32 %v3294, %v5071
        %v5630 = vmul.f32 %v3296, %v5075
        %v5631 = vmul.f32 %v2241, %v5047
        %v5632 = vmul.f32 %v2243, %v5051
        %v5633 = vmul.f32 %v2594, %v5055
        %v5634 = vmul.f32 %v2596, %v5059
        %v5635 = vmul.f32 %v2947, %v5063
        %v5636 = vmul.f32 %v2949, %v5067
        %v5637 = vmul.f32 %v3300, %v5071
        %v5638 = vmul.f32 %v3302, %v5075
        %v5639 = vmul.f32 %v2245, %v5047
        %v5640 = vmul.f32 %v2247, %v5051
        %v5641 = vmul.f32 %v2598, %v5055
        %v5642 = vmul.f32 %v2600, %v5059
        %v5643 = vmul.f32 %v2951, %v5063
        %v5644 = vmul.f32 %v2953, %v5067
        %v5645 = vmul.f32 %v3304, %v5071
        %v5646 = vmul.f32 %v3306, %v5075
        %v5647 = vmul.f32 %v2251, %v5047
        %v5648 = vmul.f32 %v2253, %v5051
        %v5649 = vmul.f32 %v2604, %v5055
        %v5650 = vmul.f32 %v2606, %v5059
        %v5651 = vmul.f32 %v2957, %v5063
        %v5652 = vmul.f32 %v2959, %v5067
        %v5653 = vmul.f32 %v3310, %v5071
        %v5654 = vmul.f32 %v3312, %v5075
        %v5655 = vmul.f32 %v2255, %v5047
        %v5656 = vmul.f32 %v2257, %v5051
        %v5657 = vmul.f32 %v2608, %v5055
        %v5658 = vmul.f32 %v2610, %v5059
        %v5659 = vmul.f32 %v2961, %v5063
        %v5660 = vmul.f32 %v2963, %v5067
        %v5661 = vmul.f32 %v3314, %v5071
        %v5662 = vmul.f32 %v3316, %v5075
        %v5664 = vlaneseq
        %v5665 = vshrl.u32 %v5664, 7
        %v5666 = vsub.s32 0, %v5665
        %v5667 = vrot.slane %v5150, %v5666
        %v5668 = vlaneseq
        %v5669 = vshrl.u32 %v5668, 7
        %v5670 = vsub.s32 1, %v5669
        %v5671 = vrot.slane %v5150, %v5670
        %v5672 = vlaneseq
        %v5673 = vshrl.u32 %v5672, 7
        %v5674 = vsub.s32 2, %v5673
        %v5675 = vrot.slane %v5150, %v5674
        %v5676 = vlaneseq
        %v5677 = vshrl.u32 %v5676, 7
        %v5678 = vsub.s32 3, %v5677
        %v5679 = vrot.slane %v5150, %v5678
        %v5680 = vlaneseq
        %v5681 = vshrl.u32 %v5680, 7
        %v5682 = vsub.s32 4, %v5681
        %v5683 = vrot.slane %v5150, %v5682
        %v5684 = vlaneseq
        %v5685 = vshrl.u32 %v5684, 7
        %v5686 = vsub.s32 5, %v5685
        %v5687 = vrot.slane %v5150, %v5686
        %v5688 = vlaneseq
        %v5689 = vshrl.u32 %v5688, 7
        %v5690 = vsub.s32 6, %v5689
        %v5691 = vrot.slane %v5150, %v5690
        %v5692 = vlaneseq
        %v5693 = vshrl.u32 %v5692, 7
        %v5694 = vsub.s32 7, %v5693
        %v5695 = vrot.slane %v5150, %v5694
        %v5704 = vadd.f32 %v5151, %v5667
        %v5705 = vadd.f32 %v5152, %v5671
        %v5706 = vadd.f32 %v5153, %v5675
        %v5707 = vadd.f32 %v5154, %v5679
        %v5708 = vadd.f32 %v5155, %v5683
        %v5709 = vadd.f32 %v5156, %v5687
        %v5710 = vadd.f32 %v5157, %v5691
        %v5711 = vadd.f32 %v5158, %v5695
        %v5712 = vadd.f32 %v5159, %v5667
        %v5713 = vadd.f32 %v5160, %v5671
        %v5714 = vadd.f32 %v5161, %v5675
        %v5715 = vadd.f32 %v5162, %v5679
        %v5716 = vadd.f32 %v5163, %v5683
        %v5717 = vadd.f32 %v5164, %v5687
        %v5718 = vadd.f32 %v5165, %v5691
        %v5719 = vadd.f32 %v5166, %v5695
        %v5720 = vadd.f32 %v5167, %v5667
        %v5721 = vadd.f32 %v5168, %v5671
        %v5722 = vadd.f32 %v5169, %v5675
        %v5723 = vadd.f32 %v5170, %v5679
        %v5724 = vadd.f32 %v5171, %v5683
        %v5725 = vadd.f32 %v5172, %v5687
        %v5726 = vadd.f32 %v5173, %v5691
        %v5727 = vadd.f32 %v5174, %v5695
        %v5728 = vadd.f32 %v5175, %v5667
        %v5729 = vadd.f32 %v5176, %v5671
        %v5730 = vadd.f32 %v5177, %v5675
        %v5731 = vadd.f32 %v5178, %v5679
        %v5732 = vadd.f32 %v5179, %v5683
        %v5733 = vadd.f32 %v5180, %v5687
        %v5734 = vadd.f32 %v5181, %v5691
        %v5735 = vadd.f32 %v5182, %v5695
        %v5736 = vadd.f32 %v5183, %v5667
        %v5737 = vadd.f32 %v5184, %v5671
        %v5738 = vadd.f32 %v5185, %v5675
        %v5739 = vadd.f32 %v5186, %v5679
        %v5740 = vadd.f32 %v5187, %v5683
        %v5741 = vadd.f32 %v5188, %v5687
        %v5742 = vadd.f32 %v5189, %v5691
        %v5743 = vadd.f32 %v5190, %v5695
        %v5744 = vadd.f32 %v5191, %v5667
        %v5745 = vadd.f32 %v5192, %v5671
        %v5746 = vadd.f32 %v5193, %v5675
        %v5747 = vadd.f32 %v5194, %v5679
        %v5748 = vadd.f32 %v5195, %v5683
        %v5749 = vadd.f32 %v5196, %v5687
        %v5750 = vadd.f32 %v5197, %v5691
        %v5751 = vadd.f32 %v5198, %v5695
        %v5752 = vadd.f32 %v5199, %v5667
        %v5753 = vadd.f32 %v5200, %v5671
        %v5754 = vadd.f32 %v5201, %v5675
        %v5755 = vadd.f32 %v5202, %v5679
        %v5756 = vadd.f32 %v5203, %v5683
        %v5757 = vadd.f32 %v5204, %v5687
        %v5758 = vadd.f32 %v5205, %v5691
        %v5759 = vadd.f32 %v5206, %v5695
        %v5760 = vadd.f32 %v5207, %v5667
        %v5761 = vadd.f32 %v5208, %v5671
        %v5762 = vadd.f32 %v5209, %v5675
        %v5763 = vadd.f32 %v5210, %v5679
        %v5764 = vadd.f32 %v5211, %v5683
        %v5765 = vadd.f32 %v5212, %v5687
        %v5766 = vadd.f32 %v5213, %v5691
        %v5767 = vadd.f32 %v5214, %v5695
        %v5768 = vadd.f32 %v5215, %v5667
        %v5769 = vadd.f32 %v5216, %v5671
        %v5770 = vadd.f32 %v5217, %v5675
        %v5771 = vadd.f32 %v5218, %v5679
        %v5772 = vadd.f32 %v5219, %v5683
        %v5773 = vadd.f32 %v5220, %v5687
        %v5774 = vadd.f32 %v5221, %v5691
        %v5775 = vadd.f32 %v5222, %v5695
        %v5776 = vadd.f32 %v5223, %v5667
        %v5777 = vadd.f32 %v5224, %v5671
        %v5778 = vadd.f32 %v5225, %v5675
        %v5779 = vadd.f32 %v5226, %v5679
        %v5780 = vadd.f32 %v5227, %v5683
        %v5781 = vadd.f32 %v5228, %v5687
        %v5782 = vadd.f32 %v5229, %v5691
        %v5783 = vadd.f32 %v5230, %v5695
        %v5784 = vadd.f32 %v5231, %v5667
        %v5785 = vadd.f32 %v5232, %v5671
        %v5786 = vadd.f32 %v5233, %v5675
        %v5787 = vadd.f32 %v5234, %v5679
        %v5788 = vadd.f32 %v5235, %v5683
        %v5789 = vadd.f32 %v5236, %v5687
        %v5790 = vadd.f32 %v5237, %v5691
        %v5791 = vadd.f32 %v5238, %v5695
        %v5792 = vadd.f32 %v5239, %v5667
        %v5793 = vadd.f32 %v5240, %v5671
        %v5794 = vadd.f32 %v5241, %v5675
        %v5795 = vadd.f32 %v5242, %v5679
        %v5796 = vadd.f32 %v5243, %v5683
        %v5797 = vadd.f32 %v5244, %v5687
        %v5798 = vadd.f32 %v5245, %v5691
        %v5799 = vadd.f32 %v5246, %v5695
        %v5800 = vadd.f32 %v5247, %v5667
        %v5801 = vadd.f32 %v5248, %v5671
        %v5802 = vadd.f32 %v5249, %v5675
        %v5803 = vadd.f32 %v5250, %v5679
        %v5804 = vadd.f32 %v5251, %v5683
        %v5805 = vadd.f32 %v5252, %v5687
        %v5806 = vadd.f32 %v5253, %v5691
        %v5807 = vadd.f32 %v5254, %v5695
        %v5808 = vadd.f32 %v5255, %v5667
        %v5809 = vadd.f32 %v5256, %v5671
        %v5810 = vadd.f32 %v5257, %v5675
        %v5811 = vadd.f32 %v5258, %v5679
        %v5812 = vadd.f32 %v5259, %v5683
        %v5813 = vadd.f32 %v5260, %v5687
        %v5814 = vadd.f32 %v5261, %v5691
        %v5815 = vadd.f32 %v5262, %v5695
        %v5816 = vadd.f32 %v5263, %v5667
        %v5817 = vadd.f32 %v5264, %v5671
        %v5818 = vadd.f32 %v5265, %v5675
        %v5819 = vadd.f32 %v5266, %v5679
        %v5820 = vadd.f32 %v5267, %v5683
        %v5821 = vadd.f32 %v5268, %v5687
        %v5822 = vadd.f32 %v5269, %v5691
        %v5823 = vadd.f32 %v5270, %v5695
        %v5824 = vadd.f32 %v5271, %v5667
        %v5825 = vadd.f32 %v5272, %v5671
        %v5826 = vadd.f32 %v5273, %v5675
        %v5827 = vadd.f32 %v5274, %v5679
        %v5828 = vadd.f32 %v5275, %v5683
        %v5829 = vadd.f32 %v5276, %v5687
        %v5830 = vadd.f32 %v5277, %v5691
        %v5831 = vadd.f32 %v5278, %v5695
        %v5832 = vadd.f32 %v5279, %v5667
        %v5833 = vadd.f32 %v5280, %v5671
        %v5834 = vadd.f32 %v5281, %v5675
        %v5835 = vadd.f32 %v5282, %v5679
        %v5836 = vadd.f32 %v5283, %v5683
        %v5837 = vadd.f32 %v5284, %v5687
        %v5838 = vadd.f32 %v5285, %v5691
        %v5839 = vadd.f32 %v5286, %v5695
        %v5840 = vadd.f32 %v5287, %v5667
        %v5841 = vadd.f32 %v5288, %v5671
        %v5842 = vadd.f32 %v5289, %v5675
        %v5843 = vadd.f32 %v5290, %v5679
        %v5844 = vadd.f32 %v5291, %v5683
        %v5845 = vadd.f32 %v5292, %v5687
        %v5846 = vadd.f32 %v5293, %v5691
        %v5847 = vadd.f32 %v5294, %v5695
        %v5848 = vadd.f32 %v5295, %v5667
        %v5849 = vadd.f32 %v5296, %v5671
        %v5850 = vadd.f32 %v5297, %v5675
        %v5851 = vadd.f32 %v5298, %v5679
        %v5852 = vadd.f32 %v5299, %v5683
        %v5853 = vadd.f32 %v5300, %v5687
        %v5854 = vadd.f32 %v5301, %v5691
        %v5855 = vadd.f32 %v5302, %v5695
        %v5856 = vadd.f32 %v5303, %v5667
        %v5857 = vadd.f32 %v5304, %v5671
        %v5858 = vadd.f32 %v5305, %v5675
        %v5859 = vadd.f32 %v5306, %v5679
        %v5860 = vadd.f32 %v5307, %v5683
        %v5861 = vadd.f32 %v5308, %v5687
        %v5862 = vadd.f32 %v5309, %v5691
        %v5863 = vadd.f32 %v5310, %v5695
        %v5864 = vadd.f32 %v5311, %v5667
        %v5865 = vadd.f32 %v5312, %v5671
        %v5866 = vadd.f32 %v5313, %v5675
        %v5867 = vadd.f32 %v5314, %v5679
        %v5868 = vadd.f32 %v5315, %v5683
        %v5869 = vadd.f32 %v5316, %v5687
        %v5870 = vadd.f32 %v5317, %v5691
        %v5871 = vadd.f32 %v5318, %v5695
        %v5872 = vadd.f32 %v5319, %v5667
        %v5873 = vadd.f32 %v5320, %v5671
        %v5874 = vadd.f32 %v5321, %v5675
        %v5875 = vadd.f32 %v5322, %v5679
        %v5876 = vadd.f32 %v5323, %v5683
        %v5877 = vadd.f32 %v5324, %v5687
        %v5878 = vadd.f32 %v5325, %v5691
        %v5879 = vadd.f32 %v5326, %v5695
        %v5880 = vadd.f32 %v5327, %v5667
        %v5881 = vadd.f32 %v5328, %v5671
        %v5882 = vadd.f32 %v5329, %v5675
        %v5883 = vadd.f32 %v5330, %v5679
        %v5884 = vadd.f32 %v5331, %v5683
        %v5885 = vadd.f32 %v5332, %v5687
        %v5886 = vadd.f32 %v5333, %v5691
        %v5887 = vadd.f32 %v5334, %v5695
        %v5888 = vadd.f32 %v5335, %v5667
        %v5889 = vadd.f32 %v5336, %v5671
        %v5890 = vadd.f32 %v5337, %v5675
        %v5891 = vadd.f32 %v5338, %v5679
        %v5892 = vadd.f32 %v5339, %v5683
        %v5893 = vadd.f32 %v5340, %v5687
        %v5894 = vadd.f32 %v5341, %v5691
        %v5895 = vadd.f32 %v5342, %v5695
        %v5896 = vadd.f32 %v5343, %v5667
        %v5897 = vadd.f32 %v5344, %v5671
        %v5898 = vadd.f32 %v5345, %v5675
        %v5899 = vadd.f32 %v5346, %v5679
        %v5900 = vadd.f32 %v5347, %v5683
        %v5901 = vadd.f32 %v5348, %v5687
        %v5902 = vadd.f32 %v5349, %v5691
        %v5903 = vadd.f32 %v5350, %v5695
        %v5904 = vadd.f32 %v5351, %v5667
        %v5905 = vadd.f32 %v5352, %v5671
        %v5906 = vadd.f32 %v5353, %v5675
        %v5907 = vadd.f32 %v5354, %v5679
        %v5908 = vadd.f32 %v5355, %v5683
        %v5909 = vadd.f32 %v5356, %v5687
        %v5910 = vadd.f32 %v5357, %v5691
        %v5911 = vadd.f32 %v5358, %v5695
        %v5912 = vadd.f32 %v5359, %v5667
        %v5913 = vadd.f32 %v5360, %v5671
        %v5914 = vadd.f32 %v5361, %v5675
        %v5915 = vadd.f32 %v5362, %v5679
        %v5916 = vadd.f32 %v5363, %v5683
        %v5917 = vadd.f32 %v5364, %v5687
        %v5918 = vadd.f32 %v5365, %v5691
        %v5919 = vadd.f32 %v5366, %v5695
        %v5920 = vadd.f32 %v5367, %v5667
        %v5921 = vadd.f32 %v5368, %v5671
        %v5922 = vadd.f32 %v5369, %v5675
        %v5923 = vadd.f32 %v5370, %v5679
        %v5924 = vadd.f32 %v5371, %v5683
        %v5925 = vadd.f32 %v5372, %v5687
        %v5926 = vadd.f32 %v5373, %v5691
        %v5927 = vadd.f32 %v5374, %v5695
        %v5928 = vadd.f32 %v5375, %v5667
        %v5929 = vadd.f32 %v5376, %v5671
        %v5930 = vadd.f32 %v5377, %v5675
        %v5931 = vadd.f32 %v5378, %v5679
        %v5932 = vadd.f32 %v5379, %v5683
        %v5933 = vadd.f32 %v5380, %v5687
        %v5934 = vadd.f32 %v5381, %v5691
        %v5935 = vadd.f32 %v5382, %v5695
        %v5936 = vadd.f32 %v5383, %v5667
        %v5937 = vadd.f32 %v5384, %v5671
        %v5938 = vadd.f32 %v5385, %v5675
        %v5939 = vadd.f32 %v5386, %v5679
        %v5940 = vadd.f32 %v5387, %v5683
        %v5941 = vadd.f32 %v5388, %v5687
        %v5942 = vadd.f32 %v5389, %v5691
        %v5943 = vadd.f32 %v5390, %v5695
        %v5944 = vadd.f32 %v5391, %v5667
        %v5945 = vadd.f32 %v5392, %v5671
        %v5946 = vadd.f32 %v5393, %v5675
        %v5947 = vadd.f32 %v5394, %v5679
        %v5948 = vadd.f32 %v5395, %v5683
        %v5949 = vadd.f32 %v5396, %v5687
        %v5950 = vadd.f32 %v5397, %v5691
        %v5951 = vadd.f32 %v5398, %v5695
        %v5952 = vadd.f32 %v5399, %v5667
        %v5953 = vadd.f32 %v5400, %v5671
        %v5954 = vadd.f32 %v5401, %v5675
        %v5955 = vadd.f32 %v5402, %v5679
        %v5956 = vadd.f32 %v5403, %v5683
        %v5957 = vadd.f32 %v5404, %v5687
        %v5958 = vadd.f32 %v5405, %v5691
        %v5959 = vadd.f32 %v5406, %v5695
        %v5960 = vadd.f32 %v5407, %v5667
        %v5961 = vadd.f32 %v5408, %v5671
        %v5962 = vadd.f32 %v5409, %v5675
        %v5963 = vadd.f32 %v5410, %v5679
        %v5964 = vadd.f32 %v5411, %v5683
        %v5965 = vadd.f32 %v5412, %v5687
        %v5966 = vadd.f32 %v5413, %v5691
        %v5967 = vadd.f32 %v5414, %v5695
        %v5968 = vadd.f32 %v5415, %v5667
        %v5969 = vadd.f32 %v5416, %v5671
        %v5970 = vadd.f32 %v5417, %v5675
        %v5971 = vadd.f32 %v5418, %v5679
        %v5972 = vadd.f32 %v5419, %v5683
        %v5973 = vadd.f32 %v5420, %v5687
        %v5974 = vadd.f32 %v5421, %v5691
        %v5975 = vadd.f32 %v5422, %v5695
        %v5976 = vadd.f32 %v5423, %v5667
        %v5977 = vadd.f32 %v5424, %v5671
        %v5978 = vadd.f32 %v5425, %v5675
        %v5979 = vadd.f32 %v5426, %v5679
        %v5980 = vadd.f32 %v5427, %v5683
        %v5981 = vadd.f32 %v5428, %v5687
        %v5982 = vadd.f32 %v5429, %v5691
        %v5983 = vadd.f32 %v5430, %v5695
        %v5984 = vadd.f32 %v5431, %v5667
        %v5985 = vadd.f32 %v5432, %v5671
        %v5986 = vadd.f32 %v5433, %v5675
        %v5987 = vadd.f32 %v5434, %v5679
        %v5988 = vadd.f32 %v5435, %v5683
        %v5989 = vadd.f32 %v5436, %v5687
        %v5990 = vadd.f32 %v5437, %v5691
        %v5991 = vadd.f32 %v5438, %v5695
        %v5992 = vadd.f32 %v5439, %v5667
        %v5993 = vadd.f32 %v5440, %v5671
        %v5994 = vadd.f32 %v5441, %v5675
        %v5995 = vadd.f32 %v5442, %v5679
        %v5996 = vadd.f32 %v5443, %v5683
        %v5997 = vadd.f32 %v5444, %v5687
        %v5998 = vadd.f32 %v5445, %v5691
        %v5999 = vadd.f32 %v5446, %v5695
        %v6000 = vadd.f32 %v5447, %v5667
        %v6001 = vadd.f32 %v5448, %v5671
        %v6002 = vadd.f32 %v5449, %v5675
        %v6003 = vadd.f32 %v5450, %v5679
        %v6004 = vadd.f32 %v5451, %v5683
        %v6005 = vadd.f32 %v5452, %v5687
        %v6006 = vadd.f32 %v5453, %v5691
        %v6007 = vadd.f32 %v5454, %v5695
        %v6008 = vadd.f32 %v5455, %v5667
        %v6009 = vadd.f32 %v5456, %v5671
        %v6010 = vadd.f32 %v5457, %v5675
        %v6011 = vadd.f32 %v5458, %v5679
        %v6012 = vadd.f32 %v5459, %v5683
        %v6013 = vadd.f32 %v5460, %v5687
        %v6014 = vadd.f32 %v5461, %v5691
        %v6015 = vadd.f32 %v5462, %v5695
        %v6016 = vadd.f32 %v5463, %v5667
        %v6017 = vadd.f32 %v5464, %v5671
        %v6018 = vadd.f32 %v5465, %v5675
        %v6019 = vadd.f32 %v5466, %v5679
        %v6020 = vadd.f32 %v5467, %v5683
        %v6021 = vadd.f32 %v5468, %v5687
        %v6022 = vadd.f32 %v5469, %v5691
        %v6023 = vadd.f32 %v5470, %v5695
        %v6024 = vadd.f32 %v5471, %v5667
        %v6025 = vadd.f32 %v5472, %v5671
        %v6026 = vadd.f32 %v5473, %v5675
        %v6027 = vadd.f32 %v5474, %v5679
        %v6028 = vadd.f32 %v5475, %v5683
        %v6029 = vadd.f32 %v5476, %v5687
        %v6030 = vadd.f32 %v5477, %v5691
        %v6031 = vadd.f32 %v5478, %v5695
        %v6032 = vadd.f32 %v5479, %v5667
        %v6033 = vadd.f32 %v5480, %v5671
        %v6034 = vadd.f32 %v5481, %v5675
        %v6035 = vadd.f32 %v5482, %v5679
        %v6036 = vadd.f32 %v5483, %v5683
        %v6037 = vadd.f32 %v5484, %v5687
        %v6038 = vadd.f32 %v5485, %v5691
        %v6039 = vadd.f32 %v5486, %v5695
        %v6040 = vadd.f32 %v5487, %v5667
        %v6041 = vadd.f32 %v5488, %v5671
        %v6042 = vadd.f32 %v5489, %v5675
        %v6043 = vadd.f32 %v5490, %v5679
        %v6044 = vadd.f32 %v5491, %v5683
        %v6045 = vadd.f32 %v5492, %v5687
        %v6046 = vadd.f32 %v5493, %v5691
        %v6047 = vadd.f32 %v5494, %v5695
        %v6048 = vadd.f32 %v5495, %v5667
        %v6049 = vadd.f32 %v5496, %v5671
        %v6050 = vadd.f32 %v5497, %v5675
        %v6051 = vadd.f32 %v5498, %v5679
        %v6052 = vadd.f32 %v5499, %v5683
        %v6053 = vadd.f32 %v5500, %v5687
        %v6054 = vadd.f32 %v5501, %v5691
        %v6055 = vadd.f32 %v5502, %v5695
        %v6056 = vadd.f32 %v5503, %v5667
        %v6057 = vadd.f32 %v5504, %v5671
        %v6058 = vadd.f32 %v5505, %v5675
        %v6059 = vadd.f32 %v5506, %v5679
        %v6060 = vadd.f32 %v5507, %v5683
        %v6061 = vadd.f32 %v5508, %v5687
        %v6062 = vadd.f32 %v5509, %v5691
        %v6063 = vadd.f32 %v5510, %v5695
        %v6064 = vadd.f32 %v5511, %v5667
        %v6065 = vadd.f32 %v5512, %v5671
        %v6066 = vadd.f32 %v5513, %v5675
        %v6067 = vadd.f32 %v5514, %v5679
        %v6068 = vadd.f32 %v5515, %v5683
        %v6069 = vadd.f32 %v5516, %v5687
        %v6070 = vadd.f32 %v5517, %v5691
        %v6071 = vadd.f32 %v5518, %v5695
        %v6072 = vadd.f32 %v5519, %v5667
        %v6073 = vadd.f32 %v5520, %v5671
        %v6074 = vadd.f32 %v5521, %v5675
        %v6075 = vadd.f32 %v5522, %v5679
        %v6076 = vadd.f32 %v5523, %v5683
        %v6077 = vadd.f32 %v5524, %v5687
        %v6078 = vadd.f32 %v5525, %v5691
        %v6079 = vadd.f32 %v5526, %v5695
        %v6080 = vadd.f32 %v5527, %v5667
        %v6081 = vadd.f32 %v5528, %v5671
        %v6082 = vadd.f32 %v5529, %v5675
        %v6083 = vadd.f32 %v5530, %v5679
        %v6084 = vadd.f32 %v5531, %v5683
        %v6085 = vadd.f32 %v5532, %v5687
        %v6086 = vadd.f32 %v5533, %v5691
        %v6087 = vadd.f32 %v5534, %v5695
        %v6088 = vadd.f32 %v5535, %v5667
        %v6089 = vadd.f32 %v5536, %v5671
        %v6090 = vadd.f32 %v5537, %v5675
        %v6091 = vadd.f32 %v5538, %v5679
        %v6092 = vadd.f32 %v5539, %v5683
        %v6093 = vadd.f32 %v5540, %v5687
        %v6094 = vadd.f32 %v5541, %v5691
        %v6095 = vadd.f32 %v5542, %v5695
        %v6096 = vadd.f32 %v5543, %v5667
        %v6097 = vadd.f32 %v5544, %v5671
        %v6098 = vadd.f32 %v5545, %v5675
        %v6099 = vadd.f32 %v5546, %v5679
        %v6100 = vadd.f32 %v5547, %v5683
        %v6101 = vadd.f32 %v5548, %v5687
        %v6102 = vadd.f32 %v5549, %v5691
        %v6103 = vadd.f32 %v5550, %v5695
        %v6104 = vadd.f32 %v5551, %v5667
        %v6105 = vadd.f32 %v5552, %v5671
        %v6106 = vadd.f32 %v5553, %v5675
        %v6107 = vadd.f32 %v5554, %v5679
        %v6108 = vadd.f32 %v5555, %v5683
        %v6109 = vadd.f32 %v5556, %v5687
        %v6110 = vadd.f32 %v5557, %v5691
        %v6111 = vadd.f32 %v5558, %v5695
        %v6112 = vadd.f32 %v5559, %v5667
        %v6113 = vadd.f32 %v5560, %v5671
        %v6114 = vadd.f32 %v5561, %v5675
        %v6115 = vadd.f32 %v5562, %v5679
        %v6116 = vadd.f32 %v5563, %v5683
        %v6117 = vadd.f32 %v5564, %v5687
        %v6118 = vadd.f32 %v5565, %v5691
        %v6119 = vadd.f32 %v5566, %v5695
        %v6120 = vadd.f32 %v5567, %v5667
        %v6121 = vadd.f32 %v5568, %v5671
        %v6122 = vadd.f32 %v5569, %v5675
        %v6123 = vadd.f32 %v5570, %v5679
        %v6124 = vadd.f32 %v5571, %v5683
        %v6125 = vadd.f32 %v5572, %v5687
        %v6126 = vadd.f32 %v5573, %v5691
        %v6127 = vadd.f32 %v5574, %v5695
        %v6128 = vadd.f32 %v5575, %v5667
        %v6129 = vadd.f32 %v5576, %v5671
        %v6130 = vadd.f32 %v5577, %v5675
        %v6131 = vadd.f32 %v5578, %v5679
        %v6132 = vadd.f32 %v5579, %v5683
        %v6133 = vadd.f32 %v5580, %v5687
        %v6134 = vadd.f32 %v5581, %v5691
        %v6135 = vadd.f32 %v5582, %v5695
        %v6136 = vadd.f32 %v5583, %v5667
        %v6137 = vadd.f32 %v5584, %v5671
        %v6138 = vadd.f32 %v5585, %v5675
        %v6139 = vadd.f32 %v5586, %v5679
        %v6140 = vadd.f32 %v5587, %v5683
        %v6141 = vadd.f32 %v5588, %v5687
        %v6142 = vadd.f32 %v5589, %v5691
        %v6143 = vadd.f32 %v5590, %v5695
        %v6144 = vadd.f32 %v5591, %v5667
        %v6145 = vadd.f32 %v5592, %v5671
        %v6146 = vadd.f32 %v5593, %v5675
        %v6147 = vadd.f32 %v5594, %v5679
        %v6148 = vadd.f32 %v5595, %v5683
        %v6149 = vadd.f32 %v5596, %v5687
        %v6150 = vadd.f32 %v5597, %v5691
        %v6151 = vadd.f32 %v5598, %v5695
        %v6152 = vadd.f32 %v5599, %v5667
        %v6153 = vadd.f32 %v5600, %v5671
        %v6154 = vadd.f32 %v5601, %v5675
        %v6155 = vadd.f32 %v5602, %v5679
        %v6156 = vadd.f32 %v5603, %v5683
        %v6157 = vadd.f32 %v5604, %v5687
        %v6158 = vadd.f32 %v5605, %v5691
        %v6159 = vadd.f32 %v5606, %v5695
        %v6160 = vadd.f32 %v5607, %v5667
        %v6161 = vadd.f32 %v5608, %v5671
        %v6162 = vadd.f32 %v5609, %v5675
        %v6163 = vadd.f32 %v5610, %v5679
        %v6164 = vadd.f32 %v5611, %v5683
        %v6165 = vadd.f32 %v5612, %v5687
        %v6166 = vadd.f32 %v5613, %v5691
        %v6167 = vadd.f32 %v5614, %v5695
        %v6168 = vadd.f32 %v5615, %v5667
        %v6169 = vadd.f32 %v5616, %v5671
        %v6170 = vadd.f32 %v5617, %v5675
        %v6171 = vadd.f32 %v5618, %v5679
        %v6172 = vadd.f32 %v5619, %v5683
        %v6173 = vadd.f32 %v5620, %v5687
        %v6174 = vadd.f32 %v5621, %v5691
        %v6175 = vadd.f32 %v5622, %v5695
        %v6176 = vadd.f32 %v5623, %v5667
        %v6177 = vadd.f32 %v5624, %v5671
        %v6178 = vadd.f32 %v5625, %v5675
        %v6179 = vadd.f32 %v5626, %v5679
        %v6180 = vadd.f32 %v5627, %v5683
        %v6181 = vadd.f32 %v5628, %v5687
        %v6182 = vadd.f32 %v5629, %v5691
        %v6183 = vadd.f32 %v5630, %v5695
        %v6184 = vadd.f32 %v5631, %v5667
        %v6185 = vadd.f32 %v5632, %v5671
        %v6186 = vadd.f32 %v5633, %v5675
        %v6187 = vadd.f32 %v5634, %v5679
        %v6188 = vadd.f32 %v5635, %v5683
        %v6189 = vadd.f32 %v5636, %v5687
        %v6190 = vadd.f32 %v5637, %v5691
        %v6191 = vadd.f32 %v5638, %v5695
        %v6192 = vadd.f32 %v5639, %v5667
        %v6193 = vadd.f32 %v5640, %v5671
        %v6194 = vadd.f32 %v5641, %v5675
        %v6195 = vadd.f32 %v5642, %v5679
        %v6196 = vadd.f32 %v5643, %v5683
        %v6197 = vadd.f32 %v5644, %v5687
        %v6198 = vadd.f32 %v5645, %v5691
        %v6199 = vadd.f32 %v5646, %v5695
        %v6200 = vadd.f32 %v5647, %v5667
        %v6201 = vadd.f32 %v5648, %v5671
        %v6202 = vadd.f32 %v5649, %v5675
        %v6203 = vadd.f32 %v5650, %v5679
        %v6204 = vadd.f32 %v5651, %v5683
        %v6205 = vadd.f32 %v5652, %v5687
        %v6206 = vadd.f32 %v5653, %v5691
        %v6207 = vadd.f32 %v5654, %v5695
        %v6208 = vadd.f32 %v5655, %v5667
        %v6209 = vadd.f32 %v5656, %v5671
        %v6210 = vadd.f32 %v5657, %v5675
        %v6211 = vadd.f32 %v5658, %v5679
        %v6212 = vadd.f32 %v5659, %v5683
        %v6213 = vadd.f32 %v5660, %v5687
        %v6214 = vadd.f32 %v5661, %v5691
        %v6215 = vadd.f32 %v5662, %v5695
        %v6216 = vmax.f32 %v5704, 0.0
        %v6217 = vmax.f32 %v5705, 0.0
        %v6218 = vmax.f32 %v5706, 0.0
        %v6219 = vmax.f32 %v5707, 0.0
        %v6220 = vmax.f32 %v5708, 0.0
        %v6221 = vmax.f32 %v5709, 0.0
        %v6222 = vmax.f32 %v5710, 0.0
        %v6223 = vmax.f32 %v5711, 0.0
        %v6224 = vmax.f32 %v5712, 0.0
        %v6225 = vmax.f32 %v5713, 0.0
        %v6226 = vmax.f32 %v5714, 0.0
        %v6227 = vmax.f32 %v5715, 0.0
        %v6228 = vmax.f32 %v5716, 0.0
        %v6229 = vmax.f32 %v5717, 0.0
        %v6230 = vmax.f32 %v5718, 0.0
        %v6231 = vmax.f32 %v5719, 0.0
        %v6232 = vmax.f32 %v5720, 0.0
        %v6233 = vmax.f32 %v5721, 0.0
        %v6234 = vmax.f32 %v5722, 0.0
        %v6235 = vmax.f32 %v5723, 0.0
        %v6236 = vmax.f32 %v5724, 0.0
        %v6237 = vmax.f32 %v5725, 0.0
        %v6238 = vmax.f32 %v5726, 0.0
        %v6239 = vmax.f32 %v5727, 0.0
        %v6240 = vmax.f32 %v5728, 0.0
        %v6241 = vmax.f32 %v5729, 0.0
        %v6242 = vmax.f32 %v5730, 0.0
        %v6243 = vmax.f32 %v5731, 0.0
        %v6244 = vmax.f32 %v5732, 0.0
        %v6245 = vmax.f32 %v5733, 0.0
        %v6246 = vmax.f32 %v5734, 0.0
        %v6247 = vmax.f32 %v5735, 0.0
        %v6248 = vmax.f32 %v5736, 0.0
        %v6249 = vmax.f32 %v5737, 0.0
        %v6250 = vmax.f32 %v5738, 0.0
        %v6251 = vmax.f32 %v5739, 0.0
        %v6252 = vmax.f32 %v5740, 0.0
        %v6253 = vmax.f32 %v5741, 0.0
        %v6254 = vmax.f32 %v5742, 0.0
        %v6255 = vmax.f32 %v5743, 0.0
        %v6256 = vmax.f32 %v5744, 0.0
        %v6257 = vmax.f32 %v5745, 0.0
        %v6258 = vmax.f32 %v5746, 0.0
        %v6259 = vmax.f32 %v5747, 0.0
        %v6260 = vmax.f32 %v5748, 0.0
        %v6261 = vmax.f32 %v5749, 0.0
        %v6262 = vmax.f32 %v5750, 0.0
        %v6263 = vmax.f32 %v5751, 0.0
        %v6264 = vmax.f32 %v5752, 0.0
        %v6265 = vmax.f32 %v5753, 0.0
        %v6266 = vmax.f32 %v5754, 0.0
        %v6267 = vmax.f32 %v5755, 0.0
        %v6268 = vmax.f32 %v5756, 0.0
        %v6269 = vmax.f32 %v5757, 0.0
        %v6270 = vmax.f32 %v5758, 0.0
        %v6271 = vmax.f32 %v5759, 0.0
        %v6272 = vmax.f32 %v5760, 0.0
        %v6273 = vmax.f32 %v5761, 0.0
        %v6274 = vmax.f32 %v5762, 0.0
        %v6275 = vmax.f32 %v5763, 0.0
        %v6276 = vmax.f32 %v5764, 0.0
        %v6277 = vmax.f32 %v5765, 0.0
        %v6278 = vmax.f32 %v5766, 0.0
        %v6279 = vmax.f32 %v5767, 0.0
        %v6280 = vmax.f32 %v5768, 0.0
        %v6281 = vmax.f32 %v5769, 0.0
        %v6282 = vmax.f32 %v5770, 0.0
        %v6283 = vmax.f32 %v5771, 0.0
        %v6284 = vmax.f32 %v5772, 0.0
        %v6285 = vmax.f32 %v5773, 0.0
        %v6286 = vmax.f32 %v5774, 0.0
        %v6287 = vmax.f32 %v5775, 0.0
        %v6288 = vmax.f32 %v5776, 0.0
        %v6289 = vmax.f32 %v5777, 0.0
        %v6290 = vmax.f32 %v5778, 0.0
        %v6291 = vmax.f32 %v5779, 0.0
        %v6292 = vmax.f32 %v5780, 0.0
        %v6293 = vmax.f32 %v5781, 0.0
        %v6294 = vmax.f32 %v5782, 0.0
        %v6295 = vmax.f32 %v5783, 0.0
        %v6296 = vmax.f32 %v5784, 0.0
        %v6297 = vmax.f32 %v5785, 0.0
        %v6298 = vmax.f32 %v5786, 0.0
        %v6299 = vmax.f32 %v5787, 0.0
        %v6300 = vmax.f32 %v5788, 0.0
        %v6301 = vmax.f32 %v5789, 0.0
        %v6302 = vmax.f32 %v5790, 0.0
        %v6303 = vmax.f32 %v5791, 0.0
        %v6304 = vmax.f32 %v5792, 0.0
        %v6305 = vmax.f32 %v5793, 0.0
        %v6306 = vmax.f32 %v5794, 0.0
        %v6307 = vmax.f32 %v5795, 0.0
        %v6308 = vmax.f32 %v5796, 0.0
        %v6309 = vmax.f32 %v5797, 0.0
        %v6310 = vmax.f32 %v5798, 0.0
        %v6311 = vmax.f32 %v5799, 0.0
        %v6312 = vmax.f32 %v5800, 0.0
        %v6313 = vmax.f32 %v5801, 0.0
        %v6314 = vmax.f32 %v5802, 0.0
        %v6315 = vmax.f32 %v5803, 0.0
        %v6316 = vmax.f32 %v5804, 0.0
        %v6317 = vmax.f32 %v5805, 0.0
        %v6318 = vmax.f32 %v5806, 0.0
        %v6319 = vmax.f32 %v5807, 0.0
        %v6320 = vmax.f32 %v5808, 0.0
        %v6321 = vmax.f32 %v5809, 0.0
        %v6322 = vmax.f32 %v5810, 0.0
        %v6323 = vmax.f32 %v5811, 0.0
        %v6324 = vmax.f32 %v5812, 0.0
        %v6325 = vmax.f32 %v5813, 0.0
        %v6326 = vmax.f32 %v5814, 0.0
        %v6327 = vmax.f32 %v5815, 0.0
        %v6328 = vmax.f32 %v5816, 0.0
        %v6329 = vmax.f32 %v5817, 0.0
        %v6330 = vmax.f32 %v5818, 0.0
        %v6331 = vmax.f32 %v5819, 0.0
        %v6332 = vmax.f32 %v5820, 0.0
        %v6333 = vmax.f32 %v5821, 0.0
        %v6334 = vmax.f32 %v5822, 0.0
        %v6335 = vmax.f32 %v5823, 0.0
        %v6336 = vmax.f32 %v5824, 0.0
        %v6337 = vmax.f32 %v5825, 0.0
        %v6338 = vmax.f32 %v5826, 0.0
        %v6339 = vmax.f32 %v5827, 0.0
        %v6340 = vmax.f32 %v5828, 0.0
        %v6341 = vmax.f32 %v5829, 0.0
        %v6342 = vmax.f32 %v5830, 0.0
        %v6343 = vmax.f32 %v5831, 0.0
        %v6344 = vmax.f32 %v5832, 0.0
        %v6345 = vmax.f32 %v5833, 0.0
        %v6346 = vmax.f32 %v5834, 0.0
        %v6347 = vmax.f32 %v5835, 0.0
        %v6348 = vmax.f32 %v5836, 0.0
        %v6349 = vmax.f32 %v5837, 0.0
        %v6350 = vmax.f32 %v5838, 0.0
        %v6351 = vmax.f32 %v5839, 0.0
        %v6352 = vmax.f32 %v5840, 0.0
        %v6353 = vmax.f32 %v5841, 0.0
        %v6354 = vmax.f32 %v5842, 0.0
        %v6355 = vmax.f32 %v5843, 0.0
        %v6356 = vmax.f32 %v5844, 0.0
        %v6357 = vmax.f32 %v5845, 0.0
        %v6358 = vmax.f32 %v5846, 0.0
        %v6359 = vmax.f32 %v5847, 0.0
        %v6360 = vmax.f32 %v5848, 0.0
        %v6361 = vmax.f32 %v5849, 0.0
        %v6362 = vmax.f32 %v5850, 0.0
        %v6363 = vmax.f32 %v5851, 0.0
        %v6364 = vmax.f32 %v5852, 0.0
        %v6365 = vmax.f32 %v5853, 0.0
        %v6366 = vmax.f32 %v5854, 0.0
        %v6367 = vmax.f32 %v5855, 0.0
        %v6368 = vmax.f32 %v5856, 0.0
        %v6369 = vmax.f32 %v5857, 0.0
        %v6370 = vmax.f32 %v5858, 0.0
        %v6371 = vmax.f32 %v5859, 0.0
        %v6372 = vmax.f32 %v5860, 0.0
        %v6373 = vmax.f32 %v5861, 0.0
        %v6374 = vmax.f32 %v5862, 0.0
        %v6375 = vmax.f32 %v5863, 0.0
        %v6376 = vmax.f32 %v5864, 0.0
        %v6377 = vmax.f32 %v5865, 0.0
        %v6378 = vmax.f32 %v5866, 0.0
        %v6379 = vmax.f32 %v5867, 0.0
        %v6380 = vmax.f32 %v5868, 0.0
        %v6381 = vmax.f32 %v5869, 0.0
        %v6382 = vmax.f32 %v5870, 0.0
        %v6383 = vmax.f32 %v5871, 0.0
        %v6384 = vmax.f32 %v5872, 0.0
        %v6385 = vmax.f32 %v5873, 0.0
        %v6386 = vmax.f32 %v5874, 0.0
        %v6387 = vmax.f32 %v5875, 0.0
        %v6388 = vmax.f32 %v5876, 0.0
        %v6389 = vmax.f32 %v5877, 0.0
        %v6390 = vmax.f32 %v5878, 0.0
        %v6391 = vmax.f32 %v5879, 0.0
        %v6392 = vmax.f32 %v5880, 0.0
        %v6393 = vmax.f32 %v5881, 0.0
        %v6394 = vmax.f32 %v5882, 0.0
        %v6395 = vmax.f32 %v5883, 0.0
        %v6396 = vmax.f32 %v5884, 0.0
        %v6397 = vmax.f32 %v5885, 0.0
        %v6398 = vmax.f32 %v5886, 0.0
        %v6399 = vmax.f32 %v5887, 0.0
        %v6400 = vmax.f32 %v5888, 0.0
        %v6401 = vmax.f32 %v5889, 0.0
        %v6402 = vmax.f32 %v5890, 0.0
        %v6403 = vmax.f32 %v5891, 0.0
        %v6404 = vmax.f32 %v5892, 0.0
        %v6405 = vmax.f32 %v5893, 0.0
        %v6406 = vmax.f32 %v5894, 0.0
        %v6407 = vmax.f32 %v5895, 0.0
        %v6408 = vmax.f32 %v5896, 0.0
        %v6409 = vmax.f32 %v5897, 0.0
        %v6410 = vmax.f32 %v5898, 0.0
        %v6411 = vmax.f32 %v5899, 0.0
        %v6412 = vmax.f32 %v5900, 0.0
        %v6413 = vmax.f32 %v5901, 0.0
        %v6414 = vmax.f32 %v5902, 0.0
        %v6415 = vmax.f32 %v5903, 0.0
        %v6416 = vmax.f32 %v5904, 0.0
        %v6417 = vmax.f32 %v5905, 0.0
        %v6418 = vmax.f32 %v5906, 0.0
        %v6419 = vmax.f32 %v5907, 0.0
        %v6420 = vmax.f32 %v5908, 0.0
        %v6421 = vmax.f32 %v5909, 0.0
        %v6422 = vmax.f32 %v5910, 0.0
        %v6423 = vmax.f32 %v5911, 0.0
        %v6424 = vmax.f32 %v5912, 0.0
        %v6425 = vmax.f32 %v5913, 0.0
        %v6426 = vmax.f32 %v5914, 0.0
        %v6427 = vmax.f32 %v5915, 0.0
        %v6428 = vmax.f32 %v5916, 0.0
        %v6429 = vmax.f32 %v5917, 0.0
        %v6430 = vmax.f32 %v5918, 0.0
        %v6431 = vmax.f32 %v5919, 0.0
        %v6432 = vmax.f32 %v5920, 0.0
        %v6433 = vmax.f32 %v5921, 0.0
        %v6434 = vmax.f32 %v5922, 0.0
        %v6435 = vmax.f32 %v5923, 0.0
        %v6436 = vmax.f32 %v5924, 0.0
        %v6437 = vmax.f32 %v5925, 0.0
        %v6438 = vmax.f32 %v5926, 0.0
        %v6439 = vmax.f32 %v5927, 0.0
        %v6440 = vmax.f32 %v5928, 0.0
        %v6441 = vmax.f32 %v5929, 0.0
        %v6442 = vmax.f32 %v5930, 0.0
        %v6443 = vmax.f32 %v5931, 0.0
        %v6444 = vmax.f32 %v5932, 0.0
        %v6445 = vmax.f32 %v5933, 0.0
        %v6446 = vmax.f32 %v5934, 0.0
        %v6447 = vmax.f32 %v5935, 0.0
        %v6448 = vmax.f32 %v5936, 0.0
        %v6449 = vmax.f32 %v5937, 0.0
        %v6450 = vmax.f32 %v5938, 0.0
        %v6451 = vmax.f32 %v5939, 0.0
        %v6452 = vmax.f32 %v5940, 0.0
        %v6453 = vmax.f32 %v5941, 0.0
        %v6454 = vmax.f32 %v5942, 0.0
        %v6455 = vmax.f32 %v5943, 0.0
        %v6456 = vmax.f32 %v5944, 0.0
        %v6457 = vmax.f32 %v5945, 0.0
        %v6458 = vmax.f32 %v5946, 0.0
        %v6459 = vmax.f32 %v5947, 0.0
        %v6460 = vmax.f32 %v5948, 0.0
        %v6461 = vmax.f32 %v5949, 0.0
        %v6462 = vmax.f32 %v5950, 0.0
        %v6463 = vmax.f32 %v5951, 0.0
        %v6464 = vmax.f32 %v5952, 0.0
        %v6465 = vmax.f32 %v5953, 0.0
        %v6466 = vmax.f32 %v5954, 0.0
        %v6467 = vmax.f32 %v5955, 0.0
        %v6468 = vmax.f32 %v5956, 0.0
        %v6469 = vmax.f32 %v5957, 0.0
        %v6470 = vmax.f32 %v5958, 0.0
        %v6471 = vmax.f32 %v5959, 0.0
        %v6472 = vmax.f32 %v5960, 0.0
        %v6473 = vmax.f32 %v5961, 0.0
        %v6474 = vmax.f32 %v5962, 0.0
        %v6475 = vmax.f32 %v5963, 0.0
        %v6476 = vmax.f32 %v5964, 0.0
        %v6477 = vmax.f32 %v5965, 0.0
        %v6478 = vmax.f32 %v5966, 0.0
        %v6479 = vmax.f32 %v5967, 0.0
        %v6480 = vmax.f32 %v5968, 0.0
        %v6481 = vmax.f32 %v5969, 0.0
        %v6482 = vmax.f32 %v5970, 0.0
        %v6483 = vmax.f32 %v5971, 0.0
        %v6484 = vmax.f32 %v5972, 0.0
        %v6485 = vmax.f32 %v5973, 0.0
        %v6486 = vmax.f32 %v5974, 0.0
        %v6487 = vmax.f32 %v5975, 0.0
        %v6488 = vmax.f32 %v5976, 0.0
        %v6489 = vmax.f32 %v5977, 0.0
        %v6490 = vmax.f32 %v5978, 0.0
        %v6491 = vmax.f32 %v5979, 0.0
        %v6492 = vmax.f32 %v5980, 0.0
        %v6493 = vmax.f32 %v5981, 0.0
        %v6494 = vmax.f32 %v5982, 0.0
        %v6495 = vmax.f32 %v5983, 0.0
        %v6496 = vmax.f32 %v5984, 0.0
        %v6497 = vmax.f32 %v5985, 0.0
        %v6498 = vmax.f32 %v5986, 0.0
        %v6499 = vmax.f32 %v5987, 0.0
        %v6500 = vmax.f32 %v5988, 0.0
        %v6501 = vmax.f32 %v5989, 0.0
        %v6502 = vmax.f32 %v5990, 0.0
        %v6503 = vmax.f32 %v5991, 0.0
        %v6504 = vmax.f32 %v5992, 0.0
        %v6505 = vmax.f32 %v5993, 0.0
        %v6506 = vmax.f32 %v5994, 0.0
        %v6507 = vmax.f32 %v5995, 0.0
        %v6508 = vmax.f32 %v5996, 0.0
        %v6509 = vmax.f32 %v5997, 0.0
        %v6510 = vmax.f32 %v5998, 0.0
        %v6511 = vmax.f32 %v5999, 0.0
        %v6512 = vmax.f32 %v6000, 0.0
        %v6513 = vmax.f32 %v6001, 0.0
        %v6514 = vmax.f32 %v6002, 0.0
        %v6515 = vmax.f32 %v6003, 0.0
        %v6516 = vmax.f32 %v6004, 0.0
        %v6517 = vmax.f32 %v6005, 0.0
        %v6518 = vmax.f32 %v6006, 0.0
        %v6519 = vmax.f32 %v6007, 0.0
        %v6520 = vmax.f32 %v6008, 0.0
        %v6521 = vmax.f32 %v6009, 0.0
        %v6522 = vmax.f32 %v6010, 0.0
        %v6523 = vmax.f32 %v6011, 0.0
        %v6524 = vmax.f32 %v6012, 0.0
        %v6525 = vmax.f32 %v6013, 0.0
        %v6526 = vmax.f32 %v6014, 0.0
        %v6527 = vmax.f32 %v6015, 0.0
        %v6528 = vmax.f32 %v6016, 0.0
        %v6529 = vmax.f32 %v6017, 0.0
        %v6530 = vmax.f32 %v6018, 0.0
        %v6531 = vmax.f32 %v6019, 0.0
        %v6532 = vmax.f32 %v6020, 0.0
        %v6533 = vmax.f32 %v6021, 0.0
        %v6534 = vmax.f32 %v6022, 0.0
        %v6535 = vmax.f32 %v6023, 0.0
        %v6536 = vmax.f32 %v6024, 0.0
        %v6537 = vmax.f32 %v6025, 0.0
        %v6538 = vmax.f32 %v6026, 0.0
        %v6539 = vmax.f32 %v6027, 0.0
        %v6540 = vmax.f32 %v6028, 0.0
        %v6541 = vmax.f32 %v6029, 0.0
        %v6542 = vmax.f32 %v6030, 0.0
        %v6543 = vmax.f32 %v6031, 0.0
        %v6544 = vmax.f32 %v6032, 0.0
        %v6545 = vmax.f32 %v6033, 0.0
        %v6546 = vmax.f32 %v6034, 0.0
        %v6547 = vmax.f32 %v6035, 0.0
        %v6548 = vmax.f32 %v6036, 0.0
        %v6549 = vmax.f32 %v6037, 0.0
        %v6550 = vmax.f32 %v6038, 0.0
        %v6551 = vmax.f32 %v6039, 0.0
        %v6552 = vmax.f32 %v6040, 0.0
        %v6553 = vmax.f32 %v6041, 0.0
        %v6554 = vmax.f32 %v6042, 0.0
        %v6555 = vmax.f32 %v6043, 0.0
        %v6556 = vmax.f32 %v6044, 0.0
        %v6557 = vmax.f32 %v6045, 0.0
        %v6558 = vmax.f32 %v6046, 0.0
        %v6559 = vmax.f32 %v6047, 0.0
        %v6560 = vmax.f32 %v6048, 0.0
        %v6561 = vmax.f32 %v6049, 0.0
        %v6562 = vmax.f32 %v6050, 0.0
        %v6563 = vmax.f32 %v6051, 0.0
        %v6564 = vmax.f32 %v6052, 0.0
        %v6565 = vmax.f32 %v6053, 0.0
        %v6566 = vmax.f32 %v6054, 0.0
        %v6567 = vmax.f32 %v6055, 0.0
        %v6568 = vmax.f32 %v6056, 0.0
        %v6569 = vmax.f32 %v6057, 0.0
        %v6570 = vmax.f32 %v6058, 0.0
        %v6571 = vmax.f32 %v6059, 0.0
        %v6572 = vmax.f32 %v6060, 0.0
        %v6573 = vmax.f32 %v6061, 0.0
        %v6574 = vmax.f32 %v6062, 0.0
        %v6575 = vmax.f32 %v6063, 0.0
        %v6576 = vmax.f32 %v6064, 0.0
        %v6577 = vmax.f32 %v6065, 0.0
        %v6578 = vmax.f32 %v6066, 0.0
        %v6579 = vmax.f32 %v6067, 0.0
        %v6580 = vmax.f32 %v6068, 0.0
        %v6581 = vmax.f32 %v6069, 0.0
        %v6582 = vmax.f32 %v6070, 0.0
        %v6583 = vmax.f32 %v6071, 0.0
        %v6584 = vmax.f32 %v6072, 0.0
        %v6585 = vmax.f32 %v6073, 0.0
        %v6586 = vmax.f32 %v6074, 0.0
        %v6587 = vmax.f32 %v6075, 0.0
        %v6588 = vmax.f32 %v6076, 0.0
        %v6589 = vmax.f32 %v6077, 0.0
        %v6590 = vmax.f32 %v6078, 0.0
        %v6591 = vmax.f32 %v6079, 0.0
        %v6592 = vmax.f32 %v6080, 0.0
        %v6593 = vmax.f32 %v6081, 0.0
        %v6594 = vmax.f32 %v6082, 0.0
        %v6595 = vmax.f32 %v6083, 0.0
        %v6596 = vmax.f32 %v6084, 0.0
        %v6597 = vmax.f32 %v6085, 0.0
        %v6598 = vmax.f32 %v6086, 0.0
        %v6599 = vmax.f32 %v6087, 0.0
        %v6600 = vmax.f32 %v6088, 0.0
        %v6601 = vmax.f32 %v6089, 0.0
        %v6602 = vmax.f32 %v6090, 0.0
        %v6603 = vmax.f32 %v6091, 0.0
        %v6604 = vmax.f32 %v6092, 0.0
        %v6605 = vmax.f32 %v6093, 0.0
        %v6606 = vmax.f32 %v6094, 0.0
        %v6607 = vmax.f32 %v6095, 0.0
        %v6608 = vmax.f32 %v6096, 0.0
        %v6609 = vmax.f32 %v6097, 0.0
        %v6610 = vmax.f32 %v6098, 0.0
        %v6611 = vmax.f32 %v6099, 0.0
        %v6612 = vmax.f32 %v6100, 0.0
        %v6613 = vmax.f32 %v6101, 0.0
        %v6614 = vmax.f32 %v6102, 0.0
        %v6615 = vmax.f32 %v6103, 0.0
        %v6616 = vmax.f32 %v6104, 0.0
        %v6617 = vmax.f32 %v6105, 0.0
        %v6618 = vmax.f32 %v6106, 0.0
        %v6619 = vmax.f32 %v6107, 0.0
        %v6620 = vmax.f32 %v6108, 0.0
        %v6621 = vmax.f32 %v6109, 0.0
        %v6622 = vmax.f32 %v6110, 0.0
        %v6623 = vmax.f32 %v6111, 0.0
        %v6624 = vmax.f32 %v6112, 0.0
        %v6625 = vmax.f32 %v6113, 0.0
        %v6626 = vmax.f32 %v6114, 0.0
        %v6627 = vmax.f32 %v6115, 0.0
        %v6628 = vmax.f32 %v6116, 0.0
        %v6629 = vmax.f32 %v6117, 0.0
        %v6630 = vmax.f32 %v6118, 0.0
        %v6631 = vmax.f32 %v6119, 0.0
        %v6632 = vmax.f32 %v6120, 0.0
        %v6633 = vmax.f32 %v6121, 0.0
        %v6634 = vmax.f32 %v6122, 0.0
        %v6635 = vmax.f32 %v6123, 0.0
        %v6636 = vmax.f32 %v6124, 0.0
        %v6637 = vmax.f32 %v6125, 0.0
        %v6638 = vmax.f32 %v6126, 0.0
        %v6639 = vmax.f32 %v6127, 0.0
        %v6640 = vmax.f32 %v6128, 0.0
        %v6641 = vmax.f32 %v6129, 0.0
        %v6642 = vmax.f32 %v6130, 0.0
        %v6643 = vmax.f32 %v6131, 0.0
        %v6644 = vmax.f32 %v6132, 0.0
        %v6645 = vmax.f32 %v6133, 0.0
        %v6646 = vmax.f32 %v6134, 0.0
        %v6647 = vmax.f32 %v6135, 0.0
        %v6648 = vmax.f32 %v6136, 0.0
        %v6649 = vmax.f32 %v6137, 0.0
        %v6650 = vmax.f32 %v6138, 0.0
        %v6651 = vmax.f32 %v6139, 0.0
        %v6652 = vmax.f32 %v6140, 0.0
        %v6653 = vmax.f32 %v6141, 0.0
        %v6654 = vmax.f32 %v6142, 0.0
        %v6655 = vmax.f32 %v6143, 0.0
        %v6656 = vmax.f32 %v6144, 0.0
        %v6657 = vmax.f32 %v6145, 0.0
        %v6658 = vmax.f32 %v6146, 0.0
        %v6659 = vmax.f32 %v6147, 0.0
        %v6660 = vmax.f32 %v6148, 0.0
        %v6661 = vmax.f32 %v6149, 0.0
        %v6662 = vmax.f32 %v6150, 0.0
        %v6663 = vmax.f32 %v6151, 0.0
        %v6664 = vmax.f32 %v6152, 0.0
        %v6665 = vmax.f32 %v6153, 0.0
        %v6666 = vmax.f32 %v6154, 0.0
        %v6667 = vmax.f32 %v6155, 0.0
        %v6668 = vmax.f32 %v6156, 0.0
        %v6669 = vmax.f32 %v6157, 0.0
        %v6670 = vmax.f32 %v6158, 0.0
        %v6671 = vmax.f32 %v6159, 0.0
        %v6672 = vmax.f32 %v6160, 0.0
        %v6673 = vmax.f32 %v6161, 0.0
        %v6674 = vmax.f32 %v6162, 0.0
        %v6675 = vmax.f32 %v6163, 0.0
        %v6676 = vmax.f32 %v6164, 0.0
        %v6677 = vmax.f32 %v6165, 0.0
        %v6678 = vmax.f32 %v6166, 0.0
        %v6679 = vmax.f32 %v6167, 0.0
        %v6680 = vmax.f32 %v6168, 0.0
        %v6681 = vmax.f32 %v6169, 0.0
        %v6682 = vmax.f32 %v6170, 0.0
        %v6683 = vmax.f32 %v6171, 0.0
        %v6684 = vmax.f32 %v6172, 0.0
        %v6685 = vmax.f32 %v6173, 0.0
        %v6686 = vmax.f32 %v6174, 0.0
        %v6687 = vmax.f32 %v6175, 0.0
        %v6688 = vmax.f32 %v6176, 0.0
        %v6689 = vmax.f32 %v6177, 0.0
        %v6690 = vmax.f32 %v6178, 0.0
        %v6691 = vmax.f32 %v6179, 0.0
        %v6692 = vmax.f32 %v6180, 0.0
        %v6693 = vmax.f32 %v6181, 0.0
        %v6694 = vmax.f32 %v6182, 0.0
        %v6695 = vmax.f32 %v6183, 0.0
        %v6696 = vmax.f32 %v6184, 0.0
        %v6697 = vmax.f32 %v6185, 0.0
        %v6698 = vmax.f32 %v6186, 0.0
        %v6699 = vmax.f32 %v6187, 0.0
        %v6700 = vmax.f32 %v6188, 0.0
        %v6701 = vmax.f32 %v6189, 0.0
        %v6702 = vmax.f32 %v6190, 0.0
        %v6703 = vmax.f32 %v6191, 0.0
        %v6704 = vmax.f32 %v6192, 0.0
        %v6705 = vmax.f32 %v6193, 0.0
        %v6706 = vmax.f32 %v6194, 0.0
        %v6707 = vmax.f32 %v6195, 0.0
        %v6708 = vmax.f32 %v6196, 0.0
        %v6709 = vmax.f32 %v6197, 0.0
        %v6710 = vmax.f32 %v6198, 0.0
        %v6711 = vmax.f32 %v6199, 0.0
        %v6712 = vmax.f32 %v6200, 0.0
        %v6713 = vmax.f32 %v6201, 0.0
        %v6714 = vmax.f32 %v6202, 0.0
        %v6715 = vmax.f32 %v6203, 0.0
        %v6716 = vmax.f32 %v6204, 0.0
        %v6717 = vmax.f32 %v6205, 0.0
        %v6718 = vmax.f32 %v6206, 0.0
        %v6719 = vmax.f32 %v6207, 0.0
        %v6720 = vmax.f32 %v6208, 0.0
        %v6721 = vmax.f32 %v6209, 0.0
        %v6722 = vmax.f32 %v6210, 0.0
        %v6723 = vmax.f32 %v6211, 0.0
        %v6724 = vmax.f32 %v6212, 0.0
        %v6725 = vmax.f32 %v6213, 0.0
        %v6726 = vmax.f32 %v6214, 0.0
        %v6727 = vmax.f32 %v6215, 0.0
        %v6728 = vadd.f32 %v6216, %v6224
        %v6729 = vadd.f32 %v6728, %v6232
        %v6730 = vadd.f32 %v6729, %v6240
        %v6731 = vadd.f32 %v6730, %v6248
        %v6732 = vadd.f32 %v6731, %v6256
        %v6733 = vadd.f32 %v6732, %v6264
        %v6734 = vadd.f32 %v6733, %v6272
        %v6735 = vadd.f32 %v6734, %v6280
        %v6736 = vadd.f32 %v6735, %v6288
        %v6737 = vadd.f32 %v6736, %v6296
        %v6738 = vadd.f32 %v6737, %v6304
        %v6739 = vadd.f32 %v6738, %v6312
        %v6740 = vadd.f32 %v6739, %v6320
        %v6741 = vadd.f32 %v6740, %v6328
        %v6742 = vadd.f32 %v6741, %v6336
        %v6743 = vadd.f32 %v6742, %v6344
        %v6744 = vadd.f32 %v6743, %v6352
        %v6745 = vadd.f32 %v6744, %v6360
        %v6746 = vadd.f32 %v6745, %v6368
        %v6747 = vadd.f32 %v6746, %v6376
        %v6748 = vadd.f32 %v6747, %v6384
        %v6749 = vadd.f32 %v6748, %v6392
        %v6750 = vadd.f32 %v6749, %v6400
        %v6751 = vadd.f32 %v6750, %v6408
        %v6752 = vadd.f32 %v6751, %v6416
        %v6753 = vadd.f32 %v6752, %v6424
        %v6754 = vadd.f32 %v6753, %v6432
        %v6755 = vadd.f32 %v6754, %v6440
        %v6756 = vadd.f32 %v6755, %v6448
        %v6757 = vadd.f32 %v6756, %v6456
        %v6758 = vadd.f32 %v6757, %v6464
        %v6759 = vrot.slane %v6758, 4
        %v6760 = vadd.f32 %v6758, %v6759
        %v6761 = vrot.slane %v6760, 2
        %v6762 = vadd.f32 %v6760, %v6761
        %v6763 = vrot.slane %v6762, 1
        %v6764 = vadd.f32 %v6762, %v6763
        %v6765 = vadd.f32 %v6217, %v6225
        %v6766 = vadd.f32 %v6765, %v6233
        %v6767 = vadd.f32 %v6766, %v6241
        %v6768 = vadd.f32 %v6767, %v6249
        %v6769 = vadd.f32 %v6768, %v6257
        %v6770 = vadd.f32 %v6769, %v6265
        %v6771 = vadd.f32 %v6770, %v6273
        %v6772 = vadd.f32 %v6771, %v6281
        %v6773 = vadd.f32 %v6772, %v6289
        %v6774 = vadd.f32 %v6773, %v6297
        %v6775 = vadd.f32 %v6774, %v6305
        %v6776 = vadd.f32 %v6775, %v6313
        %v6777 = vadd.f32 %v6776, %v6321
        %v6778 = vadd.f32 %v6777, %v6329
        %v6779 = vadd.f32 %v6778, %v6337
        %v6780 = vadd.f32 %v6779, %v6345
        %v6781 = vadd.f32 %v6780, %v6353
        %v6782 = vadd.f32 %v6781, %v6361
        %v6783 = vadd.f32 %v6782, %v6369
        %v6784 = vadd.f32 %v6783, %v6377
        %v6785 = vadd.f32 %v6784, %v6385
        %v6786 = vadd.f32 %v6785, %v6393
        %v6787 = vadd.f32 %v6786, %v6401
        %v6788 = vadd.f32 %v6787, %v6409
        %v6789 = vadd.f32 %v6788, %v6417
        %v6790 = vadd.f32 %v6789, %v6425
        %v6791 = vadd.f32 %v6790, %v6433
        %v6792 = vadd.f32 %v6791, %v6441
        %v6793 = vadd.f32 %v6792, %v6449
        %v6794 = vadd.f32 %v6793, %v6457
        %v6795 = vadd.f32 %v6794, %v6465
        %v6796 = vrot.slane %v6795, 4
        %v6797 = vadd.f32 %v6795, %v6796
        %v6798 = vrot.slane %v6797, 2
        %v6799 = vadd.f32 %v6797, %v6798
        %v6800 = vrot.slane %v6799, 1
        %v6801 = vadd.f32 %v6799, %v6800
        %v6802 = vadd.f32 %v6218, %v6226
        %v6803 = vadd.f32 %v6802, %v6234
        %v6804 = vadd.f32 %v6803, %v6242
        %v6805 = vadd.f32 %v6804, %v6250
        %v6806 = vadd.f32 %v6805, %v6258
        %v6807 = vadd.f32 %v6806, %v6266
        %v6808 = vadd.f32 %v6807, %v6274
        %v6809 = vadd.f32 %v6808, %v6282
        %v6810 = vadd.f32 %v6809, %v6290
        %v6811 = vadd.f32 %v6810, %v6298
        %v6812 = vadd.f32 %v6811, %v6306
        %v6813 = vadd.f32 %v6812, %v6314
        %v6814 = vadd.f32 %v6813, %v6322
        %v6815 = vadd.f32 %v6814, %v6330
        %v6816 = vadd.f32 %v6815, %v6338
        %v6817 = vadd.f32 %v6816, %v6346
        %v6818 = vadd.f32 %v6817, %v6354
        %v6819 = vadd.f32 %v6818, %v6362
        %v6820 = vadd.f32 %v6819, %v6370
        %v6821 = vadd.f32 %v6820, %v6378
        %v6822 = vadd.f32 %v6821, %v6386
        %v6823 = vadd.f32 %v6822, %v6394
        %v6824 = vadd.f32 %v6823, %v6402
        %v6825 = vadd.f32 %v6824, %v6410
        %v6826 = vadd.f32 %v6825, %v6418
        %v6827 = vadd.f32 %v6826, %v6426
        %v6828 = vadd.f32 %v6827, %v6434
        %v6829 = vadd.f32 %v6828, %v6442
        %v6830 = vadd.f32 %v6829, %v6450
        %v6831 = vadd.f32 %v6830, %v6458
        %v6832 = vadd.f32 %v6831, %v6466
        %v6833 = vrot.slane %v6832, 4
        %v6834 = vadd.f32 %v6832, %v6833
        %v6835 = vrot.slane %v6834, 2
        %v6836 = vadd.f32 %v6834, %v6835
        %v6837 = vrot.slane %v6836, 1
        %v6838 = vadd.f32 %v6836, %v6837
        %v6839 = vadd.f32 %v6219, %v6227
        %v6840 = vadd.f32 %v6839, %v6235
        %v6841 = vadd.f32 %v6840, %v6243
        %v6842 = vadd.f32 %v6841, %v6251
        %v6843 = vadd.f32 %v6842, %v6259
        %v6844 = vadd.f32 %v6843, %v6267
        %v6845 = vadd.f32 %v6844, %v6275
        %v6846 = vadd.f32 %v6845, %v6283
        %v6847 = vadd.f32 %v6846, %v6291
        %v6848 = vadd.f32 %v6847, %v6299
        %v6849 = vadd.f32 %v6848, %v6307
        %v6850 = vadd.f32 %v6849, %v6315
        %v6851 = vadd.f32 %v6850, %v6323
        %v6852 = vadd.f32 %v6851, %v6331
        %v6853 = vadd.f32 %v6852, %v6339
        %v6854 = vadd.f32 %v6853, %v6347
        %v6855 = vadd.f32 %v6854, %v6355
        %v6856 = vadd.f32 %v6855, %v6363
        %v6857 = vadd.f32 %v6856, %v6371
        %v6858 = vadd.f32 %v6857, %v6379
        %v6859 = vadd.f32 %v6858, %v6387
        %v6860 = vadd.f32 %v6859, %v6395
        %v6861 = vadd.f32 %v6860, %v6403
        %v6862 = vadd.f32 %v6861, %v6411
        %v6863 = vadd.f32 %v6862, %v6419
        %v6864 = vadd.f32 %v6863, %v6427
        %v6865 = vadd.f32 %v6864, %v6435
        %v6866 = vadd.f32 %v6865, %v6443
        %v6867 = vadd.f32 %v6866, %v6451
        %v6868 = vadd.f32 %v6867, %v6459
        %v6869 = vadd.f32 %v6868, %v6467
        %v6870 = vrot.slane %v6869, 4
        %v6871 = vadd.f32 %v6869, %v6870
        %v6872 = vrot.slane %v6871, 2
        %v6873 = vadd.f32 %v6871, %v6872
        %v6874 = vrot.slane %v6873, 1
        %v6875 = vadd.f32 %v6873, %v6874
        %v6876 = vadd.f32 %v6220, %v6228
        %v6877 = vadd.f32 %v6876, %v6236
        %v6878 = vadd.f32 %v6877, %v6244
        %v6879 = vadd.f32 %v6878, %v6252
        %v6880 = vadd.f32 %v6879, %v6260
        %v6881 = vadd.f32 %v6880, %v6268
        %v6882 = vadd.f32 %v6881, %v6276
        %v6883 = vadd.f32 %v6882, %v6284
        %v6884 = vadd.f32 %v6883, %v6292
        %v6885 = vadd.f32 %v6884, %v6300
        %v6886 = vadd.f32 %v6885, %v6308
        %v6887 = vadd.f32 %v6886, %v6316
        %v6888 = vadd.f32 %v6887, %v6324
        %v6889 = vadd.f32 %v6888, %v6332
        %v6890 = vadd.f32 %v6889, %v6340
        %v6891 = vadd.f32 %v6890, %v6348
        %v6892 = vadd.f32 %v6891, %v6356
        %v6893 = vadd.f32 %v6892, %v6364
        %v6894 = vadd.f32 %v6893, %v6372
        %v6895 = vadd.f32 %v6894, %v6380
        %v6896 = vadd.f32 %v6895, %v6388
        %v6897 = vadd.f32 %v6896, %v6396
        %v6898 = vadd.f32 %v6897, %v6404
        %v6899 = vadd.f32 %v6898, %v6412
        %v6900 = vadd.f32 %v6899, %v6420
        %v6901 = vadd.f32 %v6900, %v6428
        %v6902 = vadd.f32 %v6901, %v6436
        %v6903 = vadd.f32 %v6902, %v6444
        %v6904 = vadd.f32 %v6903, %v6452
        %v6905 = vadd.f32 %v6904, %v6460
        %v6906 = vadd.f32 %v6905, %v6468
        %v6907 = vrot.slane %v6906, 4
        %v6908 = vadd.f32 %v6906, %v6907
        %v6909 = vrot.slane %v6908, 2
        %v6910 = vadd.f32 %v6908, %v6909
        %v6911 = vrot.slane %v6910, 1
        %v6912 = vadd.f32 %v6910, %v6911
        %v6913 = vadd.f32 %v6221, %v6229
        %v6914 = vadd.f32 %v6913, %v6237
        %v6915 = vadd.f32 %v6914, %v6245
        %v6916 = vadd.f32 %v6915, %v6253
        %v6917 = vadd.f32 %v6916, %v6261
        %v6918 = vadd.f32 %v6917, %v6269
        %v6919 = vadd.f32 %v6918, %v6277
        %v6920 = vadd.f32 %v6919, %v6285
        %v6921 = vadd.f32 %v6920, %v6293
        %v6922 = vadd.f32 %v6921, %v6301
        %v6923 = vadd.f32 %v6922, %v6309
        %v6924 = vadd.f32 %v6923, %v6317
        %v6925 = vadd.f32 %v6924, %v6325
        %v6926 = vadd.f32 %v6925, %v6333
        %v6927 = vadd.f32 %v6926, %v6341
        %v6928 = vadd.f32 %v6927, %v6349
        %v6929 = vadd.f32 %v6928, %v6357
        %v6930 = vadd.f32 %v6929, %v6365
        %v6931 = vadd.f32 %v6930, %v6373
        %v6932 = vadd.f32 %v6931, %v6381
        %v6933 = vadd.f32 %v6932, %v6389
        %v6934 = vadd.f32 %v6933, %v6397
        %v6935 = vadd.f32 %v6934, %v6405
        %v6936 = vadd.f32 %v6935, %v6413
        %v6937 = vadd.f32 %v6936, %v6421
        %v6938 = vadd.f32 %v6937, %v6429
        %v6939 = vadd.f32 %v6938, %v6437
        %v6940 = vadd.f32 %v6939, %v6445
        %v6941 = vadd.f32 %v6940, %v6453
        %v6942 = vadd.f32 %v6941, %v6461
        %v6943 = vadd.f32 %v6942, %v6469
        %v6944 = vrot.slane %v6943, 4
        %v6945 = vadd.f32 %v6943, %v6944
        %v6946 = vrot.slane %v6945, 2
        %v6947 = vadd.f32 %v6945, %v6946
        %v6948 = vrot.slane %v6947, 1
        %v6949 = vadd.f32 %v6947, %v6948
        %v6950 = vadd.f32 %v6222, %v6230
        %v6951 = vadd.f32 %v6950, %v6238
        %v6952 = vadd.f32 %v6951, %v6246
        %v6953 = vadd.f32 %v6952, %v6254
        %v6954 = vadd.f32 %v6953, %v6262
        %v6955 = vadd.f32 %v6954, %v6270
        %v6956 = vadd.f32 %v6955, %v6278
        %v6957 = vadd.f32 %v6956, %v6286
        %v6958 = vadd.f32 %v6957, %v6294
        %v6959 = vadd.f32 %v6958, %v6302
        %v6960 = vadd.f32 %v6959, %v6310
        %v6961 = vadd.f32 %v6960, %v6318
        %v6962 = vadd.f32 %v6961, %v6326
        %v6963 = vadd.f32 %v6962, %v6334
        %v6964 = vadd.f32 %v6963, %v6342
        %v6965 = vadd.f32 %v6964, %v6350
        %v6966 = vadd.f32 %v6965, %v6358
        %v6967 = vadd.f32 %v6966, %v6366
        %v6968 = vadd.f32 %v6967, %v6374
        %v6969 = vadd.f32 %v6968, %v6382
        %v6970 = vadd.f32 %v6969, %v6390
        %v6971 = vadd.f32 %v6970, %v6398
        %v6972 = vadd.f32 %v6971, %v6406
        %v6973 = vadd.f32 %v6972, %v6414
        %v6974 = vadd.f32 %v6973, %v6422
        %v6975 = vadd.f32 %v6974, %v6430
        %v6976 = vadd.f32 %v6975, %v6438
        %v6977 = vadd.f32 %v6976, %v6446
        %v6978 = vadd.f32 %v6977, %v6454
        %v6979 = vadd.f32 %v6978, %v6462
        %v6980 = vadd.f32 %v6979, %v6470
        %v6981 = vrot.slane %v6980, 4
        %v6982 = vadd.f32 %v6980, %v6981
        %v6983 = vrot.slane %v6982, 2
        %v6984 = vadd.f32 %v6982, %v6983
        %v6985 = vrot.slane %v6984, 1
        %v6986 = vadd.f32 %v6984, %v6985
        %v6987 = vadd.f32 %v6223, %v6231
        %v6988 = vadd.f32 %v6987, %v6239
        %v6989 = vadd.f32 %v6988, %v6247
        %v6990 = vadd.f32 %v6989, %v6255
        %v6991 = vadd.f32 %v6990, %v6263
        %v6992 = vadd.f32 %v6991, %v6271
        %v6993 = vadd.f32 %v6992, %v6279
        %v6994 = vadd.f32 %v6993, %v6287
        %v6995 = vadd.f32 %v6994, %v6295
        %v6996 = vadd.f32 %v6995, %v6303
        %v6997 = vadd.f32 %v6996, %v6311
        %v6998 = vadd.f32 %v6997, %v6319
        %v6999 = vadd.f32 %v6998, %v6327
        %v7000 = vadd.f32 %v6999, %v6335
        %v7001 = vadd.f32 %v7000, %v6343
        %v7002 = vadd.f32 %v7001, %v6351
        %v7003 = vadd.f32 %v7002, %v6359
        %v7004 = vadd.f32 %v7003, %v6367
        %v7005 = vadd.f32 %v7004, %v6375
        %v7006 = vadd.f32 %v7005, %v6383
        %v7007 = vadd.f32 %v7006, %v6391
        %v7008 = vadd.f32 %v7007, %v6399
        %v7009 = vadd.f32 %v7008, %v6407
        %v7010 = vadd.f32 %v7009, %v6415
        %v7011 = vadd.f32 %v7010, %v6423
        %v7012 = vadd.f32 %v7011, %v6431
        %v7013 = vadd.f32 %v7012, %v6439
        %v7014 = vadd.f32 %v7013, %v6447
        %v7015 = vadd.f32 %v7014, %v6455
        %v7016 = vadd.f32 %v7015, %v6463
        %v7017 = vadd.f32 %v7016, %v6471
        %v7018 = vrot.slane %v7017, 4
        %v7019 = vadd.f32 %v7017, %v7018
        %v7020 = vrot.slane %v7019, 2
        %v7021 = vadd.f32 %v7019, %v7020
        %v7022 = vrot.slane %v7021, 1
        %v7023 = vadd.f32 %v7021, %v7022
        %v7024 = vadd.f32 %v6472, %v6480
        %v7025 = vadd.f32 %v7024, %v6488
        %v7026 = vadd.f32 %v7025, %v6496
        %v7027 = vadd.f32 %v7026, %v6504
        %v7028 = vadd.f32 %v7027, %v6512
        %v7029 = vadd.f32 %v7028, %v6520
        %v7030 = vadd.f32 %v7029, %v6528
        %v7031 = vadd.f32 %v7030, %v6536
        %v7032 = vadd.f32 %v7031, %v6544
        %v7033 = vadd.f32 %v7032, %v6552
        %v7034 = vadd.f32 %v7033, %v6560
        %v7035 = vadd.f32 %v7034, %v6568
        %v7036 = vadd.f32 %v7035, %v6576
        %v7037 = vadd.f32 %v7036, %v6584
        %v7038 = vadd.f32 %v7037, %v6592
        %v7039 = vadd.f32 %v7038, %v6600
        %v7040 = vadd.f32 %v7039, %v6608
        %v7041 = vadd.f32 %v7040, %v6616
        %v7042 = vadd.f32 %v7041, %v6624
        %v7043 = vadd.f32 %v7042, %v6632
        %v7044 = vadd.f32 %v7043, %v6640
        %v7045 = vadd.f32 %v7044, %v6648
        %v7046 = vadd.f32 %v7045, %v6656
        %v7047 = vadd.f32 %v7046, %v6664
        %v7048 = vadd.f32 %v7047, %v6672
        %v7049 = vadd.f32 %v7048, %v6680
        %v7050 = vadd.f32 %v7049, %v6688
        %v7051 = vadd.f32 %v7050, %v6696
        %v7052 = vadd.f32 %v7051, %v6704
        %v7053 = vadd.f32 %v7052, %v6712
        %v7054 = vadd.f32 %v7053, %v6720
        %v7055 = vrot.slane %v7054, 4
        %v7056 = vadd.f32 %v7054, %v7055
        %v7057 = vrot.slane %v7056, 2
        %v7058 = vadd.f32 %v7056, %v7057
        %v7059 = vrot.slane %v7058, 1
        %v7060 = vadd.f32 %v7058, %v7059
        %v7061 = vadd.f32 %v6473, %v6481
        %v7062 = vadd.f32 %v7061, %v6489
        %v7063 = vadd.f32 %v7062, %v6497
        %v7064 = vadd.f32 %v7063, %v6505
        %v7065 = vadd.f32 %v7064, %v6513
        %v7066 = vadd.f32 %v7065, %v6521
        %v7067 = vadd.f32 %v7066, %v6529
        %v7068 = vadd.f32 %v7067, %v6537
        %v7069 = vadd.f32 %v7068, %v6545
        %v7070 = vadd.f32 %v7069, %v6553
        %v7071 = vadd.f32 %v7070, %v6561
        %v7072 = vadd.f32 %v7071, %v6569
        %v7073 = vadd.f32 %v7072, %v6577
        %v7074 = vadd.f32 %v7073, %v6585
        %v7075 = vadd.f32 %v7074, %v6593
        %v7076 = vadd.f32 %v7075, %v6601
        %v7077 = vadd.f32 %v7076, %v6609
        %v7078 = vadd.f32 %v7077, %v6617
        %v7079 = vadd.f32 %v7078, %v6625
        %v7080 = vadd.f32 %v7079, %v6633
        %v7081 = vadd.f32 %v7080, %v6641
        %v7082 = vadd.f32 %v7081, %v6649
        %v7083 = vadd.f32 %v7082, %v6657
        %v7084 = vadd.f32 %v7083, %v6665
        %v7085 = vadd.f32 %v7084, %v6673
        %v7086 = vadd.f32 %v7085, %v6681
        %v7087 = vadd.f32 %v7086, %v6689
        %v7088 = vadd.f32 %v7087, %v6697
        %v7089 = vadd.f32 %v7088, %v6705
        %v7090 = vadd.f32 %v7089, %v6713
        %v7091 = vadd.f32 %v7090, %v6721
        %v7092 = vrot.slane %v7091, 4
        %v7093 = vadd.f32 %v7091, %v7092
        %v7094 = vrot.slane %v7093, 2
        %v7095 = vadd.f32 %v7093, %v7094
        %v7096 = vrot.slane %v7095, 1
        %v7097 = vadd.f32 %v7095, %v7096
        %v7098 = vadd.f32 %v6474, %v6482
        %v7099 = vadd.f32 %v7098, %v6490
        %v7100 = vadd.f32 %v7099, %v6498
        %v7101 = vadd.f32 %v7100, %v6506
        %v7102 = vadd.f32 %v7101, %v6514
        %v7103 = vadd.f32 %v7102, %v6522
        %v7104 = vadd.f32 %v7103, %v6530
        %v7105 = vadd.f32 %v7104, %v6538
        %v7106 = vadd.f32 %v7105, %v6546
        %v7107 = vadd.f32 %v7106, %v6554
        %v7108 = vadd.f32 %v7107, %v6562
        %v7109 = vadd.f32 %v7108, %v6570
        %v7110 = vadd.f32 %v7109, %v6578
        %v7111 = vadd.f32 %v7110, %v6586
        %v7112 = vadd.f32 %v7111, %v6594
        %v7113 = vadd.f32 %v7112, %v6602
        %v7114 = vadd.f32 %v7113, %v6610
        %v7115 = vadd.f32 %v7114, %v6618
        %v7116 = vadd.f32 %v7115, %v6626
        %v7117 = vadd.f32 %v7116, %v6634
        %v7118 = vadd.f32 %v7117, %v6642
        %v7119 = vadd.f32 %v7118, %v6650
        %v7120 = vadd.f32 %v7119, %v6658
        %v7121 = vadd.f32 %v7120, %v6666
        %v7122 = vadd.f32 %v7121, %v6674
        %v7123 = vadd.f32 %v7122, %v6682
        %v7124 = vadd.f32 %v7123, %v6690
        %v7125 = vadd.f32 %v7124, %v6698
        %v7126 = vadd.f32 %v7125, %v6706
        %v7127 = vadd.f32 %v7126, %v6714
        %v7128 = vadd.f32 %v7127, %v6722
        %v7129 = vrot.slane %v7128, 4
        %v7130 = vadd.f32 %v7128, %v7129
        %v7131 = vrot.slane %v7130, 2
        %v7132 = vadd.f32 %v7130, %v7131
        %v7133 = vrot.slane %v7132, 1
        %v7134 = vadd.f32 %v7132, %v7133
        %v7135 = vadd.f32 %v6475, %v6483
        %v7136 = vadd.f32 %v7135, %v6491
        %v7137 = vadd.f32 %v7136, %v6499
        %v7138 = vadd.f32 %v7137, %v6507
        %v7139 = vadd.f32 %v7138, %v6515
        %v7140 = vadd.f32 %v7139, %v6523
        %v7141 = vadd.f32 %v7140, %v6531
        %v7142 = vadd.f32 %v7141, %v6539
        %v7143 = vadd.f32 %v7142, %v6547
        %v7144 = vadd.f32 %v7143, %v6555
        %v7145 = vadd.f32 %v7144, %v6563
        %v7146 = vadd.f32 %v7145, %v6571
        %v7147 = vadd.f32 %v7146, %v6579
        %v7148 = vadd.f32 %v7147, %v6587
        %v7149 = vadd.f32 %v7148, %v6595
        %v7150 = vadd.f32 %v7149, %v6603
        %v7151 = vadd.f32 %v7150, %v6611
        %v7152 = vadd.f32 %v7151, %v6619
        %v7153 = vadd.f32 %v7152, %v6627
        %v7154 = vadd.f32 %v7153, %v6635
        %v7155 = vadd.f32 %v7154, %v6643
        %v7156 = vadd.f32 %v7155, %v6651
        %v7157 = vadd.f32 %v7156, %v6659
        %v7158 = vadd.f32 %v7157, %v6667
        %v7159 = vadd.f32 %v7158, %v6675
        %v7160 = vadd.f32 %v7159, %v6683
        %v7161 = vadd.f32 %v7160, %v6691
        %v7162 = vadd.f32 %v7161, %v6699
        %v7163 = vadd.f32 %v7162, %v6707
        %v7164 = vadd.f32 %v7163, %v6715
        %v7165 = vadd.f32 %v7164, %v6723
        %v7166 = vrot.slane %v7165, 4
        %v7167 = vadd.f32 %v7165, %v7166
        %v7168 = vrot.slane %v7167, 2
        %v7169 = vadd.f32 %v7167, %v7168
        %v7170 = vrot.slane %v7169, 1
        %v7171 = vadd.f32 %v7169, %v7170
        %v7172 = vadd.f32 %v6476, %v6484
        %v7173 = vadd.f32 %v7172, %v6492
        %v7174 = vadd.f32 %v7173, %v6500
        %v7175 = vadd.f32 %v7174, %v6508
        %v7176 = vadd.f32 %v7175, %v6516
        %v7177 = vadd.f32 %v7176, %v6524
        %v7178 = vadd.f32 %v7177, %v6532
        %v7179 = vadd.f32 %v7178, %v6540
        %v7180 = vadd.f32 %v7179, %v6548
        %v7181 = vadd.f32 %v7180, %v6556
        %v7182 = vadd.f32 %v7181, %v6564
        %v7183 = vadd.f32 %v7182, %v6572
        %v7184 = vadd.f32 %v7183, %v6580
        %v7185 = vadd.f32 %v7184, %v6588
        %v7186 = vadd.f32 %v7185, %v6596
        %v7187 = vadd.f32 %v7186, %v6604
        %v7188 = vadd.f32 %v7187, %v6612
        %v7189 = vadd.f32 %v7188, %v6620
        %v7190 = vadd.f32 %v7189, %v6628
        %v7191 = vadd.f32 %v7190, %v6636
        %v7192 = vadd.f32 %v7191, %v6644
        %v7193 = vadd.f32 %v7192, %v6652
        %v7194 = vadd.f32 %v7193, %v6660
        %v7195 = vadd.f32 %v7194, %v6668
        %v7196 = vadd.f32 %v7195, %v6676
        %v7197 = vadd.f32 %v7196, %v6684
        %v7198 = vadd.f32 %v7197, %v6692
        %v7199 = vadd.f32 %v7198, %v6700
        %v7200 = vadd.f32 %v7199, %v6708
        %v7201 = vadd.f32 %v7200, %v6716
        %v7202 = vadd.f32 %v7201, %v6724
        %v7203 = vrot.slane %v7202, 4
        %v7204 = vadd.f32 %v7202, %v7203
        %v7205 = vrot.slane %v7204, 2
        %v7206 = vadd.f32 %v7204, %v7205
        %v7207 = vrot.slane %v7206, 1
        %v7208 = vadd.f32 %v7206, %v7207
        %v7209 = vadd.f32 %v6477, %v6485
        %v7210 = vadd.f32 %v7209, %v6493
        %v7211 = vadd.f32 %v7210, %v6501
        %v7212 = vadd.f32 %v7211, %v6509
        %v7213 = vadd.f32 %v7212, %v6517
        %v7214 = vadd.f32 %v7213, %v6525
        %v7215 = vadd.f32 %v7214, %v6533
        %v7216 = vadd.f32 %v7215, %v6541
        %v7217 = vadd.f32 %v7216, %v6549
        %v7218 = vadd.f32 %v7217, %v6557
        %v7219 = vadd.f32 %v7218, %v6565
        %v7220 = vadd.f32 %v7219, %v6573
        %v7221 = vadd.f32 %v7220, %v6581
        %v7222 = vadd.f32 %v7221, %v6589
        %v7223 = vadd.f32 %v7222, %v6597
        %v7224 = vadd.f32 %v7223, %v6605
        %v7225 = vadd.f32 %v7224, %v6613
        %v7226 = vadd.f32 %v7225, %v6621
        %v7227 = vadd.f32 %v7226, %v6629
        %v7228 = vadd.f32 %v7227, %v6637
        %v7229 = vadd.f32 %v7228, %v6645
        %v7230 = vadd.f32 %v7229, %v6653
        %v7231 = vadd.f32 %v7230, %v6661
        %v7232 = vadd.f32 %v7231, %v6669
        %v7233 = vadd.f32 %v7232, %v6677
        %v7234 = vadd.f32 %v7233, %v6685
        %v7235 = vadd.f32 %v7234, %v6693
        %v7236 = vadd.f32 %v7235, %v6701
        %v7237 = vadd.f32 %v7236, %v6709
        %v7238 = vadd.f32 %v7237, %v6717
        %v7239 = vadd.f32 %v7238, %v6725
        %v7240 = vrot.slane %v7239, 4
        %v7241 = vadd.f32 %v7239, %v7240
        %v7242 = vrot.slane %v7241, 2
        %v7243 = vadd.f32 %v7241, %v7242
        %v7244 = vrot.slane %v7243, 1
        %v7245 = vadd.f32 %v7243, %v7244
        %v7246 = vadd.f32 %v6478, %v6486
        %v7247 = vadd.f32 %v7246, %v6494
        %v7248 = vadd.f32 %v7247, %v6502
        %v7249 = vadd.f32 %v7248, %v6510
        %v7250 = vadd.f32 %v7249, %v6518
        %v7251 = vadd.f32 %v7250, %v6526
        %v7252 = vadd.f32 %v7251, %v6534
        %v7253 = vadd.f32 %v7252, %v6542
        %v7254 = vadd.f32 %v7253, %v6550
        %v7255 = vadd.f32 %v7254, %v6558
        %v7256 = vadd.f32 %v7255, %v6566
        %v7257 = vadd.f32 %v7256, %v6574
        %v7258 = vadd.f32 %v7257, %v6582
        %v7259 = vadd.f32 %v7258, %v6590
        %v7260 = vadd.f32 %v7259, %v6598
        %v7261 = vadd.f32 %v7260, %v6606
        %v7262 = vadd.f32 %v7261, %v6614
        %v7263 = vadd.f32 %v7262, %v6622
        %v7264 = vadd.f32 %v7263, %v6630
        %v7265 = vadd.f32 %v7264, %v6638
        %v7266 = vadd.f32 %v7265, %v6646
        %v7267 = vadd.f32 %v7266, %v6654
        %v7268 = vadd.f32 %v7267, %v6662
        %v7269 = vadd.f32 %v7268, %v6670
        %v7270 = vadd.f32 %v7269, %v6678
        %v7271 = vadd.f32 %v7270, %v6686
        %v7272 = vadd.f32 %v7271, %v6694
        %v7273 = vadd.f32 %v7272, %v6702
        %v7274 = vadd.f32 %v7273, %v6710
        %v7275 = vadd.f32 %v7274, %v6718
        %v7276 = vadd.f32 %v7275, %v6726
        %v7277 = vrot.slane %v7276, 4
        %v7278 = vadd.f32 %v7276, %v7277
        %v7279 = vrot.slane %v7278, 2
        %v7280 = vadd.f32 %v7278, %v7279
        %v7281 = vrot.slane %v7280, 1
        %v7282 = vadd.f32 %v7280, %v7281
        %v7283 = vadd.f32 %v6479, %v6487
        %v7284 = vadd.f32 %v7283, %v6495
        %v7285 = vadd.f32 %v7284, %v6503
        %v7286 = vadd.f32 %v7285, %v6511
        %v7287 = vadd.f32 %v7286, %v6519
        %v7288 = vadd.f32 %v7287, %v6527
        %v7289 = vadd.f32 %v7288, %v6535
        %v7290 = vadd.f32 %v7289, %v6543
        %v7291 = vadd.f32 %v7290, %v6551
        %v7292 = vadd.f32 %v7291, %v6559
        %v7293 = vadd.f32 %v7292, %v6567
        %v7294 = vadd.f32 %v7293, %v6575
        %v7295 = vadd.f32 %v7294, %v6583
        %v7296 = vadd.f32 %v7295, %v6591
        %v7297 = vadd.f32 %v7296, %v6599
        %v7298 = vadd.f32 %v7297, %v6607
        %v7299 = vadd.f32 %v7298, %v6615
        %v7300 = vadd.f32 %v7299, %v6623
        %v7301 = vadd.f32 %v7300, %v6631
        %v7302 = vadd.f32 %v7301, %v6639
        %v7303 = vadd.f32 %v7302, %v6647
        %v7304 = vadd.f32 %v7303, %v6655
        %v7305 = vadd.f32 %v7304, %v6663
        %v7306 = vadd.f32 %v7305, %v6671
        %v7307 = vadd.f32 %v7306, %v6679
        %v7308 = vadd.f32 %v7307, %v6687
        %v7309 = vadd.f32 %v7308, %v6695
        %v7310 = vadd.f32 %v7309, %v6703
        %v7311 = vadd.f32 %v7310, %v6711
        %v7312 = vadd.f32 %v7311, %v6719
        %v7313 = vadd.f32 %v7312, %v6727
        %v7314 = vrot.slane %v7313, 4
        %v7315 = vadd.f32 %v7313, %v7314
        %v7316 = vrot.slane %v7315, 2
        %v7317 = vadd.f32 %v7315, %v7316
        %v7318 = vrot.slane %v7317, 1
        %v7319 = vadd.f32 %v7317, %v7318
        %v7320 = vmul.f32 %v6764, 0.00390625
        %v7321 = vmul.f32 %v6801, 0.00390625
        %v7322 = vmul.f32 %v6838, 0.00390625
        %v7323 = vmul.f32 %v6875, 0.00390625
        %v7324 = vmul.f32 %v6912, 0.00390625
        %v7325 = vmul.f32 %v6949, 0.00390625
        %v7326 = vmul.f32 %v6986, 0.00390625
        %v7327 = vmul.f32 %v7023, 0.00390625
        %v7328 = vmul.f32 %v7060, 0.00390625
        %v7329 = vmul.f32 %v7097, 0.00390625
        %v7330 = vmul.f32 %v7134, 0.00390625
        %v7331 = vmul.f32 %v7171, 0.00390625
        %v7332 = vmul.f32 %v7208, 0.00390625
        %v7333 = vmul.f32 %v7245, 0.00390625
        %v7334 = vmul.f32 %v7282, 0.00390625
        %v7335 = vmul.f32 %v7319, 0.00390625
        %v7336 = vpack.c.bf16 %v7320, %v7320
        %v7337 = vpack.c.bf16 %v7321, %v7321
        %v7338 = vpack.c.bf16 %v7322, %v7322
        %v7339 = vpack.c.bf16 %v7323, %v7323
        %v7340 = vpack.c.bf16 %v7324, %v7324
        %v7341 = vpack.c.bf16 %v7325, %v7325
        %v7342 = vpack.c.bf16 %v7326, %v7326
        %v7343 = vpack.c.bf16 %v7327, %v7327
        %v7344 = vpack.c.bf16 %v7328, %v7328
        %v7345 = vpack.c.bf16 %v7329, %v7329
        %v7346 = vpack.c.bf16 %v7330, %v7330
        %v7347 = vpack.c.bf16 %v7331, %v7331
        %v7348 = vpack.c.bf16 %v7332, %v7332
        %v7349 = vpack.c.bf16 %v7333, %v7333
        %v7350 = vpack.c.bf16 %v7334, %v7334
        %v7351 = vpack.c.bf16 %v7335, %v7335
        %v7368 = vcombine.low %v7336, %v7337
        %v7369 = vcombine.low %v7338, %v7339
        %v7370 = vcombine.low %v7340, %v7341
        %v7371 = vcombine.low %v7342, %v7343
        %v7373 = vunpack.c.l.s4 1966171168
        %v7374 = vunpack.c.0.s8 %v7373
        %v7375 = vlaneseq
        %v7376 = vshrl.u32 %v7375, 7
        %v7377 = vsub.s32 %v7374, %v7376
        %v7378 = vrot.slane %v7368, %v7377
        %v7380 = vunpack.c.l.s4 1966171168
        %v7381 = vunpack.c.0.s8 %v7380
        %v7382 = vlaneseq
        %v7383 = vshrl.u32 %v7382, 7
        %v7384 = vsub.s32 %v7381, %v7383
        %v7385 = vrot.slane %v7369, %v7384
        %v7387 = vunpack.c.l.s4 1966171168
        %v7388 = vunpack.c.0.s8 %v7387
        %v7389 = vlaneseq
        %v7390 = vshrl.u32 %v7389, 7
        %v7391 = vsub.s32 %v7388, %v7390
        %v7392 = vrot.slane %v7370, %v7391
        %v7394 = vunpack.c.l.s4 1966171168
        %v7395 = vunpack.c.0.s8 %v7394
        %v7396 = vlaneseq
        %v7397 = vshrl.u32 %v7396, 7
        %v7398 = vsub.s32 %v7395, %v7397
        %v7399 = vrot.slane %v7371, %v7398
        %v7400 = vcombine.low %v7378, %v7385
        %v7401 = vcombine.low %v7392, %v7399
        %v7403 = vunpack.c.l.s4 1966171168
        %v7404 = vunpack.c.0.s8 %v7403
        %v7405 = vlaneseq
        %v7406 = vshrl.u32 %v7405, 7
        %v7407 = vsub.s32 %v7404, %v7406
        %v7408 = vrot.slane %v7400, %v7407
        %v7410 = vunpack.c.l.s4 1966171168
        %v7411 = vunpack.c.0.s8 %v7410
        %v7412 = vlaneseq
        %v7413 = vshrl.u32 %v7412, 7
        %v7414 = vsub.s32 %v7411, %v7413
        %v7415 = vrot.slane %v7401, %v7414
        %v7416 = vcombine.low %v7408, %v7415
        %v7417 = vcombine.low %v7344, %v7345
        %v7418 = vcombine.low %v7346, %v7347
        %v7419 = vcombine.low %v7348, %v7349
        %v7420 = vcombine.low %v7350, %v7351
        %v7422 = vunpack.c.l.s4 1966171168
        %v7423 = vunpack.c.0.s8 %v7422
        %v7424 = vlaneseq
        %v7425 = vshrl.u32 %v7424, 7
        %v7426 = vsub.s32 %v7423, %v7425
        %v7427 = vrot.slane %v7417, %v7426
        %v7429 = vunpack.c.l.s4 1966171168
        %v7430 = vunpack.c.0.s8 %v7429
        %v7431 = vlaneseq
        %v7432 = vshrl.u32 %v7431, 7
        %v7433 = vsub.s32 %v7430, %v7432
        %v7434 = vrot.slane %v7418, %v7433
        %v7436 = vunpack.c.l.s4 1966171168
        %v7437 = vunpack.c.0.s8 %v7436
        %v7438 = vlaneseq
        %v7439 = vshrl.u32 %v7438, 7
        %v7440 = vsub.s32 %v7437, %v7439
        %v7441 = vrot.slane %v7419, %v7440
        %v7443 = vunpack.c.l.s4 1966171168
        %v7444 = vunpack.c.0.s8 %v7443
        %v7445 = vlaneseq
        %v7446 = vshrl.u32 %v7445, 7
        %v7447 = vsub.s32 %v7444, %v7446
        %v7448 = vrot.slane %v7420, %v7447
        %v7449 = vcombine.low %v7427, %v7434
        %v7450 = vcombine.low %v7441, %v7448
        %v7452 = vunpack.c.l.s4 1966171168
        %v7453 = vunpack.c.0.s8 %v7452
        %v7454 = vlaneseq
        %v7455 = vshrl.u32 %v7454, 7
        %v7456 = vsub.s32 %v7453, %v7455
        %v7457 = vrot.slane %v7449, %v7456
        %v7459 = vunpack.c.l.s4 1966171168
        %v7460 = vunpack.c.0.s8 %v7459
        %v7461 = vlaneseq
        %v7462 = vshrl.u32 %v7461, 7
        %v7463 = vsub.s32 %v7460, %v7462
        %v7464 = vrot.slane %v7450, %v7463
        %v7465 = vcombine.low %v7457, %v7464
        %v7466 = vcombine.high %v7416, %v7416
        %v7468 = vunpack.c.l.s4 1935823168
        %v7469 = vunpack.c.0.s8 %v7468
        %v7470 = vlaneseq
        %v7471 = vshrl.u32 %v7470, 7
        %v7472 = vsub.s32 %v7469, %v7471
        %v7473 = vrot.slane %v7416, %v7472
        %v7475 = vunpack.c.l.s4 1935823168
        %v7476 = vunpack.c.0.s8 %v7475
        %v7477 = vlaneseq
        %v7478 = vshrl.u32 %v7477, 7
        %v7479 = vsub.s32 %v7476, %v7478
        %v7480 = vrot.slane %v7466, %v7479
        %v7481 = vcombine.high %v7473, %v7473
        %v7482 = vcombine.high %v7480, %v7480
        %v7484 = vunpack.c.l.s4 1935823168
        %v7485 = vunpack.c.0.s8 %v7484
        %v7486 = vlaneseq
        %v7487 = vshrl.u32 %v7486, 7
        %v7488 = vsub.s32 %v7485, %v7487
        %v7489 = vrot.slane %v7473, %v7488
        %v7491 = vunpack.c.l.s4 1935823168
        %v7492 = vunpack.c.0.s8 %v7491
        %v7493 = vlaneseq
        %v7494 = vshrl.u32 %v7493, 7
        %v7495 = vsub.s32 %v7492, %v7494
        %v7496 = vrot.slane %v7481, %v7495
        %v7498 = vunpack.c.l.s4 1935823168
        %v7499 = vunpack.c.0.s8 %v7498
        %v7500 = vlaneseq
        %v7501 = vshrl.u32 %v7500, 7
        %v7502 = vsub.s32 %v7499, %v7501
        %v7503 = vrot.slane %v7480, %v7502
        %v7505 = vunpack.c.l.s4 1935823168
        %v7506 = vunpack.c.0.s8 %v7505
        %v7507 = vlaneseq
        %v7508 = vshrl.u32 %v7507, 7
        %v7509 = vsub.s32 %v7506, %v7508
        %v7510 = vrot.slane %v7482, %v7509
        %v7511 = vcombine.high %v7465, %v7465
        %v7513 = vunpack.c.l.s4 1935823168
        %v7514 = vunpack.c.0.s8 %v7513
        %v7515 = vlaneseq
        %v7516 = vshrl.u32 %v7515, 7
        %v7517 = vsub.s32 %v7514, %v7516
        %v7518 = vrot.slane %v7465, %v7517
        %v7520 = vunpack.c.l.s4 1935823168
        %v7521 = vunpack.c.0.s8 %v7520
        %v7522 = vlaneseq
        %v7523 = vshrl.u32 %v7522, 7
        %v7524 = vsub.s32 %v7521, %v7523
        %v7525 = vrot.slane %v7511, %v7524
        %v7526 = vcombine.high %v7518, %v7518
        %v7527 = vcombine.high %v7525, %v7525
        %v7529 = vunpack.c.l.s4 1935823168
        %v7530 = vunpack.c.0.s8 %v7529
        %v7531 = vlaneseq
        %v7532 = vshrl.u32 %v7531, 7
        %v7533 = vsub.s32 %v7530, %v7532
        %v7534 = vrot.slane %v7518, %v7533
        %v7536 = vunpack.c.l.s4 1935823168
        %v7537 = vunpack.c.0.s8 %v7536
        %v7538 = vlaneseq
        %v7539 = vshrl.u32 %v7538, 7
        %v7540 = vsub.s32 %v7537, %v7539
        %v7541 = vrot.slane %v7526, %v7540
        %v7543 = vunpack.c.l.s4 1935823168
        %v7544 = vunpack.c.0.s8 %v7543
        %v7545 = vlaneseq
        %v7546 = vshrl.u32 %v7545, 7
        %v7547 = vsub.s32 %v7544, %v7546
        %v7548 = vrot.slane %v7525, %v7547
        %v7550 = vunpack.c.l.s4 1935823168
        %v7551 = vunpack.c.0.s8 %v7550
        %v7552 = vlaneseq
        %v7553 = vshrl.u32 %v7552, 7
        %v7554 = vsub.s32 %v7551, %v7553
        %v7555 = vrot.slane %v7527, %v7554
        %v7556 = vunpack.c.l.b16 %v7489
        %v7557 = vunpack.c.h.b16 %v7489
        %v7558 = vunpack.c.l.b16 %v7496
        %v7559 = vunpack.c.h.b16 %v7496
        %v7560 = vunpack.c.l.b16 %v7503
        %v7561 = vunpack.c.h.b16 %v7503
        %v7562 = vunpack.c.l.b16 %v7510
        %v7563 = vunpack.c.h.b16 %v7510
        %v7564 = vunpack.c.l.b16 %v7534
        %v7565 = vunpack.c.h.b16 %v7534
        %v7566 = vunpack.c.l.b16 %v7541
        %v7567 = vunpack.c.h.b16 %v7541
        %v7568 = vunpack.c.l.b16 %v7548
        %v7569 = vunpack.c.h.b16 %v7548
        %v7570 = vunpack.c.l.b16 %v7555
        %v7571 = vunpack.c.h.b16 %v7555
        %v7572 = vrot.slane %v7564, 7
        %vm7573 = vcmask 1041409
        %v7574 = vsel %vm7573, %v7572, %v7556
        %v7575 = vrot.slane %v7565, 7
        %v7576 = vsel %vm7573, %v7575, %v7557
        %v7577 = vrot.slane %v7566, 7
        %v7578 = vsel %vm7573, %v7577, %v7558
        %v7579 = vrot.slane %v7567, 7
        %v7580 = vsel %vm7573, %v7579, %v7559
        %v7581 = vrot.slane %v7568, 7
        %v7582 = vsel %vm7573, %v7581, %v7560
        %v7583 = vrot.slane %v7569, 7
        %v7584 = vsel %vm7573, %v7583, %v7561
        %v7585 = vrot.slane %v7570, 7
        %v7586 = vsel %vm7573, %v7585, %v7562
        %v7587 = vrot.slane %v7571, 7
        %v7588 = vsel %vm7573, %v7587, %v7563
        %v7589 = vpack.c.b16 %v7576, %v7574
        %v7590 = vpack.c.b16 %v7580, %v7578
        %v7591 = vpack.c.b16 %v7584, %v7582
        %v7592 = vpack.c.b16 %v7588, %v7586
        %v7594 = vunpack.c.l.s4 1966171168
        %v7595 = vunpack.c.0.s8 %v7594
        %v7596 = vlaneseq
        %v7597 = vshrl.u32 %v7596, 7
        %v7598 = vsub.s32 %v7595, %v7597
        %v7599 = vrot.slane %v7589, %v7598
        %v7601 = vunpack.c.l.s4 1966171168
        %v7602 = vunpack.c.0.s8 %v7601
        %v7603 = vlaneseq
        %v7604 = vshrl.u32 %v7603, 7
        %v7605 = vsub.s32 %v7602, %v7604
        %v7606 = vrot.slane %v7590, %v7605
        %v7608 = vunpack.c.l.s4 1966171168
        %v7609 = vunpack.c.0.s8 %v7608
        %v7610 = vlaneseq
        %v7611 = vshrl.u32 %v7610, 7
        %v7612 = vsub.s32 %v7609, %v7611
        %v7613 = vrot.slane %v7591, %v7612
        %v7615 = vunpack.c.l.s4 1966171168
        %v7616 = vunpack.c.0.s8 %v7615
        %v7617 = vlaneseq
        %v7618 = vshrl.u32 %v7617, 7
        %v7619 = vsub.s32 %v7616, %v7618
        %v7620 = vrot.slane %v7592, %v7619
        %v7621 = vcombine.low %v7599, %v7606
        %v7622 = vcombine.low %v7613, %v7620
        %v7624 = vunpack.c.l.s4 1966171168
        %v7625 = vunpack.c.0.s8 %v7624
        %v7626 = vlaneseq
        %v7627 = vshrl.u32 %v7626, 7
        %v7628 = vsub.s32 %v7625, %v7627
        %v7629 = vrot.slane %v7621, %v7628
        %v7631 = vunpack.c.l.s4 1966171168
        %v7632 = vunpack.c.0.s8 %v7631
        %v7633 = vlaneseq
        %v7634 = vshrl.u32 %v7633, 7
        %v7635 = vsub.s32 %v7632, %v7634
        %v7636 = vrot.slane %v7622, %v7635
        %v7637 = vcombine.low %v7629, %v7636
        %7639 = vst [vmem:[%s461] sm:$0xff] %v7637
        %s7640 = smul.u32 8, %s18
        %p7641 = scmp.lt.s32.totalorder %s7640, 15
        %s7642 = scalar_select %p7641, %s7640, 15
        %s7643 = scalar_lea.vmem %s7, %s7642
        // Predicated region
        $region72: #{simclr_forward.2} parent=66 // pred_check
          %p7644 = pneg %p198
        $region73: #{simclr_forward.2} parent=66 // pred_check_branch
          %7646 = sbr.rel (%p7644) target = $region75
        $region74: #{simclr_forward.2} parent=66 // pred_region
          %s7647 = smul.u32 8, %s18
        $region75: #{simclr_forward.2} parent=66 // pred_fallthru
          _
      $region67: #{simclr_forward.2} parent=5 // pred_fallthru
        _
      %p7648 = scmp.le.s32.totalorder 2, %s13
      // Predicated region
      $region76: #{simclr_forward.2} parent=5 // pred_check
        %p7649 = pneg %p7648
      $region77: #{simclr_forward.2} parent=5 // pred_check_branch
        %7651 = sbr.rel (%p7649) target = $region79
      $region78: #{simclr_forward.2} parent=5 // pred_region
        %s7652 = ssub.s32 %s13, 2
        // Predicated region
        $region80: #{simclr_forward.2} parent=78 // pred_check
          %p7653 = pneg %p204
        $region81: #{simclr_forward.2} parent=78 // pred_check_branch
          %7655 = sbr.rel (%p7653) target = $region83
        $region82: #{simclr_forward.2} parent=78 // pred_region
          %s7656 = smul.u32 8, %s19
          %p7657 = scmp.lt.s32.totalorder %s7656, 15
          %s7658 = scalar_select %p7657, %s7656, 15
          %s7659 = scalar_lea.vmem %s7, %s7658
        $region83: #{simclr_forward.2} parent=78 // pred_fallthru
          _
      $region79: #{simclr_forward.2} parent=5 // pred_fallthru
        _
    $region6: #{simclr_forward.2} parent=1 // loop_footer
      %s17 = sadd.s32 1, %s13
    $region7: #{simclr_forward.2} parent=1 // loop_footer_branch
      %12 = sbr.rel target = $region3
    $region8: #{simclr_forward.2} parent=1 // loop_exit
      _

// kernel: simclr_forward.3
$region0: #{simclr_forward.3}
  #allocation0 [shape = 'u32[]', space=smem, size = 0x4, offset = 0x4, fixed_abs, tag = 'smem constant byte address 0x4 - core index']
  #allocation1 [shape = 'u32[144,128]{1,0:T(1,128)}', space=vmem, size = 0x12000, scoped, tag = 'internal scratch']
  %s0 = inlined_call_operand.vmem [shape: bf16[2,2048], index: 0, kind: input, shape index: {}]
  %s1 = inlined_call_operand.vmem [shape: bf16[2048,512], index: 1, kind: input, shape index: {}]
  %s2 = inlined_call_operand.vmem [shape: f32[1,512], index: 2, kind: input, shape index: {}]
  %s3 = inlined_call_operand.vmem [shape: f32[1,512], index: 3, kind: input, shape index: {}]
  %s4 = inlined_call_operand.vmem [shape: bf16[512,128], index: 4, kind: input, shape index: {}]
  %s5 = inlined_call_operand.vmem [shape: f32[1,128], index: 5, kind: input, shape index: {}]
  %s6 = inlined_call_operand.hbm [shape: f32[2,128], index: 6, kind: output, shape index: {}]
  %s7 = sld [smem:[#allocation0]]
  $region34: #{simclr_forward.3} parent=0
    _
  %s9 = ssub.s32 1, %s7
  %s10 = scalar_select 0, %s9, %s7
  $region1: #{simclr_forward.3} parent=0
    #allocation2 [shape = 'u8[1024]{0}', space=vmem, size = 0x400, scoped, tag = 'output window, operand 0, single buffered']
    #allocation3 [shape = 's32[1]{0}', space=sflag, size = 0x4, scoped, tag = 'scoped memory for simclr_forward.3']
    %11 = vsyncpa [#allocation3], 0
    // Predicated region
    $region2: #{simclr_forward.3} parent=1 // pred_check
      _
    $region3: #{simclr_forward.3} parent=1 // pred_check_branch
      %13 = sbr.rel (0) target = $region5
    $region4: #{simclr_forward.3} parent=1 // pred_region
      _
    $region5: #{simclr_forward.3} parent=1 // pred_fallthru
      _
    // Predicated region
    $region6: #{simclr_forward.3} parent=1 // pred_check
      _
    $region7: #{simclr_forward.3} parent=1 // pred_check_branch
      %15 = sbr.rel (0) target = $region9
    $region8: #{simclr_forward.3} parent=1 // pred_region
      _
    $region9: #{simclr_forward.3} parent=1 // pred_fallthru
      _
    // Predicated region
    $region10: #{simclr_forward.3} parent=1 // pred_check
      _
    $region11: #{simclr_forward.3} parent=1 // pred_check_branch
      %17 = sbr.rel (0) target = $region13
    $region12: #{simclr_forward.3} parent=1 // pred_region
      _
    $region13: #{simclr_forward.3} parent=1 // pred_fallthru
      _
    // Predicated region
    $region14: #{simclr_forward.3} parent=1 // pred_check
      _
    $region15: #{simclr_forward.3} parent=1 // pred_check_branch
      %19 = sbr.rel (0) target = $region17
    $region16: #{simclr_forward.3} parent=1 // pred_region
      _
    $region17: #{simclr_forward.3} parent=1 // pred_fallthru
      _
    // Predicated region
    $region18: #{simclr_forward.3} parent=1 // pred_check
      _
    $region19: #{simclr_forward.3} parent=1 // pred_check_branch
      %21 = sbr.rel (0) target = $region21
    $region20: #{simclr_forward.3} parent=1 // pred_region
      _
    $region21: #{simclr_forward.3} parent=1 // pred_fallthru
      _
    // Predicated region
    $region22: #{simclr_forward.3} parent=1 // pred_check
      _
    $region23: #{simclr_forward.3} parent=1 // pred_check_branch
      %23 = sbr.rel (0) target = $region25
    $region24: #{simclr_forward.3} parent=1 // pred_region
      _
    $region25: #{simclr_forward.3} parent=1 // pred_fallthru
      _
    %v25 = vld [vmem:[%s0] sm:$0xff]
    %v26 = vld [vmem:[%s0 + $0x8] sm:$0xff]
    %v27 = vld [vmem:[%s1] sm:$0xff]
    %v28 = vld [vmem:[%s1 + $0x8] sm:$0xff]
    %v29 = vld [vmem:[%s1 + $0x10] sm:$0xff]
    %v30 = vld [vmem:[%s1 + $0x18] sm:$0xff]
    %v31 = vld [vmem:[%s1 + $0x20] sm:$0xff]
    %v32 = vld [vmem:[%s1 + $0x28] sm:$0xff]
    %v33 = vld [vmem:[%s1 + $0x30] sm:$0xff]
    %v34 = vld [vmem:[%s1 + $0x38] sm:$0xff]
    %v35 = vld [vmem:[%s1 + $0x40] sm:$0xff]
    %v36 = vld [vmem:[%s1 + $0x48] sm:$0xff]
    %v37 = vld [vmem:[%s1 + $0x50] sm:$0xff]
    %v38 = vld [vmem:[%s1 + $0x58] sm:$0xff]
    %v39 = vld [vmem:[%s1 + $0x60] sm:$0xff]
    %v40 = vld [vmem:[%s1 + $0x68] sm:$0xff]
    %v41 = vld [vmem:[%s1 + $0x70] sm:$0xff]
    %v42 = vld [vmem:[%s1 + $0x78] sm:$0xff]
    %v43 = vld [vmem:[%s1 + $0x80] sm:$0xff]
    %v44 = vld [vmem:[%s1 + $0x88] sm:$0xff]
    %v45 = vld [vmem:[%s1 + $0x90] sm:$0xff]
    %v46 = vld [vmem:[%s1 + $0x98] sm:$0xff]
    %v47 = vld [vmem:[%s1 + $0xa0] sm:$0xff]
    %v48 = vld [vmem:[%s1 + $0xa8] sm:$0xff]
    %v49 = vld [vmem:[%s1 + $0xb0] sm:$0xff]
    %v50 = vld [vmem:[%s1 + $0xb8] sm:$0xff]
    %v51 = vld [vmem:[%s1 + $0xc0] sm:$0xff]
    %v52 = vld [vmem:[%s1 + $0xc8] sm:$0xff]
    %v53 = vld [vmem:[%s1 + $0xd0] sm:$0xff]
    %v54 = vld [vmem:[%s1 + $0xd8] sm:$0xff]
    %v55 = vld [vmem:[%s1 + $0xe0] sm:$0xff]
    %v56 = vld [vmem:[%s1 + $0xe8] sm:$0xff]
    %v57 = vld [vmem:[%s1 + $0xf0] sm:$0xff]
    %v58 = vld [vmem:[%s1 + $0xf8] sm:$0xff]
    %v59 = vld [vmem:[%s1 + $0x100] sm:$0xff]
    %v60 = vld [vmem:[%s1 + $0x108] sm:$0xff]
    %v61 = vld [vmem:[%s1 + $0x110] sm:$0xff]
    %v62 = vld [vmem:[%s1 + $0x118] sm:$0xff]
    %v63 = vld [vmem:[%s1 + $0x120] sm:$0xff]
    %v64 = vld [vmem:[%s1 + $0x128] sm:$0xff]
    %v65 = vld [vmem:[%s1 + $0x130] sm:$0xff]
    %v66 = vld [vmem:[%s1 + $0x138] sm:$0xff]
    %v67 = vld [vmem:[%s1 + $0x140] sm:$0xff]
    %v68 = vld [vmem:[%s1 + $0x148] sm:$0xff]
    %v69 = vld [vmem:[%s1 + $0x150] sm:$0xff]
    %v70 = vld [vmem:[%s1 + $0x158] sm:$0xff]
    %v71 = vld [vmem:[%s1 + $0x160] sm:$0xff]
    %v72 = vld [vmem:[%s1 + $0x168] sm:$0xff]
    %v73 = vld [vmem:[%s1 + $0x170] sm:$0xff]
    %v74 = vld [vmem:[%s1 + $0x178] sm:$0xff]
    %v75 = vld [vmem:[%s1 + $0x180] sm:$0xff]
    %v76 = vld [vmem:[%s1 + $0x188] sm:$0xff]
    %v77 = vld [vmem:[%s1 + $0x190] sm:$0xff]
    %v78 = vld [vmem:[%s1 + $0x198] sm:$0xff]
    %v79 = vld [vmem:[%s1 + $0x1a0] sm:$0xff]
    %v80 = vld [vmem:[%s1 + $0x1a8] sm:$0xff]
    %v81 = vld [vmem:[%s1 + $0x1b0] sm:$0xff]
    %v82 = vld [vmem:[%s1 + $0x1b8] sm:$0xff]
    %v83 = vld [vmem:[%s1 + $0x1c0] sm:$0xff]
    %v84 = vld [vmem:[%s1 + $0x1c8] sm:$0xff]
    %v85 = vld [vmem:[%s1 + $0x1d0] sm:$0xff]
    %v86 = vld [vmem:[%s1 + $0x1d8] sm:$0xff]
    %v87 = vld [vmem:[%s1 + $0x1e0] sm:$0xff]
    %v88 = vld [vmem:[%s1 + $0x1e8] sm:$0xff]
    %v89 = vld [vmem:[%s1 + $0x1f0] sm:$0xff]
    %v90 = vld [vmem:[%s1 + $0x1f8] sm:$0xff]
    %v91 = vld [vmem:[%s1 + $0x200] sm:$0xff]
    %v92 = vld [vmem:[%s1 + $0x208] sm:$0xff]
    %v93 = vld [vmem:[%s1 + $0x210] sm:$0xff]
    %v94 = vld [vmem:[%s1 + $0x218] sm:$0xff]
    %v95 = vld [vmem:[%s1 + $0x220] sm:$0xff]
    %v96 = vld [vmem:[%s1 + $0x228] sm:$0xff]
    %v97 = vld [vmem:[%s1 + $0x230] sm:$0xff]
    %v98 = vld [vmem:[%s1 + $0x238] sm:$0xff]
    %v99 = vld [vmem:[%s1 + $0x240] sm:$0xff]
    %v100 = vld [vmem:[%s1 + $0x248] sm:$0xff]
    %v101 = vld [vmem:[%s1 + $0x250] sm:$0xff]
    %v102 = vld [vmem:[%s1 + $0x258] sm:$0xff]
    %v103 = vld [vmem:[%s1 + $0x260] sm:$0xff]
    %v104 = vld [vmem:[%s1 + $0x268] sm:$0xff]
    %v105 = vld [vmem:[%s1 + $0x270] sm:$0xff]
    %v106 = vld [vmem:[%s1 + $0x278] sm:$0xff]
    %v107 = vld [vmem:[%s1 + $0x280] sm:$0xff]
    %v108 = vld [vmem:[%s1 + $0x288] sm:$0xff]
    %v109 = vld [vmem:[%s1 + $0x290] sm:$0xff]
    %v110 = vld [vmem:[%s1 + $0x298] sm:$0xff]
    %v111 = vld [vmem:[%s1 + $0x2a0] sm:$0xff]
    %v112 = vld [vmem:[%s1 + $0x2a8] sm:$0xff]
    %v113 = vld [vmem:[%s1 + $0x2b0] sm:$0xff]
    %v114 = vld [vmem:[%s1 + $0x2b8] sm:$0xff]
    %v115 = vld [vmem:[%s1 + $0x2c0] sm:$0xff]
    %v116 = vld [vmem:[%s1 + $0x2c8] sm:$0xff]
    %v117 = vld [vmem:[%s1 + $0x2d0] sm:$0xff]
    %v118 = vld [vmem:[%s1 + $0x2d8] sm:$0xff]
    %v119 = vld [vmem:[%s1 + $0x2e0] sm:$0xff]
    %v120 = vld [vmem:[%s1 + $0x2e8] sm:$0xff]
    %v121 = vld [vmem:[%s1 + $0x2f0] sm:$0xff]
    %v122 = vld [vmem:[%s1 + $0x2f8] sm:$0xff]
    %v123 = vld [vmem:[%s1 + $0x300] sm:$0xff]
    %v124 = vld [vmem:[%s1 + $0x308] sm:$0xff]
    %v125 = vld [vmem:[%s1 + $0x310] sm:$0xff]
    %v126 = vld [vmem:[%s1 + $0x318] sm:$0xff]
    %v127 = vld [vmem:[%s1 + $0x320] sm:$0xff]
    %v128 = vld [vmem:[%s1 + $0x328] sm:$0xff]
    %v129 = vld [vmem:[%s1 + $0x330] sm:$0xff]
    %v130 = vld [vmem:[%s1 + $0x338] sm:$0xff]
    %v131 = vld [vmem:[%s1 + $0x340] sm:$0xff]
    %v132 = vld [vmem:[%s1 + $0x348] sm:$0xff]
    %v133 = vld [vmem:[%s1 + $0x350] sm:$0xff]
    %v134 = vld [vmem:[%s1 + $0x358] sm:$0xff]
    %v135 = vld [vmem:[%s1 + $0x360] sm:$0xff]
    %v136 = vld [vmem:[%s1 + $0x368] sm:$0xff]
    %v137 = vld [vmem:[%s1 + $0x370] sm:$0xff]
    %v138 = vld [vmem:[%s1 + $0x378] sm:$0xff]
    %v139 = vld [vmem:[%s1 + $0x380] sm:$0xff]
    %v140 = vld [vmem:[%s1 + $0x388] sm:$0xff]
    %v141 = vld [vmem:[%s1 + $0x390] sm:$0xff]
    %v142 = vld [vmem:[%s1 + $0x398] sm:$0xff]
    %v143 = vld [vmem:[%s1 + $0x3a0] sm:$0xff]
    %v144 = vld [vmem:[%s1 + $0x3a8] sm:$0xff]
    %v145 = vld [vmem:[%s1 + $0x3b0] sm:$0xff]
    %v146 = vld [vmem:[%s1 + $0x3b8] sm:$0xff]
    %v147 = vld [vmem:[%s1 + $0x3c0] sm:$0xff]
    %v148 = vld [vmem:[%s1 + $0x3c8] sm:$0xff]
    %v149 = vld [vmem:[%s1 + $0x3d0] sm:$0xff]
    %v150 = vld [vmem:[%s1 + $0x3d8] sm:$0xff]
    %v151 = vld [vmem:[%s1 + $0x3e0] sm:$0xff]
    %v152 = vld [vmem:[%s1 + $0x3e8] sm:$0xff]
    %v153 = vld [vmem:[%s1 + $0x3f0] sm:$0xff]
    %v154 = vld [vmem:[%s1 + $0x3f8] sm:$0xff]
    %v155 = vld [vmem:[%s1 + $0x400] sm:$0xff]
    %v156 = vld [vmem:[%s1 + $0x408] sm:$0xff]
    %v157 = vld [vmem:[%s1 + $0x410] sm:$0xff]
    %v158 = vld [vmem:[%s1 + $0x418] sm:$0xff]
    %v159 = vld [vmem:[%s1 + $0x420] sm:$0xff]
    %v160 = vld [vmem:[%s1 + $0x428] sm:$0xff]
    %v161 = vld [vmem:[%s1 + $0x430] sm:$0xff]
    %v162 = vld [vmem:[%s1 + $0x438] sm:$0xff]
    %v163 = vld [vmem:[%s1 + $0x440] sm:$0xff]
    %v164 = vld [vmem:[%s1 + $0x448] sm:$0xff]
    %v165 = vld [vmem:[%s1 + $0x450] sm:$0xff]
    %v166 = vld [vmem:[%s1 + $0x458] sm:$0xff]
    %v167 = vld [vmem:[%s1 + $0x460] sm:$0xff]
    %v168 = vld [vmem:[%s1 + $0x468] sm:$0xff]
    %v169 = vld [vmem:[%s1 + $0x470] sm:$0xff]
    %v170 = vld [vmem:[%s1 + $0x478] sm:$0xff]
    %v171 = vld [vmem:[%s1 + $0x480] sm:$0xff]
    %v172 = vld [vmem:[%s1 + $0x488] sm:$0xff]
    %v173 = vld [vmem:[%s1 + $0x490] sm:$0xff]
    %v174 = vld [vmem:[%s1 + $0x498] sm:$0xff]
    %v175 = vld [vmem:[%s1 + $0x4a0] sm:$0xff]
    %v176 = vld [vmem:[%s1 + $0x4a8] sm:$0xff]
    %v177 = vld [vmem:[%s1 + $0x4b0] sm:$0xff]
    %v178 = vld [vmem:[%s1 + $0x4b8] sm:$0xff]
    %v179 = vld [vmem:[%s1 + $0x4c0] sm:$0xff]
    %v180 = vld [vmem:[%s1 + $0x4c8] sm:$0xff]
    %v181 = vld [vmem:[%s1 + $0x4d0] sm:$0xff]
    %v182 = vld [vmem:[%s1 + $0x4d8] sm:$0xff]
    %v183 = vld [vmem:[%s1 + $0x4e0] sm:$0xff]
    %v184 = vld [vmem:[%s1 + $0x4e8] sm:$0xff]
    %v185 = vld [vmem:[%s1 + $0x4f0] sm:$0xff]
    %v186 = vld [vmem:[%s1 + $0x4f8] sm:$0xff]
    %v187 = vld [vmem:[%s1 + $0x500] sm:$0xff]
    %v188 = vld [vmem:[%s1 + $0x508] sm:$0xff]
    %v189 = vld [vmem:[%s1 + $0x510] sm:$0xff]
    %v190 = vld [vmem:[%s1 + $0x518] sm:$0xff]
    %v191 = vld [vmem:[%s1 + $0x520] sm:$0xff]
    %v192 = vld [vmem:[%s1 + $0x528] sm:$0xff]
    %v193 = vld [vmem:[%s1 + $0x530] sm:$0xff]
    %v194 = vld [vmem:[%s1 + $0x538] sm:$0xff]
    %v195 = vld [vmem:[%s1 + $0x540] sm:$0xff]
    %v196 = vld [vmem:[%s1 + $0x548] sm:$0xff]
    %v197 = vld [vmem:[%s1 + $0x550] sm:$0xff]
    %v198 = vld [vmem:[%s1 + $0x558] sm:$0xff]
    %v199 = vld [vmem:[%s1 + $0x560] sm:$0xff]
    %v200 = vld [vmem:[%s1 + $0x568] sm:$0xff]
    %v201 = vld [vmem:[%s1 + $0x570] sm:$0xff]
    %v202 = vld [vmem:[%s1 + $0x578] sm:$0xff]
    %v203 = vld [vmem:[%s1 + $0x580] sm:$0xff]
    %v204 = vld [vmem:[%s1 + $0x588] sm:$0xff]
    %v205 = vld [vmem:[%s1 + $0x590] sm:$0xff]
    %v206 = vld [vmem:[%s1 + $0x598] sm:$0xff]
    %v207 = vld [vmem:[%s1 + $0x5a0] sm:$0xff]
    %v208 = vld [vmem:[%s1 + $0x5a8] sm:$0xff]
    %v209 = vld [vmem:[%s1 + $0x5b0] sm:$0xff]
    %v210 = vld [vmem:[%s1 + $0x5b8] sm:$0xff]
    %v211 = vld [vmem:[%s1 + $0x5c0] sm:$0xff]
    %v212 = vld [vmem:[%s1 + $0x5c8] sm:$0xff]
    %v213 = vld [vmem:[%s1 + $0x5d0] sm:$0xff]
    %v214 = vld [vmem:[%s1 + $0x5d8] sm:$0xff]
    %v215 = vld [vmem:[%s1 + $0x5e0] sm:$0xff]
    %v216 = vld [vmem:[%s1 + $0x5e8] sm:$0xff]
    %v217 = vld [vmem:[%s1 + $0x5f0] sm:$0xff]
    %v218 = vld [vmem:[%s1 + $0x5f8] sm:$0xff]
    %v219 = vld [vmem:[%s1 + $0x600] sm:$0xff]
    %v220 = vld [vmem:[%s1 + $0x608] sm:$0xff]
    %v221 = vld [vmem:[%s1 + $0x610] sm:$0xff]
    %v222 = vld [vmem:[%s1 + $0x618] sm:$0xff]
    %v223 = vld [vmem:[%s1 + $0x620] sm:$0xff]
    %v224 = vld [vmem:[%s1 + $0x628] sm:$0xff]
    %v225 = vld [vmem:[%s1 + $0x630] sm:$0xff]
    %v226 = vld [vmem:[%s1 + $0x638] sm:$0xff]
    %v227 = vld [vmem:[%s1 + $0x640] sm:$0xff]
    %v228 = vld [vmem:[%s1 + $0x648] sm:$0xff]
    %v229 = vld [vmem:[%s1 + $0x650] sm:$0xff]
    %v230 = vld [vmem:[%s1 + $0x658] sm:$0xff]
    %v231 = vld [vmem:[%s1 + $0x660] sm:$0xff]
    %v232 = vld [vmem:[%s1 + $0x668] sm:$0xff]
    %v233 = vld [vmem:[%s1 + $0x670] sm:$0xff]
    %v234 = vld [vmem:[%s1 + $0x678] sm:$0xff]
    %v235 = vld [vmem:[%s1 + $0x680] sm:$0xff]
    %v236 = vld [vmem:[%s1 + $0x688] sm:$0xff]
    %v237 = vld [vmem:[%s1 + $0x690] sm:$0xff]
    %v238 = vld [vmem:[%s1 + $0x698] sm:$0xff]
    %v239 = vld [vmem:[%s1 + $0x6a0] sm:$0xff]
    %v240 = vld [vmem:[%s1 + $0x6a8] sm:$0xff]
    %v241 = vld [vmem:[%s1 + $0x6b0] sm:$0xff]
    %v242 = vld [vmem:[%s1 + $0x6b8] sm:$0xff]
    %v243 = vld [vmem:[%s1 + $0x6c0] sm:$0xff]
    %v244 = vld [vmem:[%s1 + $0x6c8] sm:$0xff]
    %v245 = vld [vmem:[%s1 + $0x6d0] sm:$0xff]
    %v246 = vld [vmem:[%s1 + $0x6d8] sm:$0xff]
    %v247 = vld [vmem:[%s1 + $0x6e0] sm:$0xff]
    %v248 = vld [vmem:[%s1 + $0x6e8] sm:$0xff]
    %v249 = vld [vmem:[%s1 + $0x6f0] sm:$0xff]
    %v250 = vld [vmem:[%s1 + $0x6f8] sm:$0xff]
    %v251 = vld [vmem:[%s1 + $0x700] sm:$0xff]
    %v252 = vld [vmem:[%s1 + $0x708] sm:$0xff]
    %v253 = vld [vmem:[%s1 + $0x710] sm:$0xff]
    %v254 = vld [vmem:[%s1 + $0x718] sm:$0xff]
    %v255 = vld [vmem:[%s1 + $0x720] sm:$0xff]
    %v256 = vld [vmem:[%s1 + $0x728] sm:$0xff]
    %v257 = vld [vmem:[%s1 + $0x730] sm:$0xff]
    %v258 = vld [vmem:[%s1 + $0x738] sm:$0xff]
    %v259 = vld [vmem:[%s1 + $0x740] sm:$0xff]
    %v260 = vld [vmem:[%s1 + $0x748] sm:$0xff]
    %v261 = vld [vmem:[%s1 + $0x750] sm:$0xff]
    %v262 = vld [vmem:[%s1 + $0x758] sm:$0xff]
    %v263 = vld [vmem:[%s1 + $0x760] sm:$0xff]
    %v264 = vld [vmem:[%s1 + $0x768] sm:$0xff]
    %v265 = vld [vmem:[%s1 + $0x770] sm:$0xff]
    %v266 = vld [vmem:[%s1 + $0x778] sm:$0xff]
    %v267 = vld [vmem:[%s1 + $0x780] sm:$0xff]
    %v268 = vld [vmem:[%s1 + $0x788] sm:$0xff]
    %v269 = vld [vmem:[%s1 + $0x790] sm:$0xff]
    %v270 = vld [vmem:[%s1 + $0x798] sm:$0xff]
    %v271 = vld [vmem:[%s1 + $0x7a0] sm:$0xff]
    %v272 = vld [vmem:[%s1 + $0x7a8] sm:$0xff]
    %v273 = vld [vmem:[%s1 + $0x7b0] sm:$0xff]
    %v274 = vld [vmem:[%s1 + $0x7b8] sm:$0xff]
    %v275 = vld [vmem:[%s1 + $0x7c0] sm:$0xff]
    %v276 = vld [vmem:[%s1 + $0x7c8] sm:$0xff]
    %v277 = vld [vmem:[%s1 + $0x7d0] sm:$0xff]
    %v278 = vld [vmem:[%s1 + $0x7d8] sm:$0xff]
    %v279 = vld [vmem:[%s1 + $0x7e0] sm:$0xff]
    %v280 = vld [vmem:[%s1 + $0x7e8] sm:$0xff]
    %v281 = vld [vmem:[%s1 + $0x7f0] sm:$0xff]
    %v282 = vld [vmem:[%s1 + $0x7f8] sm:$0xff]
    %v283 = vld [vmem:[%s1 + $0x800] sm:$0xff]
    %v284 = vld [vmem:[%s1 + $0x808] sm:$0xff]
    %v285 = vld [vmem:[%s1 + $0x810] sm:$0xff]
    %v286 = vld [vmem:[%s1 + $0x818] sm:$0xff]
    %v287 = vld [vmem:[%s1 + $0x820] sm:$0xff]
    %v288 = vld [vmem:[%s1 + $0x828] sm:$0xff]
    %v289 = vld [vmem:[%s1 + $0x830] sm:$0xff]
    %v290 = vld [vmem:[%s1 + $0x838] sm:$0xff]
    %v291 = vld [vmem:[%s1 + $0x840] sm:$0xff]
    %v292 = vld [vmem:[%s1 + $0x848] sm:$0xff]
    %v293 = vld [vmem:[%s1 + $0x850] sm:$0xff]
    %v294 = vld [vmem:[%s1 + $0x858] sm:$0xff]
    %v295 = vld [vmem:[%s1 + $0x860] sm:$0xff]
    %v296 = vld [vmem:[%s1 + $0x868] sm:$0xff]
    %v297 = vld [vmem:[%s1 + $0x870] sm:$0xff]
    %v298 = vld [vmem:[%s1 + $0x878] sm:$0xff]
    %v299 = vld [vmem:[%s1 + $0x880] sm:$0xff]
    %v300 = vld [vmem:[%s1 + $0x888] sm:$0xff]
    %v301 = vld [vmem:[%s1 + $0x890] sm:$0xff]
    %v302 = vld [vmem:[%s1 + $0x898] sm:$0xff]
    %v303 = vld [vmem:[%s1 + $0x8a0] sm:$0xff]
    %v304 = vld [vmem:[%s1 + $0x8a8] sm:$0xff]
    %v305 = vld [vmem:[%s1 + $0x8b0] sm:$0xff]
    %v306 = vld [vmem:[%s1 + $0x8b8] sm:$0xff]
    %v307 = vld [vmem:[%s1 + $0x8c0] sm:$0xff]
    %v308 = vld [vmem:[%s1 + $0x8c8] sm:$0xff]
    %v309 = vld [vmem:[%s1 + $0x8d0] sm:$0xff]
    %v310 = vld [vmem:[%s1 + $0x8d8] sm:$0xff]
    %v311 = vld [vmem:[%s1 + $0x8e0] sm:$0xff]
    %v312 = vld [vmem:[%s1 + $0x8e8] sm:$0xff]
    %v313 = vld [vmem:[%s1 + $0x8f0] sm:$0xff]
    %v314 = vld [vmem:[%s1 + $0x8f8] sm:$0xff]
    %v315 = vld [vmem:[%s1 + $0x900] sm:$0xff]
    %v316 = vld [vmem:[%s1 + $0x908] sm:$0xff]
    %v317 = vld [vmem:[%s1 + $0x910] sm:$0xff]
    %v318 = vld [vmem:[%s1 + $0x918] sm:$0xff]
    %v319 = vld [vmem:[%s1 + $0x920] sm:$0xff]
    %v320 = vld [vmem:[%s1 + $0x928] sm:$0xff]
    %v321 = vld [vmem:[%s1 + $0x930] sm:$0xff]
    %v322 = vld [vmem:[%s1 + $0x938] sm:$0xff]
    %v323 = vld [vmem:[%s1 + $0x940] sm:$0xff]
    %v324 = vld [vmem:[%s1 + $0x948] sm:$0xff]
    %v325 = vld [vmem:[%s1 + $0x950] sm:$0xff]
    %v326 = vld [vmem:[%s1 + $0x958] sm:$0xff]
    %v327 = vld [vmem:[%s1 + $0x960] sm:$0xff]
    %v328 = vld [vmem:[%s1 + $0x968] sm:$0xff]
    %v329 = vld [vmem:[%s1 + $0x970] sm:$0xff]
    %v330 = vld [vmem:[%s1 + $0x978] sm:$0xff]
    %v331 = vld [vmem:[%s1 + $0x980] sm:$0xff]
    %v332 = vld [vmem:[%s1 + $0x988] sm:$0xff]
    %v333 = vld [vmem:[%s1 + $0x990] sm:$0xff]
    %v334 = vld [vmem:[%s1 + $0x998] sm:$0xff]
    %v335 = vld [vmem:[%s1 + $0x9a0] sm:$0xff]
    %v336 = vld [vmem:[%s1 + $0x9a8] sm:$0xff]
    %v337 = vld [vmem:[%s1 + $0x9b0] sm:$0xff]
    %v338 = vld [vmem:[%s1 + $0x9b8] sm:$0xff]
    %v339 = vld [vmem:[%s1 + $0x9c0] sm:$0xff]
    %v340 = vld [vmem:[%s1 + $0x9c8] sm:$0xff]
    %v341 = vld [vmem:[%s1 + $0x9d0] sm:$0xff]
    %v342 = vld [vmem:[%s1 + $0x9d8] sm:$0xff]
    %v343 = vld [vmem:[%s1 + $0x9e0] sm:$0xff]
    %v344 = vld [vmem:[%s1 + $0x9e8] sm:$0xff]
    %v345 = vld [vmem:[%s1 + $0x9f0] sm:$0xff]
    %v346 = vld [vmem:[%s1 + $0x9f8] sm:$0xff]
    %v347 = vld [vmem:[%s1 + $0xa00] sm:$0xff]
    %v348 = vld [vmem:[%s1 + $0xa08] sm:$0xff]
    %v349 = vld [vmem:[%s1 + $0xa10] sm:$0xff]
    %v350 = vld [vmem:[%s1 + $0xa18] sm:$0xff]
    %v351 = vld [vmem:[%s1 + $0xa20] sm:$0xff]
    %v352 = vld [vmem:[%s1 + $0xa28] sm:$0xff]
    %v353 = vld [vmem:[%s1 + $0xa30] sm:$0xff]
    %v354 = vld [vmem:[%s1 + $0xa38] sm:$0xff]
    %v355 = vld [vmem:[%s1 + $0xa40] sm:$0xff]
    %v356 = vld [vmem:[%s1 + $0xa48] sm:$0xff]
    %v357 = vld [vmem:[%s1 + $0xa50] sm:$0xff]
    %v358 = vld [vmem:[%s1 + $0xa58] sm:$0xff]
    %v359 = vld [vmem:[%s1 + $0xa60] sm:$0xff]
    %v360 = vld [vmem:[%s1 + $0xa68] sm:$0xff]
    %v361 = vld [vmem:[%s1 + $0xa70] sm:$0xff]
    %v362 = vld [vmem:[%s1 + $0xa78] sm:$0xff]
    %v363 = vld [vmem:[%s1 + $0xa80] sm:$0xff]
    %v364 = vld [vmem:[%s1 + $0xa88] sm:$0xff]
    %v365 = vld [vmem:[%s1 + $0xa90] sm:$0xff]
    %v366 = vld [vmem:[%s1 + $0xa98] sm:$0xff]
    %v367 = vld [vmem:[%s1 + $0xaa0] sm:$0xff]
    %v368 = vld [vmem:[%s1 + $0xaa8] sm:$0xff]
    %v369 = vld [vmem:[%s1 + $0xab0] sm:$0xff]
    %v370 = vld [vmem:[%s1 + $0xab8] sm:$0xff]
    %v371 = vld [vmem:[%s1 + $0xac0] sm:$0xff]
    %v372 = vld [vmem:[%s1 + $0xac8] sm:$0xff]
    %v373 = vld [vmem:[%s1 + $0xad0] sm:$0xff]
    %v374 = vld [vmem:[%s1 + $0xad8] sm:$0xff]
    %v375 = vld [vmem:[%s1 + $0xae0] sm:$0xff]
    %v376 = vld [vmem:[%s1 + $0xae8] sm:$0xff]
    %v377 = vld [vmem:[%s1 + $0xaf0] sm:$0xff]
    %v378 = vld [vmem:[%s1 + $0xaf8] sm:$0xff]
    %v379 = vld [vmem:[%s1 + $0xb00] sm:$0xff]
    %v380 = vld [vmem:[%s1 + $0xb08] sm:$0xff]
    %v381 = vld [vmem:[%s1 + $0xb10] sm:$0xff]
    %v382 = vld [vmem:[%s1 + $0xb18] sm:$0xff]
    %v383 = vld [vmem:[%s1 + $0xb20] sm:$0xff]
    %v384 = vld [vmem:[%s1 + $0xb28] sm:$0xff]
    %v385 = vld [vmem:[%s1 + $0xb30] sm:$0xff]
    %v386 = vld [vmem:[%s1 + $0xb38] sm:$0xff]
    %v387 = vld [vmem:[%s1 + $0xb40] sm:$0xff]
    %v388 = vld [vmem:[%s1 + $0xb48] sm:$0xff]
    %v389 = vld [vmem:[%s1 + $0xb50] sm:$0xff]
    %v390 = vld [vmem:[%s1 + $0xb58] sm:$0xff]
    %v391 = vld [vmem:[%s1 + $0xb60] sm:$0xff]
    %v392 = vld [vmem:[%s1 + $0xb68] sm:$0xff]
    %v393 = vld [vmem:[%s1 + $0xb70] sm:$0xff]
    %v394 = vld [vmem:[%s1 + $0xb78] sm:$0xff]
    %v395 = vld [vmem:[%s1 + $0xb80] sm:$0xff]
    %v396 = vld [vmem:[%s1 + $0xb88] sm:$0xff]
    %v397 = vld [vmem:[%s1 + $0xb90] sm:$0xff]
    %v398 = vld [vmem:[%s1 + $0xb98] sm:$0xff]
    %v399 = vld [vmem:[%s1 + $0xba0] sm:$0xff]
    %v400 = vld [vmem:[%s1 + $0xba8] sm:$0xff]
    %v401 = vld [vmem:[%s1 + $0xbb0] sm:$0xff]
    %v402 = vld [vmem:[%s1 + $0xbb8] sm:$0xff]
    %v403 = vld [vmem:[%s1 + $0xbc0] sm:$0xff]
    %v404 = vld [vmem:[%s1 + $0xbc8] sm:$0xff]
    %v405 = vld [vmem:[%s1 + $0xbd0] sm:$0xff]
    %v406 = vld [vmem:[%s1 + $0xbd8] sm:$0xff]
    %v407 = vld [vmem:[%s1 + $0xbe0] sm:$0xff]
    %v408 = vld [vmem:[%s1 + $0xbe8] sm:$0xff]
    %v409 = vld [vmem:[%s1 + $0xbf0] sm:$0xff]
    %v410 = vld [vmem:[%s1 + $0xbf8] sm:$0xff]
    %v411 = vld [vmem:[%s1 + $0xc00] sm:$0xff]
    %v412 = vld [vmem:[%s1 + $0xc08] sm:$0xff]
    %v413 = vld [vmem:[%s1 + $0xc10] sm:$0xff]
    %v414 = vld [vmem:[%s1 + $0xc18] sm:$0xff]
    %v415 = vld [vmem:[%s1 + $0xc20] sm:$0xff]
    %v416 = vld [vmem:[%s1 + $0xc28] sm:$0xff]
    %v417 = vld [vmem:[%s1 + $0xc30] sm:$0xff]
    %v418 = vld [vmem:[%s1 + $0xc38] sm:$0xff]
    %v419 = vld [vmem:[%s1 + $0xc40] sm:$0xff]
    %v420 = vld [vmem:[%s1 + $0xc48] sm:$0xff]
    %v421 = vld [vmem:[%s1 + $0xc50] sm:$0xff]
    %v422 = vld [vmem:[%s1 + $0xc58] sm:$0xff]
    %v423 = vld [vmem:[%s1 + $0xc60] sm:$0xff]
    %v424 = vld [vmem:[%s1 + $0xc68] sm:$0xff]
    %v425 = vld [vmem:[%s1 + $0xc70] sm:$0xff]
    %v426 = vld [vmem:[%s1 + $0xc78] sm:$0xff]
    %v427 = vld [vmem:[%s1 + $0xc80] sm:$0xff]
    %v428 = vld [vmem:[%s1 + $0xc88] sm:$0xff]
    %v429 = vld [vmem:[%s1 + $0xc90] sm:$0xff]
    %v430 = vld [vmem:[%s1 + $0xc98] sm:$0xff]
    %v431 = vld [vmem:[%s1 + $0xca0] sm:$0xff]
    %v432 = vld [vmem:[%s1 + $0xca8] sm:$0xff]
    %v433 = vld [vmem:[%s1 + $0xcb0] sm:$0xff]
    %v434 = vld [vmem:[%s1 + $0xcb8] sm:$0xff]
    %v435 = vld [vmem:[%s1 + $0xcc0] sm:$0xff]
    %v436 = vld [vmem:[%s1 + $0xcc8] sm:$0xff]
    %v437 = vld [vmem:[%s1 + $0xcd0] sm:$0xff]
    %v438 = vld [vmem:[%s1 + $0xcd8] sm:$0xff]
    %v439 = vld [vmem:[%s1 + $0xce0] sm:$0xff]
    %v440 = vld [vmem:[%s1 + $0xce8] sm:$0xff]
    %v441 = vld [vmem:[%s1 + $0xcf0] sm:$0xff]
    %v442 = vld [vmem:[%s1 + $0xcf8] sm:$0xff]
    %v443 = vld [vmem:[%s1 + $0xd00] sm:$0xff]
    %v444 = vld [vmem:[%s1 + $0xd08] sm:$0xff]
    %v445 = vld [vmem:[%s1 + $0xd10] sm:$0xff]
    %v446 = vld [vmem:[%s1 + $0xd18] sm:$0xff]
    %v447 = vld [vmem:[%s1 + $0xd20] sm:$0xff]
    %v448 = vld [vmem:[%s1 + $0xd28] sm:$0xff]
    %v449 = vld [vmem:[%s1 + $0xd30] sm:$0xff]
    %v450 = vld [vmem:[%s1 + $0xd38] sm:$0xff]
    %v451 = vld [vmem:[%s1 + $0xd40] sm:$0xff]
    %v452 = vld [vmem:[%s1 + $0xd48] sm:$0xff]
    %v453 = vld [vmem:[%s1 + $0xd50] sm:$0xff]
    %v454 = vld [vmem:[%s1 + $0xd58] sm:$0xff]
    %v455 = vld [vmem:[%s1 + $0xd60] sm:$0xff]
    %v456 = vld [vmem:[%s1 + $0xd68] sm:$0xff]
    %v457 = vld [vmem:[%s1 + $0xd70] sm:$0xff]
    %v458 = vld [vmem:[%s1 + $0xd78] sm:$0xff]
    %v459 = vld [vmem:[%s1 + $0xd80] sm:$0xff]
    %v460 = vld [vmem:[%s1 + $0xd88] sm:$0xff]
    %v461 = vld [vmem:[%s1 + $0xd90] sm:$0xff]
    %v462 = vld [vmem:[%s1 + $0xd98] sm:$0xff]
    %v463 = vld [vmem:[%s1 + $0xda0] sm:$0xff]
    %v464 = vld [vmem:[%s1 + $0xda8] sm:$0xff]
    %v465 = vld [vmem:[%s1 + $0xdb0] sm:$0xff]
    %v466 = vld [vmem:[%s1 + $0xdb8] sm:$0xff]
    %v467 = vld [vmem:[%s1 + $0xdc0] sm:$0xff]
    %v468 = vld [vmem:[%s1 + $0xdc8] sm:$0xff]
    %v469 = vld [vmem:[%s1 + $0xdd0] sm:$0xff]
    %v470 = vld [vmem:[%s1 + $0xdd8] sm:$0xff]
    %v471 = vld [vmem:[%s1 + $0xde0] sm:$0xff]
    %v472 = vld [vmem:[%s1 + $0xde8] sm:$0xff]
    %v473 = vld [vmem:[%s1 + $0xdf0] sm:$0xff]
    %v474 = vld [vmem:[%s1 + $0xdf8] sm:$0xff]
    %v475 = vld [vmem:[%s1 + $0xe00] sm:$0xff]
    %v476 = vld [vmem:[%s1 + $0xe08] sm:$0xff]
    %v477 = vld [vmem:[%s1 + $0xe10] sm:$0xff]
    %v478 = vld [vmem:[%s1 + $0xe18] sm:$0xff]
    %v479 = vld [vmem:[%s1 + $0xe20] sm:$0xff]
    %v480 = vld [vmem:[%s1 + $0xe28] sm:$0xff]
    %v481 = vld [vmem:[%s1 + $0xe30] sm:$0xff]
    %v482 = vld [vmem:[%s1 + $0xe38] sm:$0xff]
    %v483 = vld [vmem:[%s1 + $0xe40] sm:$0xff]
    %v484 = vld [vmem:[%s1 + $0xe48] sm:$0xff]
    %v485 = vld [vmem:[%s1 + $0xe50] sm:$0xff]
    %v486 = vld [vmem:[%s1 + $0xe58] sm:$0xff]
    %v487 = vld [vmem:[%s1 + $0xe60] sm:$0xff]
    %v488 = vld [vmem:[%s1 + $0xe68] sm:$0xff]
    %v489 = vld [vmem:[%s1 + $0xe70] sm:$0xff]
    %v490 = vld [vmem:[%s1 + $0xe78] sm:$0xff]
    %v491 = vld [vmem:[%s1 + $0xe80] sm:$0xff]
    %v492 = vld [vmem:[%s1 + $0xe88] sm:$0xff]
    %v493 = vld [vmem:[%s1 + $0xe90] sm:$0xff]
    %v494 = vld [vmem:[%s1 + $0xe98] sm:$0xff]
    %v495 = vld [vmem:[%s1 + $0xea0] sm:$0xff]
    %v496 = vld [vmem:[%s1 + $0xea8] sm:$0xff]
    %v497 = vld [vmem:[%s1 + $0xeb0] sm:$0xff]
    %v498 = vld [vmem:[%s1 + $0xeb8] sm:$0xff]
    %v499 = vld [vmem:[%s1 + $0xec0] sm:$0xff]
    %v500 = vld [vmem:[%s1 + $0xec8] sm:$0xff]
    %v501 = vld [vmem:[%s1 + $0xed0] sm:$0xff]
    %v502 = vld [vmem:[%s1 + $0xed8] sm:$0xff]
    %v503 = vld [vmem:[%s1 + $0xee0] sm:$0xff]
    %v504 = vld [vmem:[%s1 + $0xee8] sm:$0xff]
    %v505 = vld [vmem:[%s1 + $0xef0] sm:$0xff]
    %v506 = vld [vmem:[%s1 + $0xef8] sm:$0xff]
    %v507 = vld [vmem:[%s1 + $0xf00] sm:$0xff]
    %v508 = vld [vmem:[%s1 + $0xf08] sm:$0xff]
    %v509 = vld [vmem:[%s1 + $0xf10] sm:$0xff]
    %v510 = vld [vmem:[%s1 + $0xf18] sm:$0xff]
    %v511 = vld [vmem:[%s1 + $0xf20] sm:$0xff]
    %v512 = vld [vmem:[%s1 + $0xf28] sm:$0xff]
    %v513 = vld [vmem:[%s1 + $0xf30] sm:$0xff]
    %v514 = vld [vmem:[%s1 + $0xf38] sm:$0xff]
    %v515 = vld [vmem:[%s1 + $0xf40] sm:$0xff]
    %v516 = vld [vmem:[%s1 + $0xf48] sm:$0xff]
    %v517 = vld [vmem:[%s1 + $0xf50] sm:$0xff]
    %v518 = vld [vmem:[%s1 + $0xf58] sm:$0xff]
    %v519 = vld [vmem:[%s1 + $0xf60] sm:$0xff]
    %v520 = vld [vmem:[%s1 + $0xf68] sm:$0xff]
    %v521 = vld [vmem:[%s1 + $0xf70] sm:$0xff]
    %v522 = vld [vmem:[%s1 + $0xf78] sm:$0xff]
    %v523 = vld [vmem:[%s1 + $0xf80] sm:$0xff]
    %v524 = vld [vmem:[%s1 + $0xf88] sm:$0xff]
    %v525 = vld [vmem:[%s1 + $0xf90] sm:$0xff]
    %v526 = vld [vmem:[%s1 + $0xf98] sm:$0xff]
    %v527 = vld [vmem:[%s1 + $0xfa0] sm:$0xff]
    %v528 = vld [vmem:[%s1 + $0xfa8] sm:$0xff]
    %v529 = vld [vmem:[%s1 + $0xfb0] sm:$0xff]
    %v530 = vld [vmem:[%s1 + $0xfb8] sm:$0xff]
    %v531 = vld [vmem:[%s1 + $0xfc0] sm:$0xff]
    %v532 = vld [vmem:[%s1 + $0xfc8] sm:$0xff]
    %v533 = vld [vmem:[%s1 + $0xfd0] sm:$0xff]
    %v534 = vld [vmem:[%s1 + $0xfd8] sm:$0xff]
    %v535 = vld [vmem:[%s1 + $0xfe0] sm:$0xff]
    %v536 = vld [vmem:[%s1 + $0xfe8] sm:$0xff]
    %v537 = vld [vmem:[%s1 + $0xff0] sm:$0xff]
    %v538 = vld [vmem:[%s1 + $0xff8] sm:$0xff]
    %v541 = vcombine.high %v25, %v25
    %v543 = vunpack.c.l.s4 1966171168
    %v544 = vunpack.c.0.s8 %v543
    %v545 = vlaneseq
    %v546 = vshrl.u32 %v545, 7
    %v547 = vsub.s32 %v544, %v546
    %v548 = vrot.slane %v25, %v547
    %v550 = vunpack.c.l.s4 1966171168
    %v551 = vunpack.c.0.s8 %v550
    %v552 = vlaneseq
    %v553 = vshrl.u32 %v552, 7
    %v554 = vsub.s32 %v551, %v553
    %v555 = vrot.slane %v541, %v554
    %v556 = vcombine.high %v548, %v548
    %v557 = vcombine.high %v555, %v555
    %v559 = vunpack.c.l.s4 1966171168
    %v560 = vunpack.c.0.s8 %v559
    %v561 = vlaneseq
    %v562 = vshrl.u32 %v561, 7
    %v563 = vsub.s32 %v560, %v562
    %v564 = vrot.slane %v548, %v563
    %v566 = vunpack.c.l.s4 1966171168
    %v567 = vunpack.c.0.s8 %v566
    %v568 = vlaneseq
    %v569 = vshrl.u32 %v568, 7
    %v570 = vsub.s32 %v567, %v569
    %v571 = vrot.slane %v555, %v570
    %v573 = vunpack.c.l.s4 1966171168
    %v574 = vunpack.c.0.s8 %v573
    %v575 = vlaneseq
    %v576 = vshrl.u32 %v575, 7
    %v577 = vsub.s32 %v574, %v576
    %v578 = vrot.slane %v556, %v577
    %v580 = vunpack.c.l.s4 1966171168
    %v581 = vunpack.c.0.s8 %v580
    %v582 = vlaneseq
    %v583 = vshrl.u32 %v582, 7
    %v584 = vsub.s32 %v581, %v583
    %v585 = vrot.slane %v557, %v584
    %v586 = vcombine.high %v564, %v564
    %v587 = vcombine.high %v571, %v571
    %v588 = vcombine.high %v578, %v578
    %v589 = vcombine.high %v585, %v585
    %v590 = vcombine.high %v26, %v26
    %v592 = vunpack.c.l.s4 1966171168
    %v593 = vunpack.c.0.s8 %v592
    %v594 = vlaneseq
    %v595 = vshrl.u32 %v594, 7
    %v596 = vsub.s32 %v593, %v595
    %v597 = vrot.slane %v26, %v596
    %v599 = vunpack.c.l.s4 1966171168
    %v600 = vunpack.c.0.s8 %v599
    %v601 = vlaneseq
    %v602 = vshrl.u32 %v601, 7
    %v603 = vsub.s32 %v600, %v602
    %v604 = vrot.slane %v590, %v603
    %v605 = vcombine.high %v597, %v597
    %v606 = vcombine.high %v604, %v604
    %v608 = vunpack.c.l.s4 1966171168
    %v609 = vunpack.c.0.s8 %v608
    %v610 = vlaneseq
    %v611 = vshrl.u32 %v610, 7
    %v612 = vsub.s32 %v609, %v611
    %v613 = vrot.slane %v597, %v612
    %v615 = vunpack.c.l.s4 1966171168
    %v616 = vunpack.c.0.s8 %v615
    %v617 = vlaneseq
    %v618 = vshrl.u32 %v617, 7
    %v619 = vsub.s32 %v616, %v618
    %v620 = vrot.slane %v604, %v619
    %v622 = vunpack.c.l.s4 1966171168
    %v623 = vunpack.c.0.s8 %v622
    %v624 = vlaneseq
    %v625 = vshrl.u32 %v624, 7
    %v626 = vsub.s32 %v623, %v625
    %v627 = vrot.slane %v605, %v626
    %v629 = vunpack.c.l.s4 1966171168
    %v630 = vunpack.c.0.s8 %v629
    %v631 = vlaneseq
    %v632 = vshrl.u32 %v631, 7
    %v633 = vsub.s32 %v630, %v632
    %v634 = vrot.slane %v606, %v633
    %v635 = vcombine.high %v613, %v613
    %v636 = vcombine.high %v620, %v620
    %v637 = vcombine.high %v627, %v627
    %v638 = vcombine.high %v634, %v634
    %v1167 = vunpack.c.l.b16 %v27
    %v1168 = vunpack.c.h.b16 %v27
    %v1169 = vunpack.c.l.b16 %v28
    %v1170 = vunpack.c.h.b16 %v28
    %v1171 = vunpack.c.l.b16 %v29
    %v1172 = vunpack.c.h.b16 %v29
    %v1173 = vunpack.c.l.b16 %v30
    %v1174 = vunpack.c.h.b16 %v30
    %v1175 = vunpack.c.l.b16 %v31
    %v1176 = vunpack.c.h.b16 %v31
    %v1177 = vunpack.c.l.b16 %v32
    %v1178 = vunpack.c.h.b16 %v32
    %v1179 = vunpack.c.l.b16 %v33
    %v1180 = vunpack.c.h.b16 %v33
    %v1181 = vunpack.c.l.b16 %v34
    %v1182 = vunpack.c.h.b16 %v34
    %v1183 = vunpack.c.l.b16 %v35
    %v1184 = vunpack.c.h.b16 %v35
    %v1185 = vunpack.c.l.b16 %v36
    %v1186 = vunpack.c.h.b16 %v36
    %v1187 = vunpack.c.l.b16 %v37
    %v1188 = vunpack.c.h.b16 %v37
    %v1189 = vunpack.c.l.b16 %v38
    %v1190 = vunpack.c.h.b16 %v38
    %v1191 = vunpack.c.l.b16 %v39
    %v1192 = vunpack.c.h.b16 %v39
    %v1193 = vunpack.c.l.b16 %v40
    %v1194 = vunpack.c.h.b16 %v40
    %v1195 = vunpack.c.l.b16 %v41
    %v1196 = vunpack.c.h.b16 %v41
    %v1197 = vunpack.c.l.b16 %v42
    %v1198 = vunpack.c.h.b16 %v42
    %v1199 = vunpack.c.l.b16 %v43
    %v1200 = vunpack.c.h.b16 %v43
    %v1201 = vunpack.c.l.b16 %v44
    %v1202 = vunpack.c.h.b16 %v44
    %v1203 = vunpack.c.l.b16 %v45
    %v1204 = vunpack.c.h.b16 %v45
    %v1205 = vunpack.c.l.b16 %v46
    %v1206 = vunpack.c.h.b16 %v46
    %v1207 = vunpack.c.l.b16 %v47
    %v1208 = vunpack.c.h.b16 %v47
    %v1209 = vunpack.c.l.b16 %v48
    %v1210 = vunpack.c.h.b16 %v48
    %v1211 = vunpack.c.l.b16 %v49
    %v1212 = vunpack.c.h.b16 %v49
    %v1213 = vunpack.c.l.b16 %v50
    %v1214 = vunpack.c.h.b16 %v50
    %v1215 = vunpack.c.l.b16 %v51
    %v1216 = vunpack.c.h.b16 %v51
    %v1217 = vunpack.c.l.b16 %v52
    %v1218 = vunpack.c.h.b16 %v52
    %v1219 = vunpack.c.l.b16 %v53
    %v1220 = vunpack.c.h.b16 %v53
    %v1221 = vunpack.c.l.b16 %v54
    %v1222 = vunpack.c.h.b16 %v54
    %v1223 = vunpack.c.l.b16 %v55
    %v1224 = vunpack.c.h.b16 %v55
    %v1225 = vunpack.c.l.b16 %v56
    %v1226 = vunpack.c.h.b16 %v56
    %v1227 = vunpack.c.l.b16 %v57
    %v1228 = vunpack.c.h.b16 %v57
    %v1229 = vunpack.c.l.b16 %v58
    %v1230 = vunpack.c.h.b16 %v58
    %v1231 = vunpack.c.l.b16 %v59
    %v1232 = vunpack.c.h.b16 %v59
    %v1233 = vunpack.c.l.b16 %v60
    %v1234 = vunpack.c.h.b16 %v60
    %v1235 = vunpack.c.l.b16 %v61
    %v1236 = vunpack.c.h.b16 %v61
    %v1237 = vunpack.c.l.b16 %v62
    %v1238 = vunpack.c.h.b16 %v62
    %v1239 = vunpack.c.l.b16 %v63
    %v1240 = vunpack.c.h.b16 %v63
    %v1241 = vunpack.c.l.b16 %v64
    %v1242 = vunpack.c.h.b16 %v64
    %v1243 = vunpack.c.l.b16 %v65
    %v1244 = vunpack.c.h.b16 %v65
    %v1245 = vunpack.c.l.b16 %v66
    %v1246 = vunpack.c.h.b16 %v66
    %v1247 = vunpack.c.l.b16 %v67
    %v1248 = vunpack.c.h.b16 %v67
    %v1249 = vunpack.c.l.b16 %v68
    %v1250 = vunpack.c.h.b16 %v68
    %v1251 = vunpack.c.l.b16 %v69
    %v1252 = vunpack.c.h.b16 %v69
    %v1253 = vunpack.c.l.b16 %v70
    %v1254 = vunpack.c.h.b16 %v70
    %v1255 = vunpack.c.l.b16 %v71
    %v1256 = vunpack.c.h.b16 %v71
    %v1257 = vunpack.c.l.b16 %v72
    %v1258 = vunpack.c.h.b16 %v72
    %v1259 = vunpack.c.l.b16 %v73
    %v1260 = vunpack.c.h.b16 %v73
    %v1261 = vunpack.c.l.b16 %v74
    %v1262 = vunpack.c.h.b16 %v74
    %v1263 = vunpack.c.l.b16 %v75
    %v1264 = vunpack.c.h.b16 %v75
    %v1265 = vunpack.c.l.b16 %v76
    %v1266 = vunpack.c.h.b16 %v76
    %v1267 = vunpack.c.l.b16 %v77
    %v1268 = vunpack.c.h.b16 %v77
    %v1269 = vunpack.c.l.b16 %v78
    %v1270 = vunpack.c.h.b16 %v78
    %v1271 = vunpack.c.l.b16 %v79
    %v1272 = vunpack.c.h.b16 %v79
    %v1273 = vunpack.c.l.b16 %v80
    %v1274 = vunpack.c.h.b16 %v80
    %v1275 = vunpack.c.l.b16 %v81
    %v1276 = vunpack.c.h.b16 %v81
    %v1277 = vunpack.c.l.b16 %v82
    %v1278 = vunpack.c.h.b16 %v82
    %v1279 = vunpack.c.l.b16 %v83
    %v1280 = vunpack.c.h.b16 %v83
    %v1281 = vunpack.c.l.b16 %v84
    %v1282 = vunpack.c.h.b16 %v84
    %v1283 = vunpack.c.l.b16 %v85
    %v1284 = vunpack.c.h.b16 %v85
    %v1285 = vunpack.c.l.b16 %v86
    %v1286 = vunpack.c.h.b16 %v86
    %v1287 = vunpack.c.l.b16 %v87
    %v1288 = vunpack.c.h.b16 %v87
    %v1289 = vunpack.c.l.b16 %v88
    %v1290 = vunpack.c.h.b16 %v88
    %v1291 = vunpack.c.l.b16 %v89
    %v1292 = vunpack.c.h.b16 %v89
    %v1293 = vunpack.c.l.b16 %v90
    %v1294 = vunpack.c.h.b16 %v90
    %v1295 = vunpack.c.l.b16 %v91
    %v1296 = vunpack.c.h.b16 %v91
    %v1297 = vunpack.c.l.b16 %v92
    %v1298 = vunpack.c.h.b16 %v92
    %v1299 = vunpack.c.l.b16 %v93
    %v1300 = vunpack.c.h.b16 %v93
    %v1301 = vunpack.c.l.b16 %v94
    %v1302 = vunpack.c.h.b16 %v94
    %v1303 = vunpack.c.l.b16 %v95
    %v1304 = vunpack.c.h.b16 %v95
    %v1305 = vunpack.c.l.b16 %v96
    %v1306 = vunpack.c.h.b16 %v96
    %v1307 = vunpack.c.l.b16 %v97
    %v1308 = vunpack.c.h.b16 %v97
    %v1309 = vunpack.c.l.b16 %v98
    %v1310 = vunpack.c.h.b16 %v98
    %v1311 = vunpack.c.l.b16 %v99
    %v1312 = vunpack.c.h.b16 %v99
    %v1313 = vunpack.c.l.b16 %v100
    %v1314 = vunpack.c.h.b16 %v100
    %v1315 = vunpack.c.l.b16 %v101
    %v1316 = vunpack.c.h.b16 %v101
    %v1317 = vunpack.c.l.b16 %v102
    %v1318 = vunpack.c.h.b16 %v102
    %v1319 = vunpack.c.l.b16 %v103
    %v1320 = vunpack.c.h.b16 %v103
    %v1321 = vunpack.c.l.b16 %v104
    %v1322 = vunpack.c.h.b16 %v104
    %v1323 = vunpack.c.l.b16 %v105
    %v1324 = vunpack.c.h.b16 %v105
    %v1325 = vunpack.c.l.b16 %v106
    %v1326 = vunpack.c.h.b16 %v106
    %v1327 = vunpack.c.l.b16 %v107
    %v1328 = vunpack.c.h.b16 %v107
    %v1329 = vunpack.c.l.b16 %v108
    %v1330 = vunpack.c.h.b16 %v108
    %v1331 = vunpack.c.l.b16 %v109
    %v1332 = vunpack.c.h.b16 %v109
    %v1333 = vunpack.c.l.b16 %v110
    %v1334 = vunpack.c.h.b16 %v110
    %v1335 = vunpack.c.l.b16 %v111
    %v1336 = vunpack.c.h.b16 %v111
    %v1337 = vunpack.c.l.b16 %v112
    %v1338 = vunpack.c.h.b16 %v112
    %v1339 = vunpack.c.l.b16 %v113
    %v1340 = vunpack.c.h.b16 %v113
    %v1341 = vunpack.c.l.b16 %v114
    %v1342 = vunpack.c.h.b16 %v114
    %v1343 = vunpack.c.l.b16 %v115
    %v1344 = vunpack.c.h.b16 %v115
    %v1345 = vunpack.c.l.b16 %v116
    %v1346 = vunpack.c.h.b16 %v116
    %v1347 = vunpack.c.l.b16 %v117
    %v1348 = vunpack.c.h.b16 %v117
    %v1349 = vunpack.c.l.b16 %v118
    %v1350 = vunpack.c.h.b16 %v118
    %v1351 = vunpack.c.l.b16 %v119
    %v1352 = vunpack.c.h.b16 %v119
    %v1353 = vunpack.c.l.b16 %v120
    %v1354 = vunpack.c.h.b16 %v120
    %v1355 = vunpack.c.l.b16 %v121
    %v1356 = vunpack.c.h.b16 %v121
    %v1357 = vunpack.c.l.b16 %v122
    %v1358 = vunpack.c.h.b16 %v122
    %v1359 = vunpack.c.l.b16 %v123
    %v1360 = vunpack.c.h.b16 %v123
    %v1361 = vunpack.c.l.b16 %v124
    %v1362 = vunpack.c.h.b16 %v124
    %v1363 = vunpack.c.l.b16 %v125
    %v1364 = vunpack.c.h.b16 %v125
    %v1365 = vunpack.c.l.b16 %v126
    %v1366 = vunpack.c.h.b16 %v126
    %v1367 = vunpack.c.l.b16 %v127
    %v1368 = vunpack.c.h.b16 %v127
    %v1369 = vunpack.c.l.b16 %v128
    %v1370 = vunpack.c.h.b16 %v128
    %v1371 = vunpack.c.l.b16 %v129
    %v1372 = vunpack.c.h.b16 %v129
    %v1373 = vunpack.c.l.b16 %v130
    %v1374 = vunpack.c.h.b16 %v130
    %v1375 = vunpack.c.l.b16 %v131
    %v1376 = vunpack.c.h.b16 %v131
    %v1377 = vunpack.c.l.b16 %v132
    %v1378 = vunpack.c.h.b16 %v132
    %v1379 = vunpack.c.l.b16 %v133
    %v1380 = vunpack.c.h.b16 %v133
    %v1381 = vunpack.c.l.b16 %v134
    %v1382 = vunpack.c.h.b16 %v134
    %v1383 = vunpack.c.l.b16 %v135
    %v1384 = vunpack.c.h.b16 %v135
    %v1385 = vunpack.c.l.b16 %v136
    %v1386 = vunpack.c.h.b16 %v136
    %v1387 = vunpack.c.l.b16 %v137
    %v1388 = vunpack.c.h.b16 %v137
    %v1389 = vunpack.c.l.b16 %v138
    %v1390 = vunpack.c.h.b16 %v138
    %v1391 = vunpack.c.l.b16 %v139
    %v1392 = vunpack.c.h.b16 %v139
    %v1393 = vunpack.c.l.b16 %v140
    %v1394 = vunpack.c.h.b16 %v140
    %v1395 = vunpack.c.l.b16 %v141
    %v1396 = vunpack.c.h.b16 %v141
    %v1397 = vunpack.c.l.b16 %v142
    %v1398 = vunpack.c.h.b16 %v142
    %v1399 = vunpack.c.l.b16 %v143
    %v1400 = vunpack.c.h.b16 %v143
    %v1401 = vunpack.c.l.b16 %v144
    %v1402 = vunpack.c.h.b16 %v144
    %v1403 = vunpack.c.l.b16 %v145
    %v1404 = vunpack.c.h.b16 %v145
    %v1405 = vunpack.c.l.b16 %v146
    %v1406 = vunpack.c.h.b16 %v146
    %v1407 = vunpack.c.l.b16 %v147
    %v1408 = vunpack.c.h.b16 %v147
    %v1409 = vunpack.c.l.b16 %v148
    %v1410 = vunpack.c.h.b16 %v148
    %v1411 = vunpack.c.l.b16 %v149
    %v1412 = vunpack.c.h.b16 %v149
    %v1413 = vunpack.c.l.b16 %v150
    %v1414 = vunpack.c.h.b16 %v150
    %v1415 = vunpack.c.l.b16 %v151
    %v1416 = vunpack.c.h.b16 %v151
    %v1417 = vunpack.c.l.b16 %v152
    %v1418 = vunpack.c.h.b16 %v152
    %v1419 = vunpack.c.l.b16 %v153
    %v1420 = vunpack.c.h.b16 %v153
    %v1421 = vunpack.c.l.b16 %v154
    %v1422 = vunpack.c.h.b16 %v154
    %v1423 = vunpack.c.l.b16 %v155
    %v1424 = vunpack.c.h.b16 %v155
    %v1425 = vunpack.c.l.b16 %v156
    %v1426 = vunpack.c.h.b16 %v156
    %v1427 = vunpack.c.l.b16 %v157
    %v1428 = vunpack.c.h.b16 %v157
    %v1429 = vunpack.c.l.b16 %v158
    %v1430 = vunpack.c.h.b16 %v158
    %v1431 = vunpack.c.l.b16 %v159
    %v1432 = vunpack.c.h.b16 %v159
    %v1433 = vunpack.c.l.b16 %v160
    %v1434 = vunpack.c.h.b16 %v160
    %v1435 = vunpack.c.l.b16 %v161
    %v1436 = vunpack.c.h.b16 %v161
    %v1437 = vunpack.c.l.b16 %v162
    %v1438 = vunpack.c.h.b16 %v162
    %v1439 = vunpack.c.l.b16 %v163
    %v1440 = vunpack.c.h.b16 %v163
    %v1441 = vunpack.c.l.b16 %v164
    %v1442 = vunpack.c.h.b16 %v164
    %v1443 = vunpack.c.l.b16 %v165
    %v1444 = vunpack.c.h.b16 %v165
    %v1445 = vunpack.c.l.b16 %v166
    %v1446 = vunpack.c.h.b16 %v166
    %v1447 = vunpack.c.l.b16 %v167
    %v1448 = vunpack.c.h.b16 %v167
    %v1449 = vunpack.c.l.b16 %v168
    %v1450 = vunpack.c.h.b16 %v168
    %v1451 = vunpack.c.l.b16 %v169
    %v1452 = vunpack.c.h.b16 %v169
    %v1453 = vunpack.c.l.b16 %v170
    %v1454 = vunpack.c.h.b16 %v170
    %v1455 = vunpack.c.l.b16 %v171
    %v1456 = vunpack.c.h.b16 %v171
    %v1457 = vunpack.c.l.b16 %v172
    %v1458 = vunpack.c.h.b16 %v172
    %v1459 = vunpack.c.l.b16 %v173
    %v1460 = vunpack.c.h.b16 %v173
    %v1461 = vunpack.c.l.b16 %v174
    %v1462 = vunpack.c.h.b16 %v174
    %v1463 = vunpack.c.l.b16 %v175
    %v1464 = vunpack.c.h.b16 %v175
    %v1465 = vunpack.c.l.b16 %v176
    %v1466 = vunpack.c.h.b16 %v176
    %v1467 = vunpack.c.l.b16 %v177
    %v1468 = vunpack.c.h.b16 %v177
    %v1469 = vunpack.c.l.b16 %v178
    %v1470 = vunpack.c.h.b16 %v178
    %v1471 = vunpack.c.l.b16 %v179
    %v1472 = vunpack.c.h.b16 %v179
    %v1473 = vunpack.c.l.b16 %v180
    %v1474 = vunpack.c.h.b16 %v180
    %v1475 = vunpack.c.l.b16 %v181
    %v1476 = vunpack.c.h.b16 %v181
    %v1477 = vunpack.c.l.b16 %v182
    %v1478 = vunpack.c.h.b16 %v182
    %v1479 = vunpack.c.l.b16 %v183
    %v1480 = vunpack.c.h.b16 %v183
    %v1481 = vunpack.c.l.b16 %v184
    %v1482 = vunpack.c.h.b16 %v184
    %v1483 = vunpack.c.l.b16 %v185
    %v1484 = vunpack.c.h.b16 %v185
    %v1485 = vunpack.c.l.b16 %v186
    %v1486 = vunpack.c.h.b16 %v186
    %v1487 = vunpack.c.l.b16 %v187
    %v1488 = vunpack.c.h.b16 %v187
    %v1489 = vunpack.c.l.b16 %v188
    %v1490 = vunpack.c.h.b16 %v188
    %v1491 = vunpack.c.l.b16 %v189
    %v1492 = vunpack.c.h.b16 %v189
    %v1493 = vunpack.c.l.b16 %v190
    %v1494 = vunpack.c.h.b16 %v190
    %v1495 = vunpack.c.l.b16 %v191
    %v1496 = vunpack.c.h.b16 %v191
    %v1497 = vunpack.c.l.b16 %v192
    %v1498 = vunpack.c.h.b16 %v192
    %v1499 = vunpack.c.l.b16 %v193
    %v1500 = vunpack.c.h.b16 %v193
    %v1501 = vunpack.c.l.b16 %v194
    %v1502 = vunpack.c.h.b16 %v194
    %v1503 = vunpack.c.l.b16 %v195
    %v1504 = vunpack.c.h.b16 %v195
    %v1505 = vunpack.c.l.b16 %v196
    %v1506 = vunpack.c.h.b16 %v196
    %v1507 = vunpack.c.l.b16 %v197
    %v1508 = vunpack.c.h.b16 %v197
    %v1509 = vunpack.c.l.b16 %v198
    %v1510 = vunpack.c.h.b16 %v198
    %v1511 = vunpack.c.l.b16 %v199
    %v1512 = vunpack.c.h.b16 %v199
    %v1513 = vunpack.c.l.b16 %v200
    %v1514 = vunpack.c.h.b16 %v200
    %v1515 = vunpack.c.l.b16 %v201
    %v1516 = vunpack.c.h.b16 %v201
    %v1517 = vunpack.c.l.b16 %v202
    %v1518 = vunpack.c.h.b16 %v202
    %v1519 = vunpack.c.l.b16 %v203
    %v1520 = vunpack.c.h.b16 %v203
    %v1521 = vunpack.c.l.b16 %v204
    %v1522 = vunpack.c.h.b16 %v204
    %v1523 = vunpack.c.l.b16 %v205
    %v1524 = vunpack.c.h.b16 %v205
    %v1525 = vunpack.c.l.b16 %v206
    %v1526 = vunpack.c.h.b16 %v206
    %v1527 = vunpack.c.l.b16 %v207
    %v1528 = vunpack.c.h.b16 %v207
    %v1529 = vunpack.c.l.b16 %v208
    %v1530 = vunpack.c.h.b16 %v208
    %v1531 = vunpack.c.l.b16 %v209
    %v1532 = vunpack.c.h.b16 %v209
    %v1533 = vunpack.c.l.b16 %v210
    %v1534 = vunpack.c.h.b16 %v210
    %v1535 = vunpack.c.l.b16 %v211
    %v1536 = vunpack.c.h.b16 %v211
    %v1537 = vunpack.c.l.b16 %v212
    %v1538 = vunpack.c.h.b16 %v212
    %v1539 = vunpack.c.l.b16 %v213
    %v1540 = vunpack.c.h.b16 %v213
    %v1541 = vunpack.c.l.b16 %v214
    %v1542 = vunpack.c.h.b16 %v214
    %v1543 = vunpack.c.l.b16 %v215
    %v1544 = vunpack.c.h.b16 %v215
    %v1545 = vunpack.c.l.b16 %v216
    %v1546 = vunpack.c.h.b16 %v216
    %v1547 = vunpack.c.l.b16 %v217
    %v1548 = vunpack.c.h.b16 %v217
    %v1549 = vunpack.c.l.b16 %v218
    %v1550 = vunpack.c.h.b16 %v218
    %v1551 = vunpack.c.l.b16 %v219
    %v1552 = vunpack.c.h.b16 %v219
    %v1553 = vunpack.c.l.b16 %v220
    %v1554 = vunpack.c.h.b16 %v220
    %v1555 = vunpack.c.l.b16 %v221
    %v1556 = vunpack.c.h.b16 %v221
    %v1557 = vunpack.c.l.b16 %v222
    %v1558 = vunpack.c.h.b16 %v222
    %v1559 = vunpack.c.l.b16 %v223
    %v1560 = vunpack.c.h.b16 %v223
    %v1561 = vunpack.c.l.b16 %v224
    %v1562 = vunpack.c.h.b16 %v224
    %v1563 = vunpack.c.l.b16 %v225
    %v1564 = vunpack.c.h.b16 %v225
    %v1565 = vunpack.c.l.b16 %v226
    %v1566 = vunpack.c.h.b16 %v226
    %v1567 = vunpack.c.l.b16 %v227
    %v1568 = vunpack.c.h.b16 %v227
    %v1569 = vunpack.c.l.b16 %v228
    %v1570 = vunpack.c.h.b16 %v228
    %v1571 = vunpack.c.l.b16 %v229
    %v1572 = vunpack.c.h.b16 %v229
    %v1573 = vunpack.c.l.b16 %v230
    %v1574 = vunpack.c.h.b16 %v230
    %v1575 = vunpack.c.l.b16 %v231
    %v1576 = vunpack.c.h.b16 %v231
    %v1577 = vunpack.c.l.b16 %v232
    %v1578 = vunpack.c.h.b16 %v232
    %v1579 = vunpack.c.l.b16 %v233
    %v1580 = vunpack.c.h.b16 %v233
    %v1581 = vunpack.c.l.b16 %v234
    %v1582 = vunpack.c.h.b16 %v234
    %v1583 = vunpack.c.l.b16 %v235
    %v1584 = vunpack.c.h.b16 %v235
    %v1585 = vunpack.c.l.b16 %v236
    %v1586 = vunpack.c.h.b16 %v236
    %v1587 = vunpack.c.l.b16 %v237
    %v1588 = vunpack.c.h.b16 %v237
    %v1589 = vunpack.c.l.b16 %v238
    %v1590 = vunpack.c.h.b16 %v238
    %v1591 = vunpack.c.l.b16 %v239
    %v1592 = vunpack.c.h.b16 %v239
    %v1593 = vunpack.c.l.b16 %v240
    %v1594 = vunpack.c.h.b16 %v240
    %v1595 = vunpack.c.l.b16 %v241
    %v1596 = vunpack.c.h.b16 %v241
    %v1597 = vunpack.c.l.b16 %v242
    %v1598 = vunpack.c.h.b16 %v242
    %v1599 = vunpack.c.l.b16 %v243
    %v1600 = vunpack.c.h.b16 %v243
    %v1601 = vunpack.c.l.b16 %v244
    %v1602 = vunpack.c.h.b16 %v244
    %v1603 = vunpack.c.l.b16 %v245
    %v1604 = vunpack.c.h.b16 %v245
    %v1605 = vunpack.c.l.b16 %v246
    %v1606 = vunpack.c.h.b16 %v246
    %v1607 = vunpack.c.l.b16 %v247
    %v1608 = vunpack.c.h.b16 %v247
    %v1609 = vunpack.c.l.b16 %v248
    %v1610 = vunpack.c.h.b16 %v248
    %v1611 = vunpack.c.l.b16 %v249
    %v1612 = vunpack.c.h.b16 %v249
    %v1613 = vunpack.c.l.b16 %v250
    %v1614 = vunpack.c.h.b16 %v250
    %v1615 = vunpack.c.l.b16 %v251
    %v1616 = vunpack.c.h.b16 %v251
    %v1617 = vunpack.c.l.b16 %v252
    %v1618 = vunpack.c.h.b16 %v252
    %v1619 = vunpack.c.l.b16 %v253
    %v1620 = vunpack.c.h.b16 %v253
    %v1621 = vunpack.c.l.b16 %v254
    %v1622 = vunpack.c.h.b16 %v254
    %v1623 = vunpack.c.l.b16 %v255
    %v1624 = vunpack.c.h.b16 %v255
    %v1625 = vunpack.c.l.b16 %v256
    %v1626 = vunpack.c.h.b16 %v256
    %v1627 = vunpack.c.l.b16 %v257
    %v1628 = vunpack.c.h.b16 %v257
    %v1629 = vunpack.c.l.b16 %v258
    %v1630 = vunpack.c.h.b16 %v258
    %v1631 = vunpack.c.l.b16 %v259
    %v1632 = vunpack.c.h.b16 %v259
    %v1633 = vunpack.c.l.b16 %v260
    %v1634 = vunpack.c.h.b16 %v260
    %v1635 = vunpack.c.l.b16 %v261
    %v1636 = vunpack.c.h.b16 %v261
    %v1637 = vunpack.c.l.b16 %v262
    %v1638 = vunpack.c.h.b16 %v262
    %v1639 = vunpack.c.l.b16 %v263
    %v1640 = vunpack.c.h.b16 %v263
    %v1641 = vunpack.c.l.b16 %v264
    %v1642 = vunpack.c.h.b16 %v264
    %v1643 = vunpack.c.l.b16 %v265
    %v1644 = vunpack.c.h.b16 %v265
    %v1645 = vunpack.c.l.b16 %v266
    %v1646 = vunpack.c.h.b16 %v266
    %v1647 = vunpack.c.l.b16 %v267
    %v1648 = vunpack.c.h.b16 %v267
    %v1649 = vunpack.c.l.b16 %v268
    %v1650 = vunpack.c.h.b16 %v268
    %v1651 = vunpack.c.l.b16 %v269
    %v1652 = vunpack.c.h.b16 %v269
    %v1653 = vunpack.c.l.b16 %v270
    %v1654 = vunpack.c.h.b16 %v270
    %v1655 = vunpack.c.l.b16 %v271
    %v1656 = vunpack.c.h.b16 %v271
    %v1657 = vunpack.c.l.b16 %v272
    %v1658 = vunpack.c.h.b16 %v272
    %v1659 = vunpack.c.l.b16 %v273
    %v1660 = vunpack.c.h.b16 %v273
    %v1661 = vunpack.c.l.b16 %v274
    %v1662 = vunpack.c.h.b16 %v274
    %v1663 = vunpack.c.l.b16 %v275
    %v1664 = vunpack.c.h.b16 %v275
    %v1665 = vunpack.c.l.b16 %v276
    %v1666 = vunpack.c.h.b16 %v276
    %v1667 = vunpack.c.l.b16 %v277
    %v1668 = vunpack.c.h.b16 %v277
    %v1669 = vunpack.c.l.b16 %v278
    %v1670 = vunpack.c.h.b16 %v278
    %v1671 = vunpack.c.l.b16 %v279
    %v1672 = vunpack.c.h.b16 %v279
    %v1673 = vunpack.c.l.b16 %v280
    %v1674 = vunpack.c.h.b16 %v280
    %v1675 = vunpack.c.l.b16 %v281
    %v1676 = vunpack.c.h.b16 %v281
    %v1677 = vunpack.c.l.b16 %v282
    %v1678 = vunpack.c.h.b16 %v282
    %v1679 = vunpack.c.l.b16 %v283
    %v1680 = vunpack.c.h.b16 %v283
    %v1681 = vunpack.c.l.b16 %v284
    %v1682 = vunpack.c.h.b16 %v284
    %v1683 = vunpack.c.l.b16 %v285
    %v1684 = vunpack.c.h.b16 %v285
    %v1685 = vunpack.c.l.b16 %v286
    %v1686 = vunpack.c.h.b16 %v286
    %v1687 = vunpack.c.l.b16 %v287
    %v1688 = vunpack.c.h.b16 %v287
    %v1689 = vunpack.c.l.b16 %v288
    %v1690 = vunpack.c.h.b16 %v288
    %v1691 = vunpack.c.l.b16 %v289
    %v1692 = vunpack.c.h.b16 %v289
    %v1693 = vunpack.c.l.b16 %v290
    %v1694 = vunpack.c.h.b16 %v290
    %v1695 = vunpack.c.l.b16 %v291
    %v1696 = vunpack.c.h.b16 %v291
    %v1697 = vunpack.c.l.b16 %v292
    %v1698 = vunpack.c.h.b16 %v292
    %v1699 = vunpack.c.l.b16 %v293
    %v1700 = vunpack.c.h.b16 %v293
    %v1701 = vunpack.c.l.b16 %v294
    %v1702 = vunpack.c.h.b16 %v294
    %v1703 = vunpack.c.l.b16 %v295
    %v1704 = vunpack.c.h.b16 %v295
    %v1705 = vunpack.c.l.b16 %v296
    %v1706 = vunpack.c.h.b16 %v296
    %v1707 = vunpack.c.l.b16 %v297
    %v1708 = vunpack.c.h.b16 %v297
    %v1709 = vunpack.c.l.b16 %v298
    %v1710 = vunpack.c.h.b16 %v298
    %v1711 = vunpack.c.l.b16 %v299
    %v1712 = vunpack.c.h.b16 %v299
    %v1713 = vunpack.c.l.b16 %v300
    %v1714 = vunpack.c.h.b16 %v300
    %v1715 = vunpack.c.l.b16 %v301
    %v1716 = vunpack.c.h.b16 %v301
    %v1717 = vunpack.c.l.b16 %v302
    %v1718 = vunpack.c.h.b16 %v302
    %v1719 = vunpack.c.l.b16 %v303
    %v1720 = vunpack.c.h.b16 %v303
    %v1721 = vunpack.c.l.b16 %v304
    %v1722 = vunpack.c.h.b16 %v304
    %v1723 = vunpack.c.l.b16 %v305
    %v1724 = vunpack.c.h.b16 %v305
    %v1725 = vunpack.c.l.b16 %v306
    %v1726 = vunpack.c.h.b16 %v306
    %v1727 = vunpack.c.l.b16 %v307
    %v1728 = vunpack.c.h.b16 %v307
    %v1729 = vunpack.c.l.b16 %v308
    %v1730 = vunpack.c.h.b16 %v308
    %v1731 = vunpack.c.l.b16 %v309
    %v1732 = vunpack.c.h.b16 %v309
    %v1733 = vunpack.c.l.b16 %v310
    %v1734 = vunpack.c.h.b16 %v310
    %v1735 = vunpack.c.l.b16 %v311
    %v1736 = vunpack.c.h.b16 %v311
    %v1737 = vunpack.c.l.b16 %v312
    %v1738 = vunpack.c.h.b16 %v312
    %v1739 = vunpack.c.l.b16 %v313
    %v1740 = vunpack.c.h.b16 %v313
    %v1741 = vunpack.c.l.b16 %v314
    %v1742 = vunpack.c.h.b16 %v314
    %v1743 = vunpack.c.l.b16 %v315
    %v1744 = vunpack.c.h.b16 %v315
    %v1745 = vunpack.c.l.b16 %v316
    %v1746 = vunpack.c.h.b16 %v316
    %v1747 = vunpack.c.l.b16 %v317
    %v1748 = vunpack.c.h.b16 %v317
    %v1749 = vunpack.c.l.b16 %v318
    %v1750 = vunpack.c.h.b16 %v318
    %v1751 = vunpack.c.l.b16 %v319
    %v1752 = vunpack.c.h.b16 %v319
    %v1753 = vunpack.c.l.b16 %v320
    %v1754 = vunpack.c.h.b16 %v320
    %v1755 = vunpack.c.l.b16 %v321
    %v1756 = vunpack.c.h.b16 %v321
    %v1757 = vunpack.c.l.b16 %v322
    %v1758 = vunpack.c.h.b16 %v322
    %v1759 = vunpack.c.l.b16 %v323
    %v1760 = vunpack.c.h.b16 %v323
    %v1761 = vunpack.c.l.b16 %v324
    %v1762 = vunpack.c.h.b16 %v324
    %v1763 = vunpack.c.l.b16 %v325
    %v1764 = vunpack.c.h.b16 %v325
    %v1765 = vunpack.c.l.b16 %v326
    %v1766 = vunpack.c.h.b16 %v326
    %v1767 = vunpack.c.l.b16 %v327
    %v1768 = vunpack.c.h.b16 %v327
    %v1769 = vunpack.c.l.b16 %v328
    %v1770 = vunpack.c.h.b16 %v328
    %v1771 = vunpack.c.l.b16 %v329
    %v1772 = vunpack.c.h.b16 %v329
    %v1773 = vunpack.c.l.b16 %v330
    %v1774 = vunpack.c.h.b16 %v330
    %v1775 = vunpack.c.l.b16 %v331
    %v1776 = vunpack.c.h.b16 %v331
    %v1777 = vunpack.c.l.b16 %v332
    %v1778 = vunpack.c.h.b16 %v332
    %v1779 = vunpack.c.l.b16 %v333
    %v1780 = vunpack.c.h.b16 %v333
    %v1781 = vunpack.c.l.b16 %v334
    %v1782 = vunpack.c.h.b16 %v334
    %v1783 = vunpack.c.l.b16 %v335
    %v1784 = vunpack.c.h.b16 %v335
    %v1785 = vunpack.c.l.b16 %v336
    %v1786 = vunpack.c.h.b16 %v336
    %v1787 = vunpack.c.l.b16 %v337
    %v1788 = vunpack.c.h.b16 %v337
    %v1789 = vunpack.c.l.b16 %v338
    %v1790 = vunpack.c.h.b16 %v338
    %v1791 = vunpack.c.l.b16 %v339
    %v1792 = vunpack.c.h.b16 %v339
    %v1793 = vunpack.c.l.b16 %v340
    %v1794 = vunpack.c.h.b16 %v340
    %v1795 = vunpack.c.l.b16 %v341
    %v1796 = vunpack.c.h.b16 %v341
    %v1797 = vunpack.c.l.b16 %v342
    %v1798 = vunpack.c.h.b16 %v342
    %v1799 = vunpack.c.l.b16 %v343
    %v1800 = vunpack.c.h.b16 %v343
    %v1801 = vunpack.c.l.b16 %v344
    %v1802 = vunpack.c.h.b16 %v344
    %v1803 = vunpack.c.l.b16 %v345
    %v1804 = vunpack.c.h.b16 %v345
    %v1805 = vunpack.c.l.b16 %v346
    %v1806 = vunpack.c.h.b16 %v346
    %v1807 = vunpack.c.l.b16 %v347
    %v1808 = vunpack.c.h.b16 %v347
    %v1809 = vunpack.c.l.b16 %v348
    %v1810 = vunpack.c.h.b16 %v348
    %v1811 = vunpack.c.l.b16 %v349
    %v1812 = vunpack.c.h.b16 %v349
    %v1813 = vunpack.c.l.b16 %v350
    %v1814 = vunpack.c.h.b16 %v350
    %v1815 = vunpack.c.l.b16 %v351
    %v1816 = vunpack.c.h.b16 %v351
    %v1817 = vunpack.c.l.b16 %v352
    %v1818 = vunpack.c.h.b16 %v352
    %v1819 = vunpack.c.l.b16 %v353
    %v1820 = vunpack.c.h.b16 %v353
    %v1821 = vunpack.c.l.b16 %v354
    %v1822 = vunpack.c.h.b16 %v354
    %v1823 = vunpack.c.l.b16 %v355
    %v1824 = vunpack.c.h.b16 %v355
    %v1825 = vunpack.c.l.b16 %v356
    %v1826 = vunpack.c.h.b16 %v356
    %v1827 = vunpack.c.l.b16 %v357
    %v1828 = vunpack.c.h.b16 %v357
    %v1829 = vunpack.c.l.b16 %v358
    %v1830 = vunpack.c.h.b16 %v358
    %v1831 = vunpack.c.l.b16 %v359
    %v1832 = vunpack.c.h.b16 %v359
    %v1833 = vunpack.c.l.b16 %v360
    %v1834 = vunpack.c.h.b16 %v360
    %v1835 = vunpack.c.l.b16 %v361
    %v1836 = vunpack.c.h.b16 %v361
    %v1837 = vunpack.c.l.b16 %v362
    %v1838 = vunpack.c.h.b16 %v362
    %v1839 = vunpack.c.l.b16 %v363
    %v1840 = vunpack.c.h.b16 %v363
    %v1841 = vunpack.c.l.b16 %v364
    %v1842 = vunpack.c.h.b16 %v364
    %v1843 = vunpack.c.l.b16 %v365
    %v1844 = vunpack.c.h.b16 %v365
    %v1845 = vunpack.c.l.b16 %v366
    %v1846 = vunpack.c.h.b16 %v366
    %v1847 = vunpack.c.l.b16 %v367
    %v1848 = vunpack.c.h.b16 %v367
    %v1849 = vunpack.c.l.b16 %v368
    %v1850 = vunpack.c.h.b16 %v368
    %v1851 = vunpack.c.l.b16 %v369
    %v1852 = vunpack.c.h.b16 %v369
    %v1853 = vunpack.c.l.b16 %v370
    %v1854 = vunpack.c.h.b16 %v370
    %v1855 = vunpack.c.l.b16 %v371
    %v1856 = vunpack.c.h.b16 %v371
    %v1857 = vunpack.c.l.b16 %v372
    %v1858 = vunpack.c.h.b16 %v372
    %v1859 = vunpack.c.l.b16 %v373
    %v1860 = vunpack.c.h.b16 %v373
    %v1861 = vunpack.c.l.b16 %v374
    %v1862 = vunpack.c.h.b16 %v374
    %v1863 = vunpack.c.l.b16 %v375
    %v1864 = vunpack.c.h.b16 %v375
    %v1865 = vunpack.c.l.b16 %v376
    %v1866 = vunpack.c.h.b16 %v376
    %v1867 = vunpack.c.l.b16 %v377
    %v1868 = vunpack.c.h.b16 %v377
    %v1869 = vunpack.c.l.b16 %v378
    %v1870 = vunpack.c.h.b16 %v378
    %v1871 = vunpack.c.l.b16 %v379
    %v1872 = vunpack.c.h.b16 %v379
    %v1873 = vunpack.c.l.b16 %v380
    %v1874 = vunpack.c.h.b16 %v380
    %v1875 = vunpack.c.l.b16 %v381
    %v1876 = vunpack.c.h.b16 %v381
    %v1877 = vunpack.c.l.b16 %v382
    %v1878 = vunpack.c.h.b16 %v382
    %v1879 = vunpack.c.l.b16 %v383
    %v1880 = vunpack.c.h.b16 %v383
    %v1881 = vunpack.c.l.b16 %v384
    %v1882 = vunpack.c.h.b16 %v384
    %v1883 = vunpack.c.l.b16 %v385
    %v1884 = vunpack.c.h.b16 %v385
    %v1885 = vunpack.c.l.b16 %v386
    %v1886 = vunpack.c.h.b16 %v386
    %v1887 = vunpack.c.l.b16 %v387
    %v1888 = vunpack.c.h.b16 %v387
    %v1889 = vunpack.c.l.b16 %v388
    %v1890 = vunpack.c.h.b16 %v388
    %v1891 = vunpack.c.l.b16 %v389
    %v1892 = vunpack.c.h.b16 %v389
    %v1893 = vunpack.c.l.b16 %v390
    %v1894 = vunpack.c.h.b16 %v390
    %v1895 = vunpack.c.l.b16 %v391
    %v1896 = vunpack.c.h.b16 %v391
    %v1897 = vunpack.c.l.b16 %v392
    %v1898 = vunpack.c.h.b16 %v392
    %v1899 = vunpack.c.l.b16 %v393
    %v1900 = vunpack.c.h.b16 %v393
    %v1901 = vunpack.c.l.b16 %v394
    %v1902 = vunpack.c.h.b16 %v394
    %v1903 = vunpack.c.l.b16 %v395
    %v1904 = vunpack.c.h.b16 %v395
    %v1905 = vunpack.c.l.b16 %v396
    %v1906 = vunpack.c.h.b16 %v396
    %v1907 = vunpack.c.l.b16 %v397
    %v1908 = vunpack.c.h.b16 %v397
    %v1909 = vunpack.c.l.b16 %v398
    %v1910 = vunpack.c.h.b16 %v398
    %v1911 = vunpack.c.l.b16 %v399
    %v1912 = vunpack.c.h.b16 %v399
    %v1913 = vunpack.c.l.b16 %v400
    %v1914 = vunpack.c.h.b16 %v400
    %v1915 = vunpack.c.l.b16 %v401
    %v1916 = vunpack.c.h.b16 %v401
    %v1917 = vunpack.c.l.b16 %v402
    %v1918 = vunpack.c.h.b16 %v402
    %v1919 = vunpack.c.l.b16 %v403
    %v1920 = vunpack.c.h.b16 %v403
    %v1921 = vunpack.c.l.b16 %v404
    %v1922 = vunpack.c.h.b16 %v404
    %v1923 = vunpack.c.l.b16 %v405
    %v1924 = vunpack.c.h.b16 %v405
    %v1925 = vunpack.c.l.b16 %v406
    %v1926 = vunpack.c.h.b16 %v406
    %v1927 = vunpack.c.l.b16 %v407
    %v1928 = vunpack.c.h.b16 %v407
    %v1929 = vunpack.c.l.b16 %v408
    %v1930 = vunpack.c.h.b16 %v408
    %v1931 = vunpack.c.l.b16 %v409
    %v1932 = vunpack.c.h.b16 %v409
    %v1933 = vunpack.c.l.b16 %v410
    %v1934 = vunpack.c.h.b16 %v410
    %v1935 = vunpack.c.l.b16 %v411
    %v1936 = vunpack.c.h.b16 %v411
    %v1937 = vunpack.c.l.b16 %v412
    %v1938 = vunpack.c.h.b16 %v412
    %v1939 = vunpack.c.l.b16 %v413
    %v1940 = vunpack.c.h.b16 %v413
    %v1941 = vunpack.c.l.b16 %v414
    %v1942 = vunpack.c.h.b16 %v414
    %v1943 = vunpack.c.l.b16 %v415
    %v1944 = vunpack.c.h.b16 %v415
    %v1945 = vunpack.c.l.b16 %v416
    %v1946 = vunpack.c.h.b16 %v416
    %v1947 = vunpack.c.l.b16 %v417
    %v1948 = vunpack.c.h.b16 %v417
    %v1949 = vunpack.c.l.b16 %v418
    %v1950 = vunpack.c.h.b16 %v418
    %v1951 = vunpack.c.l.b16 %v419
    %v1952 = vunpack.c.h.b16 %v419
    %v1953 = vunpack.c.l.b16 %v420
    %v1954 = vunpack.c.h.b16 %v420
    %v1955 = vunpack.c.l.b16 %v421
    %v1956 = vunpack.c.h.b16 %v421
    %v1957 = vunpack.c.l.b16 %v422
    %v1958 = vunpack.c.h.b16 %v422
    %v1959 = vunpack.c.l.b16 %v423
    %v1960 = vunpack.c.h.b16 %v423
    %v1961 = vunpack.c.l.b16 %v424
    %v1962 = vunpack.c.h.b16 %v424
    %v1963 = vunpack.c.l.b16 %v425
    %v1964 = vunpack.c.h.b16 %v425
    %v1965 = vunpack.c.l.b16 %v426
    %v1966 = vunpack.c.h.b16 %v426
    %v1967 = vunpack.c.l.b16 %v427
    %v1968 = vunpack.c.h.b16 %v427
    %v1969 = vunpack.c.l.b16 %v428
    %v1970 = vunpack.c.h.b16 %v428
    %v1971 = vunpack.c.l.b16 %v429
    %v1972 = vunpack.c.h.b16 %v429
    %v1973 = vunpack.c.l.b16 %v430
    %v1974 = vunpack.c.h.b16 %v430
    %v1975 = vunpack.c.l.b16 %v431
    %v1976 = vunpack.c.h.b16 %v431
    %v1977 = vunpack.c.l.b16 %v432
    %v1978 = vunpack.c.h.b16 %v432
    %v1979 = vunpack.c.l.b16 %v433
    %v1980 = vunpack.c.h.b16 %v433
    %v1981 = vunpack.c.l.b16 %v434
    %v1982 = vunpack.c.h.b16 %v434
    %v1983 = vunpack.c.l.b16 %v435
    %v1984 = vunpack.c.h.b16 %v435
    %v1985 = vunpack.c.l.b16 %v436
    %v1986 = vunpack.c.h.b16 %v436
    %v1987 = vunpack.c.l.b16 %v437
    %v1988 = vunpack.c.h.b16 %v437
    %v1989 = vunpack.c.l.b16 %v438
    %v1990 = vunpack.c.h.b16 %v438
    %v1991 = vunpack.c.l.b16 %v439
    %v1992 = vunpack.c.h.b16 %v439
    %v1993 = vunpack.c.l.b16 %v440
    %v1994 = vunpack.c.h.b16 %v440
    %v1995 = vunpack.c.l.b16 %v441
    %v1996 = vunpack.c.h.b16 %v441
    %v1997 = vunpack.c.l.b16 %v442
    %v1998 = vunpack.c.h.b16 %v442
    %v1999 = vunpack.c.l.b16 %v443
    %v2000 = vunpack.c.h.b16 %v443
    %v2001 = vunpack.c.l.b16 %v444
    %v2002 = vunpack.c.h.b16 %v444
    %v2003 = vunpack.c.l.b16 %v445
    %v2004 = vunpack.c.h.b16 %v445
    %v2005 = vunpack.c.l.b16 %v446
    %v2006 = vunpack.c.h.b16 %v446
    %v2007 = vunpack.c.l.b16 %v447
    %v2008 = vunpack.c.h.b16 %v447
    %v2009 = vunpack.c.l.b16 %v448
    %v2010 = vunpack.c.h.b16 %v448
    %v2011 = vunpack.c.l.b16 %v449
    %v2012 = vunpack.c.h.b16 %v449
    %v2013 = vunpack.c.l.b16 %v450
    %v2014 = vunpack.c.h.b16 %v450
    %v2015 = vunpack.c.l.b16 %v451
    %v2016 = vunpack.c.h.b16 %v451
    %v2017 = vunpack.c.l.b16 %v452
    %v2018 = vunpack.c.h.b16 %v452
    %v2019 = vunpack.c.l.b16 %v453
    %v2020 = vunpack.c.h.b16 %v453
    %v2021 = vunpack.c.l.b16 %v454
    %v2022 = vunpack.c.h.b16 %v454
    %v2023 = vunpack.c.l.b16 %v455
    %v2024 = vunpack.c.h.b16 %v455
    %v2025 = vunpack.c.l.b16 %v456
    %v2026 = vunpack.c.h.b16 %v456
    %v2027 = vunpack.c.l.b16 %v457
    %v2028 = vunpack.c.h.b16 %v457
    %v2029 = vunpack.c.l.b16 %v458
    %v2030 = vunpack.c.h.b16 %v458
    %v2031 = vunpack.c.l.b16 %v459
    %v2032 = vunpack.c.h.b16 %v459
    %v2033 = vunpack.c.l.b16 %v460
    %v2034 = vunpack.c.h.b16 %v460
    %v2035 = vunpack.c.l.b16 %v461
    %v2036 = vunpack.c.h.b16 %v461
    %v2037 = vunpack.c.l.b16 %v462
    %v2038 = vunpack.c.h.b16 %v462
    %v2039 = vunpack.c.l.b16 %v463
    %v2040 = vunpack.c.h.b16 %v463
    %v2041 = vunpack.c.l.b16 %v464
    %v2042 = vunpack.c.h.b16 %v464
    %v2043 = vunpack.c.l.b16 %v465
    %v2044 = vunpack.c.h.b16 %v465
    %v2045 = vunpack.c.l.b16 %v466
    %v2046 = vunpack.c.h.b16 %v466
    %v2047 = vunpack.c.l.b16 %v467
    %v2048 = vunpack.c.h.b16 %v467
    %v2049 = vunpack.c.l.b16 %v468
    %v2050 = vunpack.c.h.b16 %v468
    %v2051 = vunpack.c.l.b16 %v469
    %v2052 = vunpack.c.h.b16 %v469
    %v2053 = vunpack.c.l.b16 %v470
    %v2054 = vunpack.c.h.b16 %v470
    %v2055 = vunpack.c.l.b16 %v471
    %v2056 = vunpack.c.h.b16 %v471
    %v2057 = vunpack.c.l.b16 %v472
    %v2058 = vunpack.c.h.b16 %v472
    %v2059 = vunpack.c.l.b16 %v473
    %v2060 = vunpack.c.h.b16 %v473
    %v2061 = vunpack.c.l.b16 %v474
    %v2062 = vunpack.c.h.b16 %v474
    %v2063 = vunpack.c.l.b16 %v475
    %v2064 = vunpack.c.h.b16 %v475
    %v2065 = vunpack.c.l.b16 %v476
    %v2066 = vunpack.c.h.b16 %v476
    %v2067 = vunpack.c.l.b16 %v477
    %v2068 = vunpack.c.h.b16 %v477
    %v2069 = vunpack.c.l.b16 %v478
    %v2070 = vunpack.c.h.b16 %v478
    %v2071 = vunpack.c.l.b16 %v479
    %v2072 = vunpack.c.h.b16 %v479
    %v2073 = vunpack.c.l.b16 %v480
    %v2074 = vunpack.c.h.b16 %v480
    %v2075 = vunpack.c.l.b16 %v481
    %v2076 = vunpack.c.h.b16 %v481
    %v2077 = vunpack.c.l.b16 %v482
    %v2078 = vunpack.c.h.b16 %v482
    %v2079 = vunpack.c.l.b16 %v483
    %v2080 = vunpack.c.h.b16 %v483
    %v2081 = vunpack.c.l.b16 %v484
    %v2082 = vunpack.c.h.b16 %v484
    %v2083 = vunpack.c.l.b16 %v485
    %v2084 = vunpack.c.h.b16 %v485
    %v2085 = vunpack.c.l.b16 %v486
    %v2086 = vunpack.c.h.b16 %v486
    %v2087 = vunpack.c.l.b16 %v487
    %v2088 = vunpack.c.h.b16 %v487
    %v2089 = vunpack.c.l.b16 %v488
    %v2090 = vunpack.c.h.b16 %v488
    %v2091 = vunpack.c.l.b16 %v489
    %v2092 = vunpack.c.h.b16 %v489
    %v2093 = vunpack.c.l.b16 %v490
    %v2094 = vunpack.c.h.b16 %v490
    %v2095 = vunpack.c.l.b16 %v491
    %v2096 = vunpack.c.h.b16 %v491
    %v2097 = vunpack.c.l.b16 %v492
    %v2098 = vunpack.c.h.b16 %v492
    %v2099 = vunpack.c.l.b16 %v493
    %v2100 = vunpack.c.h.b16 %v493
    %v2101 = vunpack.c.l.b16 %v494
    %v2102 = vunpack.c.h.b16 %v494
    %v2103 = vunpack.c.l.b16 %v495
    %v2104 = vunpack.c.h.b16 %v495
    %v2105 = vunpack.c.l.b16 %v496
    %v2106 = vunpack.c.h.b16 %v496
    %v2107 = vunpack.c.l.b16 %v497
    %v2108 = vunpack.c.h.b16 %v497
    %v2109 = vunpack.c.l.b16 %v498
    %v2110 = vunpack.c.h.b16 %v498
    %v2111 = vunpack.c.l.b16 %v499
    %v2112 = vunpack.c.h.b16 %v499
    %v2113 = vunpack.c.l.b16 %v500
    %v2114 = vunpack.c.h.b16 %v500
    %v2115 = vunpack.c.l.b16 %v501
    %v2116 = vunpack.c.h.b16 %v501
    %v2117 = vunpack.c.l.b16 %v502
    %v2118 = vunpack.c.h.b16 %v502
    %v2119 = vunpack.c.l.b16 %v503
    %v2120 = vunpack.c.h.b16 %v503
    %v2121 = vunpack.c.l.b16 %v504
    %v2122 = vunpack.c.h.b16 %v504
    %v2123 = vunpack.c.l.b16 %v505
    %v2124 = vunpack.c.h.b16 %v505
    %v2125 = vunpack.c.l.b16 %v506
    %v2126 = vunpack.c.h.b16 %v506
    %v2127 = vunpack.c.l.b16 %v507
    %v2128 = vunpack.c.h.b16 %v507
    %v2129 = vunpack.c.l.b16 %v508
    %v2130 = vunpack.c.h.b16 %v508
    %v2131 = vunpack.c.l.b16 %v509
    %v2132 = vunpack.c.h.b16 %v509
    %v2133 = vunpack.c.l.b16 %v510
    %v2134 = vunpack.c.h.b16 %v510
    %v2135 = vunpack.c.l.b16 %v511
    %v2136 = vunpack.c.h.b16 %v511
    %v2137 = vunpack.c.l.b16 %v512
    %v2138 = vunpack.c.h.b16 %v512
    %v2139 = vunpack.c.l.b16 %v513
    %v2140 = vunpack.c.h.b16 %v513
    %v2141 = vunpack.c.l.b16 %v514
    %v2142 = vunpack.c.h.b16 %v514
    %v2143 = vunpack.c.l.b16 %v515
    %v2144 = vunpack.c.h.b16 %v515
    %v2145 = vunpack.c.l.b16 %v516
    %v2146 = vunpack.c.h.b16 %v516
    %v2147 = vunpack.c.l.b16 %v517
    %v2148 = vunpack.c.h.b16 %v517
    %v2149 = vunpack.c.l.b16 %v518
    %v2150 = vunpack.c.h.b16 %v518
    %v2151 = vunpack.c.l.b16 %v519
    %v2152 = vunpack.c.h.b16 %v519
    %v2153 = vunpack.c.l.b16 %v520
    %v2154 = vunpack.c.h.b16 %v520
    %v2155 = vunpack.c.l.b16 %v521
    %v2156 = vunpack.c.h.b16 %v521
    %v2157 = vunpack.c.l.b16 %v522
    %v2158 = vunpack.c.h.b16 %v522
    %v2159 = vunpack.c.l.b16 %v523
    %v2160 = vunpack.c.h.b16 %v523
    %v2161 = vunpack.c.l.b16 %v524
    %v2162 = vunpack.c.h.b16 %v524
    %v2163 = vunpack.c.l.b16 %v525
    %v2164 = vunpack.c.h.b16 %v525
    %v2165 = vunpack.c.l.b16 %v526
    %v2166 = vunpack.c.h.b16 %v526
    %v2167 = vunpack.c.l.b16 %v527
    %v2168 = vunpack.c.h.b16 %v527
    %v2169 = vunpack.c.l.b16 %v528
    %v2170 = vunpack.c.h.b16 %v528
    %v2171 = vunpack.c.l.b16 %v529
    %v2172 = vunpack.c.h.b16 %v529
    %v2173 = vunpack.c.l.b16 %v530
    %v2174 = vunpack.c.h.b16 %v530
    %v2175 = vunpack.c.l.b16 %v531
    %v2176 = vunpack.c.h.b16 %v531
    %v2177 = vunpack.c.l.b16 %v532
    %v2178 = vunpack.c.h.b16 %v532
    %v2179 = vunpack.c.l.b16 %v533
    %v2180 = vunpack.c.h.b16 %v533
    %v2181 = vunpack.c.l.b16 %v534
    %v2182 = vunpack.c.h.b16 %v534
    %v2183 = vunpack.c.l.b16 %v535
    %v2184 = vunpack.c.h.b16 %v535
    %v2185 = vunpack.c.l.b16 %v536
    %v2186 = vunpack.c.h.b16 %v536
    %v2187 = vunpack.c.l.b16 %v537
    %v2188 = vunpack.c.h.b16 %v537
    %v2189 = vunpack.c.l.b16 %v538
    %v2190 = vunpack.c.h.b16 %v538
    %v2191 = vpack.c.b16 %v1171, %v1167
    %v2192 = vpack.c.b16 %v1172, %v1168
    %v2193 = vpack.c.b16 %v1173, %v1169
    %v2194 = vpack.c.b16 %v1174, %v1170
    %v2195 = vpack.c.b16 %v1179, %v1175
    %v2196 = vpack.c.b16 %v1180, %v1176
    %v2197 = vpack.c.b16 %v1181, %v1177
    %v2198 = vpack.c.b16 %v1182, %v1178
    %v2199 = vpack.c.b16 %v1187, %v1183
    %v2200 = vpack.c.b16 %v1188, %v1184
    %v2201 = vpack.c.b16 %v1189, %v1185
    %v2202 = vpack.c.b16 %v1190, %v1186
    %v2203 = vpack.c.b16 %v1195, %v1191
    %v2204 = vpack.c.b16 %v1196, %v1192
    %v2205 = vpack.c.b16 %v1197, %v1193
    %v2206 = vpack.c.b16 %v1198, %v1194
    %v2207 = vpack.c.b16 %v1203, %v1199
    %v2208 = vpack.c.b16 %v1204, %v1200
    %v2209 = vpack.c.b16 %v1205, %v1201
    %v2210 = vpack.c.b16 %v1206, %v1202
    %v2211 = vpack.c.b16 %v1211, %v1207
    %v2212 = vpack.c.b16 %v1212, %v1208
    %v2213 = vpack.c.b16 %v1213, %v1209
    %v2214 = vpack.c.b16 %v1214, %v1210
    %v2215 = vpack.c.b16 %v1219, %v1215
    %v2216 = vpack.c.b16 %v1220, %v1216
    %v2217 = vpack.c.b16 %v1221, %v1217
    %v2218 = vpack.c.b16 %v1222, %v1218
    %v2219 = vpack.c.b16 %v1227, %v1223
    %v2220 = vpack.c.b16 %v1228, %v1224
    %v2221 = vpack.c.b16 %v1229, %v1225
    %v2222 = vpack.c.b16 %v1230, %v1226
    %v2223 = vpack.c.b16 %v1235, %v1231
    %v2224 = vpack.c.b16 %v1236, %v1232
    %v2225 = vpack.c.b16 %v1237, %v1233
    %v2226 = vpack.c.b16 %v1238, %v1234
    %v2227 = vpack.c.b16 %v1243, %v1239
    %v2228 = vpack.c.b16 %v1244, %v1240
    %v2229 = vpack.c.b16 %v1245, %v1241
    %v2230 = vpack.c.b16 %v1246, %v1242
    %v2231 = vpack.c.b16 %v1251, %v1247
    %v2232 = vpack.c.b16 %v1252, %v1248
    %v2233 = vpack.c.b16 %v1253, %v1249
    %v2234 = vpack.c.b16 %v1254, %v1250
    %v2235 = vpack.c.b16 %v1259, %v1255
    %v2236 = vpack.c.b16 %v1260, %v1256
    %v2237 = vpack.c.b16 %v1261, %v1257
    %v2238 = vpack.c.b16 %v1262, %v1258
    %v2239 = vpack.c.b16 %v1267, %v1263
    %v2240 = vpack.c.b16 %v1268, %v1264
    %v2241 = vpack.c.b16 %v1269, %v1265
    %v2242 = vpack.c.b16 %v1270, %v1266
    %v2243 = vpack.c.b16 %v1275, %v1271
    %v2244 = vpack.c.b16 %v1276, %v1272
    %v2245 = vpack.c.b16 %v1277, %v1273
    %v2246 = vpack.c.b16 %v1278, %v1274
    %v2247 = vpack.c.b16 %v1283, %v1279
    %v2248 = vpack.c.b16 %v1284, %v1280
    %v2249 = vpack.c.b16 %v1285, %v1281
    %v2250 = vpack.c.b16 %v1286, %v1282
    %v2251 = vpack.c.b16 %v1291, %v1287
    %v2252 = vpack.c.b16 %v1292, %v1288
    %v2253 = vpack.c.b16 %v1293, %v1289
    %v2254 = vpack.c.b16 %v1294, %v1290
    %v2255 = vpack.c.b16 %v1299, %v1295
    %v2256 = vpack.c.b16 %v1300, %v1296
    %v2257 = vpack.c.b16 %v1301, %v1297
    %v2258 = vpack.c.b16 %v1302, %v1298
    %v2259 = vpack.c.b16 %v1307, %v1303
    %v2260 = vpack.c.b16 %v1308, %v1304
    %v2261 = vpack.c.b16 %v1309, %v1305
    %v2262 = vpack.c.b16 %v1310, %v1306
    %v2263 = vpack.c.b16 %v1315, %v1311
    %v2264 = vpack.c.b16 %v1316, %v1312
    %v2265 = vpack.c.b16 %v1317, %v1313
    %v2266 = vpack.c.b16 %v1318, %v1314
    %v2267 = vpack.c.b16 %v1323, %v1319
    %v2268 = vpack.c.b16 %v1324, %v1320
    %v2269 = vpack.c.b16 %v1325, %v1321
    %v2270 = vpack.c.b16 %v1326, %v1322
    %v2271 = vpack.c.b16 %v1331, %v1327
    %v2272 = vpack.c.b16 %v1332, %v1328
    %v2273 = vpack.c.b16 %v1333, %v1329
    %v2274 = vpack.c.b16 %v1334, %v1330
    %v2275 = vpack.c.b16 %v1339, %v1335
    %v2276 = vpack.c.b16 %v1340, %v1336
    %v2277 = vpack.c.b16 %v1341, %v1337
    %v2278 = vpack.c.b16 %v1342, %v1338
    %v2279 = vpack.c.b16 %v1347, %v1343
    %v2280 = vpack.c.b16 %v1348, %v1344
    %v2281 = vpack.c.b16 %v1349, %v1345
    %v2282 = vpack.c.b16 %v1350, %v1346
    %v2283 = vpack.c.b16 %v1355, %v1351
    %v2284 = vpack.c.b16 %v1356, %v1352
    %v2285 = vpack.c.b16 %v1357, %v1353
    %v2286 = vpack.c.b16 %v1358, %v1354
    %v2287 = vpack.c.b16 %v1363, %v1359
    %v2288 = vpack.c.b16 %v1364, %v1360
    %v2289 = vpack.c.b16 %v1365, %v1361
    %v2290 = vpack.c.b16 %v1366, %v1362
    %v2291 = vpack.c.b16 %v1371, %v1367
    %v2292 = vpack.c.b16 %v1372, %v1368
    %v2293 = vpack.c.b16 %v1373, %v1369
    %v2294 = vpack.c.b16 %v1374, %v1370
    %v2295 = vpack.c.b16 %v1379, %v1375
    %v2296 = vpack.c.b16 %v1380, %v1376
    %v2297 = vpack.c.b16 %v1381, %v1377
    %v2298 = vpack.c.b16 %v1382, %v1378
    %v2299 = vpack.c.b16 %v1387, %v1383
    %v2300 = vpack.c.b16 %v1388, %v1384
    %v2301 = vpack.c.b16 %v1389, %v1385
    %v2302 = vpack.c.b16 %v1390, %v1386
    %v2303 = vpack.c.b16 %v1395, %v1391
    %v2304 = vpack.c.b16 %v1396, %v1392
    %v2305 = vpack.c.b16 %v1397, %v1393
    %v2306 = vpack.c.b16 %v1398, %v1394
    %v2307 = vpack.c.b16 %v1403, %v1399
    %v2308 = vpack.c.b16 %v1404, %v1400
    %v2309 = vpack.c.b16 %v1405, %v1401
    %v2310 = vpack.c.b16 %v1406, %v1402
    %v2311 = vpack.c.b16 %v1411, %v1407
    %v2312 = vpack.c.b16 %v1412, %v1408
    %v2313 = vpack.c.b16 %v1413, %v1409
    %v2314 = vpack.c.b16 %v1414, %v1410
    %v2315 = vpack.c.b16 %v1419, %v1415
    %v2316 = vpack.c.b16 %v1420, %v1416
    %v2317 = vpack.c.b16 %v1421, %v1417
    %v2318 = vpack.c.b16 %v1422, %v1418
    %v2319 = vpack.c.b16 %v1427, %v1423
    %v2320 = vpack.c.b16 %v1428, %v1424
    %v2321 = vpack.c.b16 %v1429, %v1425
    %v2322 = vpack.c.b16 %v1430, %v1426
    %v2323 = vpack.c.b16 %v1435, %v1431
    %v2324 = vpack.c.b16 %v1436, %v1432
    %v2325 = vpack.c.b16 %v1437, %v1433
    %v2326 = vpack.c.b16 %v1438, %v1434
    %v2327 = vpack.c.b16 %v1443, %v1439
    %v2328 = vpack.c.b16 %v1444, %v1440
    %v2329 = vpack.c.b16 %v1445, %v1441
    %v2330 = vpack.c.b16 %v1446, %v1442
    %v2331 = vpack.c.b16 %v1451, %v1447
    %v2332 = vpack.c.b16 %v1452, %v1448
    %v2333 = vpack.c.b16 %v1453, %v1449
    %v2334 = vpack.c.b16 %v1454, %v1450
    %v2335 = vpack.c.b16 %v1459, %v1455
    %v2336 = vpack.c.b16 %v1460, %v1456
    %v2337 = vpack.c.b16 %v1461, %v1457
    %v2338 = vpack.c.b16 %v1462, %v1458
    %v2339 = vpack.c.b16 %v1467, %v1463
    %v2340 = vpack.c.b16 %v1468, %v1464
    %v2341 = vpack.c.b16 %v1469, %v1465
    %v2342 = vpack.c.b16 %v1470, %v1466
    %v2343 = vpack.c.b16 %v1475, %v1471
    %v2344 = vpack.c.b16 %v1476, %v1472
    %v2345 = vpack.c.b16 %v1477, %v1473
    %v2346 = vpack.c.b16 %v1478, %v1474
    %v2347 = vpack.c.b16 %v1483, %v1479
    %v2348 = vpack.c.b16 %v1484, %v1480
    %v2349 = vpack.c.b16 %v1485, %v1481
    %v2350 = vpack.c.b16 %v1486, %v1482
    %v2351 = vpack.c.b16 %v1491, %v1487
    %v2352 = vpack.c.b16 %v1492, %v1488
    %v2353 = vpack.c.b16 %v1493, %v1489
    %v2354 = vpack.c.b16 %v1494, %v1490
    %v2355 = vpack.c.b16 %v1499, %v1495
    %v2356 = vpack.c.b16 %v1500, %v1496
    %v2357 = vpack.c.b16 %v1501, %v1497
    %v2358 = vpack.c.b16 %v1502, %v1498
    %v2359 = vpack.c.b16 %v1507, %v1503
    %v2360 = vpack.c.b16 %v1508, %v1504
    %v2361 = vpack.c.b16 %v1509, %v1505
    %v2362 = vpack.c.b16 %v1510, %v1506
    %v2363 = vpack.c.b16 %v1515, %v1511
    %v2364 = vpack.c.b16 %v1516, %v1512
    %v2365 = vpack.c.b16 %v1517, %v1513
    %v2366 = vpack.c.b16 %v1518, %v1514
    %v2367 = vpack.c.b16 %v1523, %v1519
    %v2368 = vpack.c.b16 %v1524, %v1520
    %v2369 = vpack.c.b16 %v1525, %v1521
    %v2370 = vpack.c.b16 %v1526, %v1522
    %v2371 = vpack.c.b16 %v1531, %v1527
    %v2372 = vpack.c.b16 %v1532, %v1528
    %v2373 = vpack.c.b16 %v1533, %v1529
    %v2374 = vpack.c.b16 %v1534, %v1530
    %v2375 = vpack.c.b16 %v1539, %v1535
    %v2376 = vpack.c.b16 %v1540, %v1536
    %v2377 = vpack.c.b16 %v1541, %v1537
    %v2378 = vpack.c.b16 %v1542, %v1538
    %v2379 = vpack.c.b16 %v1547, %v1543
    %v2380 = vpack.c.b16 %v1548, %v1544
    %v2381 = vpack.c.b16 %v1549, %v1545
    %v2382 = vpack.c.b16 %v1550, %v1546
    %v2383 = vpack.c.b16 %v1555, %v1551
    %v2384 = vpack.c.b16 %v1556, %v1552
    %v2385 = vpack.c.b16 %v1557, %v1553
    %v2386 = vpack.c.b16 %v1558, %v1554
    %v2387 = vpack.c.b16 %v1563, %v1559
    %v2388 = vpack.c.b16 %v1564, %v1560
    %v2389 = vpack.c.b16 %v1565, %v1561
    %v2390 = vpack.c.b16 %v1566, %v1562
    %v2391 = vpack.c.b16 %v1571, %v1567
    %v2392 = vpack.c.b16 %v1572, %v1568
    %v2393 = vpack.c.b16 %v1573, %v1569
    %v2394 = vpack.c.b16 %v1574, %v1570
    %v2395 = vpack.c.b16 %v1579, %v1575
    %v2396 = vpack.c.b16 %v1580, %v1576
    %v2397 = vpack.c.b16 %v1581, %v1577
    %v2398 = vpack.c.b16 %v1582, %v1578
    %v2399 = vpack.c.b16 %v1587, %v1583
    %v2400 = vpack.c.b16 %v1588, %v1584
    %v2401 = vpack.c.b16 %v1589, %v1585
    %v2402 = vpack.c.b16 %v1590, %v1586
    %v2403 = vpack.c.b16 %v1595, %v1591
    %v2404 = vpack.c.b16 %v1596, %v1592
    %v2405 = vpack.c.b16 %v1597, %v1593
    %v2406 = vpack.c.b16 %v1598, %v1594
    %v2407 = vpack.c.b16 %v1603, %v1599
    %v2408 = vpack.c.b16 %v1604, %v1600
    %v2409 = vpack.c.b16 %v1605, %v1601
    %v2410 = vpack.c.b16 %v1606, %v1602
    %v2411 = vpack.c.b16 %v1611, %v1607
    %v2412 = vpack.c.b16 %v1612, %v1608
    %v2413 = vpack.c.b16 %v1613, %v1609
    %v2414 = vpack.c.b16 %v1614, %v1610
    %v2415 = vpack.c.b16 %v1619, %v1615
    %v2416 = vpack.c.b16 %v1620, %v1616
    %v2417 = vpack.c.b16 %v1621, %v1617
    %v2418 = vpack.c.b16 %v1622, %v1618
    %v2419 = vpack.c.b16 %v1627, %v1623
    %v2420 = vpack.c.b16 %v1628, %v1624
    %v2421 = vpack.c.b16 %v1629, %v1625
    %v2422 = vpack.c.b16 %v1630, %v1626
    %v2423 = vpack.c.b16 %v1635, %v1631
    %v2424 = vpack.c.b16 %v1636, %v1632
    %v2425 = vpack.c.b16 %v1637, %v1633
    %v2426 = vpack.c.b16 %v1638, %v1634
    %v2427 = vpack.c.b16 %v1643, %v1639
    %v2428 = vpack.c.b16 %v1644, %v1640
    %v2429 = vpack.c.b16 %v1645, %v1641
    %v2430 = vpack.c.b16 %v1646, %v1642
    %v2431 = vpack.c.b16 %v1651, %v1647
    %v2432 = vpack.c.b16 %v1652, %v1648
    %v2433 = vpack.c.b16 %v1653, %v1649
    %v2434 = vpack.c.b16 %v1654, %v1650
    %v2435 = vpack.c.b16 %v1659, %v1655
    %v2436 = vpack.c.b16 %v1660, %v1656
    %v2437 = vpack.c.b16 %v1661, %v1657
    %v2438 = vpack.c.b16 %v1662, %v1658
    %v2439 = vpack.c.b16 %v1667, %v1663
    %v2440 = vpack.c.b16 %v1668, %v1664
    %v2441 = vpack.c.b16 %v1669, %v1665
    %v2442 = vpack.c.b16 %v1670, %v1666
    %v2443 = vpack.c.b16 %v1675, %v1671
    %v2444 = vpack.c.b16 %v1676, %v1672
    %v2445 = vpack.c.b16 %v1677, %v1673
    %v2446 = vpack.c.b16 %v1678, %v1674
    %v2447 = vpack.c.b16 %v1683, %v1679
    %v2448 = vpack.c.b16 %v1684, %v1680
    %v2449 = vpack.c.b16 %v1685, %v1681
    %v2450 = vpack.c.b16 %v1686, %v1682
    %v2451 = vpack.c.b16 %v1691, %v1687
    %v2452 = vpack.c.b16 %v1692, %v1688
    %v2453 = vpack.c.b16 %v1693, %v1689
    %v2454 = vpack.c.b16 %v1694, %v1690
    %v2455 = vpack.c.b16 %v1699, %v1695
    %v2456 = vpack.c.b16 %v1700, %v1696
    %v2457 = vpack.c.b16 %v1701, %v1697
    %v2458 = vpack.c.b16 %v1702, %v1698
    %v2459 = vpack.c.b16 %v1707, %v1703
    %v2460 = vpack.c.b16 %v1708, %v1704
    %v2461 = vpack.c.b16 %v1709, %v1705
    %v2462 = vpack.c.b16 %v1710, %v1706
    %v2463 = vpack.c.b16 %v1715, %v1711
    %v2464 = vpack.c.b16 %v1716, %v1712
    %v2465 = vpack.c.b16 %v1717, %v1713
    %v2466 = vpack.c.b16 %v1718, %v1714
    %v2467 = vpack.c.b16 %v1723, %v1719
    %v2468 = vpack.c.b16 %v1724, %v1720
    %v2469 = vpack.c.b16 %v1725, %v1721
    %v2470 = vpack.c.b16 %v1726, %v1722
    %v2471 = vpack.c.b16 %v1731, %v1727
    %v2472 = vpack.c.b16 %v1732, %v1728
    %v2473 = vpack.c.b16 %v1733, %v1729
    %v2474 = vpack.c.b16 %v1734, %v1730
    %v2475 = vpack.c.b16 %v1739, %v1735
    %v2476 = vpack.c.b16 %v1740, %v1736
    %v2477 = vpack.c.b16 %v1741, %v1737
    %v2478 = vpack.c.b16 %v1742, %v1738
    %v2479 = vpack.c.b16 %v1747, %v1743
    %v2480 = vpack.c.b16 %v1748, %v1744
    %v2481 = vpack.c.b16 %v1749, %v1745
    %v2482 = vpack.c.b16 %v1750, %v1746
    %v2483 = vpack.c.b16 %v1755, %v1751
    %v2484 = vpack.c.b16 %v1756, %v1752
    %v2485 = vpack.c.b16 %v1757, %v1753
    %v2486 = vpack.c.b16 %v1758, %v1754
    %v2487 = vpack.c.b16 %v1763, %v1759
    %v2488 = vpack.c.b16 %v1764, %v1760
    %v2489 = vpack.c.b16 %v1765, %v1761
    %v2490 = vpack.c.b16 %v1766, %v1762
    %v2491 = vpack.c.b16 %v1771, %v1767
    %v2492 = vpack.c.b16 %v1772, %v1768
    %v2493 = vpack.c.b16 %v1773, %v1769
    %v2494 = vpack.c.b16 %v1774, %v1770
    %v2495 = vpack.c.b16 %v1779, %v1775
    %v2496 = vpack.c.b16 %v1780, %v1776
    %v2497 = vpack.c.b16 %v1781, %v1777
    %v2498 = vpack.c.b16 %v1782, %v1778
    %v2499 = vpack.c.b16 %v1787, %v1783
    %v2500 = vpack.c.b16 %v1788, %v1784
    %v2501 = vpack.c.b16 %v1789, %v1785
    %v2502 = vpack.c.b16 %v1790, %v1786
    %v2503 = vpack.c.b16 %v1795, %v1791
    %v2504 = vpack.c.b16 %v1796, %v1792
    %v2505 = vpack.c.b16 %v1797, %v1793
    %v2506 = vpack.c.b16 %v1798, %v1794
    %v2507 = vpack.c.b16 %v1803, %v1799
    %v2508 = vpack.c.b16 %v1804, %v1800
    %v2509 = vpack.c.b16 %v1805, %v1801
    %v2510 = vpack.c.b16 %v1806, %v1802
    %v2511 = vpack.c.b16 %v1811, %v1807
    %v2512 = vpack.c.b16 %v1812, %v1808
    %v2513 = vpack.c.b16 %v1813, %v1809
    %v2514 = vpack.c.b16 %v1814, %v1810
    %v2515 = vpack.c.b16 %v1819, %v1815
    %v2516 = vpack.c.b16 %v1820, %v1816
    %v2517 = vpack.c.b16 %v1821, %v1817
    %v2518 = vpack.c.b16 %v1822, %v1818
    %v2519 = vpack.c.b16 %v1827, %v1823
    %v2520 = vpack.c.b16 %v1828, %v1824
    %v2521 = vpack.c.b16 %v1829, %v1825
    %v2522 = vpack.c.b16 %v1830, %v1826
    %v2523 = vpack.c.b16 %v1835, %v1831
    %v2524 = vpack.c.b16 %v1836, %v1832
    %v2525 = vpack.c.b16 %v1837, %v1833
    %v2526 = vpack.c.b16 %v1838, %v1834
    %v2527 = vpack.c.b16 %v1843, %v1839
    %v2528 = vpack.c.b16 %v1844, %v1840
    %v2529 = vpack.c.b16 %v1845, %v1841
    %v2530 = vpack.c.b16 %v1846, %v1842
    %v2531 = vpack.c.b16 %v1851, %v1847
    %v2532 = vpack.c.b16 %v1852, %v1848
    %v2533 = vpack.c.b16 %v1853, %v1849
    %v2534 = vpack.c.b16 %v1854, %v1850
    %v2535 = vpack.c.b16 %v1859, %v1855
    %v2536 = vpack.c.b16 %v1860, %v1856
    %v2537 = vpack.c.b16 %v1861, %v1857
    %v2538 = vpack.c.b16 %v1862, %v1858
    %v2539 = vpack.c.b16 %v1867, %v1863
    %v2540 = vpack.c.b16 %v1868, %v1864
    %v2541 = vpack.c.b16 %v1869, %v1865
    %v2542 = vpack.c.b16 %v1870, %v1866
    %v2543 = vpack.c.b16 %v1875, %v1871
    %v2544 = vpack.c.b16 %v1876, %v1872
    %v2545 = vpack.c.b16 %v1877, %v1873
    %v2546 = vpack.c.b16 %v1878, %v1874
    %v2547 = vpack.c.b16 %v1883, %v1879
    %v2548 = vpack.c.b16 %v1884, %v1880
    %v2549 = vpack.c.b16 %v1885, %v1881
    %v2550 = vpack.c.b16 %v1886, %v1882
    %v2551 = vpack.c.b16 %v1891, %v1887
    %v2552 = vpack.c.b16 %v1892, %v1888
    %v2553 = vpack.c.b16 %v1893, %v1889
    %v2554 = vpack.c.b16 %v1894, %v1890
    %v2555 = vpack.c.b16 %v1899, %v1895
    %v2556 = vpack.c.b16 %v1900, %v1896
    %v2557 = vpack.c.b16 %v1901, %v1897
    %v2558 = vpack.c.b16 %v1902, %v1898
    %v2559 = vpack.c.b16 %v1907, %v1903
    %v2560 = vpack.c.b16 %v1908, %v1904
    %v2561 = vpack.c.b16 %v1909, %v1905
    %v2562 = vpack.c.b16 %v1910, %v1906
    %v2563 = vpack.c.b16 %v1915, %v1911
    %v2564 = vpack.c.b16 %v1916, %v1912
    %v2565 = vpack.c.b16 %v1917, %v1913
    %v2566 = vpack.c.b16 %v1918, %v1914
    %v2567 = vpack.c.b16 %v1923, %v1919
    %v2568 = vpack.c.b16 %v1924, %v1920
    %v2569 = vpack.c.b16 %v1925, %v1921
    %v2570 = vpack.c.b16 %v1926, %v1922
    %v2571 = vpack.c.b16 %v1931, %v1927
    %v2572 = vpack.c.b16 %v1932, %v1928
    %v2573 = vpack.c.b16 %v1933, %v1929
    %v2574 = vpack.c.b16 %v1934, %v1930
    %v2575 = vpack.c.b16 %v1939, %v1935
    %v2576 = vpack.c.b16 %v1940, %v1936
    %v2577 = vpack.c.b16 %v1941, %v1937
    %v2578 = vpack.c.b16 %v1942, %v1938
    %v2579 = vpack.c.b16 %v1947, %v1943
    %v2580 = vpack.c.b16 %v1948, %v1944
    %v2581 = vpack.c.b16 %v1949, %v1945
    %v2582 = vpack.c.b16 %v1950, %v1946
    %v2583 = vpack.c.b16 %v1955, %v1951
    %v2584 = vpack.c.b16 %v1956, %v1952
    %v2585 = vpack.c.b16 %v1957, %v1953
    %v2586 = vpack.c.b16 %v1958, %v1954
    %v2587 = vpack.c.b16 %v1963, %v1959
    %v2588 = vpack.c.b16 %v1964, %v1960
    %v2589 = vpack.c.b16 %v1965, %v1961
    %v2590 = vpack.c.b16 %v1966, %v1962
    %v2591 = vpack.c.b16 %v1971, %v1967
    %v2592 = vpack.c.b16 %v1972, %v1968
    %v2593 = vpack.c.b16 %v1973, %v1969
    %v2594 = vpack.c.b16 %v1974, %v1970
    %v2595 = vpack.c.b16 %v1979, %v1975
    %v2596 = vpack.c.b16 %v1980, %v1976
    %v2597 = vpack.c.b16 %v1981, %v1977
    %v2598 = vpack.c.b16 %v1982, %v1978
    %v2599 = vpack.c.b16 %v1987, %v1983
    %v2600 = vpack.c.b16 %v1988, %v1984
    %v2601 = vpack.c.b16 %v1989, %v1985
    %v2602 = vpack.c.b16 %v1990, %v1986
    %v2603 = vpack.c.b16 %v1995, %v1991
    %v2604 = vpack.c.b16 %v1996, %v1992
    %v2605 = vpack.c.b16 %v1997, %v1993
    %v2606 = vpack.c.b16 %v1998, %v1994
    %v2607 = vpack.c.b16 %v2003, %v1999
    %v2608 = vpack.c.b16 %v2004, %v2000
    %v2609 = vpack.c.b16 %v2005, %v2001
    %v2610 = vpack.c.b16 %v2006, %v2002
    %v2611 = vpack.c.b16 %v2011, %v2007
    %v2612 = vpack.c.b16 %v2012, %v2008
    %v2613 = vpack.c.b16 %v2013, %v2009
    %v2614 = vpack.c.b16 %v2014, %v2010
    %v2615 = vpack.c.b16 %v2019, %v2015
    %v2616 = vpack.c.b16 %v2020, %v2016
    %v2617 = vpack.c.b16 %v2021, %v2017
    %v2618 = vpack.c.b16 %v2022, %v2018
    %v2619 = vpack.c.b16 %v2027, %v2023
    %v2620 = vpack.c.b16 %v2028, %v2024
    %v2621 = vpack.c.b16 %v2029, %v2025
    %v2622 = vpack.c.b16 %v2030, %v2026
    %v2623 = vpack.c.b16 %v2035, %v2031
    %v2624 = vpack.c.b16 %v2036, %v2032
    %v2625 = vpack.c.b16 %v2037, %v2033
    %v2626 = vpack.c.b16 %v2038, %v2034
    %v2627 = vpack.c.b16 %v2043, %v2039
    %v2628 = vpack.c.b16 %v2044, %v2040
    %v2629 = vpack.c.b16 %v2045, %v2041
    %v2630 = vpack.c.b16 %v2046, %v2042
    %v2631 = vpack.c.b16 %v2051, %v2047
    %v2632 = vpack.c.b16 %v2052, %v2048
    %v2633 = vpack.c.b16 %v2053, %v2049
    %v2634 = vpack.c.b16 %v2054, %v2050
    %v2635 = vpack.c.b16 %v2059, %v2055
    %v2636 = vpack.c.b16 %v2060, %v2056
    %v2637 = vpack.c.b16 %v2061, %v2057
    %v2638 = vpack.c.b16 %v2062, %v2058
    %v2639 = vpack.c.b16 %v2067, %v2063
    %v2640 = vpack.c.b16 %v2068, %v2064
    %v2641 = vpack.c.b16 %v2069, %v2065
    %v2642 = vpack.c.b16 %v2070, %v2066
    %v2643 = vpack.c.b16 %v2075, %v2071
    %v2644 = vpack.c.b16 %v2076, %v2072
    %v2645 = vpack.c.b16 %v2077, %v2073
    %v2646 = vpack.c.b16 %v2078, %v2074
    %v2647 = vpack.c.b16 %v2083, %v2079
    %v2648 = vpack.c.b16 %v2084, %v2080
    %v2649 = vpack.c.b16 %v2085, %v2081
    %v2650 = vpack.c.b16 %v2086, %v2082
    %v2651 = vpack.c.b16 %v2091, %v2087
    %v2652 = vpack.c.b16 %v2092, %v2088
    %v2653 = vpack.c.b16 %v2093, %v2089
    %v2654 = vpack.c.b16 %v2094, %v2090
    %v2655 = vpack.c.b16 %v2099, %v2095
    %v2656 = vpack.c.b16 %v2100, %v2096
    %v2657 = vpack.c.b16 %v2101, %v2097
    %v2658 = vpack.c.b16 %v2102, %v2098
    %v2659 = vpack.c.b16 %v2107, %v2103
    %v2660 = vpack.c.b16 %v2108, %v2104
    %v2661 = vpack.c.b16 %v2109, %v2105
    %v2662 = vpack.c.b16 %v2110, %v2106
    %v2663 = vpack.c.b16 %v2115, %v2111
    %v2664 = vpack.c.b16 %v2116, %v2112
    %v2665 = vpack.c.b16 %v2117, %v2113
    %v2666 = vpack.c.b16 %v2118, %v2114
    %v2667 = vpack.c.b16 %v2123, %v2119
    %v2668 = vpack.c.b16 %v2124, %v2120
    %v2669 = vpack.c.b16 %v2125, %v2121
    %v2670 = vpack.c.b16 %v2126, %v2122
    %v2671 = vpack.c.b16 %v2131, %v2127
    %v2672 = vpack.c.b16 %v2132, %v2128
    %v2673 = vpack.c.b16 %v2133, %v2129
    %v2674 = vpack.c.b16 %v2134, %v2130
    %v2675 = vpack.c.b16 %v2139, %v2135
    %v2676 = vpack.c.b16 %v2140, %v2136
    %v2677 = vpack.c.b16 %v2141, %v2137
    %v2678 = vpack.c.b16 %v2142, %v2138
    %v2679 = vpack.c.b16 %v2147, %v2143
    %v2680 = vpack.c.b16 %v2148, %v2144
    %v2681 = vpack.c.b16 %v2149, %v2145
    %v2682 = vpack.c.b16 %v2150, %v2146
    %v2683 = vpack.c.b16 %v2155, %v2151
    %v2684 = vpack.c.b16 %v2156, %v2152
    %v2685 = vpack.c.b16 %v2157, %v2153
    %v2686 = vpack.c.b16 %v2158, %v2154
    %v2687 = vpack.c.b16 %v2163, %v2159
    %v2688 = vpack.c.b16 %v2164, %v2160
    %v2689 = vpack.c.b16 %v2165, %v2161
    %v2690 = vpack.c.b16 %v2166, %v2162
    %v2691 = vpack.c.b16 %v2171, %v2167
    %v2692 = vpack.c.b16 %v2172, %v2168
    %v2693 = vpack.c.b16 %v2173, %v2169
    %v2694 = vpack.c.b16 %v2174, %v2170
    %v2695 = vpack.c.b16 %v2179, %v2175
    %v2696 = vpack.c.b16 %v2180, %v2176
    %v2697 = vpack.c.b16 %v2181, %v2177
    %v2698 = vpack.c.b16 %v2182, %v2178
    %v2699 = vpack.c.b16 %v2187, %v2183
    %v2700 = vpack.c.b16 %v2188, %v2184
    %v2701 = vpack.c.b16 %v2189, %v2185
    %v2702 = vpack.c.b16 %v2190, %v2186
    %3215 = vmatprep.subr.bf16.mxu0 %v2220
    %3216 = vmatpush1.bf16.msra.mxu0 %v2219
    %3217 = vmatprep.subr.bf16.mxu0 %v2216
    %3218 = vmatpush1.bf16.msra.mxu0 %v2215
    %3219 = vmatprep.subr.bf16.mxu0 %v2212
    %3220 = vmatpush1.bf16.msra.mxu0 %v2211
    %3221 = vmatprep.subr.bf16.mxu0 %v2208
    %3222 = vmatpush1.bf16.msra.mxu0 %v2207
    %3223 = vmatprep.subr.bf16.mxu0 %v2204
    %3224 = vmatpush1.bf16.msra.mxu0 %v2203
    %3225 = vmatprep.subr.bf16.mxu0 %v2200
    %3226 = vmatpush1.bf16.msra.mxu0 %v2199
    %3227 = vmatprep.subr.bf16.mxu0 %v2196
    %3228 = vmatpush1.bf16.msra.mxu0 %v2195
    %3229 = vmatprep.subr.bf16.mxu0 %v2192
    %3230 = vmatpush1.bf16.msra.mxu0 %v2191
    %3231 = vmatprep.subr.bf16.mxu0 %v2252
    %3232 = vmatpush2.bf16.msra.mxu0 %v2251
    %3233 = vmatprep.subr.bf16.mxu0 %v2248
    %3234 = vmatpush2.bf16.msra.mxu0 %v2247
    %3235 = vmatprep.subr.bf16.mxu0 %v2244
    %3236 = vmatpush2.bf16.msra.mxu0 %v2243
    %3237 = vmatprep.subr.bf16.mxu0 %v2240
    %3238 = vmatpush2.bf16.msra.mxu0 %v2239
    %3239 = vmatprep.subr.bf16.mxu0 %v2236
    %3240 = vmatpush2.bf16.msra.mxu0 %v2235
    %3241 = vmatprep.subr.bf16.mxu0 %v2232
    %3242 = vmatpush2.bf16.msra.mxu0 %v2231
    %3243 = vmatprep.subr.bf16.mxu0 %v2228
    %3244 = vmatpush2.bf16.msra.mxu0 %v2227
    %3245 = vmatprep.subr.bf16.mxu0 %v2224
    %3246 = vmatpush2.bf16.msra.mxu0 %v2223
    %3247 = vmatprep.mubr.bf16.mxu0 %v578
    %3248 = vmatmul.mubr.bf16.gmra.mxu0 %v564
    %v3249 = vpop.f32.mrf.mxu0
    %v3250 = vadd.f32 0.0, %v3249
    %v3251 = vpop.f32.mrf.mxu0
    %v3252 = vadd.f32 0.0, %v3251
    %v3253 = vpop.f32.mrf.mxu0
    %v3254 = vpop.f32.mrf.mxu0
    %3255 = vdwg.mxu0
    %3256 = vmatprep.subr.bf16.mxu0 %v2284
    %3257 = vmatpush1.bf16.msra.mxu0 %v2283
    %3258 = vmatprep.subr.bf16.mxu0 %v2280
    %3259 = vmatpush1.bf16.msra.mxu0 %v2279
    %3260 = vmatprep.subr.bf16.mxu0 %v2276
    %3261 = vmatpush1.bf16.msra.mxu0 %v2275
    %3262 = vmatprep.subr.bf16.mxu0 %v2272
    %3263 = vmatpush1.bf16.msra.mxu0 %v2271
    %3264 = vmatprep.subr.bf16.mxu0 %v2268
    %3265 = vmatpush1.bf16.msra.mxu0 %v2267
    %3266 = vmatprep.subr.bf16.mxu0 %v2264
    %3267 = vmatpush1.bf16.msra.mxu0 %v2263
    %3268 = vmatprep.subr.bf16.mxu0 %v2260
    %3269 = vmatpush1.bf16.msra.mxu0 %v2259
    %3270 = vmatprep.subr.bf16.mxu0 %v2256
    %3271 = vmatpush1.bf16.msra.mxu0 %v2255
    %3272 = vmatprep.subr.bf16.mxu0 %v2316
    %3273 = vmatpush2.bf16.msra.mxu0 %v2315
    %3274 = vmatprep.subr.bf16.mxu0 %v2312
    %3275 = vmatpush2.bf16.msra.mxu0 %v2311
    %3276 = vmatprep.subr.bf16.mxu0 %v2308
    %3277 = vmatpush2.bf16.msra.mxu0 %v2307
    %3278 = vmatprep.subr.bf16.mxu0 %v2304
    %3279 = vmatpush2.bf16.msra.mxu0 %v2303
    %3280 = vmatprep.subr.bf16.mxu0 %v2300
    %3281 = vmatpush2.bf16.msra.mxu0 %v2299
    %3282 = vmatprep.subr.bf16.mxu0 %v2296
    %3283 = vmatpush2.bf16.msra.mxu0 %v2295
    %3284 = vmatprep.subr.bf16.mxu0 %v2292
    %3285 = vmatpush2.bf16.msra.mxu0 %v2291
    %3286 = vmatprep.subr.bf16.mxu0 %v2288
    %3287 = vmatpush2.bf16.msra.mxu0 %v2287
    %3288 = vmatprep.mubr.bf16.mxu0 %v588
    %3289 = vmatmul.mubr.bf16.gmra.mxu0 %v586
    %v3290 = vpop.f32.mrf.mxu0
    %v3291 = vadd.f32 %v3250, %v3290
    %v3292 = vpop.f32.mrf.mxu0
    %v3293 = vadd.f32 %v3252, %v3292
    %v3294 = vpop.f32.mrf.mxu0
    %v3295 = vpop.f32.mrf.mxu0
    %3296 = vdwg.mxu0
    %3297 = vmatprep.subr.bf16.mxu0 %v2348
    %3298 = vmatpush1.bf16.msra.mxu0 %v2347
    %3299 = vmatprep.subr.bf16.mxu0 %v2344
    %3300 = vmatpush1.bf16.msra.mxu0 %v2343
    %3301 = vmatprep.subr.bf16.mxu0 %v2340
    %3302 = vmatpush1.bf16.msra.mxu0 %v2339
    %3303 = vmatprep.subr.bf16.mxu0 %v2336
    %3304 = vmatpush1.bf16.msra.mxu0 %v2335
    %3305 = vmatprep.subr.bf16.mxu0 %v2332
    %3306 = vmatpush1.bf16.msra.mxu0 %v2331
    %3307 = vmatprep.subr.bf16.mxu0 %v2328
    %3308 = vmatpush1.bf16.msra.mxu0 %v2327
    %3309 = vmatprep.subr.bf16.mxu0 %v2324
    %3310 = vmatpush1.bf16.msra.mxu0 %v2323
    %3311 = vmatprep.subr.bf16.mxu0 %v2320
    %3312 = vmatpush1.bf16.msra.mxu0 %v2319
    %3313 = vmatprep.subr.bf16.mxu0 %v2380
    %3314 = vmatpush2.bf16.msra.mxu0 %v2379
    %3315 = vmatprep.subr.bf16.mxu0 %v2376
    %3316 = vmatpush2.bf16.msra.mxu0 %v2375
    %3317 = vmatprep.subr.bf16.mxu0 %v2372
    %3318 = vmatpush2.bf16.msra.mxu0 %v2371
    %3319 = vmatprep.subr.bf16.mxu0 %v2368
    %3320 = vmatpush2.bf16.msra.mxu0 %v2367
    %3321 = vmatprep.subr.bf16.mxu0 %v2364
    %3322 = vmatpush2.bf16.msra.mxu0 %v2363
    %3323 = vmatprep.subr.bf16.mxu0 %v2360
    %3324 = vmatpush2.bf16.msra.mxu0 %v2359
    %3325 = vmatprep.subr.bf16.mxu0 %v2356
    %3326 = vmatpush2.bf16.msra.mxu0 %v2355
    %3327 = vmatprep.subr.bf16.mxu0 %v2352
    %3328 = vmatpush2.bf16.msra.mxu0 %v2351
    %3329 = vmatprep.mubr.bf16.mxu0 %v585
    %3330 = vmatmul.mubr.bf16.gmra.mxu0 %v571
    %v3331 = vpop.f32.mrf.mxu0
    %v3332 = vadd.f32 %v3291, %v3331
    %v3333 = vpop.f32.mrf.mxu0
    %v3334 = vadd.f32 %v3293, %v3333
    %v3335 = vpop.f32.mrf.mxu0
    %v3336 = vpop.f32.mrf.mxu0
    %3337 = vdwg.mxu0
    %3338 = vmatprep.subr.bf16.mxu0 %v2412
    %3339 = vmatpush1.bf16.msra.mxu0 %v2411
    %3340 = vmatprep.subr.bf16.mxu0 %v2408
    %3341 = vmatpush1.bf16.msra.mxu0 %v2407
    %3342 = vmatprep.subr.bf16.mxu0 %v2404
    %3343 = vmatpush1.bf16.msra.mxu0 %v2403
    %3344 = vmatprep.subr.bf16.mxu0 %v2400
    %3345 = vmatpush1.bf16.msra.mxu0 %v2399
    %3346 = vmatprep.subr.bf16.mxu0 %v2396
    %3347 = vmatpush1.bf16.msra.mxu0 %v2395
    %3348 = vmatprep.subr.bf16.mxu0 %v2392
    %3349 = vmatpush1.bf16.msra.mxu0 %v2391
    %3350 = vmatprep.subr.bf16.mxu0 %v2388
    %3351 = vmatpush1.bf16.msra.mxu0 %v2387
    %3352 = vmatprep.subr.bf16.mxu0 %v2384
    %3353 = vmatpush1.bf16.msra.mxu0 %v2383
    %3354 = vmatprep.subr.bf16.mxu0 %v2444
    %3355 = vmatpush2.bf16.msra.mxu0 %v2443
    %3356 = vmatprep.subr.bf16.mxu0 %v2440
    %3357 = vmatpush2.bf16.msra.mxu0 %v2439
    %3358 = vmatprep.subr.bf16.mxu0 %v2436
    %3359 = vmatpush2.bf16.msra.mxu0 %v2435
    %3360 = vmatprep.subr.bf16.mxu0 %v2432
    %3361 = vmatpush2.bf16.msra.mxu0 %v2431
    %3362 = vmatprep.subr.bf16.mxu0 %v2428
    %3363 = vmatpush2.bf16.msra.mxu0 %v2427
    %3364 = vmatprep.subr.bf16.mxu0 %v2424
    %3365 = vmatpush2.bf16.msra.mxu0 %v2423
    %3366 = vmatprep.subr.bf16.mxu0 %v2420
    %3367 = vmatpush2.bf16.msra.mxu0 %v2419
    %3368 = vmatprep.subr.bf16.mxu0 %v2416
    %3369 = vmatpush2.bf16.msra.mxu0 %v2415
    %3370 = vmatprep.mubr.bf16.mxu0 %v589
    %3371 = vmatmul.mubr.bf16.gmra.mxu0 %v587
    %v3372 = vpop.f32.mrf.mxu0
    %v3373 = vadd.f32 %v3332, %v3372
    %v3374 = vpop.f32.mrf.mxu0
    %v3375 = vadd.f32 %v3334, %v3374
    %v3376 = vpop.f32.mrf.mxu0
    %v3377 = vpop.f32.mrf.mxu0
    %3378 = vdwg.mxu0
    %3379 = vmatprep.subr.bf16.mxu0 %v2476
    %3380 = vmatpush1.bf16.msra.mxu0 %v2475
    %3381 = vmatprep.subr.bf16.mxu0 %v2472
    %3382 = vmatpush1.bf16.msra.mxu0 %v2471
    %3383 = vmatprep.subr.bf16.mxu0 %v2468
    %3384 = vmatpush1.bf16.msra.mxu0 %v2467
    %3385 = vmatprep.subr.bf16.mxu0 %v2464
    %3386 = vmatpush1.bf16.msra.mxu0 %v2463
    %3387 = vmatprep.subr.bf16.mxu0 %v2460
    %3388 = vmatpush1.bf16.msra.mxu0 %v2459
    %3389 = vmatprep.subr.bf16.mxu0 %v2456
    %3390 = vmatpush1.bf16.msra.mxu0 %v2455
    %3391 = vmatprep.subr.bf16.mxu0 %v2452
    %3392 = vmatpush1.bf16.msra.mxu0 %v2451
    %3393 = vmatprep.subr.bf16.mxu0 %v2448
    %3394 = vmatpush1.bf16.msra.mxu0 %v2447
    %3395 = vmatprep.subr.bf16.mxu0 %v2508
    %3396 = vmatpush2.bf16.msra.mxu0 %v2507
    %3397 = vmatprep.subr.bf16.mxu0 %v2504
    %3398 = vmatpush2.bf16.msra.mxu0 %v2503
    %3399 = vmatprep.subr.bf16.mxu0 %v2500
    %3400 = vmatpush2.bf16.msra.mxu0 %v2499
    %3401 = vmatprep.subr.bf16.mxu0 %v2496
    %3402 = vmatpush2.bf16.msra.mxu0 %v2495
    %3403 = vmatprep.subr.bf16.mxu0 %v2492
    %3404 = vmatpush2.bf16.msra.mxu0 %v2491
    %3405 = vmatprep.subr.bf16.mxu0 %v2488
    %3406 = vmatpush2.bf16.msra.mxu0 %v2487
    %3407 = vmatprep.subr.bf16.mxu0 %v2484
    %3408 = vmatpush2.bf16.msra.mxu0 %v2483
    %3409 = vmatprep.subr.bf16.mxu0 %v2480
    %3410 = vmatpush2.bf16.msra.mxu0 %v2479
    %3411 = vmatprep.mubr.bf16.mxu0 %v627
    %3412 = vmatmul.mubr.bf16.gmra.mxu0 %v613
    %v3413 = vpop.f32.mrf.mxu0
    %v3414 = vadd.f32 %v3373, %v3413
    %v3415 = vpop.f32.mrf.mxu0
    %v3416 = vadd.f32 %v3375, %v3415
    %v3417 = vpop.f32.mrf.mxu0
    %v3418 = vpop.f32.mrf.mxu0
    %3419 = vdwg.mxu0
    %3420 = vmatprep.subr.bf16.mxu0 %v2540
    %3421 = vmatpush1.bf16.msra.mxu0 %v2539
    %3422 = vmatprep.subr.bf16.mxu0 %v2536
    %3423 = vmatpush1.bf16.msra.mxu0 %v2535
    %3424 = vmatprep.subr.bf16.mxu0 %v2532
    %3425 = vmatpush1.bf16.msra.mxu0 %v2531
    %3426 = vmatprep.subr.bf16.mxu0 %v2528
    %3427 = vmatpush1.bf16.msra.mxu0 %v2527
    %3428 = vmatprep.subr.bf16.mxu0 %v2524
    %3429 = vmatpush1.bf16.msra.mxu0 %v2523
    %3430 = vmatprep.subr.bf16.mxu0 %v2520
    %3431 = vmatpush1.bf16.msra.mxu0 %v2519
    %3432 = vmatprep.subr.bf16.mxu0 %v2516
    %3433 = vmatpush1.bf16.msra.mxu0 %v2515
    %3434 = vmatprep.subr.bf16.mxu0 %v2512
    %3435 = vmatpush1.bf16.msra.mxu0 %v2511
    %3436 = vmatprep.subr.bf16.mxu0 %v2572
    %3437 = vmatpush2.bf16.msra.mxu0 %v2571
    %3438 = vmatprep.subr.bf16.mxu0 %v2568
    %3439 = vmatpush2.bf16.msra.mxu0 %v2567
    %3440 = vmatprep.subr.bf16.mxu0 %v2564
    %3441 = vmatpush2.bf16.msra.mxu0 %v2563
    %3442 = vmatprep.subr.bf16.mxu0 %v2560
    %3443 = vmatpush2.bf16.msra.mxu0 %v2559
    %3444 = vmatprep.subr.bf16.mxu0 %v2556
    %3445 = vmatpush2.bf16.msra.mxu0 %v2555
    %3446 = vmatprep.subr.bf16.mxu0 %v2552
    %3447 = vmatpush2.bf16.msra.mxu0 %v2551
    %3448 = vmatprep.subr.bf16.mxu0 %v2548
    %3449 = vmatpush2.bf16.msra.mxu0 %v2547
    %3450 = vmatprep.subr.bf16.mxu0 %v2544
    %3451 = vmatpush2.bf16.msra.mxu0 %v2543
    %3452 = vmatprep.mubr.bf16.mxu0 %v637
    %3453 = vmatmul.mubr.bf16.gmra.mxu0 %v635
    %v3454 = vpop.f32.mrf.mxu0
    %v3455 = vadd.f32 %v3414, %v3454
    %v3456 = vpop.f32.mrf.mxu0
    %v3457 = vadd.f32 %v3416, %v3456
    %v3458 = vpop.f32.mrf.mxu0
    %v3459 = vpop.f32.mrf.mxu0
    %3460 = vdwg.mxu0
    %3461 = vmatprep.subr.bf16.mxu0 %v2604
    %3462 = vmatpush1.bf16.msra.mxu0 %v2603
    %3463 = vmatprep.subr.bf16.mxu0 %v2600
    %3464 = vmatpush1.bf16.msra.mxu0 %v2599
    %3465 = vmatprep.subr.bf16.mxu0 %v2596
    %3466 = vmatpush1.bf16.msra.mxu0 %v2595
    %3467 = vmatprep.subr.bf16.mxu0 %v2592
    %3468 = vmatpush1.bf16.msra.mxu0 %v2591
    %3469 = vmatprep.subr.bf16.mxu0 %v2588
    %3470 = vmatpush1.bf16.msra.mxu0 %v2587
    %3471 = vmatprep.subr.bf16.mxu0 %v2584
    %3472 = vmatpush1.bf16.msra.mxu0 %v2583
    %3473 = vmatprep.subr.bf16.mxu0 %v2580
    %3474 = vmatpush1.bf16.msra.mxu0 %v2579
    %3475 = vmatprep.subr.bf16.mxu0 %v2576
    %3476 = vmatpush1.bf16.msra.mxu0 %v2575
    %3477 = vmatprep.subr.bf16.mxu0 %v2636
    %3478 = vmatpush2.bf16.msra.mxu0 %v2635
    %3479 = vmatprep.subr.bf16.mxu0 %v2632
    %3480 = vmatpush2.bf16.msra.mxu0 %v2631
    %3481 = vmatprep.subr.bf16.mxu0 %v2628
    %3482 = vmatpush2.bf16.msra.mxu0 %v2627
    %3483 = vmatprep.subr.bf16.mxu0 %v2624
    %3484 = vmatpush2.bf16.msra.mxu0 %v2623
    %3485 = vmatprep.subr.bf16.mxu0 %v2620
    %3486 = vmatpush2.bf16.msra.mxu0 %v2619
    %3487 = vmatprep.subr.bf16.mxu0 %v2616
    %3488 = vmatpush2.bf16.msra.mxu0 %v2615
    %3489 = vmatprep.subr.bf16.mxu0 %v2612
    %3490 = vmatpush2.bf16.msra.mxu0 %v2611
    %3491 = vmatprep.subr.bf16.mxu0 %v2608
    %3492 = vmatpush2.bf16.msra.mxu0 %v2607
    %3493 = vmatprep.mubr.bf16.mxu0 %v634
    %3494 = vmatmul.mubr.bf16.gmra.mxu0 %v620
    %v3495 = vpop.f32.mrf.mxu0
    %v3496 = vadd.f32 %v3455, %v3495
    %v3497 = vpop.f32.mrf.mxu0
    %v3498 = vadd.f32 %v3457, %v3497
    %v3499 = vpop.f32.mrf.mxu0
    %v3500 = vpop.f32.mrf.mxu0
    %3501 = vdwg.mxu0
    %3502 = vmatprep.subr.bf16.mxu0 %v2668
    %3503 = vmatpush1.bf16.msra.mxu0 %v2667
    %3504 = vmatprep.subr.bf16.mxu0 %v2664
    %3505 = vmatpush1.bf16.msra.mxu0 %v2663
    %3506 = vmatprep.subr.bf16.mxu0 %v2660
    %3507 = vmatpush1.bf16.msra.mxu0 %v2659
    %3508 = vmatprep.subr.bf16.mxu0 %v2656
    %3509 = vmatpush1.bf16.msra.mxu0 %v2655
    %3510 = vmatprep.subr.bf16.mxu0 %v2652
    %3511 = vmatpush1.bf16.msra.mxu0 %v2651
    %3512 = vmatprep.subr.bf16.mxu0 %v2648
    %3513 = vmatpush1.bf16.msra.mxu0 %v2647
    %3514 = vmatprep.subr.bf16.mxu0 %v2644
    %3515 = vmatpush1.bf16.msra.mxu0 %v2643
    %3516 = vmatprep.subr.bf16.mxu0 %v2640
    %3517 = vmatpush1.bf16.msra.mxu0 %v2639
    %3518 = vmatprep.subr.bf16.mxu0 %v2700
    %3519 = vmatpush2.bf16.msra.mxu0 %v2699
    %3520 = vmatprep.subr.bf16.mxu0 %v2696
    %3521 = vmatpush2.bf16.msra.mxu0 %v2695
    %3522 = vmatprep.subr.bf16.mxu0 %v2692
    %3523 = vmatpush2.bf16.msra.mxu0 %v2691
    %3524 = vmatprep.subr.bf16.mxu0 %v2688
    %3525 = vmatpush2.bf16.msra.mxu0 %v2687
    %3526 = vmatprep.subr.bf16.mxu0 %v2684
    %3527 = vmatpush2.bf16.msra.mxu0 %v2683
    %3528 = vmatprep.subr.bf16.mxu0 %v2680
    %3529 = vmatpush2.bf16.msra.mxu0 %v2679
    %3530 = vmatprep.subr.bf16.mxu0 %v2676
    %3531 = vmatpush2.bf16.msra.mxu0 %v2675
    %3532 = vmatprep.subr.bf16.mxu0 %v2672
    %3533 = vmatpush2.bf16.msra.mxu0 %v2671
    %3534 = vmatprep.mubr.bf16.mxu0 %v638
    %3535 = vmatmul.mubr.bf16.gmra.mxu0 %v636
    %v3536 = vpop.f32.mrf.mxu0
    %v3537 = vadd.f32 %v3496, %v3536
    %v3538 = vpop.f32.mrf.mxu0
    %v3539 = vadd.f32 %v3498, %v3538
    %v3540 = vpop.f32.mrf.mxu0
    %v3541 = vpop.f32.mrf.mxu0
    %3542 = vdwg.mxu0
    %3543 = vmatprep.subr.bf16.mxu0 %v2222
    %3544 = vmatpush1.bf16.msra.mxu0 %v2221
    %3545 = vmatprep.subr.bf16.mxu0 %v2218
    %3546 = vmatpush1.bf16.msra.mxu0 %v2217
    %3547 = vmatprep.subr.bf16.mxu0 %v2214
    %3548 = vmatpush1.bf16.msra.mxu0 %v2213
    %3549 = vmatprep.subr.bf16.mxu0 %v2210
    %3550 = vmatpush1.bf16.msra.mxu0 %v2209
    %3551 = vmatprep.subr.bf16.mxu0 %v2206
    %3552 = vmatpush1.bf16.msra.mxu0 %v2205
    %3553 = vmatprep.subr.bf16.mxu0 %v2202
    %3554 = vmatpush1.bf16.msra.mxu0 %v2201
    %3555 = vmatprep.subr.bf16.mxu0 %v2198
    %3556 = vmatpush1.bf16.msra.mxu0 %v2197
    %3557 = vmatprep.subr.bf16.mxu0 %v2194
    %3558 = vmatpush1.bf16.msra.mxu0 %v2193
    %3559 = vmatprep.subr.bf16.mxu0 %v2254
    %3560 = vmatpush2.bf16.msra.mxu0 %v2253
    %3561 = vmatprep.subr.bf16.mxu0 %v2250
    %3562 = vmatpush2.bf16.msra.mxu0 %v2249
    %3563 = vmatprep.subr.bf16.mxu0 %v2246
    %3564 = vmatpush2.bf16.msra.mxu0 %v2245
    %3565 = vmatprep.subr.bf16.mxu0 %v2242
    %3566 = vmatpush2.bf16.msra.mxu0 %v2241
    %3567 = vmatprep.subr.bf16.mxu0 %v2238
    %3568 = vmatpush2.bf16.msra.mxu0 %v2237
    %3569 = vmatprep.subr.bf16.mxu0 %v2234
    %3570 = vmatpush2.bf16.msra.mxu0 %v2233
    %3571 = vmatprep.subr.bf16.mxu0 %v2230
    %3572 = vmatpush2.bf16.msra.mxu0 %v2229
    %3573 = vmatprep.subr.bf16.mxu0 %v2226
    %3574 = vmatpush2.bf16.msra.mxu0 %v2225
    %3575 = vmatprep.mubr.bf16.mxu0 %v578
    %3576 = vmatmul.mubr.bf16.gmra.mxu0 %v564
    %v3577 = vpop.f32.mrf.mxu0
    %v3578 = vadd.f32 0.0, %v3577
    %v3579 = vpop.f32.mrf.mxu0
    %v3580 = vadd.f32 0.0, %v3579
    %v3581 = vpop.f32.mrf.mxu0
    %v3582 = vpop.f32.mrf.mxu0
    %3583 = vdwg.mxu0
    %3584 = vmatprep.subr.bf16.mxu0 %v2286
    %3585 = vmatpush1.bf16.msra.mxu0 %v2285
    %3586 = vmatprep.subr.bf16.mxu0 %v2282
    %3587 = vmatpush1.bf16.msra.mxu0 %v2281
    %3588 = vmatprep.subr.bf16.mxu0 %v2278
    %3589 = vmatpush1.bf16.msra.mxu0 %v2277
    %3590 = vmatprep.subr.bf16.mxu0 %v2274
    %3591 = vmatpush1.bf16.msra.mxu0 %v2273
    %3592 = vmatprep.subr.bf16.mxu0 %v2270
    %3593 = vmatpush1.bf16.msra.mxu0 %v2269
    %3594 = vmatprep.subr.bf16.mxu0 %v2266
    %3595 = vmatpush1.bf16.msra.mxu0 %v2265
    %3596 = vmatprep.subr.bf16.mxu0 %v2262
    %3597 = vmatpush1.bf16.msra.mxu0 %v2261
    %3598 = vmatprep.subr.bf16.mxu0 %v2258
    %3599 = vmatpush1.bf16.msra.mxu0 %v2257
    %3600 = vmatprep.subr.bf16.mxu0 %v2318
    %3601 = vmatpush2.bf16.msra.mxu0 %v2317
    %3602 = vmatprep.subr.bf16.mxu0 %v2314
    %3603 = vmatpush2.bf16.msra.mxu0 %v2313
    %3604 = vmatprep.subr.bf16.mxu0 %v2310
    %3605 = vmatpush2.bf16.msra.mxu0 %v2309
    %3606 = vmatprep.subr.bf16.mxu0 %v2306
    %3607 = vmatpush2.bf16.msra.mxu0 %v2305
    %3608 = vmatprep.subr.bf16.mxu0 %v2302
    %3609 = vmatpush2.bf16.msra.mxu0 %v2301
    %3610 = vmatprep.subr.bf16.mxu0 %v2298
    %3611 = vmatpush2.bf16.msra.mxu0 %v2297
    %3612 = vmatprep.subr.bf16.mxu0 %v2294
    %3613 = vmatpush2.bf16.msra.mxu0 %v2293
    %3614 = vmatprep.subr.bf16.mxu0 %v2290
    %3615 = vmatpush2.bf16.msra.mxu0 %v2289
    %3616 = vmatprep.mubr.bf16.mxu0 %v588
    %3617 = vmatmul.mubr.bf16.gmra.mxu0 %v586
    %v3618 = vpop.f32.mrf.mxu0
    %v3619 = vadd.f32 %v3578, %v3618
    %v3620 = vpop.f32.mrf.mxu0
    %v3621 = vadd.f32 %v3580, %v3620
    %v3622 = vpop.f32.mrf.mxu0
    %v3623 = vpop.f32.mrf.mxu0
    %3624 = vdwg.mxu0
    %3625 = vmatprep.subr.bf16.mxu0 %v2350
    %3626 = vmatpush1.bf16.msra.mxu0 %v2349
    %3627 = vmatprep.subr.bf16.mxu0 %v2346
    %3628 = vmatpush1.bf16.msra.mxu0 %v2345
    %3629 = vmatprep.subr.bf16.mxu0 %v2342
    %3630 = vmatpush1.bf16.msra.mxu0 %v2341
    %3631 = vmatprep.subr.bf16.mxu0 %v2338
    %3632 = vmatpush1.bf16.msra.mxu0 %v2337
    %3633 = vmatprep.subr.bf16.mxu0 %v2334
    %3634 = vmatpush1.bf16.msra.mxu0 %v2333
    %3635 = vmatprep.subr.bf16.mxu0 %v2330
    %3636 = vmatpush1.bf16.msra.mxu0 %v2329
    %3637 = vmatprep.subr.bf16.mxu0 %v2326
    %3638 = vmatpush1.bf16.msra.mxu0 %v2325
    %3639 = vmatprep.subr.bf16.mxu0 %v2322
    %3640 = vmatpush1.bf16.msra.mxu0 %v2321
    %3641 = vmatprep.subr.bf16.mxu0 %v2382
    %3642 = vmatpush2.bf16.msra.mxu0 %v2381
    %3643 = vmatprep.subr.bf16.mxu0 %v2378
    %3644 = vmatpush2.bf16.msra.mxu0 %v2377
    %3645 = vmatprep.subr.bf16.mxu0 %v2374
    %3646 = vmatpush2.bf16.msra.mxu0 %v2373
    %3647 = vmatprep.subr.bf16.mxu0 %v2370
    %3648 = vmatpush2.bf16.msra.mxu0 %v2369
    %3649 = vmatprep.subr.bf16.mxu0 %v2366
    %3650 = vmatpush2.bf16.msra.mxu0 %v2365
    %3651 = vmatprep.subr.bf16.mxu0 %v2362
    %3652 = vmatpush2.bf16.msra.mxu0 %v2361
    %3653 = vmatprep.subr.bf16.mxu0 %v2358
    %3654 = vmatpush2.bf16.msra.mxu0 %v2357
    %3655 = vmatprep.subr.bf16.mxu0 %v2354
    %3656 = vmatpush2.bf16.msra.mxu0 %v2353
    %3657 = vmatprep.mubr.bf16.mxu0 %v585
    %3658 = vmatmul.mubr.bf16.gmra.mxu0 %v571
    %v3659 = vpop.f32.mrf.mxu0
    %v3660 = vadd.f32 %v3619, %v3659
    %v3661 = vpop.f32.mrf.mxu0
    %v3662 = vadd.f32 %v3621, %v3661
    %v3663 = vpop.f32.mrf.mxu0
    %v3664 = vpop.f32.mrf.mxu0
    %3665 = vdwg.mxu0
    %3666 = vmatprep.subr.bf16.mxu0 %v2414
    %3667 = vmatpush1.bf16.msra.mxu0 %v2413
    %3668 = vmatprep.subr.bf16.mxu0 %v2410
    %3669 = vmatpush1.bf16.msra.mxu0 %v2409
    %3670 = vmatprep.subr.bf16.mxu0 %v2406
    %3671 = vmatpush1.bf16.msra.mxu0 %v2405
    %3672 = vmatprep.subr.bf16.mxu0 %v2402
    %3673 = vmatpush1.bf16.msra.mxu0 %v2401
    %3674 = vmatprep.subr.bf16.mxu0 %v2398
    %3675 = vmatpush1.bf16.msra.mxu0 %v2397
    %3676 = vmatprep.subr.bf16.mxu0 %v2394
    %3677 = vmatpush1.bf16.msra.mxu0 %v2393
    %3678 = vmatprep.subr.bf16.mxu0 %v2390
    %3679 = vmatpush1.bf16.msra.mxu0 %v2389
    %3680 = vmatprep.subr.bf16.mxu0 %v2386
    %3681 = vmatpush1.bf16.msra.mxu0 %v2385
    %3682 = vmatprep.subr.bf16.mxu0 %v2446
    %3683 = vmatpush2.bf16.msra.mxu0 %v2445
    %3684 = vmatprep.subr.bf16.mxu0 %v2442
    %3685 = vmatpush2.bf16.msra.mxu0 %v2441
    %3686 = vmatprep.subr.bf16.mxu0 %v2438
    %3687 = vmatpush2.bf16.msra.mxu0 %v2437
    %3688 = vmatprep.subr.bf16.mxu0 %v2434
    %3689 = vmatpush2.bf16.msra.mxu0 %v2433
    %3690 = vmatprep.subr.bf16.mxu0 %v2430
    %3691 = vmatpush2.bf16.msra.mxu0 %v2429
    %3692 = vmatprep.subr.bf16.mxu0 %v2426
    %3693 = vmatpush2.bf16.msra.mxu0 %v2425
    %3694 = vmatprep.subr.bf16.mxu0 %v2422
    %3695 = vmatpush2.bf16.msra.mxu0 %v2421
    %3696 = vmatprep.subr.bf16.mxu0 %v2418
    %3697 = vmatpush2.bf16.msra.mxu0 %v2417
    %3698 = vmatprep.mubr.bf16.mxu0 %v589
    %3699 = vmatmul.mubr.bf16.gmra.mxu0 %v587
    %v3700 = vpop.f32.mrf.mxu0
    %v3701 = vadd.f32 %v3660, %v3700
    %v3702 = vpop.f32.mrf.mxu0
    %v3703 = vadd.f32 %v3662, %v3702
    %v3704 = vpop.f32.mrf.mxu0
    %v3705 = vpop.f32.mrf.mxu0
    %3706 = vdwg.mxu0
    %3707 = vmatprep.subr.bf16.mxu0 %v2478
    %3708 = vmatpush1.bf16.msra.mxu0 %v2477
    %3709 = vmatprep.subr.bf16.mxu0 %v2474
    %3710 = vmatpush1.bf16.msra.mxu0 %v2473
    %3711 = vmatprep.subr.bf16.mxu0 %v2470
    %3712 = vmatpush1.bf16.msra.mxu0 %v2469
    %3713 = vmatprep.subr.bf16.mxu0 %v2466
    %3714 = vmatpush1.bf16.msra.mxu0 %v2465
    %3715 = vmatprep.subr.bf16.mxu0 %v2462
    %3716 = vmatpush1.bf16.msra.mxu0 %v2461
    %3717 = vmatprep.subr.bf16.mxu0 %v2458
    %3718 = vmatpush1.bf16.msra.mxu0 %v2457
    %3719 = vmatprep.subr.bf16.mxu0 %v2454
    %3720 = vmatpush1.bf16.msra.mxu0 %v2453
    %3721 = vmatprep.subr.bf16.mxu0 %v2450
    %3722 = vmatpush1.bf16.msra.mxu0 %v2449
    %3723 = vmatprep.subr.bf16.mxu0 %v2510
    %3724 = vmatpush2.bf16.msra.mxu0 %v2509
    %3725 = vmatprep.subr.bf16.mxu0 %v2506
    %3726 = vmatpush2.bf16.msra.mxu0 %v2505
    %3727 = vmatprep.subr.bf16.mxu0 %v2502
    %3728 = vmatpush2.bf16.msra.mxu0 %v2501
    %3729 = vmatprep.subr.bf16.mxu0 %v2498
    %3730 = vmatpush2.bf16.msra.mxu0 %v2497
    %3731 = vmatprep.subr.bf16.mxu0 %v2494
    %3732 = vmatpush2.bf16.msra.mxu0 %v2493
    %3733 = vmatprep.subr.bf16.mxu0 %v2490
    %3734 = vmatpush2.bf16.msra.mxu0 %v2489
    %3735 = vmatprep.subr.bf16.mxu0 %v2486
    %3736 = vmatpush2.bf16.msra.mxu0 %v2485
    %3737 = vmatprep.subr.bf16.mxu0 %v2482
    %3738 = vmatpush2.bf16.msra.mxu0 %v2481
    %3739 = vmatprep.mubr.bf16.mxu0 %v627
    %3740 = vmatmul.mubr.bf16.gmra.mxu0 %v613
    %v3741 = vpop.f32.mrf.mxu0
    %v3742 = vadd.f32 %v3701, %v3741
    %v3743 = vpop.f32.mrf.mxu0
    %v3744 = vadd.f32 %v3703, %v3743
    %v3745 = vpop.f32.mrf.mxu0
    %v3746 = vpop.f32.mrf.mxu0
    %3747 = vdwg.mxu0
    %3748 = vmatprep.subr.bf16.mxu0 %v2542
    %3749 = vmatpush1.bf16.msra.mxu0 %v2541
    %3750 = vmatprep.subr.bf16.mxu0 %v2538
    %3751 = vmatpush1.bf16.msra.mxu0 %v2537
    %3752 = vmatprep.subr.bf16.mxu0 %v2534
    %3753 = vmatpush1.bf16.msra.mxu0 %v2533
    %3754 = vmatprep.subr.bf16.mxu0 %v2530
    %3755 = vmatpush1.bf16.msra.mxu0 %v2529
    %3756 = vmatprep.subr.bf16.mxu0 %v2526
    %3757 = vmatpush1.bf16.msra.mxu0 %v2525
    %3758 = vmatprep.subr.bf16.mxu0 %v2522
    %3759 = vmatpush1.bf16.msra.mxu0 %v2521
    %3760 = vmatprep.subr.bf16.mxu0 %v2518
    %3761 = vmatpush1.bf16.msra.mxu0 %v2517
    %3762 = vmatprep.subr.bf16.mxu0 %v2514
    %3763 = vmatpush1.bf16.msra.mxu0 %v2513
    %3764 = vmatprep.subr.bf16.mxu0 %v2574
    %3765 = vmatpush2.bf16.msra.mxu0 %v2573
    %3766 = vmatprep.subr.bf16.mxu0 %v2570
    %3767 = vmatpush2.bf16.msra.mxu0 %v2569
    %3768 = vmatprep.subr.bf16.mxu0 %v2566
    %3769 = vmatpush2.bf16.msra.mxu0 %v2565
    %3770 = vmatprep.subr.bf16.mxu0 %v2562
    %3771 = vmatpush2.bf16.msra.mxu0 %v2561
    %3772 = vmatprep.subr.bf16.mxu0 %v2558
    %3773 = vmatpush2.bf16.msra.mxu0 %v2557
    %3774 = vmatprep.subr.bf16.mxu0 %v2554
    %3775 = vmatpush2.bf16.msra.mxu0 %v2553
    %3776 = vmatprep.subr.bf16.mxu0 %v2550
    %3777 = vmatpush2.bf16.msra.mxu0 %v2549
    %3778 = vmatprep.subr.bf16.mxu0 %v2546
    %3779 = vmatpush2.bf16.msra.mxu0 %v2545
    %3780 = vmatprep.mubr.bf16.mxu0 %v637
    %3781 = vmatmul.mubr.bf16.gmra.mxu0 %v635
    %v3782 = vpop.f32.mrf.mxu0
    %v3783 = vadd.f32 %v3742, %v3782
    %v3784 = vpop.f32.mrf.mxu0
    %v3785 = vadd.f32 %v3744, %v3784
    %v3786 = vpop.f32.mrf.mxu0
    %v3787 = vpop.f32.mrf.mxu0
    %3788 = vdwg.mxu0
    %3789 = vmatprep.subr.bf16.mxu0 %v2606
    %3790 = vmatpush1.bf16.msra.mxu0 %v2605
    %3791 = vmatprep.subr.bf16.mxu0 %v2602
    %3792 = vmatpush1.bf16.msra.mxu0 %v2601
    %3793 = vmatprep.subr.bf16.mxu0 %v2598
    %3794 = vmatpush1.bf16.msra.mxu0 %v2597
    %3795 = vmatprep.subr.bf16.mxu0 %v2594
    %3796 = vmatpush1.bf16.msra.mxu0 %v2593
    %3797 = vmatprep.subr.bf16.mxu0 %v2590
    %3798 = vmatpush1.bf16.msra.mxu0 %v2589
    %3799 = vmatprep.subr.bf16.mxu0 %v2586
    %3800 = vmatpush1.bf16.msra.mxu0 %v2585
    %3801 = vmatprep.subr.bf16.mxu0 %v2582
    %3802 = vmatpush1.bf16.msra.mxu0 %v2581
    %3803 = vmatprep.subr.bf16.mxu0 %v2578
    %3804 = vmatpush1.bf16.msra.mxu0 %v2577
    %3805 = vmatprep.subr.bf16.mxu0 %v2638
    %3806 = vmatpush2.bf16.msra.mxu0 %v2637
    %3807 = vmatprep.subr.bf16.mxu0 %v2634
    %3808 = vmatpush2.bf16.msra.mxu0 %v2633
    %3809 = vmatprep.subr.bf16.mxu0 %v2630
    %3810 = vmatpush2.bf16.msra.mxu0 %v2629
    %3811 = vmatprep.subr.bf16.mxu0 %v2626
    %3812 = vmatpush2.bf16.msra.mxu0 %v2625
    %3813 = vmatprep.subr.bf16.mxu0 %v2622
    %3814 = vmatpush2.bf16.msra.mxu0 %v2621
    %3815 = vmatprep.subr.bf16.mxu0 %v2618
    %3816 = vmatpush2.bf16.msra.mxu0 %v2617
    %3817 = vmatprep.subr.bf16.mxu0 %v2614
    %3818 = vmatpush2.bf16.msra.mxu0 %v2613
    %3819 = vmatprep.subr.bf16.mxu0 %v2610
    %3820 = vmatpush2.bf16.msra.mxu0 %v2609
    %3821 = vmatprep.mubr.bf16.mxu0 %v634
    %3822 = vmatmul.mubr.bf16.gmra.mxu0 %v620
    %v3823 = vpop.f32.mrf.mxu0
    %v3824 = vadd.f32 %v3783, %v3823
    %v3825 = vpop.f32.mrf.mxu0
    %v3826 = vadd.f32 %v3785, %v3825
    %v3827 = vpop.f32.mrf.mxu0
    %v3828 = vpop.f32.mrf.mxu0
    %3829 = vdwg.mxu0
    %3830 = vmatprep.subr.bf16.mxu0 %v2670
    %3831 = vmatpush1.bf16.msra.mxu0 %v2669
    %3832 = vmatprep.subr.bf16.mxu0 %v2666
    %3833 = vmatpush1.bf16.msra.mxu0 %v2665
    %3834 = vmatprep.subr.bf16.mxu0 %v2662
    %3835 = vmatpush1.bf16.msra.mxu0 %v2661
    %3836 = vmatprep.subr.bf16.mxu0 %v2658
    %3837 = vmatpush1.bf16.msra.mxu0 %v2657
    %3838 = vmatprep.subr.bf16.mxu0 %v2654
    %3839 = vmatpush1.bf16.msra.mxu0 %v2653
    %3840 = vmatprep.subr.bf16.mxu0 %v2650
    %3841 = vmatpush1.bf16.msra.mxu0 %v2649
    %3842 = vmatprep.subr.bf16.mxu0 %v2646
    %3843 = vmatpush1.bf16.msra.mxu0 %v2645
    %3844 = vmatprep.subr.bf16.mxu0 %v2642
    %3845 = vmatpush1.bf16.msra.mxu0 %v2641
    %3846 = vmatprep.subr.bf16.mxu0 %v2702
    %3847 = vmatpush2.bf16.msra.mxu0 %v2701
    %3848 = vmatprep.subr.bf16.mxu0 %v2698
    %3849 = vmatpush2.bf16.msra.mxu0 %v2697
    %3850 = vmatprep.subr.bf16.mxu0 %v2694
    %3851 = vmatpush2.bf16.msra.mxu0 %v2693
    %3852 = vmatprep.subr.bf16.mxu0 %v2690
    %3853 = vmatpush2.bf16.msra.mxu0 %v2689
    %3854 = vmatprep.subr.bf16.mxu0 %v2686
    %3855 = vmatpush2.bf16.msra.mxu0 %v2685
    %3856 = vmatprep.subr.bf16.mxu0 %v2682
    %3857 = vmatpush2.bf16.msra.mxu0 %v2681
    %3858 = vmatprep.subr.bf16.mxu0 %v2678
    %3859 = vmatpush2.bf16.msra.mxu0 %v2677
    %3860 = vmatprep.subr.bf16.mxu0 %v2674
    %3861 = vmatpush2.bf16.msra.mxu0 %v2673
    %3862 = vmatprep.mubr.bf16.mxu0 %v638
    %3863 = vmatmul.mubr.bf16.gmra.mxu0 %v636
    %v3864 = vpop.f32.mrf.mxu0
    %v3865 = vadd.f32 %v3824, %v3864
    %v3866 = vpop.f32.mrf.mxu0
    %v3867 = vadd.f32 %v3826, %v3866
    %v3868 = vpop.f32.mrf.mxu0
    %v3869 = vpop.f32.mrf.mxu0
    %3870 = vdwg.mxu0
    %vm3871 = vcmask 1041408
    %v3872 = vsel %vm3871, %v3537, 0.0
    %v3873 = vrot.slane %v3872, 4
    %v3874 = vadd.f32 %v3872, %v3873
    %v3875 = vrot.slane %v3874, 2
    %v3876 = vadd.f32 %v3874, %v3875
    %v3877 = vrot.slane %v3876, 1
    %v3878 = vadd.f32 %v3876, %v3877
    %v3879 = vsel %vm3871, %v3539, 0.0
    %v3880 = vrot.slane %v3879, 4
    %v3881 = vadd.f32 %v3879, %v3880
    %v3882 = vrot.slane %v3881, 2
    %v3883 = vadd.f32 %v3881, %v3882
    %v3884 = vrot.slane %v3883, 1
    %v3885 = vadd.f32 %v3883, %v3884
    %v3886 = vsel %vm3871, %v3865, 0.0
    %v3887 = vrot.slane %v3886, 4
    %v3888 = vadd.f32 %v3886, %v3887
    %v3889 = vrot.slane %v3888, 2
    %v3890 = vadd.f32 %v3888, %v3889
    %v3891 = vrot.slane %v3890, 1
    %v3892 = vadd.f32 %v3890, %v3891
    %v3893 = vsel %vm3871, %v3867, 0.0
    %v3894 = vrot.slane %v3893, 4
    %v3895 = vadd.f32 %v3893, %v3894
    %v3896 = vrot.slane %v3895, 2
    %v3897 = vadd.f32 %v3895, %v3896
    %v3898 = vrot.slane %v3897, 1
    %v3899 = vadd.f32 %v3897, %v3898
    %v3900 = vmul.f32 %v3878, 0.5
    %v3901 = vmul.f32 %v3885, 0.5
    %v3902 = vmul.f32 %v3892, 0.5
    %v3903 = vmul.f32 %v3899, 0.5
    %v3904 = vmul.f32 %v3537, %v3537
    %v3905 = vmul.f32 %v3539, %v3539
    %v3906 = vmul.f32 %v3865, %v3865
    %v3907 = vmul.f32 %v3867, %v3867
    %v3908 = vsel %vm3871, %v3904, 0.0
    %v3909 = vrot.slane %v3908, 4
    %v3910 = vadd.f32 %v3908, %v3909
    %v3911 = vrot.slane %v3910, 2
    %v3912 = vadd.f32 %v3910, %v3911
    %v3913 = vrot.slane %v3912, 1
    %v3914 = vadd.f32 %v3912, %v3913
    %v3915 = vsel %vm3871, %v3905, 0.0
    %v3916 = vrot.slane %v3915, 4
    %v3917 = vadd.f32 %v3915, %v3916
    %v3918 = vrot.slane %v3917, 2
    %v3919 = vadd.f32 %v3917, %v3918
    %v3920 = vrot.slane %v3919, 1
    %v3921 = vadd.f32 %v3919, %v3920
    %v3922 = vsel %vm3871, %v3906, 0.0
    %v3923 = vrot.slane %v3922, 4
    %v3924 = vadd.f32 %v3922, %v3923
    %v3925 = vrot.slane %v3924, 2
    %v3926 = vadd.f32 %v3924, %v3925
    %v3927 = vrot.slane %v3926, 1
    %v3928 = vadd.f32 %v3926, %v3927
    %v3929 = vsel %vm3871, %v3907, 0.0
    %v3930 = vrot.slane %v3929, 4
    %v3931 = vadd.f32 %v3929, %v3930
    %v3932 = vrot.slane %v3931, 2
    %v3933 = vadd.f32 %v3931, %v3932
    %v3934 = vrot.slane %v3933, 1
    %v3935 = vadd.f32 %v3933, %v3934
    %v3936 = vmul.f32 %v3914, 0.5
    %v3937 = vmul.f32 %v3921, 0.5
    %v3938 = vmul.f32 %v3928, 0.5
    %v3939 = vmul.f32 %v3935, 0.5
    %v3940 = vmul.f32 %v3900, %v3900
    %v3941 = vmul.f32 %v3901, %v3901
    %v3942 = vmul.f32 %v3902, %v3902
    %v3943 = vmul.f32 %v3903, %v3903
    %v3944 = vsub.f32 %v3936, %v3940
    %v3945 = vsub.f32 %v3937, %v3941
    %v3946 = vsub.f32 %v3938, %v3942
    %v3947 = vsub.f32 %v3939, %v3943
    %v3948 = vld [vmem:[%s2] sm:$0xf]
    %v3949 = vadd.f32 %v3944, 1e-05
    %v3950 = vadd.f32 %v3945, 1e-05
    %v3951 = vadd.f32 %v3946, 1e-05
    %v3952 = vadd.f32 %v3947, 1e-05
    %v3953 = vrsqrt.pop %v3949
    %v3954 = vrsqrt.pop %v3950
    %v3955 = vrsqrt.pop %v3951
    %v3956 = vrsqrt.pop %v3952
    %v3961 = vcombine.low %v3953, %v3954
    %v3962 = vcombine.low %v3955, %v3956
    %v3964 = vunpack.c.l.s4 1966171168
    %v3965 = vunpack.c.0.s8 %v3964
    %v3966 = vlaneseq
    %v3967 = vshrl.u32 %v3966, 7
    %v3968 = vsub.s32 %v3965, %v3967
    %v3969 = vrot.slane %v3961, %v3968
    %v3971 = vunpack.c.l.s4 1966171168
    %v3972 = vunpack.c.0.s8 %v3971
    %v3973 = vlaneseq
    %v3974 = vshrl.u32 %v3973, 7
    %v3975 = vsub.s32 %v3972, %v3974
    %v3976 = vrot.slane %v3962, %v3975
    %v3977 = vcombine.low %v3969, %v3976
    %v3979 = vunpack.c.l.s4 1966171168
    %v3980 = vunpack.c.0.s8 %v3979
    %v3981 = vlaneseq
    %v3982 = vshrl.u32 %v3981, 7
    %v3983 = vsub.s32 %v3980, %v3982
    %v3984 = vrot.slane %v3977, %v3983
    %v3986 = vmul.f32 %v3948, %v3984
    %v3987 = vld [vmem:[%s3] sm:$0xf]
    %v3989 = vlaneseq
    %v3990 = vshrl.u32 %v3989, 7
    %v3991 = vsub.s32 0, %v3990
    %v3992 = vrot.slane %v3986, %v3991
    %v3993 = vlaneseq
    %v3994 = vshrl.u32 %v3993, 7
    %v3995 = vsub.s32 1, %v3994
    %v3996 = vrot.slane %v3986, %v3995
    %v3997 = vlaneseq
    %v3998 = vshrl.u32 %v3997, 7
    %v3999 = vsub.s32 2, %v3998
    %v4000 = vrot.slane %v3986, %v3999
    %v4001 = vlaneseq
    %v4002 = vshrl.u32 %v4001, 7
    %v4003 = vsub.s32 3, %v4002
    %v4004 = vrot.slane %v3986, %v4003
    %v4009 = vmul.f32 %v3900, %v3992
    %v4010 = vmul.f32 %v3901, %v3996
    %v4011 = vmul.f32 %v3902, %v4000
    %v4012 = vmul.f32 %v3903, %v4004
    %v4017 = vcombine.low %v4009, %v4010
    %v4018 = vcombine.low %v4011, %v4012
    %v4020 = vunpack.c.l.s4 1966171168
    %v4021 = vunpack.c.0.s8 %v4020
    %v4022 = vlaneseq
    %v4023 = vshrl.u32 %v4022, 7
    %v4024 = vsub.s32 %v4021, %v4023
    %v4025 = vrot.slane %v4017, %v4024
    %v4027 = vunpack.c.l.s4 1966171168
    %v4028 = vunpack.c.0.s8 %v4027
    %v4029 = vlaneseq
    %v4030 = vshrl.u32 %v4029, 7
    %v4031 = vsub.s32 %v4028, %v4030
    %v4032 = vrot.slane %v4018, %v4031
    %v4033 = vcombine.low %v4025, %v4032
    %v4035 = vunpack.c.l.s4 1966171168
    %v4036 = vunpack.c.0.s8 %v4035
    %v4037 = vlaneseq
    %v4038 = vshrl.u32 %v4037, 7
    %v4039 = vsub.s32 %v4036, %v4038
    %v4040 = vrot.slane %v4033, %v4039
    %v4042 = vsub.f32 %v3987, %v4040
    %v4043 = vmul.f32 %v3537, %v3992
    %v4044 = vmul.f32 %v3539, %v3996
    %v4045 = vmul.f32 %v3865, %v4000
    %v4046 = vmul.f32 %v3867, %v4004
    %v4048 = vlaneseq
    %v4049 = vshrl.u32 %v4048, 7
    %v4050 = vsub.s32 0, %v4049
    %v4051 = vrot.slane %v4042, %v4050
    %v4052 = vlaneseq
    %v4053 = vshrl.u32 %v4052, 7
    %v4054 = vsub.s32 1, %v4053
    %v4055 = vrot.slane %v4042, %v4054
    %v4056 = vlaneseq
    %v4057 = vshrl.u32 %v4056, 7
    %v4058 = vsub.s32 2, %v4057
    %v4059 = vrot.slane %v4042, %v4058
    %v4060 = vlaneseq
    %v4061 = vshrl.u32 %v4060, 7
    %v4062 = vsub.s32 3, %v4061
    %v4063 = vrot.slane %v4042, %v4062
    %v4068 = vadd.f32 %v4043, %v4051
    %v4069 = vadd.f32 %v4044, %v4055
    %v4070 = vadd.f32 %v4045, %v4059
    %v4071 = vadd.f32 %v4046, %v4063
    %v4072 = vmax.f32 %v4068, 0.0
    %v4073 = vmax.f32 %v4069, 0.0
    %v4074 = vmax.f32 %v4070, 0.0
    %v4075 = vmax.f32 %v4071, 0.0
    %v4076 = vpack.c.bf16 %v4072, %v4072
    %v4077 = vpack.c.bf16 %v4073, %v4073
    %v4078 = vpack.c.bf16 %v4074, %v4074
    %v4079 = vpack.c.bf16 %v4075, %v4075
    %v4080 = vld [vmem:[%s4] sm:$0xf]
    %v4081 = vld [vmem:[%s4 + $0x4] sm:$0xf]
    %v4082 = vld [vmem:[%s4 + $0x8] sm:$0xf]
    %v4083 = vld [vmem:[%s4 + $0xc] sm:$0xf]
    %v4084 = vld [vmem:[%s4 + $0x10] sm:$0xf]
    %v4085 = vld [vmem:[%s4 + $0x14] sm:$0xf]
    %v4086 = vld [vmem:[%s4 + $0x18] sm:$0xf]
    %v4087 = vld [vmem:[%s4 + $0x1c] sm:$0xf]
    %v4088 = vld [vmem:[%s4 + $0x20] sm:$0xf]
    %v4089 = vld [vmem:[%s4 + $0x24] sm:$0xf]
    %v4090 = vld [vmem:[%s4 + $0x28] sm:$0xf]
    %v4091 = vld [vmem:[%s4 + $0x2c] sm:$0xf]
    %v4092 = vld [vmem:[%s4 + $0x30] sm:$0xf]
    %v4093 = vld [vmem:[%s4 + $0x34] sm:$0xf]
    %v4094 = vld [vmem:[%s4 + $0x38] sm:$0xf]
    %v4095 = vld [vmem:[%s4 + $0x3c] sm:$0xf]
    %v4096 = vld [vmem:[%s4 + $0x40] sm:$0xf]
    %v4097 = vld [vmem:[%s4 + $0x44] sm:$0xf]
    %v4098 = vld [vmem:[%s4 + $0x48] sm:$0xf]
    %v4099 = vld [vmem:[%s4 + $0x4c] sm:$0xf]
    %v4100 = vld [vmem:[%s4 + $0x50] sm:$0xf]
    %v4101 = vld [vmem:[%s4 + $0x54] sm:$0xf]
    %v4102 = vld [vmem:[%s4 + $0x58] sm:$0xf]
    %v4103 = vld [vmem:[%s4 + $0x5c] sm:$0xf]
    %v4104 = vld [vmem:[%s4 + $0x60] sm:$0xf]
    %v4105 = vld [vmem:[%s4 + $0x64] sm:$0xf]
    %v4106 = vld [vmem:[%s4 + $0x68] sm:$0xf]
    %v4107 = vld [vmem:[%s4 + $0x6c] sm:$0xf]
    %v4108 = vld [vmem:[%s4 + $0x70] sm:$0xf]
    %v4109 = vld [vmem:[%s4 + $0x74] sm:$0xf]
    %v4110 = vld [vmem:[%s4 + $0x78] sm:$0xf]
    %v4111 = vld [vmem:[%s4 + $0x7c] sm:$0xf]
    %v4112 = vld [vmem:[%s4 + $0x80] sm:$0xf]
    %v4113 = vld [vmem:[%s4 + $0x84] sm:$0xf]
    %v4114 = vld [vmem:[%s4 + $0x88] sm:$0xf]
    %v4115 = vld [vmem:[%s4 + $0x8c] sm:$0xf]
    %v4116 = vld [vmem:[%s4 + $0x90] sm:$0xf]
    %v4117 = vld [vmem:[%s4 + $0x94] sm:$0xf]
    %v4118 = vld [vmem:[%s4 + $0x98] sm:$0xf]
    %v4119 = vld [vmem:[%s4 + $0x9c] sm:$0xf]
    %v4120 = vld [vmem:[%s4 + $0xa0] sm:$0xf]
    %v4121 = vld [vmem:[%s4 + $0xa4] sm:$0xf]
    %v4122 = vld [vmem:[%s4 + $0xa8] sm:$0xf]
    %v4123 = vld [vmem:[%s4 + $0xac] sm:$0xf]
    %v4124 = vld [vmem:[%s4 + $0xb0] sm:$0xf]
    %v4125 = vld [vmem:[%s4 + $0xb4] sm:$0xf]
    %v4126 = vld [vmem:[%s4 + $0xb8] sm:$0xf]
    %v4127 = vld [vmem:[%s4 + $0xbc] sm:$0xf]
    %v4128 = vld [vmem:[%s4 + $0xc0] sm:$0xf]
    %v4129 = vld [vmem:[%s4 + $0xc4] sm:$0xf]
    %v4130 = vld [vmem:[%s4 + $0xc8] sm:$0xf]
    %v4131 = vld [vmem:[%s4 + $0xcc] sm:$0xf]
    %v4132 = vld [vmem:[%s4 + $0xd0] sm:$0xf]
    %v4133 = vld [vmem:[%s4 + $0xd4] sm:$0xf]
    %v4134 = vld [vmem:[%s4 + $0xd8] sm:$0xf]
    %v4135 = vld [vmem:[%s4 + $0xdc] sm:$0xf]
    %v4136 = vld [vmem:[%s4 + $0xe0] sm:$0xf]
    %v4137 = vld [vmem:[%s4 + $0xe4] sm:$0xf]
    %v4138 = vld [vmem:[%s4 + $0xe8] sm:$0xf]
    %v4139 = vld [vmem:[%s4 + $0xec] sm:$0xf]
    %v4140 = vld [vmem:[%s4 + $0xf0] sm:$0xf]
    %v4141 = vld [vmem:[%s4 + $0xf4] sm:$0xf]
    %v4142 = vld [vmem:[%s4 + $0xf8] sm:$0xf]
    %v4143 = vld [vmem:[%s4 + $0xfc] sm:$0xf]
    %v4144 = vld [vmem:[%s5] sm:$0x1]
    %v4146 = vlaneseq
    %v4147 = vshrl.u32 %v4146, 7
    %v4148 = vsub.s32 0, %v4147
    %v4149 = vrot.slane %v4144, %v4148
    %v4215 = vunpack.c.l.b16 %v4080
    %v4216 = vunpack.c.l.b16 %v4081
    %v4217 = vunpack.c.l.b16 %v4082
    %v4218 = vunpack.c.l.b16 %v4083
    %v4219 = vunpack.c.l.b16 %v4084
    %v4220 = vunpack.c.l.b16 %v4085
    %v4221 = vunpack.c.l.b16 %v4086
    %v4222 = vunpack.c.l.b16 %v4087
    %v4223 = vunpack.c.l.b16 %v4088
    %v4224 = vunpack.c.l.b16 %v4089
    %v4225 = vunpack.c.l.b16 %v4090
    %v4226 = vunpack.c.l.b16 %v4091
    %v4227 = vunpack.c.l.b16 %v4092
    %v4228 = vunpack.c.l.b16 %v4093
    %v4229 = vunpack.c.l.b16 %v4094
    %v4230 = vunpack.c.l.b16 %v4095
    %v4231 = vunpack.c.l.b16 %v4096
    %v4232 = vunpack.c.l.b16 %v4097
    %v4233 = vunpack.c.l.b16 %v4098
    %v4234 = vunpack.c.l.b16 %v4099
    %v4235 = vunpack.c.l.b16 %v4100
    %v4236 = vunpack.c.l.b16 %v4101
    %v4237 = vunpack.c.l.b16 %v4102
    %v4238 = vunpack.c.l.b16 %v4103
    %v4239 = vunpack.c.l.b16 %v4104
    %v4240 = vunpack.c.l.b16 %v4105
    %v4241 = vunpack.c.l.b16 %v4106
    %v4242 = vunpack.c.l.b16 %v4107
    %v4243 = vunpack.c.l.b16 %v4108
    %v4244 = vunpack.c.l.b16 %v4109
    %v4245 = vunpack.c.l.b16 %v4110
    %v4246 = vunpack.c.l.b16 %v4111
    %v4247 = vunpack.c.l.b16 %v4112
    %v4248 = vunpack.c.l.b16 %v4113
    %v4249 = vunpack.c.l.b16 %v4114
    %v4250 = vunpack.c.l.b16 %v4115
    %v4251 = vunpack.c.l.b16 %v4116
    %v4252 = vunpack.c.l.b16 %v4117
    %v4253 = vunpack.c.l.b16 %v4118
    %v4254 = vunpack.c.l.b16 %v4119
    %v4255 = vunpack.c.l.b16 %v4120
    %v4256 = vunpack.c.l.b16 %v4121
    %v4257 = vunpack.c.l.b16 %v4122
    %v4258 = vunpack.c.l.b16 %v4123
    %v4259 = vunpack.c.l.b16 %v4124
    %v4260 = vunpack.c.l.b16 %v4125
    %v4261 = vunpack.c.l.b16 %v4126
    %v4262 = vunpack.c.l.b16 %v4127
    %v4263 = vunpack.c.l.b16 %v4128
    %v4264 = vunpack.c.l.b16 %v4129
    %v4265 = vunpack.c.l.b16 %v4130
    %v4266 = vunpack.c.l.b16 %v4131
    %v4267 = vunpack.c.l.b16 %v4132
    %v4268 = vunpack.c.l.b16 %v4133
    %v4269 = vunpack.c.l.b16 %v4134
    %v4270 = vunpack.c.l.b16 %v4135
    %v4271 = vunpack.c.l.b16 %v4136
    %v4272 = vunpack.c.l.b16 %v4137
    %v4273 = vunpack.c.l.b16 %v4138
    %v4274 = vunpack.c.l.b16 %v4139
    %v4275 = vunpack.c.l.b16 %v4140
    %v4276 = vunpack.c.l.b16 %v4141
    %v4277 = vunpack.c.l.b16 %v4142
    %v4278 = vunpack.c.l.b16 %v4143
    %v4279 = vpack.c.b16 %v4216, %v4215
    %v4280 = vpack.c.b16 %v4218, %v4217
    %v4281 = vpack.c.b16 %v4220, %v4219
    %v4282 = vpack.c.b16 %v4222, %v4221
    %v4283 = vpack.c.b16 %v4224, %v4223
    %v4284 = vpack.c.b16 %v4226, %v4225
    %v4285 = vpack.c.b16 %v4228, %v4227
    %v4286 = vpack.c.b16 %v4230, %v4229
    %v4287 = vpack.c.b16 %v4232, %v4231
    %v4288 = vpack.c.b16 %v4234, %v4233
    %v4289 = vpack.c.b16 %v4236, %v4235
    %v4290 = vpack.c.b16 %v4238, %v4237
    %v4291 = vpack.c.b16 %v4240, %v4239
    %v4292 = vpack.c.b16 %v4242, %v4241
    %v4293 = vpack.c.b16 %v4244, %v4243
    %v4294 = vpack.c.b16 %v4246, %v4245
    %v4295 = vpack.c.b16 %v4248, %v4247
    %v4296 = vpack.c.b16 %v4250, %v4249
    %v4297 = vpack.c.b16 %v4252, %v4251
    %v4298 = vpack.c.b16 %v4254, %v4253
    %v4299 = vpack.c.b16 %v4256, %v4255
    %v4300 = vpack.c.b16 %v4258, %v4257
    %v4301 = vpack.c.b16 %v4260, %v4259
    %v4302 = vpack.c.b16 %v4262, %v4261
    %v4303 = vpack.c.b16 %v4264, %v4263
    %v4304 = vpack.c.b16 %v4266, %v4265
    %v4305 = vpack.c.b16 %v4268, %v4267
    %v4306 = vpack.c.b16 %v4270, %v4269
    %v4307 = vpack.c.b16 %v4272, %v4271
    %v4308 = vpack.c.b16 %v4274, %v4273
    %v4309 = vpack.c.b16 %v4276, %v4275
    %v4310 = vpack.c.b16 %v4278, %v4277
    %4343 = vmatprep.subr.bf16.mxu0 0
    %4344 = vmatpush1.bf16.msra.mxu0 %v4286
    %4345 = vmatprep.subr.bf16.mxu0 0
    %4346 = vmatpush1.bf16.msra.mxu0 %v4285
    %4347 = vmatprep.subr.bf16.mxu0 0
    %4348 = vmatpush1.bf16.msra.mxu0 %v4284
    %4349 = vmatprep.subr.bf16.mxu0 0
    %4350 = vmatpush1.bf16.msra.mxu0 %v4283
    %4351 = vmatprep.subr.bf16.mxu0 0
    %4352 = vmatpush1.bf16.msra.mxu0 %v4282
    %4353 = vmatprep.subr.bf16.mxu0 0
    %4354 = vmatpush1.bf16.msra.mxu0 %v4281
    %4355 = vmatprep.subr.bf16.mxu0 0
    %4356 = vmatpush1.bf16.msra.mxu0 %v4280
    %4357 = vmatprep.subr.bf16.mxu0 0
    %4358 = vmatpush1.bf16.msra.mxu0 %v4279
    %4359 = vmatprep.subr.bf16.mxu0 0
    %4360 = vmatpush2.bf16.msra.mxu0 %v4294
    %4361 = vmatprep.subr.bf16.mxu0 0
    %4362 = vmatpush2.bf16.msra.mxu0 %v4293
    %4363 = vmatprep.subr.bf16.mxu0 0
    %4364 = vmatpush2.bf16.msra.mxu0 %v4292
    %4365 = vmatprep.subr.bf16.mxu0 0
    %4366 = vmatpush2.bf16.msra.mxu0 %v4291
    %4367 = vmatprep.subr.bf16.mxu0 0
    %4368 = vmatpush2.bf16.msra.mxu0 %v4290
    %4369 = vmatprep.subr.bf16.mxu0 0
    %4370 = vmatpush2.bf16.msra.mxu0 %v4289
    %4371 = vmatprep.subr.bf16.mxu0 0
    %4372 = vmatpush2.bf16.msra.mxu0 %v4288
    %4373 = vmatprep.subr.bf16.mxu0 0
    %4374 = vmatpush2.bf16.msra.mxu0 %v4287
    %4375 = vmatprep.mubr.bf16.mxu0 %v4077
    %4376 = vmatmul.mubr.bf16.gmra.mxu0 %v4076
    %v4377 = vpop.f32.mrf.mxu0
    %v4378 = vadd.f32 %v4149, %v4377
    %v4379 = vpop.f32.mrf.mxu0
    %v4380 = vpop.f32.mrf.mxu0
    %v4381 = vpop.f32.mrf.mxu0
    %4382 = vdwg.mxu0
    %4383 = vmatprep.subr.bf16.mxu0 0
    %4384 = vmatpush1.bf16.msra.mxu0 %v4302
    %4385 = vmatprep.subr.bf16.mxu0 0
    %4386 = vmatpush1.bf16.msra.mxu0 %v4301
    %4387 = vmatprep.subr.bf16.mxu0 0
    %4388 = vmatpush1.bf16.msra.mxu0 %v4300
    %4389 = vmatprep.subr.bf16.mxu0 0
    %4390 = vmatpush1.bf16.msra.mxu0 %v4299
    %4391 = vmatprep.subr.bf16.mxu0 0
    %4392 = vmatpush1.bf16.msra.mxu0 %v4298
    %4393 = vmatprep.subr.bf16.mxu0 0
    %4394 = vmatpush1.bf16.msra.mxu0 %v4297
    %4395 = vmatprep.subr.bf16.mxu0 0
    %4396 = vmatpush1.bf16.msra.mxu0 %v4296
    %4397 = vmatprep.subr.bf16.mxu0 0
    %4398 = vmatpush1.bf16.msra.mxu0 %v4295
    %4399 = vmatprep.subr.bf16.mxu0 0
    %4400 = vmatpush2.bf16.msra.mxu0 %v4310
    %4401 = vmatprep.subr.bf16.mxu0 0
    %4402 = vmatpush2.bf16.msra.mxu0 %v4309
    %4403 = vmatprep.subr.bf16.mxu0 0
    %4404 = vmatpush2.bf16.msra.mxu0 %v4308
    %4405 = vmatprep.subr.bf16.mxu0 0
    %4406 = vmatpush2.bf16.msra.mxu0 %v4307
    %4407 = vmatprep.subr.bf16.mxu0 0
    %4408 = vmatpush2.bf16.msra.mxu0 %v4306
    %4409 = vmatprep.subr.bf16.mxu0 0
    %4410 = vmatpush2.bf16.msra.mxu0 %v4305
    %4411 = vmatprep.subr.bf16.mxu0 0
    %4412 = vmatpush2.bf16.msra.mxu0 %v4304
    %4413 = vmatprep.subr.bf16.mxu0 0
    %4414 = vmatpush2.bf16.msra.mxu0 %v4303
    %4415 = vmatprep.mubr.bf16.mxu0 %v4079
    %4416 = vmatmul.mubr.bf16.gmra.mxu0 %v4078
    %v4417 = vpop.f32.mrf.mxu0
    %v4418 = vadd.f32 %v4378, %v4417
    %v4419 = vpop.f32.mrf.mxu0
    %v4420 = vpop.f32.mrf.mxu0
    %v4421 = vpop.f32.mrf.mxu0
    %4422 = vdwg.mxu0
    %v4423 = vmul.f32 %v4418, %v4418
    %v4424 = vsel %vm3871, %v4423, 0.0
    %4425 = vadd.xlane.f32.xlu0 %v4424
    %v4426 = vpop.xlane.xlu0 %4425
    %v4427 = vmax.f32 %v4426, 1e-24
    %v4428 = vrsqrt.pop %v4427
    %v4429 = vmul.f32 %v4418, %v4428
    %4430 = vst [vmem:[#allocation2] sm:$0x3] %v4429
    // Predicated region
    $region26: #{simclr_forward.3} parent=1 // pred_check
      _
    $region27: #{simclr_forward.3} parent=1 // pred_check_branch
      %4432 = sbr.rel (0) target = $region29
    $region28: #{simclr_forward.3} parent=1 // pred_region
      %s4434 = ssub.s32 32, 32
      %4435 = vsyncadd [#allocation3], %s4434
      %s4437 = sshll.u32 [#allocation2], 4
      %s4438 = int_to_ptr.vmem [resolvable:$true] %s4437
      %4440 = dma.vmem_to_hbm [thread:$0]  %s4438, 32, %s6, [#allocation3]
    $region29: #{simclr_forward.3} parent=1 // pred_fallthru
      _
    // Predicated region
    $region30: #{simclr_forward.3} parent=1 // pred_check
      _
    $region31: #{simclr_forward.3} parent=1 // pred_check_branch
      %4442 = sbr.rel (0) target = $region33
    $region32: #{simclr_forward.3} parent=1 // pred_region
      %4443 = dma.done [#allocation3], 32
    $region33: #{simclr_forward.3} parent=1 // pred_fallthru
      _
    %4444 = vsyncpa [#allocation3], 1

</llo_original>
